<compile_context>
chip_gen: v7x
topology: tpu7x:2x2x1
jax: 0.10.0
libtpu: 0.0.40
codegen_flags: <defaults>
</compile_context>

<pallas_src>
import functools
import math
from typing import NamedTuple

import jax
import jax.numpy as jnp
from jax import lax
from jax.experimental import pallas as pl
from jax.experimental.pallas import tpu as pltpu

_MAX_BATCH_BLOCK = 128   # batch rows per grid step (per-step VMEM footprint ~10 MB)


class _Meta(NamedTuple):
    n_act: int   # number of actions (A)
    n_out: int   # lane-padded kernel output columns (>= 1 + A)


# --------------------------------------------------------------------------
# Fused Pallas kernel: conv1 + conv2 + conv3 + dueling head
# --------------------------------------------------------------------------
def _fused_dqn_kernel(x_ref, w1_ref, b1_ref, w2_ref, b2_ref, w3_ref, b3_ref,
                      wh1_ref, bh1_ref, wh2_ref, bh2_ref, o_ref, *, epi_dtype):
    f32, bf16 = jnp.float32, jnp.bfloat16
    nb = x_ref.shape[0]
    hp, wp, c1 = x_ref.shape[2], x_ref.shape[3], x_ref.shape[4]
    oh2p, ow2p = hp - 1, wp - 1          # conv1 phase-slab spatial extent (= oh2+1, ow2+1)
    oh2, ow2 = oh2p - 1, ow2p - 1        # conv2 output spatial size
    oh3, ow3 = oh2 - 2, ow2 - 2          # conv3 output spatial size
    o1, o2, o3 = w1_ref.shape[-1], w2_ref.shape[-1], w3_ref.shape[-1]

    def act(acc_f32, b_ref):
        # bias + ReLU epilogue; result cast to bf16 for the next MXU matmul.
        # f32 epilogue on v5-and-older (no bf16 VALU), bf16 epilogue on v6e/v7x.
        if epi_dtype is f32:
            return jnp.maximum(acc_f32 + b_ref[...], 0.0).astype(bf16)
        return jnp.maximum(acc_f32.astype(epi_dtype) + b_ref[...].astype(epi_dtype),
                           0.0).astype(bf16)

    x = x_ref[...]                       # (nb, 4, hp, wp, c1): parity-split s2d input

    # ---- conv1 (8x8 / stride 4): ONE K=4*c1 matmul covering all 4 output phases ----
    # Phase (rh, rw) holds conv1 outputs at rows 2i+rh, cols 2j+rw -- exactly the
    # layout conv2's stride-2 window consumes, so no relayout is needed in between.
    m1 = nb * oh2p * ow2p
    slabs = []
    for rh in range(2):
        for rw in range(2):
            taps = []
            for p in range(2):
                for q in range(2):
                    u, v = rh + p, rw + q
                    taps.append(x[:, 2 * (u & 1) + (v & 1),
                                  (u >> 1):(u >> 1) + oh2p,
                                  (v >> 1):(v >> 1) + ow2p, :])
            slabs.append(jnp.concatenate(taps, axis=-1).reshape(m1, 4 * c1))
    x1 = jnp.concatenate(slabs, axis=0)                         # (4*m1, 4*c1)
    a1 = act(jnp.dot(x1, w1_ref[...], preferred_element_type=f32), b1_ref)
    a1 = a1.reshape(4, nb, oh2p, ow2p, o1)                      # phase-major conv1 out

    # ---- conv2 (4x4 / stride 2): ONE K=16*o1 matmul ---------------------------------
    m2 = nb * oh2 * ow2
    taps = []
    for dy in range(4):
        for dx in range(4):
            ph = 2 * (dy & 1) + (dx & 1)
            taps.append(a1[ph, :, (dy >> 1):(dy >> 1) + oh2,
                           (dx >> 1):(dx >> 1) + ow2, :])
    x2 = jnp.concatenate(taps, axis=-1).reshape(m2, 16 * o1)
    a2 = act(jnp.dot(x2, w2_ref[...], preferred_element_type=f32), b2_ref)
    a2 = a2.reshape(nb, oh2, ow2, o2)

    # ---- conv3 (3x3 / stride 1): ONE K=9*o2 matmul ----------------------------------
    m3 = nb * oh3 * ow3
    taps = [a2[:, i:i + oh3, j:j + ow3, :] for i in range(3) for j in range(3)]
    x3 = jnp.concatenate(taps, axis=-1).reshape(m3, 9 * o2)
    feats = act(jnp.dot(x3, w3_ref[...], preferred_element_type=f32), b3_ref)
    feats = feats.reshape(nb, oh3 * ow3 * o3)     # NHWC flatten (head weights permuted)

    # ---- dueling head: value & advantage streams fused into two matmuls -------------
    hid = act(jnp.dot(feats, wh1_ref[...], preferred_element_type=f32), bh1_ref)
    out = jnp.dot(hid, wh2_ref[...], preferred_element_type=f32) + bh2_ref[...]
    o_ref[...] = out.astype(o_ref.dtype)          # col 0 = value, cols 1..A = advantages


# --------------------------------------------------------------------------
# Wrapper helpers
# --------------------------------------------------------------------------
def _round_up(v, m):
    return ((v + m - 1) // m) * m


def _default_epilogue_dtype():
    """bf16 bias/ReLU epilogues on chips with a bf16 VPU (v6e/v7x), f32 otherwise."""
    try:
        kind = jax.devices()[0].device_kind.lower()
    except Exception:
        return jnp.float32
    if any(tag in kind for tag in ("v2", "v3", "v4", "v5")):
        return jnp.float32
    return jnp.bfloat16


def _pick_batch_block(b):
    """Rows per grid step (multiple of 8) and padded batch size.

    Small batches are only padded to the next multiple of 8 (not 64), and the grid
    is forced to >= 2 steps whenever there are >= 16 rows so that the "parallel"
    batch axis can be split across v7x's two TensorCores."""
    b8 = _round_up(b, 8)
    steps = -(-b8 // min(_MAX_BATCH_BLOCK, b8))
    if steps < 2 and b8 >= 16:
        steps = 2
    nb = _round_up(-(-b8 // steps), 8)
    return nb, nb * steps


def _relayout_input(x_nchw, oh2, ow2):
    """NCHW f32 -> bf16, stride-4 space-to-depth, split into the 4 conv2 parity slabs.

    Output (N, 4, oh2+2, ow2+2, 16*C); parity index = 2*row_parity + col_parity.
    One XLA-side relayout (~1x activation bytes); the kernel then needs no strided
    slicing at all."""
    n, c, h, w = x_nchw.shape
    oh1, ow1 = (h - 8) // 4 + 1, (w - 8) // 4 + 1
    hu, wu = 4 * oh1 + 4, 4 * ow1 + 4            # input extent the conv stack reads
    x = x_nchw[:, :, :hu, :wu].astype(jnp.bfloat16)
    x = x.reshape(n, c, hu // 4, 4, wu // 4, 4)
    x = jnp.transpose(x, (0, 2, 4, 3, 5, 1)).reshape(n, hu // 4, wu // 4, 16 * c)
    hp, wp = oh2 + 2, ow2 + 2
    slabs = []
    for a in range(2):
        for b2 in range(2):
            sl = x[:, a::2, b2::2, :][:, :hp, :wp, :]
            pad_h, pad_w = hp - sl.shape[1], wp - sl.shape[2]
            if pad_h or pad_w:                   # odd parity can be 1 short; never read
                sl = jnp.pad(sl, ((0, 0), (0, pad_h), (0, pad_w), (0, 0)))
            slabs.append(sl)
    return jnp.stack(slabs, axis=1)              # (N, 4, hp, wp, 16*C)


# --------------------------------------------------------------------------
# Forward pass (input relayout, single pallas_call, global-mean epilogue)
# --------------------------------------------------------------------------
def conv_dueling_dqn_forward(x_nchw, weights, *, meta, epilogue_dtype=None):
    """Forward pass matching ConvDuelingDQN.forward (NCHW float32 input)."""
    if epilogue_dtype is None:
        epilogue_dtype = _default_epilogue_dtype()
    b, _, h, w = x_nchw.shape
    oh1, ow1 = (h - 8) // 4 + 1, (w - 8) // 4 + 1
    oh2, ow2 = (oh1 - 4) // 2 + 1, (ow1 - 4) // 2 + 1
    oh3, ow3 = oh2 - 2, ow2 - 2

    x = _relayout_input(x_nchw, oh2, ow2)        # (b, 4, oh2+2, ow2+2, 16*C)

    nb, bp = _pick_batch_block(b)
    if bp != b:
        x = jnp.pad(x, ((0, bp - b),) + ((0, 0),) * (x.ndim - 1))

    args = [x] + [weights[k] for k in
                  ("w1", "b1", "w2", "b2", "w3", "b3", "wh1", "bh1", "wh2", "bh2")]

    def _full_spec(arr):
        r = arr.ndim
        return pl.BlockSpec(arr.shape, lambda i, r=r: (0,) * r)

    in_specs = [pl.BlockSpec((nb,) + x.shape[1:], lambda i: (i, 0, 0, 0, 0))]
    in_specs += [_full_spec(a) for a in args[1:]]

    c1 = x.shape[-1]
    o1 = weights["w1"].shape[-1]
    o2 = weights["w2"].shape[-1]
    o3 = weights["w3"].shape[-1]
    hidden = weights["wh1"].shape[1]
    n_out = weights["wh2"].shape[1]
    feat = o3 * oh3 * ow3
    flops = 2 * bp * (4 * (oh2 + 1) * (ow2 + 1) * (4 * c1) * o1
                      + oh2 * ow2 * (16 * o1) * o2
                      + oh3 * ow3 * (9 * o2) * o3
                      + feat * hidden + hidden * n_out)
    bytes_accessed = int(sum(a.size * a.dtype.itemsize for a in args)
                         + bp * n_out * 4)

    out = pl.pallas_call(
        functools.partial(_fused_dqn_kernel, epi_dtype=epilogue_dtype),
        out_shape=jax.ShapeDtypeStruct((bp, n_out), jnp.float32),
        grid=(bp // nb,),
        in_specs=in_specs,
        out_specs=pl.BlockSpec((nb, n_out), lambda i: (i, 0)),
        compiler_params=pltpu.CompilerParams(
            dimension_semantics=("parallel",),
            vmem_limit_bytes=32 * 1024 * 1024),   # > v5e's 16 MiB default, <= all gens
        cost_estimate=pl.CostEstimate(flops=flops, transcendentals=0,
                                      bytes_accessed=bytes_accessed),
    )(*args)

    va = out[:b]
    v, a = va[:, :1], va[:, 1:1 + meta.n_act]
    # PyTorch: qvals = values + (advantages - advantages.mean()) -> GLOBAL mean over
    # (batch, actions).  Computed here, outside the batch-tiled kernel, so tiling the
    # batch across grid steps / cores can never silently make it a per-tile mean.
    return v + (a - jnp.mean(a))


# --------------------------------------------------------------------------
# One-time weight re-layout (hoisted out of the forward pass)
# --------------------------------------------------------------------------
def prepare_params(params, input_dim):
    cin, h, w = input_dim
    oh1, ow1 = (h - 8) // 4 + 1, (w - 8) // 4 + 1
    oh2, ow2 = (oh1 - 4) // 2 + 1, (ow1 - 4) // 2 + 1
    oh3, ow3 = oh2 - 2, ow2 - 2
    n_act = params["a2_w"].shape[0]
    bf16, f32 = jnp.bfloat16, jnp.float32

    # conv1: fold the stride-4 space-to-depth into channels and K-concat the 2x2 taps
    # -> one (4*16*Cin, 32) im2col weight.  Column order (p, q, rh, rw, cin) matches
    # the kernel's tap/lane concatenation order.
    o1 = params["conv1_w"].shape[0]
    w1 = params["conv1_w"].reshape(o1, cin, 2, 4, 2, 4)      # (O, I, p, rh, q, rw)
    w1 = jnp.transpose(w1, (2, 4, 3, 5, 1, 0))               # (p, q, rh, rw, I, O)
    w1 = w1.reshape(4 * 16 * cin, o1).astype(bf16)           # (256, 32) for Cin=4

    # conv2 / conv3: plain HWIO im2col weights, K-concatenated over all taps.
    def im2col_w(w_oihw):
        o, i, kh, kw = w_oihw.shape
        return jnp.transpose(w_oihw, (2, 3, 1, 0)).reshape(kh * kw * i, o).astype(bf16)

    w2 = im2col_w(params["conv2_w"])                         # (512, 64)
    w3 = im2col_w(params["conv3_w"])                         # (576, 64)
    b1 = params["conv1_b"].reshape(1, -1).astype(f32)
    b2 = params["conv2_b"].reshape(1, -1).astype(f32)
    b3 = params["conv3_b"].reshape(1, -1).astype(f32)

    # Head layer 1: permute PyTorch NCHW-flatten columns (c, h, w) to the kernel's
    # NHWC flatten order (h, w, c) and fuse the two streams -> (F, 256).
    o3 = params["conv3_w"].shape[0]
    feat = o3 * oh3 * ow3

    def perm_fc(w_out_in):
        return (w_out_in.reshape(-1, o3, oh3, ow3)
                .transpose(0, 2, 3, 1).reshape(-1, feat).T)

    wh1 = jnp.concatenate([perm_fc(params["v1_w"]), perm_fc(params["a1_w"])],
                          axis=1).astype(bf16)               # (F, 256)
    bh1 = jnp.concatenate([params["v1_b"], params["a1_b"]]).reshape(1, -1).astype(f32)

    # Head layer 2: block matrix, lane-padded so the kernel output store is unmasked.
    hidden2 = wh1.shape[1]                                   # 256
    n_out = max(128, ((1 + n_act + 127) // 128) * 128)
    wh2 = jnp.zeros((hidden2, n_out), f32)
    wh2 = wh2.at[:hidden2 // 2, 0:1].set(params["v2_w"].T)
    wh2 = wh2.at[hidden2 // 2:, 1:1 + n_act].set(params["a2_w"].T)
    bh2 = jnp.zeros((1, n_out), f32)
    bh2 = bh2.at[0, 0].set(params["v2_b"][0])
    bh2 = bh2.at[0, 1:1 + n_act].set(params["a2_b"])

    weights = dict(w1=w1, b1=b1, w2=w2, b2=b2, w3=w3, b3=b3,
                   wh1=wh1, bh1=bh1, wh2=wh2.astype(bf16), bh2=bh2)
    return weights, _Meta(n_act=n_act, n_out=n_out)


# --------------------------------------------------------------------------
# Deterministic parameter init (PyTorch-default-style uniform bounds)
# --------------------------------------------------------------------------
def _uniform(key, shape, fan_in):
    bound = 1.0 / math.sqrt(fan_in)
    return jax.random.uniform(key, shape, jnp.float32, -bound, bound)


def init_params(key, in_channels, fc_input_dim, output_dim):
    ks = jax.random.split(key, 14)
    p = {}
    p["conv1_w"] = _uniform(ks[0], (32, in_channels, 8, 8), in_channels * 8 * 8)
    p["conv1_b"] = _uniform(ks[1], (32,), in_channels * 8 * 8)
    p["conv2_w"] = _uniform(ks[2], (64, 32, 4, 4), 32 * 4 * 4)
    p["conv2_b"] = _uniform(ks[3], (64,), 32 * 4 * 4)
    p["conv3_w"] = _uniform(ks[4], (64, 64, 3, 3), 64 * 3 * 3)
    p["conv3_b"] = _uniform(ks[5], (64,), 64 * 3 * 3)
    p["v1_w"] = _uniform(ks[6], (128, fc_input_dim), fc_input_dim)
    p["v1_b"] = _uniform(ks[7], (128,), fc_input_dim)
    p["v2_w"] = _uniform(ks[8], (1, 128), 128)
    p["v2_b"] = _uniform(ks[9], (1,), 128)
    p["a1_w"] = _uniform(ks[10], (128, fc_input_dim), fc_input_dim)
    p["a1_b"] = _uniform(ks[11], (128,), fc_input_dim)
    p["a2_w"] = _uniform(ks[12], (output_dim, 128), 128)
    p["a2_b"] = _uniform(ks[13], (output_dim,), 128)
    return p


# --------------------------------------------------------------------------
# Pure-JAX reference (silent correctness check)
# --------------------------------------------------------------------------
def reference_forward(x_nchw, params, compute_dtype=jnp.float32):
    """XLA reference.  compute_dtype=bfloat16 mirrors the kernel's mixed precision
    (bf16 matmul operands, f32 accumulate)."""
    cd = compute_dtype
    x = jnp.transpose(x_nchw, (0, 2, 3, 1)).astype(cd)
    for w_key, b_key, s in (("conv1_w", "conv1_b", 4),
                            ("conv2_w", "conv2_b", 2),
                            ("conv3_w", "conv3_b", 1)):
        wk = jnp.transpose(params[w_key], (2, 3, 1, 0)).astype(cd)   # OIHW -> HWIO
        y = lax.conv_general_dilated(
            x, wk, (s, s), "VALID",
            dimension_numbers=("NHWC", "HWIO", "NHWC"),
            preferred_element_type=jnp.float32)
        x = jnp.maximum(y + params[b_key], 0.0).astype(cd)
    feats = jnp.transpose(x, (0, 3, 1, 2)).reshape(x.shape[0], -1)

    def linear(h, wk, bk):
        return jnp.dot(h.astype(cd), params[wk].T.astype(cd),
                       preferred_element_type=jnp.float32) + params[bk]

    hv = jnp.maximum(linear(feats, "v1_w", "v1_b"), 0.0).astype(cd)
    v = linear(hv, "v2_w", "v2_b")
    ha = jnp.maximum(linear(feats, "a1_w", "a1_b"), 0.0).astype(cd)
    a = linear(ha, "a2_w", "a2_b")
    return v + (a - jnp.mean(a))


# --------------------------------------------------------------------------
if __name__ == "__main__":
    # Conv stack (k8/s4, k4/s2, k3/s1) needs spatial >= 36; 36x36 -> 1x1x64 features.
    input_dim = (4, 36, 36)        # (C, H, W)
    output_dim = 6
    batch = 2
    oh = ((36 - 8) // 4 + 1 - 4) // 2 + 1 - 2        # conv3 output spatial size (=1)
    fc_input_dim = 64 * oh * oh

    key = jax.random.PRNGKey(0)
    k_param, k_x = jax.random.split(key)
    params = init_params(k_param, input_dim[0], fc_input_dim, output_dim)
    x = jax.random.normal(k_x, (batch,) + input_dim, dtype=jnp.float32)

    weights, meta = prepare_params(params, input_dim)
    epi = _default_epilogue_dtype()
    fwd = jax.jit(functools.partial(conv_dueling_dqn_forward, meta=meta,
                                    epilogue_dtype=epi))

    qvals = jax.block_until_ready(fwd(x, weights))
    assert qvals.shape == (batch, output_dim)

    # Check vs a reference that mirrors the kernel's bf16-operand / f32-accumulate
    # mixed precision (slightly wider tolerance when the bf16 epilogue is active).
    tol = 5e-3 if epi == jnp.float32 else 2.5e-2
    ref_bf16 = jax.block_until_ready(reference_forward(x, params, jnp.bfloat16))
    assert bool(jnp.allclose(qvals, ref_bf16, atol=tol, rtol=tol)), "mismatch vs bf16 reference"

    # Sanity check vs the true f32 module semantics (bf16-level tolerance).
    ref_f32 = jax.block_until_ready(reference_forward(x, params, jnp.float32))
    assert bool(jnp.allclose(qvals, ref_f32, atol=5e-2, rtol=5e-2)), "mismatch vs f32 reference"

    print("KERNEL_OK")
</pallas_src>

<mosaic_0001>
module attributes {stable_mosaic.version = 11 : i64} {
  func.func @_fused_dqn_kernel(%arg0: i32, %arg1: memref<8x4x5x5x64xbf16, #tpu.memory_space<vmem>>, %arg2: memref<256x32xbf16, #tpu.memory_space<vmem>>, %arg3: memref<1x32xf32, #tpu.memory_space<vmem>>, %arg4: memref<512x64xbf16, #tpu.memory_space<vmem>>, %arg5: memref<1x64xf32, #tpu.memory_space<vmem>>, %arg6: memref<576x64xbf16, #tpu.memory_space<vmem>>, %arg7: memref<1x64xf32, #tpu.memory_space<vmem>>, %arg8: memref<64x256xbf16, #tpu.memory_space<vmem>>, %arg9: memref<1x256xf32, #tpu.memory_space<vmem>>, %arg10: memref<256x128xbf16, #tpu.memory_space<vmem>>, %arg11: memref<1x128xf32, #tpu.memory_space<vmem>>, %arg12: memref<8x128xf32, #tpu.memory_space<vmem>>) attributes {dimension_semantics = [#tpu.dimension_semantics<parallel>], iteration_bounds = array<i64: 1>, scalar_prefetch = 0 : i64, scratch_operands = 0 : i64, tpu.core_type = #tpu.core_type<tc>, window_params = [{transform_indices = @transform_0, window_bounds = array<i64: 8, 4, 5, 5, 64>}, {pipeline_mode = #tpu.pipeline_mode<synchronous>, transform_indices = @transform_1, window_bounds = array<i64: 256, 32>}, {pipeline_mode = #tpu.pipeline_mode<synchronous>, transform_indices = @transform_2, window_bounds = array<i64: 1, 32>}, {pipeline_mode = #tpu.pipeline_mode<synchronous>, transform_indices = @transform_3, window_bounds = array<i64: 512, 64>}, {pipeline_mode = #tpu.pipeline_mode<synchronous>, transform_indices = @transform_4, window_bounds = array<i64: 1, 64>}, {pipeline_mode = #tpu.pipeline_mode<synchronous>, transform_indices = @transform_5, window_bounds = array<i64: 576, 64>}, {pipeline_mode = #tpu.pipeline_mode<synchronous>, transform_indices = @transform_6, window_bounds = array<i64: 1, 64>}, {pipeline_mode = #tpu.pipeline_mode<synchronous>, transform_indices = @transform_7, window_bounds = array<i64: 64, 256>}, {pipeline_mode = #tpu.pipeline_mode<synchronous>, transform_indices = @transform_8, window_bounds = array<i64: 1, 256>}, {pipeline_mode = #tpu.pipeline_mode<synchronous>, transform_indices = @transform_9, window_bounds = array<i64: 256, 128>}, {pipeline_mode = #tpu.pipeline_mode<synchronous>, transform_indices = @transform_10, window_bounds = array<i64: 1, 128>}, {transform_indices = @transform_11, window_bounds = array<i64: 8, 128>}]} {
    %c0 = arith.constant 0 : index
    %c0_0 = arith.constant 0 : index
    %c0_1 = arith.constant 0 : index
    %c0_2 = arith.constant 0 : index
    %c0_3 = arith.constant 0 : index
    %0 = vector.load %arg1[%c0, %c0_0, %c0_1, %c0_2, %c0_3] : memref<8x4x5x5x64xbf16, #tpu.memory_space<vmem>>, vector<8x4x5x5x64xbf16>
    %1 = vector.extract_strided_slice %0 {offsets = [0, 0, 0, 0, 0], sizes = [8, 1, 4, 4, 64], strides = [1, 1, 1, 1, 1]} : vector<8x4x5x5x64xbf16> to vector<8x1x4x4x64xbf16>
    %2 = vector.shape_cast %1 : vector<8x1x4x4x64xbf16> to vector<8x4x4x64xbf16>
    %3 = vector.extract_strided_slice %0 {offsets = [0, 1, 0, 0, 0], sizes = [8, 1, 4, 4, 64], strides = [1, 1, 1, 1, 1]} : vector<8x4x5x5x64xbf16> to vector<8x1x4x4x64xbf16>
    %4 = vector.shape_cast %3 : vector<8x1x4x4x64xbf16> to vector<8x4x4x64xbf16>
    %5 = vector.extract_strided_slice %0 {offsets = [0, 2, 0, 0, 0], sizes = [8, 1, 4, 4, 64], strides = [1, 1, 1, 1, 1]} : vector<8x4x5x5x64xbf16> to vector<8x1x4x4x64xbf16>
    %6 = vector.shape_cast %5 : vector<8x1x4x4x64xbf16> to vector<8x4x4x64xbf16>
    %7 = vector.extract_strided_slice %0 {offsets = [0, 3, 0, 0, 0], sizes = [8, 1, 4, 4, 64], strides = [1, 1, 1, 1, 1]} : vector<8x4x5x5x64xbf16> to vector<8x1x4x4x64xbf16>
    %8 = vector.shape_cast %7 : vector<8x1x4x4x64xbf16> to vector<8x4x4x64xbf16>
    %9 = tpu.concatenate %2, %4, %6, %8 in 3 : vector<8x4x4x64xbf16>, vector<8x4x4x64xbf16>, vector<8x4x4x64xbf16>, vector<8x4x4x64xbf16> -> vector<8x4x4x256xbf16>
    %10 = vector.shape_cast %9 : vector<8x4x4x256xbf16> to vector<128x256xbf16>
    %11 = vector.extract_strided_slice %0 {offsets = [0, 1, 0, 0, 0], sizes = [8, 1, 4, 4, 64], strides = [1, 1, 1, 1, 1]} : vector<8x4x5x5x64xbf16> to vector<8x1x4x4x64xbf16>
    %12 = vector.shape_cast %11 : vector<8x1x4x4x64xbf16> to vector<8x4x4x64xbf16>
    %13 = vector.extract_strided_slice %0 {offsets = [0, 0, 0, 1, 0], sizes = [8, 1, 4, 4, 64], strides = [1, 1, 1, 1, 1]} : vector<8x4x5x5x64xbf16> to vector<8x1x4x4x64xbf16>
    %14 = vector.shape_cast %13 : vector<8x1x4x4x64xbf16> to vector<8x4x4x64xbf16>
    %15 = vector.extract_strided_slice %0 {offsets = [0, 3, 0, 0, 0], sizes = [8, 1, 4, 4, 64], strides = [1, 1, 1, 1, 1]} : vector<8x4x5x5x64xbf16> to vector<8x1x4x4x64xbf16>
    %16 = vector.shape_cast %15 : vector<8x1x4x4x64xbf16> to vector<8x4x4x64xbf16>
    %17 = vector.extract_strided_slice %0 {offsets = [0, 2, 0, 1, 0], sizes = [8, 1, 4, 4, 64], strides = [1, 1, 1, 1, 1]} : vector<8x4x5x5x64xbf16> to vector<8x1x4x4x64xbf16>
    %18 = vector.shape_cast %17 : vector<8x1x4x4x64xbf16> to vector<8x4x4x64xbf16>
    %19 = tpu.concatenate %12, %14, %16, %18 in 3 : vector<8x4x4x64xbf16>, vector<8x4x4x64xbf16>, vector<8x4x4x64xbf16>, vector<8x4x4x64xbf16> -> vector<8x4x4x256xbf16>
    %20 = vector.shape_cast %19 : vector<8x4x4x256xbf16> to vector<128x256xbf16>
    %21 = vector.extract_strided_slice %0 {offsets = [0, 2, 0, 0, 0], sizes = [8, 1, 4, 4, 64], strides = [1, 1, 1, 1, 1]} : vector<8x4x5x5x64xbf16> to vector<8x1x4x4x64xbf16>
    %22 = vector.shape_cast %21 : vector<8x1x4x4x64xbf16> to vector<8x4x4x64xbf16>
    %23 = vector.extract_strided_slice %0 {offsets = [0, 3, 0, 0, 0], sizes = [8, 1, 4, 4, 64], strides = [1, 1, 1, 1, 1]} : vector<8x4x5x5x64xbf16> to vector<8x1x4x4x64xbf16>
    %24 = vector.shape_cast %23 : vector<8x1x4x4x64xbf16> to vector<8x4x4x64xbf16>
    %25 = vector.extract_strided_slice %0 {offsets = [0, 0, 1, 0, 0], sizes = [8, 1, 4, 4, 64], strides = [1, 1, 1, 1, 1]} : vector<8x4x5x5x64xbf16> to vector<8x1x4x4x64xbf16>
    %26 = vector.shape_cast %25 : vector<8x1x4x4x64xbf16> to vector<8x4x4x64xbf16>
    %27 = vector.extract_strided_slice %0 {offsets = [0, 1, 1, 0, 0], sizes = [8, 1, 4, 4, 64], strides = [1, 1, 1, 1, 1]} : vector<8x4x5x5x64xbf16> to vector<8x1x4x4x64xbf16>
    %28 = vector.shape_cast %27 : vector<8x1x4x4x64xbf16> to vector<8x4x4x64xbf16>
    %29 = tpu.concatenate %22, %24, %26, %28 in 3 : vector<8x4x4x64xbf16>, vector<8x4x4x64xbf16>, vector<8x4x4x64xbf16>, vector<8x4x4x64xbf16> -> vector<8x4x4x256xbf16>
    %30 = vector.shape_cast %29 : vector<8x4x4x256xbf16> to vector<128x256xbf16>
    %31 = vector.extract_strided_slice %0 {offsets = [0, 3, 0, 0, 0], sizes = [8, 1, 4, 4, 64], strides = [1, 1, 1, 1, 1]} : vector<8x4x5x5x64xbf16> to vector<8x1x4x4x64xbf16>
    %32 = vector.shape_cast %31 : vector<8x1x4x4x64xbf16> to vector<8x4x4x64xbf16>
    %33 = vector.extract_strided_slice %0 {offsets = [0, 2, 0, 1, 0], sizes = [8, 1, 4, 4, 64], strides = [1, 1, 1, 1, 1]} : vector<8x4x5x5x64xbf16> to vector<8x1x4x4x64xbf16>
    %34 = vector.shape_cast %33 : vector<8x1x4x4x64xbf16> to vector<8x4x4x64xbf16>
    %35 = vector.extract_strided_slice %0 {offsets = [0, 1, 1, 0, 0], sizes = [8, 1, 4, 4, 64], strides = [1, 1, 1, 1, 1]} : vector<8x4x5x5x64xbf16> to vector<8x1x4x4x64xbf16>
    %36 = vector.shape_cast %35 : vector<8x1x4x4x64xbf16> to vector<8x4x4x64xbf16>
    %37 = vector.extract_strided_slice %0 {offsets = [0, 0, 1, 1, 0], sizes = [8, 1, 4, 4, 64], strides = [1, 1, 1, 1, 1]} : vector<8x4x5x5x64xbf16> to vector<8x1x4x4x64xbf16>
    %38 = vector.shape_cast %37 : vector<8x1x4x4x64xbf16> to vector<8x4x4x64xbf16>
    %39 = tpu.concatenate %32, %34, %36, %38 in 3 : vector<8x4x4x64xbf16>, vector<8x4x4x64xbf16>, vector<8x4x4x64xbf16>, vector<8x4x4x64xbf16> -> vector<8x4x4x256xbf16>
    %40 = vector.shape_cast %39 : vector<8x4x4x256xbf16> to vector<128x256xbf16>
    %41 = tpu.concatenate %10, %20, %30, %40 in 0 : vector<128x256xbf16>, vector<128x256xbf16>, vector<128x256xbf16>, vector<128x256xbf16> -> vector<512x256xbf16>
    %c0_4 = arith.constant 0 : index
    %c0_5 = arith.constant 0 : index
    %42 = vector.load %arg2[%c0_4, %c0_5] : memref<256x32xbf16, #tpu.memory_space<vmem>>, vector<256x32xbf16>
    %cst = arith.constant dense<0.000000e+00> : vector<512x32xf32>
    %43 = tpu.matmul %41, %42, %cst {dimension_numbers = #tpu.dot_dimension_numbers<[1], [0], [0], [1], [0, 0, 1, 1], [], []>} : vector<512x256xbf16>, vector<256x32xbf16>, vector<512x32xf32> -> vector<512x32xf32>
    %44 = arith.truncf %43 : vector<512x32xf32> to vector<512x32xbf16>
    %c0_6 = arith.constant 0 : index
    %c0_7 = arith.constant 0 : index
    %45 = vector.load %arg3[%c0_6, %c0_7] : memref<1x32xf32, #tpu.memory_space<vmem>>, vector<1x32xf32>
    %46 = arith.truncf %45 : vector<1x32xf32> to vector<1x32xbf16>
    %47 = vector.broadcast %46 : vector<1x32xbf16> to vector<512x32xbf16>
    %48 = arith.addf %44, %47 : vector<512x32xbf16>
    %cst_8 = arith.constant 0.000000e+00 : bf16
    %49 = vector.broadcast %cst_8 : bf16 to vector<512x32xbf16>
    %50 = arith.maximumf %48, %49 : vector<512x32xbf16>
    %51 = vector.shape_cast %50 : vector<512x32xbf16> to vector<4x8x4x4x32xbf16>
    %52 = vector.extract_strided_slice %51 {offsets = [0, 0, 0, 0, 0], sizes = [1, 8, 3, 3, 32], strides = [1, 1, 1, 1, 1]} : vector<4x8x4x4x32xbf16> to vector<1x8x3x3x32xbf16>
    %53 = vector.shape_cast %52 : vector<1x8x3x3x32xbf16> to vector<8x3x3x32xbf16>
    %54 = vector.extract_strided_slice %51 {offsets = [1, 0, 0, 0, 0], sizes = [1, 8, 3, 3, 32], strides = [1, 1, 1, 1, 1]} : vector<4x8x4x4x32xbf16> to vector<1x8x3x3x32xbf16>
    %55 = vector.shape_cast %54 : vector<1x8x3x3x32xbf16> to vector<8x3x3x32xbf16>
    %56 = vector.extract_strided_slice %51 {offsets = [0, 0, 0, 1, 0], sizes = [1, 8, 3, 3, 32], strides = [1, 1, 1, 1, 1]} : vector<4x8x4x4x32xbf16> to vector<1x8x3x3x32xbf16>
    %57 = vector.shape_cast %56 : vector<1x8x3x3x32xbf16> to vector<8x3x3x32xbf16>
    %58 = vector.extract_strided_slice %51 {offsets = [1, 0, 0, 1, 0], sizes = [1, 8, 3, 3, 32], strides = [1, 1, 1, 1, 1]} : vector<4x8x4x4x32xbf16> to vector<1x8x3x3x32xbf16>
    %59 = vector.shape_cast %58 : vector<1x8x3x3x32xbf16> to vector<8x3x3x32xbf16>
    %60 = vector.extract_strided_slice %51 {offsets = [2, 0, 0, 0, 0], sizes = [1, 8, 3, 3, 32], strides = [1, 1, 1, 1, 1]} : vector<4x8x4x4x32xbf16> to vector<1x8x3x3x32xbf16>
    %61 = vector.shape_cast %60 : vector<1x8x3x3x32xbf16> to vector<8x3x3x32xbf16>
    %62 = vector.extract_strided_slice %51 {offsets = [3, 0, 0, 0, 0], sizes = [1, 8, 3, 3, 32], strides = [1, 1, 1, 1, 1]} : vector<4x8x4x4x32xbf16> to vector<1x8x3x3x32xbf16>
    %63 = vector.shape_cast %62 : vector<1x8x3x3x32xbf16> to vector<8x3x3x32xbf16>
    %64 = vector.extract_strided_slice %51 {offsets = [2, 0, 0, 1, 0], sizes = [1, 8, 3, 3, 32], strides = [1, 1, 1, 1, 1]} : vector<4x8x4x4x32xbf16> to vector<1x8x3x3x32xbf16>
    %65 = vector.shape_cast %64 : vector<1x8x3x3x32xbf16> to vector<8x3x3x32xbf16>
    %66 = vector.extract_strided_slice %51 {offsets = [3, 0, 0, 1, 0], sizes = [1, 8, 3, 3, 32], strides = [1, 1, 1, 1, 1]} : vector<4x8x4x4x32xbf16> to vector<1x8x3x3x32xbf16>
    %67 = vector.shape_cast %66 : vector<1x8x3x3x32xbf16> to vector<8x3x3x32xbf16>
    %68 = vector.extract_strided_slice %51 {offsets = [0, 0, 1, 0, 0], sizes = [1, 8, 3, 3, 32], strides = [1, 1, 1, 1, 1]} : vector<4x8x4x4x32xbf16> to vector<1x8x3x3x32xbf16>
    %69 = vector.shape_cast %68 : vector<1x8x3x3x32xbf16> to vector<8x3x3x32xbf16>
    %70 = vector.extract_strided_slice %51 {offsets = [1, 0, 1, 0, 0], sizes = [1, 8, 3, 3, 32], strides = [1, 1, 1, 1, 1]} : vector<4x8x4x4x32xbf16> to vector<1x8x3x3x32xbf16>
    %71 = vector.shape_cast %70 : vector<1x8x3x3x32xbf16> to vector<8x3x3x32xbf16>
    %72 = vector.extract_strided_slice %51 {offsets = [0, 0, 1, 1, 0], sizes = [1, 8, 3, 3, 32], strides = [1, 1, 1, 1, 1]} : vector<4x8x4x4x32xbf16> to vector<1x8x3x3x32xbf16>
    %73 = vector.shape_cast %72 : vector<1x8x3x3x32xbf16> to vector<8x3x3x32xbf16>
    %74 = vector.extract_strided_slice %51 {offsets = [1, 0, 1, 1, 0], sizes = [1, 8, 3, 3, 32], strides = [1, 1, 1, 1, 1]} : vector<4x8x4x4x32xbf16> to vector<1x8x3x3x32xbf16>
    %75 = vector.shape_cast %74 : vector<1x8x3x3x32xbf16> to vector<8x3x3x32xbf16>
    %76 = vector.extract_strided_slice %51 {offsets = [2, 0, 1, 0, 0], sizes = [1, 8, 3, 3, 32], strides = [1, 1, 1, 1, 1]} : vector<4x8x4x4x32xbf16> to vector<1x8x3x3x32xbf16>
    %77 = vector.shape_cast %76 : vector<1x8x3x3x32xbf16> to vector<8x3x3x32xbf16>
    %78 = vector.extract_strided_slice %51 {offsets = [3, 0, 1, 0, 0], sizes = [1, 8, 3, 3, 32], strides = [1, 1, 1, 1, 1]} : vector<4x8x4x4x32xbf16> to vector<1x8x3x3x32xbf16>
    %79 = vector.shape_cast %78 : vector<1x8x3x3x32xbf16> to vector<8x3x3x32xbf16>
    %80 = vector.extract_strided_slice %51 {offsets = [2, 0, 1, 1, 0], sizes = [1, 8, 3, 3, 32], strides = [1, 1, 1, 1, 1]} : vector<4x8x4x4x32xbf16> to vector<1x8x3x3x32xbf16>
    %81 = vector.shape_cast %80 : vector<1x8x3x3x32xbf16> to vector<8x3x3x32xbf16>
    %82 = vector.extract_strided_slice %51 {offsets = [3, 0, 1, 1, 0], sizes = [1, 8, 3, 3, 32], strides = [1, 1, 1, 1, 1]} : vector<4x8x4x4x32xbf16> to vector<1x8x3x3x32xbf16>
    %83 = vector.shape_cast %82 : vector<1x8x3x3x32xbf16> to vector<8x3x3x32xbf16>
    %84 = tpu.concatenate %53, %55, %57, %59, %61, %63, %65, %67, %69, %71, %73, %75, %77, %79, %81, %83 in 3 : vector<8x3x3x32xbf16>, vector<8x3x3x32xbf16>, vector<8x3x3x32xbf16>, vector<8x3x3x32xbf16>, vector<8x3x3x32xbf16>, vector<8x3x3x32xbf16>, vector<8x3x3x32xbf16>, vector<8x3x3x32xbf16>, vector<8x3x3x32xbf16>, vector<8x3x3x32xbf16>, vector<8x3x3x32xbf16>, vector<8x3x3x32xbf16>, vector<8x3x3x32xbf16>, vector<8x3x3x32xbf16>, vector<8x3x3x32xbf16>, vector<8x3x3x32xbf16> -> vector<8x3x3x512xbf16>
    %85 = vector.shape_cast %84 : vector<8x3x3x512xbf16> to vector<72x512xbf16>
    %c0_9 = arith.constant 0 : index
    %c0_10 = arith.constant 0 : index
    %86 = vector.load %arg4[%c0_9, %c0_10] : memref<512x64xbf16, #tpu.memory_space<vmem>>, vector<512x64xbf16>
    %cst_11 = arith.constant dense<0.000000e+00> : vector<72x64xf32>
    %87 = tpu.matmul %85, %86, %cst_11 {dimension_numbers = #tpu.dot_dimension_numbers<[1], [0], [0], [1], [0, 0, 1, 1], [], []>} : vector<72x512xbf16>, vector<512x64xbf16>, vector<72x64xf32> -> vector<72x64xf32>
    %88 = arith.truncf %87 : vector<72x64xf32> to vector<72x64xbf16>
    %c0_12 = arith.constant 0 : index
    %c0_13 = arith.constant 0 : index
    %89 = vector.load %arg5[%c0_12, %c0_13] : memref<1x64xf32, #tpu.memory_space<vmem>>, vector<1x64xf32>
    %90 = arith.truncf %89 : vector<1x64xf32> to vector<1x64xbf16>
    %91 = vector.broadcast %90 : vector<1x64xbf16> to vector<72x64xbf16>
    %92 = arith.addf %88, %91 : vector<72x64xbf16>
    %cst_14 = arith.constant 0.000000e+00 : bf16
    %93 = vector.broadcast %cst_14 : bf16 to vector<72x64xbf16>
    %94 = arith.maximumf %92, %93 : vector<72x64xbf16>
    %95 = vector.shape_cast %94 : vector<72x64xbf16> to vector<8x3x3x64xbf16>
    %96 = vector.extract_strided_slice %95 {offsets = [0, 0, 0, 0], sizes = [8, 1, 1, 64], strides = [1, 1, 1, 1]} : vector<8x3x3x64xbf16> to vector<8x1x1x64xbf16>
    %97 = vector.extract_strided_slice %95 {offsets = [0, 0, 1, 0], sizes = [8, 1, 1, 64], strides = [1, 1, 1, 1]} : vector<8x3x3x64xbf16> to vector<8x1x1x64xbf16>
    %98 = vector.extract_strided_slice %95 {offsets = [0, 0, 2, 0], sizes = [8, 1, 1, 64], strides = [1, 1, 1, 1]} : vector<8x3x3x64xbf16> to vector<8x1x1x64xbf16>
    %99 = vector.extract_strided_slice %95 {offsets = [0, 1, 0, 0], sizes = [8, 1, 1, 64], strides = [1, 1, 1, 1]} : vector<8x3x3x64xbf16> to vector<8x1x1x64xbf16>
    %100 = vector.extract_strided_slice %95 {offsets = [0, 1, 1, 0], sizes = [8, 1, 1, 64], strides = [1, 1, 1, 1]} : vector<8x3x3x64xbf16> to vector<8x1x1x64xbf16>
    %101 = vector.extract_strided_slice %95 {offsets = [0, 1, 2, 0], sizes = [8, 1, 1, 64], strides = [1, 1, 1, 1]} : vector<8x3x3x64xbf16> to vector<8x1x1x64xbf16>
    %102 = vector.extract_strided_slice %95 {offsets = [0, 2, 0, 0], sizes = [8, 1, 1, 64], strides = [1, 1, 1, 1]} : vector<8x3x3x64xbf16> to vector<8x1x1x64xbf16>
    %103 = vector.extract_strided_slice %95 {offsets = [0, 2, 1, 0], sizes = [8, 1, 1, 64], strides = [1, 1, 1, 1]} : vector<8x3x3x64xbf16> to vector<8x1x1x64xbf16>
    %104 = vector.extract_strided_slice %95 {offsets = [0, 2, 2, 0], sizes = [8, 1, 1, 64], strides = [1, 1, 1, 1]} : vector<8x3x3x64xbf16> to vector<8x1x1x64xbf16>
    %105 = tpu.concatenate %96, %97, %98, %99, %100, %101, %102, %103, %104 in 3 : vector<8x1x1x64xbf16>, vector<8x1x1x64xbf16>, vector<8x1x1x64xbf16>, vector<8x1x1x64xbf16>, vector<8x1x1x64xbf16>, vector<8x1x1x64xbf16>, vector<8x1x1x64xbf16>, vector<8x1x1x64xbf16>, vector<8x1x1x64xbf16> -> vector<8x1x1x576xbf16>
    %106 = vector.shape_cast %105 : vector<8x1x1x576xbf16> to vector<8x576xbf16>
    %c0_15 = arith.constant 0 : index
    %c0_16 = arith.constant 0 : index
    %107 = vector.load %arg6[%c0_15, %c0_16] : memref<576x64xbf16, #tpu.memory_space<vmem>>, vector<576x64xbf16>
    %cst_17 = arith.constant dense<0.000000e+00> : vector<8x64xf32>
    %108 = tpu.matmul %106, %107, %cst_17 {dimension_numbers = #tpu.dot_dimension_numbers<[1], [0], [0], [1], [0, 0, 1, 1], [], []>} : vector<8x576xbf16>, vector<576x64xbf16>, vector<8x64xf32> -> vector<8x64xf32>
    %109 = arith.truncf %108 : vector<8x64xf32> to vector<8x64xbf16>
    %c0_18 = arith.constant 0 : index
    %c0_19 = arith.constant 0 : index
    %110 = vector.load %arg7[%c0_18, %c0_19] : memref<1x64xf32, #tpu.memory_space<vmem>>, vector<1x64xf32>
    %111 = arith.truncf %110 : vector<1x64xf32> to vector<1x64xbf16>
    %112 = vector.broadcast %111 : vector<1x64xbf16> to vector<8x64xbf16>
    %113 = arith.addf %109, %112 : vector<8x64xbf16>
    %cst_20 = arith.constant 0.000000e+00 : bf16
    %114 = vector.broadcast %cst_20 : bf16 to vector<8x64xbf16>
    %115 = arith.maximumf %113, %114 : vector<8x64xbf16>
    %c0_21 = arith.constant 0 : index
    %c0_22 = arith.constant 0 : index
    %116 = vector.load %arg8[%c0_21, %c0_22] : memref<64x256xbf16, #tpu.memory_space<vmem>>, vector<64x256xbf16>
    %cst_23 = arith.constant dense<0.000000e+00> : vector<8x256xf32>
    %117 = tpu.matmul %115, %116, %cst_23 {dimension_numbers = #tpu.dot_dimension_numbers<[1], [0], [0], [1], [0, 0, 1, 1], [], []>} : vector<8x64xbf16>, vector<64x256xbf16>, vector<8x256xf32> -> vector<8x256xf32>
    %118 = arith.truncf %117 : vector<8x256xf32> to vector<8x256xbf16>
    %c0_24 = arith.constant 0 : index
    %c0_25 = arith.constant 0 : index
    %119 = vector.load %arg9[%c0_24, %c0_25] : memref<1x256xf32, #tpu.memory_space<vmem>>, vector<1x256xf32>
    %120 = arith.truncf %119 : vector<1x256xf32> to vector<1x256xbf16>
    %121 = vector.broadcast %120 : vector<1x256xbf16> to vector<8x256xbf16>
    %122 = arith.addf %118, %121 : vector<8x256xbf16>
    %cst_26 = arith.constant 0.000000e+00 : bf16
    %123 = vector.broadcast %cst_26 : bf16 to vector<8x256xbf16>
    %124 = arith.maximumf %122, %123 : vector<8x256xbf16>
    %c0_27 = arith.constant 0 : index
    %c0_28 = arith.constant 0 : index
    %125 = vector.load %arg10[%c0_27, %c0_28] : memref<256x128xbf16, #tpu.memory_space<vmem>>, vector<256x128xbf16>
    %cst_29 = arith.constant dense<0.000000e+00> : vector<8x128xf32>
    %126 = tpu.matmul %124, %125, %cst_29 {dimension_numbers = #tpu.dot_dimension_numbers<[1], [0], [0], [1], [0, 0, 1, 1], [], []>} : vector<8x256xbf16>, vector<256x128xbf16>, vector<8x128xf32> -> vector<8x128xf32>
    %c0_30 = arith.constant 0 : index
    %c0_31 = arith.constant 0 : index
    %127 = vector.load %arg11[%c0_30, %c0_31] : memref<1x128xf32, #tpu.memory_space<vmem>>, vector<1x128xf32>
    %128 = vector.broadcast %127 : vector<1x128xf32> to vector<8x128xf32>
    %129 = arith.addf %126, %128 : vector<8x128xf32>
    %c0_32 = arith.constant 0 : index
    %c0_33 = arith.constant 0 : index
    %130 = vector.load %arg12[%c0_32, %c0_33] : memref<8x128xf32, #tpu.memory_space<vmem>>, vector<8x128xf32>
    tpu.vector_store %arg12[%c0_32, %c0_33], %129 {strides = array<i32>} : memref<8x128xf32, #tpu.memory_space<vmem>>, vector<8x128xf32>,
    return
  }
  func.func @transform_0(%arg0: i32) -> (i32, i32, i32, i32, i32) {
    %c0_i32 = arith.constant 0 : i32
    %c0_i32_0 = arith.constant 0 : i32
    %c0_i32_1 = arith.constant 0 : i32
    %c0_i32_2 = arith.constant 0 : i32
    %c0_i32_3 = arith.constant 0 : i32
    return %arg0, %c0_i32, %c0_i32_0, %c0_i32_1, %c0_i32_2 : i32, i32, i32, i32, i32
  }
  func.func @transform_1(%arg0: i32) -> (i32, i32) {
    %c0_i32 = arith.constant 0 : i32
    %c0_i32_0 = arith.constant 0 : i32
    %c0_i32_1 = arith.constant 0 : i32
    return %c0_i32, %c0_i32_0 : i32, i32
  }
  func.func @transform_2(%arg0: i32) -> (i32, i32) {
    %c0_i32 = arith.constant 0 : i32
    %c0_i32_0 = arith.constant 0 : i32
    %c0_i32_1 = arith.constant 0 : i32
    return %c0_i32, %c0_i32_0 : i32, i32
  }
  func.func @transform_3(%arg0: i32) -> (i32, i32) {
    %c0_i32 = arith.constant 0 : i32
    %c0_i32_0 = arith.constant 0 : i32
    %c0_i32_1 = arith.constant 0 : i32
    return %c0_i32, %c0_i32_0 : i32, i32
  }
  func.func @transform_4(%arg0: i32) -> (i32, i32) {
    %c0_i32 = arith.constant 0 : i32
    %c0_i32_0 = arith.constant 0 : i32
    %c0_i32_1 = arith.constant 0 : i32
    return %c0_i32, %c0_i32_0 : i32, i32
  }
  func.func @transform_5(%arg0: i32) -> (i32, i32) {
    %c0_i32 = arith.constant 0 : i32
    %c0_i32_0 = arith.constant 0 : i32
    %c0_i32_1 = arith.constant 0 : i32
    return %c0_i32, %c0_i32_0 : i32, i32
  }
  func.func @transform_6(%arg0: i32) -> (i32, i32) {
    %c0_i32 = arith.constant 0 : i32
    %c0_i32_0 = arith.constant 0 : i32
    %c0_i32_1 = arith.constant 0 : i32
    return %c0_i32, %c0_i32_0 : i32, i32
  }
  func.func @transform_7(%arg0: i32) -> (i32, i32) {
    %c0_i32 = arith.constant 0 : i32
    %c0_i32_0 = arith.constant 0 : i32
    %c0_i32_1 = arith.constant 0 : i32
    return %c0_i32, %c0_i32_0 : i32, i32
  }
  func.func @transform_8(%arg0: i32) -> (i32, i32) {
    %c0_i32 = arith.constant 0 : i32
    %c0_i32_0 = arith.constant 0 : i32
    %c0_i32_1 = arith.constant 0 : i32
    return %c0_i32, %c0_i32_0 : i32, i32
  }
  func.func @transform_9(%arg0: i32) -> (i32, i32) {
    %c0_i32 = arith.constant 0 : i32
    %c0_i32_0 = arith.constant 0 : i32
    %c0_i32_1 = arith.constant 0 : i32
    return %c0_i32, %c0_i32_0 : i32, i32
  }
  func.func @transform_10(%arg0: i32) -> (i32, i32) {
    %c0_i32 = arith.constant 0 : i32
    %c0_i32_0 = arith.constant 0 : i32
    %c0_i32_1 = arith.constant 0 : i32
    return %c0_i32, %c0_i32_0 : i32, i32
  }
  func.func @transform_11(%arg0: i32) -> (i32, i32) {
    %c0_i32 = arith.constant 0 : i32
    %c0_i32_0 = arith.constant 0 : i32
    return %arg0, %c0_i32 : i32, i32
  }
}

</mosaic_0001>

<llo_original>
// kernel: conv_dueling_dqn_forward.1
$region0: #{conv_dueling_dqn_forward.1}
  #allocation0 [shape = 'u32[]', space=smem, size = 0x4, offset = 0x4, fixed_abs, tag = 'smem constant byte address 0x4 - core index']
  #allocation1 [shape = 'u32[144,128]{1,0:T(1,128)}', space=vmem, size = 0x12000, scoped, tag = 'internal scratch']
  %s0 = inlined_call_operand.vmem [shape: bf16[8,4,5,5,64], index: 0, kind: input, shape index: {}]
  %s1 = inlined_call_operand.vmem [shape: bf16[256,32], index: 1, kind: input, shape index: {}]
  %s2 = inlined_call_operand.vmem [shape: f32[1,32], index: 2, kind: input, shape index: {}]
  %s3 = inlined_call_operand.vmem [shape: bf16[512,64], index: 3, kind: input, shape index: {}]
  %s4 = inlined_call_operand.vmem [shape: f32[1,64], index: 4, kind: input, shape index: {}]
  %s5 = inlined_call_operand.vmem [shape: bf16[576,64], index: 5, kind: input, shape index: {}]
  %s6 = inlined_call_operand.vmem [shape: f32[1,64], index: 6, kind: input, shape index: {}]
  %s7 = inlined_call_operand.vmem [shape: bf16[64,256], index: 7, kind: input, shape index: {}]
  %s8 = inlined_call_operand.vmem [shape: f32[1,256], index: 8, kind: input, shape index: {}]
  %s9 = inlined_call_operand.vmem [shape: bf16[256,128], index: 9, kind: input, shape index: {}]
  %s10 = inlined_call_operand.vmem [shape: f32[1,128], index: 10, kind: input, shape index: {}]
  %s11 = inlined_call_operand.vmem [shape: f32[8,128], index: 11, kind: output, shape index: {}]
  %s12 = sld [smem:[#allocation0]]
  $region54: #{conv_dueling_dqn_forward.1} parent=0
    _
  %s14 = ssub.s32 1, %s12
  %s15 = scalar_select 0, %s14, %s12
  // Predicated region
  $region2: #{conv_dueling_dqn_forward.1} parent=0 // pred_check
    _
  $region3: #{conv_dueling_dqn_forward.1} parent=0 // pred_check_branch
    %17 = sbr.rel (0) target = $region5
  $region4: #{conv_dueling_dqn_forward.1} parent=0 // pred_region
    _
  $region5: #{conv_dueling_dqn_forward.1} parent=0 // pred_fallthru
    _
  // Predicated region
  $region6: #{conv_dueling_dqn_forward.1} parent=0 // pred_check
    _
  $region7: #{conv_dueling_dqn_forward.1} parent=0 // pred_check_branch
    %19 = sbr.rel (0) target = $region9
  $region8: #{conv_dueling_dqn_forward.1} parent=0 // pred_region
    _
  $region9: #{conv_dueling_dqn_forward.1} parent=0 // pred_fallthru
    _
  // Predicated region
  $region10: #{conv_dueling_dqn_forward.1} parent=0 // pred_check
    _
  $region11: #{conv_dueling_dqn_forward.1} parent=0 // pred_check_branch
    %21 = sbr.rel (0) target = $region13
  $region12: #{conv_dueling_dqn_forward.1} parent=0 // pred_region
    _
  $region13: #{conv_dueling_dqn_forward.1} parent=0 // pred_fallthru
    _
  // Predicated region
  $region14: #{conv_dueling_dqn_forward.1} parent=0 // pred_check
    _
  $region15: #{conv_dueling_dqn_forward.1} parent=0 // pred_check_branch
    %23 = sbr.rel (0) target = $region17
  $region16: #{conv_dueling_dqn_forward.1} parent=0 // pred_region
    _
  $region17: #{conv_dueling_dqn_forward.1} parent=0 // pred_fallthru
    _
  // Predicated region
  $region18: #{conv_dueling_dqn_forward.1} parent=0 // pred_check
    _
  $region19: #{conv_dueling_dqn_forward.1} parent=0 // pred_check_branch
    %25 = sbr.rel (0) target = $region21
  $region20: #{conv_dueling_dqn_forward.1} parent=0 // pred_region
    _
  $region21: #{conv_dueling_dqn_forward.1} parent=0 // pred_fallthru
    _
  // Predicated region
  $region22: #{conv_dueling_dqn_forward.1} parent=0 // pred_check
    _
  $region23: #{conv_dueling_dqn_forward.1} parent=0 // pred_check_branch
    %27 = sbr.rel (0) target = $region25
  $region24: #{conv_dueling_dqn_forward.1} parent=0 // pred_region
    _
  $region25: #{conv_dueling_dqn_forward.1} parent=0 // pred_fallthru
    _
  // Predicated region
  $region26: #{conv_dueling_dqn_forward.1} parent=0 // pred_check
    _
  $region27: #{conv_dueling_dqn_forward.1} parent=0 // pred_check_branch
    %29 = sbr.rel (0) target = $region29
  $region28: #{conv_dueling_dqn_forward.1} parent=0 // pred_region
    _
  $region29: #{conv_dueling_dqn_forward.1} parent=0 // pred_fallthru
    _
  // Predicated region
  $region30: #{conv_dueling_dqn_forward.1} parent=0 // pred_check
    _
  $region31: #{conv_dueling_dqn_forward.1} parent=0 // pred_check_branch
    %31 = sbr.rel (0) target = $region33
  $region32: #{conv_dueling_dqn_forward.1} parent=0 // pred_region
    _
  $region33: #{conv_dueling_dqn_forward.1} parent=0 // pred_fallthru
    _
  // Predicated region
  $region34: #{conv_dueling_dqn_forward.1} parent=0 // pred_check
    _
  $region35: #{conv_dueling_dqn_forward.1} parent=0 // pred_check_branch
    %33 = sbr.rel (0) target = $region37
  $region36: #{conv_dueling_dqn_forward.1} parent=0 // pred_region
    _
  $region37: #{conv_dueling_dqn_forward.1} parent=0 // pred_fallthru
    _
  // Predicated region
  $region38: #{conv_dueling_dqn_forward.1} parent=0 // pred_check
    _
  $region39: #{conv_dueling_dqn_forward.1} parent=0 // pred_check_branch
    %35 = sbr.rel (0) target = $region41
  $region40: #{conv_dueling_dqn_forward.1} parent=0 // pred_region
    _
  $region41: #{conv_dueling_dqn_forward.1} parent=0 // pred_fallthru
    _
  // Predicated region
  $region42: #{conv_dueling_dqn_forward.1} parent=0 // pred_check
    _
  $region43: #{conv_dueling_dqn_forward.1} parent=0 // pred_check_branch
    %37 = sbr.rel (0) target = $region45
  $region44: #{conv_dueling_dqn_forward.1} parent=0 // pred_region
    _
  $region45: #{conv_dueling_dqn_forward.1} parent=0 // pred_fallthru
    _
  %v39 = vld [vmem:[%s0] sm:$0x7]
  %v40 = vld [vmem:[%s0 + $0x4] sm:$0x7]
  %v41 = vld [vmem:[%s0 + $0x8] sm:$0x7]
  %v42 = vld [vmem:[%s0 + $0xc] sm:$0x7]
  %v43 = vld [vmem:[%s0 + $0x10] sm:$0x7]
  %v44 = vld [vmem:[%s0 + $0x14] sm:$0x7]
  %v45 = vld [vmem:[%s0 + $0x18] sm:$0x7]
  %v46 = vld [vmem:[%s0 + $0x1c] sm:$0x7]
  %v47 = vld [vmem:[%s0 + $0x20] sm:$0x7]
  %v48 = vld [vmem:[%s0 + $0x24] sm:$0x7]
  %v49 = vld [vmem:[%s0 + $0x28] sm:$0x7]
  %v50 = vld [vmem:[%s0 + $0x2c] sm:$0x7]
  %v51 = vld [vmem:[%s0 + $0x30] sm:$0x7]
  %v52 = vld [vmem:[%s0 + $0x34] sm:$0x7]
  %v53 = vld [vmem:[%s0 + $0x3c] sm:$0x7]
  %v54 = vld [vmem:[%s0 + $0x40] sm:$0x7]
  %v55 = vld [vmem:[%s0 + $0x44] sm:$0x7]
  %v56 = vld [vmem:[%s0 + $0x48] sm:$0x7]
  %v57 = vld [vmem:[%s0 + $0x50] sm:$0x7]
  %v58 = vld [vmem:[%s0 + $0x54] sm:$0x7]
  %v59 = vld [vmem:[%s0 + $0x58] sm:$0x7]
  %v60 = vld [vmem:[%s0 + $0x5c] sm:$0x7]
  %v61 = vld [vmem:[%s0 + $0x60] sm:$0x7]
  %v62 = vld [vmem:[%s0 + $0x64] sm:$0x7]
  %v63 = vld [vmem:[%s0 + $0x68] sm:$0x7]
  %v64 = vld [vmem:[%s0 + $0x6c] sm:$0x7]
  %v65 = vld [vmem:[%s0 + $0x70] sm:$0x7]
  %v66 = vld [vmem:[%s0 + $0x74] sm:$0x7]
  %v67 = vld [vmem:[%s0 + $0x78] sm:$0x7]
  %v68 = vld [vmem:[%s0 + $0x7c] sm:$0x7]
  %v69 = vld [vmem:[%s0 + $0x80] sm:$0x7]
  %v70 = vld [vmem:[%s0 + $0x84] sm:$0x7]
  %v71 = vld [vmem:[%s0 + $0x8c] sm:$0x7]
  %v72 = vld [vmem:[%s0 + $0x90] sm:$0x7]
  %v73 = vld [vmem:[%s0 + $0x94] sm:$0x7]
  %v74 = vld [vmem:[%s0 + $0x98] sm:$0x7]
  %v75 = vld [vmem:[%s0 + $0xa0] sm:$0x7]
  %v76 = vld [vmem:[%s0 + $0xa4] sm:$0x7]
  %v77 = vld [vmem:[%s0 + $0xa8] sm:$0x7]
  %v78 = vld [vmem:[%s0 + $0xac] sm:$0x7]
  %v79 = vld [vmem:[%s0 + $0xb0] sm:$0x7]
  %v80 = vld [vmem:[%s0 + $0xb4] sm:$0x7]
  %v81 = vld [vmem:[%s0 + $0xb8] sm:$0x7]
  %v82 = vld [vmem:[%s0 + $0xbc] sm:$0x7]
  %v83 = vld [vmem:[%s0 + $0xc0] sm:$0x7]
  %v84 = vld [vmem:[%s0 + $0xc4] sm:$0x7]
  %v85 = vld [vmem:[%s0 + $0xc8] sm:$0x7]
  %v86 = vld [vmem:[%s0 + $0xcc] sm:$0x7]
  %v87 = vld [vmem:[%s0 + $0xd0] sm:$0x7]
  %v88 = vld [vmem:[%s0 + $0xd4] sm:$0x7]
  %v89 = vld [vmem:[%s0 + $0xdc] sm:$0x7]
  %v90 = vld [vmem:[%s0 + $0xe0] sm:$0x7]
  %v91 = vld [vmem:[%s0 + $0xe4] sm:$0x7]
  %v92 = vld [vmem:[%s0 + $0xe8] sm:$0x7]
  %v93 = vld [vmem:[%s0 + $0xf0] sm:$0x7]
  %v94 = vld [vmem:[%s0 + $0xf4] sm:$0x7]
  %v95 = vld [vmem:[%s0 + $0xf8] sm:$0x7]
  %v96 = vld [vmem:[%s0 + $0xfc] sm:$0x7]
  %v97 = vld [vmem:[%s0 + $0x100] sm:$0x7]
  %v98 = vld [vmem:[%s0 + $0x104] sm:$0x7]
  %v99 = vld [vmem:[%s0 + $0x108] sm:$0x7]
  %v100 = vld [vmem:[%s0 + $0x10c] sm:$0x7]
  %v101 = vld [vmem:[%s0 + $0x110] sm:$0x7]
  %v102 = vld [vmem:[%s0 + $0x114] sm:$0x7]
  %v103 = vld [vmem:[%s0 + $0x118] sm:$0x7]
  %v104 = vld [vmem:[%s0 + $0x11c] sm:$0x7]
  %v105 = vld [vmem:[%s0 + $0x120] sm:$0x7]
  %v106 = vld [vmem:[%s0 + $0x124] sm:$0x7]
  %v107 = vld [vmem:[%s0 + $0x12c] sm:$0x7]
  %v108 = vld [vmem:[%s0 + $0x130] sm:$0x7]
  %v109 = vld [vmem:[%s0 + $0x134] sm:$0x7]
  %v110 = vld [vmem:[%s0 + $0x138] sm:$0x7]
  %v111 = vld [vmem:[%s0 + $0x140] sm:$0x7]
  %v112 = vld [vmem:[%s0 + $0x144] sm:$0x7]
  %v113 = vld [vmem:[%s0 + $0x148] sm:$0x7]
  %v114 = vld [vmem:[%s0 + $0x14c] sm:$0x7]
  %v115 = vld [vmem:[%s0 + $0x150] sm:$0x7]
  %v116 = vld [vmem:[%s0 + $0x154] sm:$0x7]
  %v117 = vld [vmem:[%s0 + $0x158] sm:$0x7]
  %v118 = vld [vmem:[%s0 + $0x15c] sm:$0x7]
  %v119 = vld [vmem:[%s0 + $0x160] sm:$0x7]
  %v120 = vld [vmem:[%s0 + $0x164] sm:$0x7]
  %v121 = vld [vmem:[%s0 + $0x168] sm:$0x7]
  %v122 = vld [vmem:[%s0 + $0x16c] sm:$0x7]
  %v123 = vld [vmem:[%s0 + $0x170] sm:$0x7]
  %v124 = vld [vmem:[%s0 + $0x174] sm:$0x7]
  %v125 = vld [vmem:[%s0 + $0x17c] sm:$0x7]
  %v126 = vld [vmem:[%s0 + $0x180] sm:$0x7]
  %v127 = vld [vmem:[%s0 + $0x184] sm:$0x7]
  %v128 = vld [vmem:[%s0 + $0x188] sm:$0x7]
  %v129 = vld [vmem:[%s0 + $0x190] sm:$0x7]
  %v130 = vld [vmem:[%s0 + $0x194] sm:$0x7]
  %v131 = vld [vmem:[%s0 + $0x198] sm:$0x7]
  %v132 = vld [vmem:[%s0 + $0x19c] sm:$0x7]
  %v133 = vld [vmem:[%s0 + $0x1a0] sm:$0x7]
  %v134 = vld [vmem:[%s0 + $0x1a4] sm:$0x7]
  %v135 = vld [vmem:[%s0 + $0x1a8] sm:$0x7]
  %v136 = vld [vmem:[%s0 + $0x1ac] sm:$0x7]
  %v137 = vld [vmem:[%s0 + $0x1b0] sm:$0x7]
  %v138 = vld [vmem:[%s0 + $0x1b4] sm:$0x7]
  %v139 = vld [vmem:[%s0 + $0x1b8] sm:$0x7]
  %v140 = vld [vmem:[%s0 + $0x1bc] sm:$0x7]
  %v141 = vld [vmem:[%s0 + $0x1c0] sm:$0x7]
  %v142 = vld [vmem:[%s0 + $0x1c4] sm:$0x7]
  %v143 = vld [vmem:[%s0 + $0x1cc] sm:$0x7]
  %v144 = vld [vmem:[%s0 + $0x1d0] sm:$0x7]
  %v145 = vld [vmem:[%s0 + $0x1d4] sm:$0x7]
  %v146 = vld [vmem:[%s0 + $0x1d8] sm:$0x7]
  %v147 = vld [vmem:[%s0 + $0x1e0] sm:$0x7]
  %v148 = vld [vmem:[%s0 + $0x1e4] sm:$0x7]
  %v149 = vld [vmem:[%s0 + $0x1e8] sm:$0x7]
  %v150 = vld [vmem:[%s0 + $0x1ec] sm:$0x7]
  %v151 = vld [vmem:[%s0 + $0x1f0] sm:$0x7]
  %v152 = vld [vmem:[%s0 + $0x1f4] sm:$0x7]
  %v153 = vld [vmem:[%s0 + $0x1f8] sm:$0x7]
  %v154 = vld [vmem:[%s0 + $0x1fc] sm:$0x7]
  %v155 = vld [vmem:[%s0 + $0x200] sm:$0x7]
  %v156 = vld [vmem:[%s0 + $0x204] sm:$0x7]
  %v157 = vld [vmem:[%s0 + $0x208] sm:$0x7]
  %v158 = vld [vmem:[%s0 + $0x20c] sm:$0x7]
  %v159 = vld [vmem:[%s0 + $0x210] sm:$0x7]
  %v160 = vld [vmem:[%s0 + $0x214] sm:$0x7]
  %v161 = vld [vmem:[%s0 + $0x21c] sm:$0x7]
  %v162 = vld [vmem:[%s0 + $0x220] sm:$0x7]
  %v163 = vld [vmem:[%s0 + $0x224] sm:$0x7]
  %v164 = vld [vmem:[%s0 + $0x228] sm:$0x7]
  %v165 = vld [vmem:[%s0 + $0x230] sm:$0x7]
  %v166 = vld [vmem:[%s0 + $0x234] sm:$0x7]
  %v167 = vld [vmem:[%s0 + $0x238] sm:$0x7]
  %v168 = vld [vmem:[%s0 + $0x23c] sm:$0x7]
  %v169 = vld [vmem:[%s0 + $0x240] sm:$0x7]
  %v170 = vld [vmem:[%s0 + $0x244] sm:$0x7]
  %v171 = vld [vmem:[%s0 + $0x248] sm:$0x7]
  %v172 = vld [vmem:[%s0 + $0x24c] sm:$0x7]
  %v173 = vld [vmem:[%s0 + $0x250] sm:$0x7]
  %v174 = vld [vmem:[%s0 + $0x254] sm:$0x7]
  %v175 = vld [vmem:[%s0 + $0x258] sm:$0x7]
  %v176 = vld [vmem:[%s0 + $0x25c] sm:$0x7]
  %v177 = vld [vmem:[%s0 + $0x260] sm:$0x7]
  %v178 = vld [vmem:[%s0 + $0x264] sm:$0x7]
  %v179 = vld [vmem:[%s0 + $0x26c] sm:$0x7]
  %v180 = vld [vmem:[%s0 + $0x270] sm:$0x7]
  %v181 = vld [vmem:[%s0 + $0x274] sm:$0x7]
  %v182 = vld [vmem:[%s0 + $0x278] sm:$0x7]
  %v215 = vunpack.c.l.b16 %v44
  %v216 = vunpack.c.l.b16 %v45
  %v217 = vunpack.c.l.b16 %v46
  %v218 = vunpack.c.l.b16 %v47
  %v219 = vunpack.c.l.b16 %v62
  %v220 = vunpack.c.l.b16 %v63
  %v221 = vunpack.c.l.b16 %v64
  %v222 = vunpack.c.l.b16 %v65
  %v223 = vunpack.c.l.b16 %v80
  %v224 = vunpack.c.l.b16 %v81
  %v225 = vunpack.c.l.b16 %v82
  %v226 = vunpack.c.l.b16 %v83
  %v227 = vunpack.c.l.b16 %v98
  %v228 = vunpack.c.l.b16 %v99
  %v229 = vunpack.c.l.b16 %v100
  %v230 = vunpack.c.l.b16 %v101
  %v231 = vunpack.c.l.b16 %v116
  %v232 = vunpack.c.l.b16 %v117
  %v233 = vunpack.c.l.b16 %v118
  %v234 = vunpack.c.l.b16 %v119
  %v235 = vunpack.c.l.b16 %v134
  %v236 = vunpack.c.l.b16 %v135
  %v237 = vunpack.c.l.b16 %v136
  %v238 = vunpack.c.l.b16 %v137
  %v239 = vunpack.c.l.b16 %v152
  %v240 = vunpack.c.l.b16 %v153
  %v241 = vunpack.c.l.b16 %v154
  %v242 = vunpack.c.l.b16 %v155
  %v243 = vunpack.c.l.b16 %v170
  %v244 = vunpack.c.l.b16 %v171
  %v245 = vunpack.c.l.b16 %v172
  %v246 = vunpack.c.l.b16 %v173
  %v247 = vpack.c.b16 %v215, %v215
  %v248 = vpack.c.b16 %v216, %v216
  %v249 = vpack.c.b16 %v217, %v217
  %v250 = vpack.c.b16 %v218, %v218
  %v251 = vpack.c.b16 %v219, %v219
  %v252 = vpack.c.b16 %v220, %v220
  %v253 = vpack.c.b16 %v221, %v221
  %v254 = vpack.c.b16 %v222, %v222
  %v255 = vpack.c.b16 %v223, %v223
  %v256 = vpack.c.b16 %v224, %v224
  %v257 = vpack.c.b16 %v225, %v225
  %v258 = vpack.c.b16 %v226, %v226
  %v259 = vpack.c.b16 %v227, %v227
  %v260 = vpack.c.b16 %v228, %v228
  %v261 = vpack.c.b16 %v229, %v229
  %v262 = vpack.c.b16 %v230, %v230
  %v263 = vpack.c.b16 %v231, %v231
  %v264 = vpack.c.b16 %v232, %v232
  %v265 = vpack.c.b16 %v233, %v233
  %v266 = vpack.c.b16 %v234, %v234
  %v267 = vpack.c.b16 %v235, %v235
  %v268 = vpack.c.b16 %v236, %v236
  %v269 = vpack.c.b16 %v237, %v237
  %v270 = vpack.c.b16 %v238, %v238
  %v271 = vpack.c.b16 %v239, %v239
  %v272 = vpack.c.b16 %v240, %v240
  %v273 = vpack.c.b16 %v241, %v241
  %v274 = vpack.c.b16 %v242, %v242
  %v275 = vpack.c.b16 %v243, %v243
  %v276 = vpack.c.b16 %v244, %v244
  %v277 = vpack.c.b16 %v245, %v245
  %v278 = vpack.c.b16 %v246, %v246
  %279 = vrot.lane.b32.xlu0 %v247, 64
  %v280 = vpop.permute.xlu0 %279
  %281 = vrot.lane.b32.xlu0 %v248, 64
  %v282 = vpop.permute.xlu0 %281
  %283 = vrot.lane.b32.xlu0 %v249, 64
  %v284 = vpop.permute.xlu0 %283
  %285 = vrot.lane.b32.xlu0 %v250, 64
  %v286 = vpop.permute.xlu0 %285
  %287 = vrot.lane.b32.xlu0 %v251, 64
  %v288 = vpop.permute.xlu0 %287
  %289 = vrot.lane.b32.xlu0 %v252, 64
  %v290 = vpop.permute.xlu0 %289
  %291 = vrot.lane.b32.xlu0 %v253, 64
  %v292 = vpop.permute.xlu0 %291
  %293 = vrot.lane.b32.xlu0 %v254, 64
  %v294 = vpop.permute.xlu0 %293
  %295 = vrot.lane.b32.xlu0 %v255, 64
  %v296 = vpop.permute.xlu0 %295
  %297 = vrot.lane.b32.xlu0 %v256, 64
  %v298 = vpop.permute.xlu0 %297
  %299 = vrot.lane.b32.xlu0 %v257, 64
  %v300 = vpop.permute.xlu0 %299
  %301 = vrot.lane.b32.xlu0 %v258, 64
  %v302 = vpop.permute.xlu0 %301
  %303 = vrot.lane.b32.xlu0 %v259, 64
  %v304 = vpop.permute.xlu0 %303
  %305 = vrot.lane.b32.xlu0 %v260, 64
  %v306 = vpop.permute.xlu0 %305
  %307 = vrot.lane.b32.xlu0 %v261, 64
  %v308 = vpop.permute.xlu0 %307
  %309 = vrot.lane.b32.xlu0 %v262, 64
  %v310 = vpop.permute.xlu0 %309
  %311 = vrot.lane.b32.xlu0 %v263, 64
  %v312 = vpop.permute.xlu0 %311
  %313 = vrot.lane.b32.xlu0 %v264, 64
  %v314 = vpop.permute.xlu0 %313
  %315 = vrot.lane.b32.xlu0 %v265, 64
  %v316 = vpop.permute.xlu0 %315
  %317 = vrot.lane.b32.xlu0 %v266, 64
  %v318 = vpop.permute.xlu0 %317
  %319 = vrot.lane.b32.xlu0 %v267, 64
  %v320 = vpop.permute.xlu0 %319
  %321 = vrot.lane.b32.xlu0 %v268, 64
  %v322 = vpop.permute.xlu0 %321
  %323 = vrot.lane.b32.xlu0 %v269, 64
  %v324 = vpop.permute.xlu0 %323
  %325 = vrot.lane.b32.xlu0 %v270, 64
  %v326 = vpop.permute.xlu0 %325
  %327 = vrot.lane.b32.xlu0 %v271, 64
  %v328 = vpop.permute.xlu0 %327
  %329 = vrot.lane.b32.xlu0 %v272, 64
  %v330 = vpop.permute.xlu0 %329
  %331 = vrot.lane.b32.xlu0 %v273, 64
  %v332 = vpop.permute.xlu0 %331
  %333 = vrot.lane.b32.xlu0 %v274, 64
  %v334 = vpop.permute.xlu0 %333
  %335 = vrot.lane.b32.xlu0 %v275, 64
  %v336 = vpop.permute.xlu0 %335
  %337 = vrot.lane.b32.xlu0 %v276, 64
  %v338 = vpop.permute.xlu0 %337
  %339 = vrot.lane.b32.xlu0 %v277, 64
  %v340 = vpop.permute.xlu0 %339
  %341 = vrot.lane.b32.xlu0 %v278, 64
  %v342 = vpop.permute.xlu0 %341
  %v375 = vunpack.c.l.b16 %v53
  %v376 = vunpack.c.l.b16 %v54
  %v377 = vunpack.c.l.b16 %v55
  %v378 = vunpack.c.l.b16 %v56
  %v379 = vunpack.c.l.b16 %v71
  %v380 = vunpack.c.l.b16 %v72
  %v381 = vunpack.c.l.b16 %v73
  %v382 = vunpack.c.l.b16 %v74
  %v383 = vunpack.c.l.b16 %v89
  %v384 = vunpack.c.l.b16 %v90
  %v385 = vunpack.c.l.b16 %v91
  %v386 = vunpack.c.l.b16 %v92
  %v387 = vunpack.c.l.b16 %v107
  %v388 = vunpack.c.l.b16 %v108
  %v389 = vunpack.c.l.b16 %v109
  %v390 = vunpack.c.l.b16 %v110
  %v391 = vunpack.c.l.b16 %v125
  %v392 = vunpack.c.l.b16 %v126
  %v393 = vunpack.c.l.b16 %v127
  %v394 = vunpack.c.l.b16 %v128
  %v395 = vunpack.c.l.b16 %v143
  %v396 = vunpack.c.l.b16 %v144
  %v397 = vunpack.c.l.b16 %v145
  %v398 = vunpack.c.l.b16 %v146
  %v399 = vunpack.c.l.b16 %v161
  %v400 = vunpack.c.l.b16 %v162
  %v401 = vunpack.c.l.b16 %v163
  %v402 = vunpack.c.l.b16 %v164
  %v403 = vunpack.c.l.b16 %v179
  %v404 = vunpack.c.l.b16 %v180
  %v405 = vunpack.c.l.b16 %v181
  %v406 = vunpack.c.l.b16 %v182
  %v407 = vpack.c.b16 %v375, %v375
  %v408 = vpack.c.b16 %v376, %v376
  %v409 = vpack.c.b16 %v377, %v377
  %v410 = vpack.c.b16 %v378, %v378
  %v411 = vpack.c.b16 %v379, %v379
  %v412 = vpack.c.b16 %v380, %v380
  %v413 = vpack.c.b16 %v381, %v381
  %v414 = vpack.c.b16 %v382, %v382
  %v415 = vpack.c.b16 %v383, %v383
  %v416 = vpack.c.b16 %v384, %v384
  %v417 = vpack.c.b16 %v385, %v385
  %v418 = vpack.c.b16 %v386, %v386
  %v419 = vpack.c.b16 %v387, %v387
  %v420 = vpack.c.b16 %v388, %v388
  %v421 = vpack.c.b16 %v389, %v389
  %v422 = vpack.c.b16 %v390, %v390
  %v423 = vpack.c.b16 %v391, %v391
  %v424 = vpack.c.b16 %v392, %v392
  %v425 = vpack.c.b16 %v393, %v393
  %v426 = vpack.c.b16 %v394, %v394
  %v427 = vpack.c.b16 %v395, %v395
  %v428 = vpack.c.b16 %v396, %v396
  %v429 = vpack.c.b16 %v397, %v397
  %v430 = vpack.c.b16 %v398, %v398
  %v431 = vpack.c.b16 %v399, %v399
  %v432 = vpack.c.b16 %v400, %v400
  %v433 = vpack.c.b16 %v401, %v401
  %v434 = vpack.c.b16 %v402, %v402
  %v435 = vpack.c.b16 %v403, %v403
  %v436 = vpack.c.b16 %v404, %v404
  %v437 = vpack.c.b16 %v405, %v405
  %v438 = vpack.c.b16 %v406, %v406
  %439 = vrot.lane.b32.xlu0 %v407, 64
  %v440 = vpop.permute.xlu0 %439
  %441 = vrot.lane.b32.xlu0 %v408, 64
  %v442 = vpop.permute.xlu0 %441
  %443 = vrot.lane.b32.xlu0 %v409, 64
  %v444 = vpop.permute.xlu0 %443
  %445 = vrot.lane.b32.xlu0 %v410, 64
  %v446 = vpop.permute.xlu0 %445
  %447 = vrot.lane.b32.xlu0 %v411, 64
  %v448 = vpop.permute.xlu0 %447
  %449 = vrot.lane.b32.xlu0 %v412, 64
  %v450 = vpop.permute.xlu0 %449
  %451 = vrot.lane.b32.xlu0 %v413, 64
  %v452 = vpop.permute.xlu0 %451
  %453 = vrot.lane.b32.xlu0 %v414, 64
  %v454 = vpop.permute.xlu0 %453
  %455 = vrot.lane.b32.xlu0 %v415, 64
  %v456 = vpop.permute.xlu0 %455
  %457 = vrot.lane.b32.xlu0 %v416, 64
  %v458 = vpop.permute.xlu0 %457
  %459 = vrot.lane.b32.xlu0 %v417, 64
  %v460 = vpop.permute.xlu0 %459
  %461 = vrot.lane.b32.xlu0 %v418, 64
  %v462 = vpop.permute.xlu0 %461
  %463 = vrot.lane.b32.xlu0 %v419, 64
  %v464 = vpop.permute.xlu0 %463
  %465 = vrot.lane.b32.xlu0 %v420, 64
  %v466 = vpop.permute.xlu0 %465
  %467 = vrot.lane.b32.xlu0 %v421, 64
  %v468 = vpop.permute.xlu0 %467
  %469 = vrot.lane.b32.xlu0 %v422, 64
  %v470 = vpop.permute.xlu0 %469
  %471 = vrot.lane.b32.xlu0 %v423, 64
  %v472 = vpop.permute.xlu0 %471
  %473 = vrot.lane.b32.xlu0 %v424, 64
  %v474 = vpop.permute.xlu0 %473
  %475 = vrot.lane.b32.xlu0 %v425, 64
  %v476 = vpop.permute.xlu0 %475
  %477 = vrot.lane.b32.xlu0 %v426, 64
  %v478 = vpop.permute.xlu0 %477
  %479 = vrot.lane.b32.xlu0 %v427, 64
  %v480 = vpop.permute.xlu0 %479
  %481 = vrot.lane.b32.xlu0 %v428, 64
  %v482 = vpop.permute.xlu0 %481
  %483 = vrot.lane.b32.xlu0 %v429, 64
  %v484 = vpop.permute.xlu0 %483
  %485 = vrot.lane.b32.xlu0 %v430, 64
  %v486 = vpop.permute.xlu0 %485
  %487 = vrot.lane.b32.xlu0 %v431, 64
  %v488 = vpop.permute.xlu0 %487
  %489 = vrot.lane.b32.xlu0 %v432, 64
  %v490 = vpop.permute.xlu0 %489
  %491 = vrot.lane.b32.xlu0 %v433, 64
  %v492 = vpop.permute.xlu0 %491
  %493 = vrot.lane.b32.xlu0 %v434, 64
  %v494 = vpop.permute.xlu0 %493
  %495 = vrot.lane.b32.xlu0 %v435, 64
  %v496 = vpop.permute.xlu0 %495
  %497 = vrot.lane.b32.xlu0 %v436, 64
  %v498 = vpop.permute.xlu0 %497
  %499 = vrot.lane.b32.xlu0 %v437, 64
  %v500 = vpop.permute.xlu0 %499
  %501 = vrot.lane.b32.xlu0 %v438, 64
  %v502 = vpop.permute.xlu0 %501
  %vm503 = vcmask 523264
  %v506 = vsel %vm503, %v39, %v280
  %v509 = vsel %vm503, %v40, %v282
  %v512 = vsel %vm503, %v41, %v284
  %v515 = vsel %vm503, %v42, %v286
  %v518 = vsel %vm503, %v57, %v288
  %v521 = vsel %vm503, %v58, %v290
  %v524 = vsel %vm503, %v59, %v292
  %v527 = vsel %vm503, %v60, %v294
  %v530 = vsel %vm503, %v75, %v296
  %v533 = vsel %vm503, %v76, %v298
  %v536 = vsel %vm503, %v77, %v300
  %v539 = vsel %vm503, %v78, %v302
  %v542 = vsel %vm503, %v93, %v304
  %v545 = vsel %vm503, %v94, %v306
  %v548 = vsel %vm503, %v95, %v308
  %v551 = vsel %vm503, %v96, %v310
  %v554 = vsel %vm503, %v111, %v312
  %v557 = vsel %vm503, %v112, %v314
  %v560 = vsel %vm503, %v113, %v316
  %v563 = vsel %vm503, %v114, %v318
  %v566 = vsel %vm503, %v129, %v320
  %v569 = vsel %vm503, %v130, %v322
  %v572 = vsel %vm503, %v131, %v324
  %v575 = vsel %vm503, %v132, %v326
  %v578 = vsel %vm503, %v147, %v328
  %v581 = vsel %vm503, %v148, %v330
  %v584 = vsel %vm503, %v149, %v332
  %v587 = vsel %vm503, %v150, %v334
  %v590 = vsel %vm503, %v165, %v336
  %v593 = vsel %vm503, %v166, %v338
  %v596 = vsel %vm503, %v167, %v340
  %v599 = vsel %vm503, %v168, %v342
  %v602 = vsel %vm503, %v49, %v440
  %v605 = vsel %vm503, %v50, %v442
  %v608 = vsel %vm503, %v51, %v444
  %v611 = vsel %vm503, %v52, %v446
  %v614 = vsel %vm503, %v67, %v448
  %v617 = vsel %vm503, %v68, %v450
  %v620 = vsel %vm503, %v69, %v452
  %v623 = vsel %vm503, %v70, %v454
  %v626 = vsel %vm503, %v85, %v456
  %v629 = vsel %vm503, %v86, %v458
  %v632 = vsel %vm503, %v87, %v460
  %v635 = vsel %vm503, %v88, %v462
  %v638 = vsel %vm503, %v103, %v464
  %v641 = vsel %vm503, %v104, %v466
  %v644 = vsel %vm503, %v105, %v468
  %v647 = vsel %vm503, %v106, %v470
  %v650 = vsel %vm503, %v121, %v472
  %v653 = vsel %vm503, %v122, %v474
  %v656 = vsel %vm503, %v123, %v476
  %v659 = vsel %vm503, %v124, %v478
  %v662 = vsel %vm503, %v139, %v480
  %v665 = vsel %vm503, %v140, %v482
  %v668 = vsel %vm503, %v141, %v484
  %v671 = vsel %vm503, %v142, %v486
  %v674 = vsel %vm503, %v157, %v488
  %v677 = vsel %vm503, %v158, %v490
  %v680 = vsel %vm503, %v159, %v492
  %v683 = vsel %vm503, %v160, %v494
  %v686 = vsel %vm503, %v175, %v496
  %v689 = vsel %vm503, %v176, %v498
  %v692 = vsel %vm503, %v177, %v500
  %v695 = vsel %vm503, %v178, %v502
  %v760 = vcombine.low %v506, %v602
  %v762 = vunpack.c.l.s4 1983009808
  %v763 = vunpack.c.0.s8 %v762
  %v764 = vlaneseq
  %v765 = vshrl.u32 %v764, 7
  %v766 = vsub.s32 %v763, %v765
  %v767 = vrot.slane %v760, %v766
  %v768 = vcombine.low %v509, %v605
  %v770 = vunpack.c.l.s4 1983009808
  %v771 = vunpack.c.0.s8 %v770
  %v772 = vlaneseq
  %v773 = vshrl.u32 %v772, 7
  %v774 = vsub.s32 %v771, %v773
  %v775 = vrot.slane %v768, %v774
  %v776 = vcombine.low %v512, %v608
  %v778 = vunpack.c.l.s4 1983009808
  %v779 = vunpack.c.0.s8 %v778
  %v780 = vlaneseq
  %v781 = vshrl.u32 %v780, 7
  %v782 = vsub.s32 %v779, %v781
  %v783 = vrot.slane %v776, %v782
  %v784 = vcombine.low %v515, %v611
  %v786 = vunpack.c.l.s4 1983009808
  %v787 = vunpack.c.0.s8 %v786
  %v788 = vlaneseq
  %v789 = vshrl.u32 %v788, 7
  %v790 = vsub.s32 %v787, %v789
  %v791 = vrot.slane %v784, %v790
  %v792 = vcombine.low %v518, %v614
  %v794 = vunpack.c.l.s4 1983009808
  %v795 = vunpack.c.0.s8 %v794
  %v796 = vlaneseq
  %v797 = vshrl.u32 %v796, 7
  %v798 = vsub.s32 %v795, %v797
  %v799 = vrot.slane %v792, %v798
  %v800 = vcombine.low %v521, %v617
  %v802 = vunpack.c.l.s4 1983009808
  %v803 = vunpack.c.0.s8 %v802
  %v804 = vlaneseq
  %v805 = vshrl.u32 %v804, 7
  %v806 = vsub.s32 %v803, %v805
  %v807 = vrot.slane %v800, %v806
  %v808 = vcombine.low %v524, %v620
  %v810 = vunpack.c.l.s4 1983009808
  %v811 = vunpack.c.0.s8 %v810
  %v812 = vlaneseq
  %v813 = vshrl.u32 %v812, 7
  %v814 = vsub.s32 %v811, %v813
  %v815 = vrot.slane %v808, %v814
  %v816 = vcombine.low %v527, %v623
  %v818 = vunpack.c.l.s4 1983009808
  %v819 = vunpack.c.0.s8 %v818
  %v820 = vlaneseq
  %v821 = vshrl.u32 %v820, 7
  %v822 = vsub.s32 %v819, %v821
  %v823 = vrot.slane %v816, %v822
  %v824 = vcombine.low %v530, %v626
  %v826 = vunpack.c.l.s4 1983009808
  %v827 = vunpack.c.0.s8 %v826
  %v828 = vlaneseq
  %v829 = vshrl.u32 %v828, 7
  %v830 = vsub.s32 %v827, %v829
  %v831 = vrot.slane %v824, %v830
  %v832 = vcombine.low %v533, %v629
  %v834 = vunpack.c.l.s4 1983009808
  %v835 = vunpack.c.0.s8 %v834
  %v836 = vlaneseq
  %v837 = vshrl.u32 %v836, 7
  %v838 = vsub.s32 %v835, %v837
  %v839 = vrot.slane %v832, %v838
  %v840 = vcombine.low %v536, %v632
  %v842 = vunpack.c.l.s4 1983009808
  %v843 = vunpack.c.0.s8 %v842
  %v844 = vlaneseq
  %v845 = vshrl.u32 %v844, 7
  %v846 = vsub.s32 %v843, %v845
  %v847 = vrot.slane %v840, %v846
  %v848 = vcombine.low %v539, %v635
  %v850 = vunpack.c.l.s4 1983009808
  %v851 = vunpack.c.0.s8 %v850
  %v852 = vlaneseq
  %v853 = vshrl.u32 %v852, 7
  %v854 = vsub.s32 %v851, %v853
  %v855 = vrot.slane %v848, %v854
  %v856 = vcombine.low %v542, %v638
  %v858 = vunpack.c.l.s4 1983009808
  %v859 = vunpack.c.0.s8 %v858
  %v860 = vlaneseq
  %v861 = vshrl.u32 %v860, 7
  %v862 = vsub.s32 %v859, %v861
  %v863 = vrot.slane %v856, %v862
  %v864 = vcombine.low %v545, %v641
  %v866 = vunpack.c.l.s4 1983009808
  %v867 = vunpack.c.0.s8 %v866
  %v868 = vlaneseq
  %v869 = vshrl.u32 %v868, 7
  %v870 = vsub.s32 %v867, %v869
  %v871 = vrot.slane %v864, %v870
  %v872 = vcombine.low %v548, %v644
  %v874 = vunpack.c.l.s4 1983009808
  %v875 = vunpack.c.0.s8 %v874
  %v876 = vlaneseq
  %v877 = vshrl.u32 %v876, 7
  %v878 = vsub.s32 %v875, %v877
  %v879 = vrot.slane %v872, %v878
  %v880 = vcombine.low %v551, %v647
  %v882 = vunpack.c.l.s4 1983009808
  %v883 = vunpack.c.0.s8 %v882
  %v884 = vlaneseq
  %v885 = vshrl.u32 %v884, 7
  %v886 = vsub.s32 %v883, %v885
  %v887 = vrot.slane %v880, %v886
  %v888 = vcombine.low %v554, %v650
  %v890 = vunpack.c.l.s4 1983009808
  %v891 = vunpack.c.0.s8 %v890
  %v892 = vlaneseq
  %v893 = vshrl.u32 %v892, 7
  %v894 = vsub.s32 %v891, %v893
  %v895 = vrot.slane %v888, %v894
  %v896 = vcombine.low %v557, %v653
  %v898 = vunpack.c.l.s4 1983009808
  %v899 = vunpack.c.0.s8 %v898
  %v900 = vlaneseq
  %v901 = vshrl.u32 %v900, 7
  %v902 = vsub.s32 %v899, %v901
  %v903 = vrot.slane %v896, %v902
  %v904 = vcombine.low %v560, %v656
  %v906 = vunpack.c.l.s4 1983009808
  %v907 = vunpack.c.0.s8 %v906
  %v908 = vlaneseq
  %v909 = vshrl.u32 %v908, 7
  %v910 = vsub.s32 %v907, %v909
  %v911 = vrot.slane %v904, %v910
  %v912 = vcombine.low %v563, %v659
  %v914 = vunpack.c.l.s4 1983009808
  %v915 = vunpack.c.0.s8 %v914
  %v916 = vlaneseq
  %v917 = vshrl.u32 %v916, 7
  %v918 = vsub.s32 %v915, %v917
  %v919 = vrot.slane %v912, %v918
  %v920 = vcombine.low %v566, %v662
  %v922 = vunpack.c.l.s4 1983009808
  %v923 = vunpack.c.0.s8 %v922
  %v924 = vlaneseq
  %v925 = vshrl.u32 %v924, 7
  %v926 = vsub.s32 %v923, %v925
  %v927 = vrot.slane %v920, %v926
  %v928 = vcombine.low %v569, %v665
  %v930 = vunpack.c.l.s4 1983009808
  %v931 = vunpack.c.0.s8 %v930
  %v932 = vlaneseq
  %v933 = vshrl.u32 %v932, 7
  %v934 = vsub.s32 %v931, %v933
  %v935 = vrot.slane %v928, %v934
  %v936 = vcombine.low %v572, %v668
  %v938 = vunpack.c.l.s4 1983009808
  %v939 = vunpack.c.0.s8 %v938
  %v940 = vlaneseq
  %v941 = vshrl.u32 %v940, 7
  %v942 = vsub.s32 %v939, %v941
  %v943 = vrot.slane %v936, %v942
  %v944 = vcombine.low %v575, %v671
  %v946 = vunpack.c.l.s4 1983009808
  %v947 = vunpack.c.0.s8 %v946
  %v948 = vlaneseq
  %v949 = vshrl.u32 %v948, 7
  %v950 = vsub.s32 %v947, %v949
  %v951 = vrot.slane %v944, %v950
  %v952 = vcombine.low %v578, %v674
  %v954 = vunpack.c.l.s4 1983009808
  %v955 = vunpack.c.0.s8 %v954
  %v956 = vlaneseq
  %v957 = vshrl.u32 %v956, 7
  %v958 = vsub.s32 %v955, %v957
  %v959 = vrot.slane %v952, %v958
  %v960 = vcombine.low %v581, %v677
  %v962 = vunpack.c.l.s4 1983009808
  %v963 = vunpack.c.0.s8 %v962
  %v964 = vlaneseq
  %v965 = vshrl.u32 %v964, 7
  %v966 = vsub.s32 %v963, %v965
  %v967 = vrot.slane %v960, %v966
  %v968 = vcombine.low %v584, %v680
  %v970 = vunpack.c.l.s4 1983009808
  %v971 = vunpack.c.0.s8 %v970
  %v972 = vlaneseq
  %v973 = vshrl.u32 %v972, 7
  %v974 = vsub.s32 %v971, %v973
  %v975 = vrot.slane %v968, %v974
  %v976 = vcombine.low %v587, %v683
  %v978 = vunpack.c.l.s4 1983009808
  %v979 = vunpack.c.0.s8 %v978
  %v980 = vlaneseq
  %v981 = vshrl.u32 %v980, 7
  %v982 = vsub.s32 %v979, %v981
  %v983 = vrot.slane %v976, %v982
  %v984 = vcombine.low %v590, %v686
  %v986 = vunpack.c.l.s4 1983009808
  %v987 = vunpack.c.0.s8 %v986
  %v988 = vlaneseq
  %v989 = vshrl.u32 %v988, 7
  %v990 = vsub.s32 %v987, %v989
  %v991 = vrot.slane %v984, %v990
  %v992 = vcombine.low %v593, %v689
  %v994 = vunpack.c.l.s4 1983009808
  %v995 = vunpack.c.0.s8 %v994
  %v996 = vlaneseq
  %v997 = vshrl.u32 %v996, 7
  %v998 = vsub.s32 %v995, %v997
  %v999 = vrot.slane %v992, %v998
  %v1000 = vcombine.low %v596, %v692
  %v1002 = vunpack.c.l.s4 1983009808
  %v1003 = vunpack.c.0.s8 %v1002
  %v1004 = vlaneseq
  %v1005 = vshrl.u32 %v1004, 7
  %v1006 = vsub.s32 %v1003, %v1005
  %v1007 = vrot.slane %v1000, %v1006
  %v1008 = vcombine.low %v599, %v695
  %v1010 = vunpack.c.l.s4 1983009808
  %v1011 = vunpack.c.0.s8 %v1010
  %v1012 = vlaneseq
  %v1013 = vshrl.u32 %v1012, 7
  %v1014 = vsub.s32 %v1011, %v1013
  %v1015 = vrot.slane %v1008, %v1014
  %v1048 = vunpack.c.l.b16 %v39
  %v1049 = vunpack.c.l.b16 %v40
  %v1050 = vunpack.c.l.b16 %v41
  %v1051 = vunpack.c.l.b16 %v42
  %v1052 = vunpack.c.l.b16 %v57
  %v1053 = vunpack.c.l.b16 %v58
  %v1054 = vunpack.c.l.b16 %v59
  %v1055 = vunpack.c.l.b16 %v60
  %v1056 = vunpack.c.l.b16 %v75
  %v1057 = vunpack.c.l.b16 %v76
  %v1058 = vunpack.c.l.b16 %v77
  %v1059 = vunpack.c.l.b16 %v78
  %v1060 = vunpack.c.l.b16 %v93
  %v1061 = vunpack.c.l.b16 %v94
  %v1062 = vunpack.c.l.b16 %v95
  %v1063 = vunpack.c.l.b16 %v96
  %v1064 = vunpack.c.l.b16 %v111
  %v1065 = vunpack.c.l.b16 %v112
  %v1066 = vunpack.c.l.b16 %v113
  %v1067 = vunpack.c.l.b16 %v114
  %v1068 = vunpack.c.l.b16 %v129
  %v1069 = vunpack.c.l.b16 %v130
  %v1070 = vunpack.c.l.b16 %v131
  %v1071 = vunpack.c.l.b16 %v132
  %v1072 = vunpack.c.l.b16 %v147
  %v1073 = vunpack.c.l.b16 %v148
  %v1074 = vunpack.c.l.b16 %v149
  %v1075 = vunpack.c.l.b16 %v150
  %v1076 = vunpack.c.l.b16 %v165
  %v1077 = vunpack.c.l.b16 %v166
  %v1078 = vunpack.c.l.b16 %v167
  %v1079 = vunpack.c.l.b16 %v168
  %v1080 = vpack.c.b16 %v1048, %v1048
  %v1081 = vpack.c.b16 %v1049, %v1049
  %v1082 = vpack.c.b16 %v1050, %v1050
  %v1083 = vpack.c.b16 %v1051, %v1051
  %v1084 = vpack.c.b16 %v1052, %v1052
  %v1085 = vpack.c.b16 %v1053, %v1053
  %v1086 = vpack.c.b16 %v1054, %v1054
  %v1087 = vpack.c.b16 %v1055, %v1055
  %v1088 = vpack.c.b16 %v1056, %v1056
  %v1089 = vpack.c.b16 %v1057, %v1057
  %v1090 = vpack.c.b16 %v1058, %v1058
  %v1091 = vpack.c.b16 %v1059, %v1059
  %v1092 = vpack.c.b16 %v1060, %v1060
  %v1093 = vpack.c.b16 %v1061, %v1061
  %v1094 = vpack.c.b16 %v1062, %v1062
  %v1095 = vpack.c.b16 %v1063, %v1063
  %v1096 = vpack.c.b16 %v1064, %v1064
  %v1097 = vpack.c.b16 %v1065, %v1065
  %v1098 = vpack.c.b16 %v1066, %v1066
  %v1099 = vpack.c.b16 %v1067, %v1067
  %v1100 = vpack.c.b16 %v1068, %v1068
  %v1101 = vpack.c.b16 %v1069, %v1069
  %v1102 = vpack.c.b16 %v1070, %v1070
  %v1103 = vpack.c.b16 %v1071, %v1071
  %v1104 = vpack.c.b16 %v1072, %v1072
  %v1105 = vpack.c.b16 %v1073, %v1073
  %v1106 = vpack.c.b16 %v1074, %v1074
  %v1107 = vpack.c.b16 %v1075, %v1075
  %v1108 = vpack.c.b16 %v1076, %v1076
  %v1109 = vpack.c.b16 %v1077, %v1077
  %v1110 = vpack.c.b16 %v1078, %v1078
  %v1111 = vpack.c.b16 %v1079, %v1079
  %v1113 = vshrl.u32 %v1080, 16
  %v1115 = vshll.u32 %v1080, 16
  %v1117 = vrot.slane %v1115, 1
  %v1118 = vor.u32 %v1113, %v1117
  %v1120 = vshrl.u32 %v1081, 16
  %v1122 = vshll.u32 %v1081, 16
  %v1124 = vrot.slane %v1122, 1
  %v1125 = vor.u32 %v1120, %v1124
  %v1127 = vshrl.u32 %v1082, 16
  %v1129 = vshll.u32 %v1082, 16
  %v1131 = vrot.slane %v1129, 1
  %v1132 = vor.u32 %v1127, %v1131
  %v1134 = vshrl.u32 %v1083, 16
  %v1136 = vshll.u32 %v1083, 16
  %v1138 = vrot.slane %v1136, 1
  %v1139 = vor.u32 %v1134, %v1138
  %v1141 = vshrl.u32 %v1084, 16
  %v1143 = vshll.u32 %v1084, 16
  %v1145 = vrot.slane %v1143, 1
  %v1146 = vor.u32 %v1141, %v1145
  %v1148 = vshrl.u32 %v1085, 16
  %v1150 = vshll.u32 %v1085, 16
  %v1152 = vrot.slane %v1150, 1
  %v1153 = vor.u32 %v1148, %v1152
  %v1155 = vshrl.u32 %v1086, 16
  %v1157 = vshll.u32 %v1086, 16
  %v1159 = vrot.slane %v1157, 1
  %v1160 = vor.u32 %v1155, %v1159
  %v1162 = vshrl.u32 %v1087, 16
  %v1164 = vshll.u32 %v1087, 16
  %v1166 = vrot.slane %v1164, 1
  %v1167 = vor.u32 %v1162, %v1166
  %v1169 = vshrl.u32 %v1088, 16
  %v1171 = vshll.u32 %v1088, 16
  %v1173 = vrot.slane %v1171, 1
  %v1174 = vor.u32 %v1169, %v1173
  %v1176 = vshrl.u32 %v1089, 16
  %v1178 = vshll.u32 %v1089, 16
  %v1180 = vrot.slane %v1178, 1
  %v1181 = vor.u32 %v1176, %v1180
  %v1183 = vshrl.u32 %v1090, 16
  %v1185 = vshll.u32 %v1090, 16
  %v1187 = vrot.slane %v1185, 1
  %v1188 = vor.u32 %v1183, %v1187
  %v1190 = vshrl.u32 %v1091, 16
  %v1192 = vshll.u32 %v1091, 16
  %v1194 = vrot.slane %v1192, 1
  %v1195 = vor.u32 %v1190, %v1194
  %v1197 = vshrl.u32 %v1092, 16
  %v1199 = vshll.u32 %v1092, 16
  %v1201 = vrot.slane %v1199, 1
  %v1202 = vor.u32 %v1197, %v1201
  %v1204 = vshrl.u32 %v1093, 16
  %v1206 = vshll.u32 %v1093, 16
  %v1208 = vrot.slane %v1206, 1
  %v1209 = vor.u32 %v1204, %v1208
  %v1211 = vshrl.u32 %v1094, 16
  %v1213 = vshll.u32 %v1094, 16
  %v1215 = vrot.slane %v1213, 1
  %v1216 = vor.u32 %v1211, %v1215
  %v1218 = vshrl.u32 %v1095, 16
  %v1220 = vshll.u32 %v1095, 16
  %v1222 = vrot.slane %v1220, 1
  %v1223 = vor.u32 %v1218, %v1222
  %v1225 = vshrl.u32 %v1096, 16
  %v1227 = vshll.u32 %v1096, 16
  %v1229 = vrot.slane %v1227, 1
  %v1230 = vor.u32 %v1225, %v1229
  %v1232 = vshrl.u32 %v1097, 16
  %v1234 = vshll.u32 %v1097, 16
  %v1236 = vrot.slane %v1234, 1
  %v1237 = vor.u32 %v1232, %v1236
  %v1239 = vshrl.u32 %v1098, 16
  %v1241 = vshll.u32 %v1098, 16
  %v1243 = vrot.slane %v1241, 1
  %v1244 = vor.u32 %v1239, %v1243
  %v1246 = vshrl.u32 %v1099, 16
  %v1248 = vshll.u32 %v1099, 16
  %v1250 = vrot.slane %v1248, 1
  %v1251 = vor.u32 %v1246, %v1250
  %v1253 = vshrl.u32 %v1100, 16
  %v1255 = vshll.u32 %v1100, 16
  %v1257 = vrot.slane %v1255, 1
  %v1258 = vor.u32 %v1253, %v1257
  %v1260 = vshrl.u32 %v1101, 16
  %v1262 = vshll.u32 %v1101, 16
  %v1264 = vrot.slane %v1262, 1
  %v1265 = vor.u32 %v1260, %v1264
  %v1267 = vshrl.u32 %v1102, 16
  %v1269 = vshll.u32 %v1102, 16
  %v1271 = vrot.slane %v1269, 1
  %v1272 = vor.u32 %v1267, %v1271
  %v1274 = vshrl.u32 %v1103, 16
  %v1276 = vshll.u32 %v1103, 16
  %v1278 = vrot.slane %v1276, 1
  %v1279 = vor.u32 %v1274, %v1278
  %v1281 = vshrl.u32 %v1104, 16
  %v1283 = vshll.u32 %v1104, 16
  %v1285 = vrot.slane %v1283, 1
  %v1286 = vor.u32 %v1281, %v1285
  %v1288 = vshrl.u32 %v1105, 16
  %v1290 = vshll.u32 %v1105, 16
  %v1292 = vrot.slane %v1290, 1
  %v1293 = vor.u32 %v1288, %v1292
  %v1295 = vshrl.u32 %v1106, 16
  %v1297 = vshll.u32 %v1106, 16
  %v1299 = vrot.slane %v1297, 1
  %v1300 = vor.u32 %v1295, %v1299
  %v1302 = vshrl.u32 %v1107, 16
  %v1304 = vshll.u32 %v1107, 16
  %v1306 = vrot.slane %v1304, 1
  %v1307 = vor.u32 %v1302, %v1306
  %v1309 = vshrl.u32 %v1108, 16
  %v1311 = vshll.u32 %v1108, 16
  %v1313 = vrot.slane %v1311, 1
  %v1314 = vor.u32 %v1309, %v1313
  %v1316 = vshrl.u32 %v1109, 16
  %v1318 = vshll.u32 %v1109, 16
  %v1320 = vrot.slane %v1318, 1
  %v1321 = vor.u32 %v1316, %v1320
  %v1323 = vshrl.u32 %v1110, 16
  %v1325 = vshll.u32 %v1110, 16
  %v1327 = vrot.slane %v1325, 1
  %v1328 = vor.u32 %v1323, %v1327
  %v1330 = vshrl.u32 %v1111, 16
  %v1332 = vshll.u32 %v1111, 16
  %v1334 = vrot.slane %v1332, 1
  %v1335 = vor.u32 %v1330, %v1334
  %1336 = vrot.lane.b32.xlu0 %v1118, 64
  %v1337 = vpop.permute.xlu0 %1336
  %1338 = vrot.lane.b32.xlu0 %v1125, 64
  %v1339 = vpop.permute.xlu0 %1338
  %1340 = vrot.lane.b32.xlu0 %v1132, 64
  %v1341 = vpop.permute.xlu0 %1340
  %1342 = vrot.lane.b32.xlu0 %v1139, 64
  %v1343 = vpop.permute.xlu0 %1342
  %1344 = vrot.lane.b32.xlu0 %v1146, 64
  %v1345 = vpop.permute.xlu0 %1344
  %1346 = vrot.lane.b32.xlu0 %v1153, 64
  %v1347 = vpop.permute.xlu0 %1346
  %1348 = vrot.lane.b32.xlu0 %v1160, 64
  %v1349 = vpop.permute.xlu0 %1348
  %1350 = vrot.lane.b32.xlu0 %v1167, 64
  %v1351 = vpop.permute.xlu0 %1350
  %1352 = vrot.lane.b32.xlu0 %v1174, 64
  %v1353 = vpop.permute.xlu0 %1352
  %1354 = vrot.lane.b32.xlu0 %v1181, 64
  %v1355 = vpop.permute.xlu0 %1354
  %1356 = vrot.lane.b32.xlu0 %v1188, 64
  %v1357 = vpop.permute.xlu0 %1356
  %1358 = vrot.lane.b32.xlu0 %v1195, 64
  %v1359 = vpop.permute.xlu0 %1358
  %1360 = vrot.lane.b32.xlu0 %v1202, 64
  %v1361 = vpop.permute.xlu0 %1360
  %1362 = vrot.lane.b32.xlu0 %v1209, 64
  %v1363 = vpop.permute.xlu0 %1362
  %1364 = vrot.lane.b32.xlu0 %v1216, 64
  %v1365 = vpop.permute.xlu0 %1364
  %1366 = vrot.lane.b32.xlu0 %v1223, 64
  %v1367 = vpop.permute.xlu0 %1366
  %1368 = vrot.lane.b32.xlu0 %v1230, 64
  %v1369 = vpop.permute.xlu0 %1368
  %1370 = vrot.lane.b32.xlu0 %v1237, 64
  %v1371 = vpop.permute.xlu0 %1370
  %1372 = vrot.lane.b32.xlu0 %v1244, 64
  %v1373 = vpop.permute.xlu0 %1372
  %1374 = vrot.lane.b32.xlu0 %v1251, 64
  %v1375 = vpop.permute.xlu0 %1374
  %1376 = vrot.lane.b32.xlu0 %v1258, 64
  %v1377 = vpop.permute.xlu0 %1376
  %1378 = vrot.lane.b32.xlu0 %v1265, 64
  %v1379 = vpop.permute.xlu0 %1378
  %1380 = vrot.lane.b32.xlu0 %v1272, 64
  %v1381 = vpop.permute.xlu0 %1380
  %1382 = vrot.lane.b32.xlu0 %v1279, 64
  %v1383 = vpop.permute.xlu0 %1382
  %1384 = vrot.lane.b32.xlu0 %v1286, 64
  %v1385 = vpop.permute.xlu0 %1384
  %1386 = vrot.lane.b32.xlu0 %v1293, 64
  %v1387 = vpop.permute.xlu0 %1386
  %1388 = vrot.lane.b32.xlu0 %v1300, 64
  %v1389 = vpop.permute.xlu0 %1388
  %1390 = vrot.lane.b32.xlu0 %v1307, 64
  %v1391 = vpop.permute.xlu0 %1390
  %1392 = vrot.lane.b32.xlu0 %v1314, 64
  %v1393 = vpop.permute.xlu0 %1392
  %1394 = vrot.lane.b32.xlu0 %v1321, 64
  %v1395 = vpop.permute.xlu0 %1394
  %1396 = vrot.lane.b32.xlu0 %v1328, 64
  %v1397 = vpop.permute.xlu0 %1396
  %1398 = vrot.lane.b32.xlu0 %v1335, 64
  %v1399 = vpop.permute.xlu0 %1398
  %v1432 = vunpack.c.l.b16 %v49
  %v1433 = vunpack.c.l.b16 %v50
  %v1434 = vunpack.c.l.b16 %v51
  %v1435 = vunpack.c.l.b16 %v52
  %v1436 = vunpack.c.l.b16 %v67
  %v1437 = vunpack.c.l.b16 %v68
  %v1438 = vunpack.c.l.b16 %v69
  %v1439 = vunpack.c.l.b16 %v70
  %v1440 = vunpack.c.l.b16 %v85
  %v1441 = vunpack.c.l.b16 %v86
  %v1442 = vunpack.c.l.b16 %v87
  %v1443 = vunpack.c.l.b16 %v88
  %v1444 = vunpack.c.l.b16 %v103
  %v1445 = vunpack.c.l.b16 %v104
  %v1446 = vunpack.c.l.b16 %v105
  %v1447 = vunpack.c.l.b16 %v106
  %v1448 = vunpack.c.l.b16 %v121
  %v1449 = vunpack.c.l.b16 %v122
  %v1450 = vunpack.c.l.b16 %v123
  %v1451 = vunpack.c.l.b16 %v124
  %v1452 = vunpack.c.l.b16 %v139
  %v1453 = vunpack.c.l.b16 %v140
  %v1454 = vunpack.c.l.b16 %v141
  %v1455 = vunpack.c.l.b16 %v142
  %v1456 = vunpack.c.l.b16 %v157
  %v1457 = vunpack.c.l.b16 %v158
  %v1458 = vunpack.c.l.b16 %v159
  %v1459 = vunpack.c.l.b16 %v160
  %v1460 = vunpack.c.l.b16 %v175
  %v1461 = vunpack.c.l.b16 %v176
  %v1462 = vunpack.c.l.b16 %v177
  %v1463 = vunpack.c.l.b16 %v178
  %v1464 = vpack.c.b16 %v1432, %v1432
  %v1465 = vpack.c.b16 %v1433, %v1433
  %v1466 = vpack.c.b16 %v1434, %v1434
  %v1467 = vpack.c.b16 %v1435, %v1435
  %v1468 = vpack.c.b16 %v1436, %v1436
  %v1469 = vpack.c.b16 %v1437, %v1437
  %v1470 = vpack.c.b16 %v1438, %v1438
  %v1471 = vpack.c.b16 %v1439, %v1439
  %v1472 = vpack.c.b16 %v1440, %v1440
  %v1473 = vpack.c.b16 %v1441, %v1441
  %v1474 = vpack.c.b16 %v1442, %v1442
  %v1475 = vpack.c.b16 %v1443, %v1443
  %v1476 = vpack.c.b16 %v1444, %v1444
  %v1477 = vpack.c.b16 %v1445, %v1445
  %v1478 = vpack.c.b16 %v1446, %v1446
  %v1479 = vpack.c.b16 %v1447, %v1447
  %v1480 = vpack.c.b16 %v1448, %v1448
  %v1481 = vpack.c.b16 %v1449, %v1449
  %v1482 = vpack.c.b16 %v1450, %v1450
  %v1483 = vpack.c.b16 %v1451, %v1451
  %v1484 = vpack.c.b16 %v1452, %v1452
  %v1485 = vpack.c.b16 %v1453, %v1453
  %v1486 = vpack.c.b16 %v1454, %v1454
  %v1487 = vpack.c.b16 %v1455, %v1455
  %v1488 = vpack.c.b16 %v1456, %v1456
  %v1489 = vpack.c.b16 %v1457, %v1457
  %v1490 = vpack.c.b16 %v1458, %v1458
  %v1491 = vpack.c.b16 %v1459, %v1459
  %v1492 = vpack.c.b16 %v1460, %v1460
  %v1493 = vpack.c.b16 %v1461, %v1461
  %v1494 = vpack.c.b16 %v1462, %v1462
  %v1495 = vpack.c.b16 %v1463, %v1463
  %v1497 = vshrl.u32 %v1464, 16
  %v1499 = vshll.u32 %v1464, 16
  %v1501 = vrot.slane %v1499, 1
  %v1502 = vor.u32 %v1497, %v1501
  %v1504 = vshrl.u32 %v1465, 16
  %v1506 = vshll.u32 %v1465, 16
  %v1508 = vrot.slane %v1506, 1
  %v1509 = vor.u32 %v1504, %v1508
  %v1511 = vshrl.u32 %v1466, 16
  %v1513 = vshll.u32 %v1466, 16
  %v1515 = vrot.slane %v1513, 1
  %v1516 = vor.u32 %v1511, %v1515
  %v1518 = vshrl.u32 %v1467, 16
  %v1520 = vshll.u32 %v1467, 16
  %v1522 = vrot.slane %v1520, 1
  %v1523 = vor.u32 %v1518, %v1522
  %v1525 = vshrl.u32 %v1468, 16
  %v1527 = vshll.u32 %v1468, 16
  %v1529 = vrot.slane %v1527, 1
  %v1530 = vor.u32 %v1525, %v1529
  %v1532 = vshrl.u32 %v1469, 16
  %v1534 = vshll.u32 %v1469, 16
  %v1536 = vrot.slane %v1534, 1
  %v1537 = vor.u32 %v1532, %v1536
  %v1539 = vshrl.u32 %v1470, 16
  %v1541 = vshll.u32 %v1470, 16
  %v1543 = vrot.slane %v1541, 1
  %v1544 = vor.u32 %v1539, %v1543
  %v1546 = vshrl.u32 %v1471, 16
  %v1548 = vshll.u32 %v1471, 16
  %v1550 = vrot.slane %v1548, 1
  %v1551 = vor.u32 %v1546, %v1550
  %v1553 = vshrl.u32 %v1472, 16
  %v1555 = vshll.u32 %v1472, 16
  %v1557 = vrot.slane %v1555, 1
  %v1558 = vor.u32 %v1553, %v1557
  %v1560 = vshrl.u32 %v1473, 16
  %v1562 = vshll.u32 %v1473, 16
  %v1564 = vrot.slane %v1562, 1
  %v1565 = vor.u32 %v1560, %v1564
  %v1567 = vshrl.u32 %v1474, 16
  %v1569 = vshll.u32 %v1474, 16
  %v1571 = vrot.slane %v1569, 1
  %v1572 = vor.u32 %v1567, %v1571
  %v1574 = vshrl.u32 %v1475, 16
  %v1576 = vshll.u32 %v1475, 16
  %v1578 = vrot.slane %v1576, 1
  %v1579 = vor.u32 %v1574, %v1578
  %v1581 = vshrl.u32 %v1476, 16
  %v1583 = vshll.u32 %v1476, 16
  %v1585 = vrot.slane %v1583, 1
  %v1586 = vor.u32 %v1581, %v1585
  %v1588 = vshrl.u32 %v1477, 16
  %v1590 = vshll.u32 %v1477, 16
  %v1592 = vrot.slane %v1590, 1
  %v1593 = vor.u32 %v1588, %v1592
  %v1595 = vshrl.u32 %v1478, 16
  %v1597 = vshll.u32 %v1478, 16
  %v1599 = vrot.slane %v1597, 1
  %v1600 = vor.u32 %v1595, %v1599
  %v1602 = vshrl.u32 %v1479, 16
  %v1604 = vshll.u32 %v1479, 16
  %v1606 = vrot.slane %v1604, 1
  %v1607 = vor.u32 %v1602, %v1606
  %v1609 = vshrl.u32 %v1480, 16
  %v1611 = vshll.u32 %v1480, 16
  %v1613 = vrot.slane %v1611, 1
  %v1614 = vor.u32 %v1609, %v1613
  %v1616 = vshrl.u32 %v1481, 16
  %v1618 = vshll.u32 %v1481, 16
  %v1620 = vrot.slane %v1618, 1
  %v1621 = vor.u32 %v1616, %v1620
  %v1623 = vshrl.u32 %v1482, 16
  %v1625 = vshll.u32 %v1482, 16
  %v1627 = vrot.slane %v1625, 1
  %v1628 = vor.u32 %v1623, %v1627
  %v1630 = vshrl.u32 %v1483, 16
  %v1632 = vshll.u32 %v1483, 16
  %v1634 = vrot.slane %v1632, 1
  %v1635 = vor.u32 %v1630, %v1634
  %v1637 = vshrl.u32 %v1484, 16
  %v1639 = vshll.u32 %v1484, 16
  %v1641 = vrot.slane %v1639, 1
  %v1642 = vor.u32 %v1637, %v1641
  %v1644 = vshrl.u32 %v1485, 16
  %v1646 = vshll.u32 %v1485, 16
  %v1648 = vrot.slane %v1646, 1
  %v1649 = vor.u32 %v1644, %v1648
  %v1651 = vshrl.u32 %v1486, 16
  %v1653 = vshll.u32 %v1486, 16
  %v1655 = vrot.slane %v1653, 1
  %v1656 = vor.u32 %v1651, %v1655
  %v1658 = vshrl.u32 %v1487, 16
  %v1660 = vshll.u32 %v1487, 16
  %v1662 = vrot.slane %v1660, 1
  %v1663 = vor.u32 %v1658, %v1662
  %v1665 = vshrl.u32 %v1488, 16
  %v1667 = vshll.u32 %v1488, 16
  %v1669 = vrot.slane %v1667, 1
  %v1670 = vor.u32 %v1665, %v1669
  %v1672 = vshrl.u32 %v1489, 16
  %v1674 = vshll.u32 %v1489, 16
  %v1676 = vrot.slane %v1674, 1
  %v1677 = vor.u32 %v1672, %v1676
  %v1679 = vshrl.u32 %v1490, 16
  %v1681 = vshll.u32 %v1490, 16
  %v1683 = vrot.slane %v1681, 1
  %v1684 = vor.u32 %v1679, %v1683
  %v1686 = vshrl.u32 %v1491, 16
  %v1688 = vshll.u32 %v1491, 16
  %v1690 = vrot.slane %v1688, 1
  %v1691 = vor.u32 %v1686, %v1690
  %v1693 = vshrl.u32 %v1492, 16
  %v1695 = vshll.u32 %v1492, 16
  %v1697 = vrot.slane %v1695, 1
  %v1698 = vor.u32 %v1693, %v1697
  %v1700 = vshrl.u32 %v1493, 16
  %v1702 = vshll.u32 %v1493, 16
  %v1704 = vrot.slane %v1702, 1
  %v1705 = vor.u32 %v1700, %v1704
  %v1707 = vshrl.u32 %v1494, 16
  %v1709 = vshll.u32 %v1494, 16
  %v1711 = vrot.slane %v1709, 1
  %v1712 = vor.u32 %v1707, %v1711
  %v1714 = vshrl.u32 %v1495, 16
  %v1716 = vshll.u32 %v1495, 16
  %v1718 = vrot.slane %v1716, 1
  %v1719 = vor.u32 %v1714, %v1718
  %1720 = vrot.lane.b32.xlu0 %v1502, 64
  %v1721 = vpop.permute.xlu0 %1720
  %1722 = vrot.lane.b32.xlu0 %v1509, 64
  %v1723 = vpop.permute.xlu0 %1722
  %1724 = vrot.lane.b32.xlu0 %v1516, 64
  %v1725 = vpop.permute.xlu0 %1724
  %1726 = vrot.lane.b32.xlu0 %v1523, 64
  %v1727 = vpop.permute.xlu0 %1726
  %1728 = vrot.lane.b32.xlu0 %v1530, 64
  %v1729 = vpop.permute.xlu0 %1728
  %1730 = vrot.lane.b32.xlu0 %v1537, 64
  %v1731 = vpop.permute.xlu0 %1730
  %1732 = vrot.lane.b32.xlu0 %v1544, 64
  %v1733 = vpop.permute.xlu0 %1732
  %1734 = vrot.lane.b32.xlu0 %v1551, 64
  %v1735 = vpop.permute.xlu0 %1734
  %1736 = vrot.lane.b32.xlu0 %v1558, 64
  %v1737 = vpop.permute.xlu0 %1736
  %1738 = vrot.lane.b32.xlu0 %v1565, 64
  %v1739 = vpop.permute.xlu0 %1738
  %1740 = vrot.lane.b32.xlu0 %v1572, 64
  %v1741 = vpop.permute.xlu0 %1740
  %1742 = vrot.lane.b32.xlu0 %v1579, 64
  %v1743 = vpop.permute.xlu0 %1742
  %1744 = vrot.lane.b32.xlu0 %v1586, 64
  %v1745 = vpop.permute.xlu0 %1744
  %1746 = vrot.lane.b32.xlu0 %v1593, 64
  %v1747 = vpop.permute.xlu0 %1746
  %1748 = vrot.lane.b32.xlu0 %v1600, 64
  %v1749 = vpop.permute.xlu0 %1748
  %1750 = vrot.lane.b32.xlu0 %v1607, 64
  %v1751 = vpop.permute.xlu0 %1750
  %1752 = vrot.lane.b32.xlu0 %v1614, 64
  %v1753 = vpop.permute.xlu0 %1752
  %1754 = vrot.lane.b32.xlu0 %v1621, 64
  %v1755 = vpop.permute.xlu0 %1754
  %1756 = vrot.lane.b32.xlu0 %v1628, 64
  %v1757 = vpop.permute.xlu0 %1756
  %1758 = vrot.lane.b32.xlu0 %v1635, 64
  %v1759 = vpop.permute.xlu0 %1758
  %1760 = vrot.lane.b32.xlu0 %v1642, 64
  %v1761 = vpop.permute.xlu0 %1760
  %1762 = vrot.lane.b32.xlu0 %v1649, 64
  %v1763 = vpop.permute.xlu0 %1762
  %1764 = vrot.lane.b32.xlu0 %v1656, 64
  %v1765 = vpop.permute.xlu0 %1764
  %1766 = vrot.lane.b32.xlu0 %v1663, 64
  %v1767 = vpop.permute.xlu0 %1766
  %1768 = vrot.lane.b32.xlu0 %v1670, 64
  %v1769 = vpop.permute.xlu0 %1768
  %1770 = vrot.lane.b32.xlu0 %v1677, 64
  %v1771 = vpop.permute.xlu0 %1770
  %1772 = vrot.lane.b32.xlu0 %v1684, 64
  %v1773 = vpop.permute.xlu0 %1772
  %1774 = vrot.lane.b32.xlu0 %v1691, 64
  %v1775 = vpop.permute.xlu0 %1774
  %1776 = vrot.lane.b32.xlu0 %v1698, 64
  %v1777 = vpop.permute.xlu0 %1776
  %1778 = vrot.lane.b32.xlu0 %v1705, 64
  %v1779 = vpop.permute.xlu0 %1778
  %1780 = vrot.lane.b32.xlu0 %v1712, 64
  %v1781 = vpop.permute.xlu0 %1780
  %1782 = vrot.lane.b32.xlu0 %v1719, 64
  %v1783 = vpop.permute.xlu0 %1782
  %v1786 = vsel %vm503, %v44, %v1337
  %v1789 = vsel %vm503, %v45, %v1339
  %v1792 = vsel %vm503, %v46, %v1341
  %v1795 = vsel %vm503, %v47, %v1343
  %v1798 = vsel %vm503, %v62, %v1345
  %v1801 = vsel %vm503, %v63, %v1347
  %v1804 = vsel %vm503, %v64, %v1349
  %v1807 = vsel %vm503, %v65, %v1351
  %v1810 = vsel %vm503, %v80, %v1353
  %v1813 = vsel %vm503, %v81, %v1355
  %v1816 = vsel %vm503, %v82, %v1357
  %v1819 = vsel %vm503, %v83, %v1359
  %v1822 = vsel %vm503, %v98, %v1361
  %v1825 = vsel %vm503, %v99, %v1363
  %v1828 = vsel %vm503, %v100, %v1365
  %v1831 = vsel %vm503, %v101, %v1367
  %v1834 = vsel %vm503, %v116, %v1369
  %v1837 = vsel %vm503, %v117, %v1371
  %v1840 = vsel %vm503, %v118, %v1373
  %v1843 = vsel %vm503, %v119, %v1375
  %v1846 = vsel %vm503, %v134, %v1377
  %v1849 = vsel %vm503, %v135, %v1379
  %v1852 = vsel %vm503, %v136, %v1381
  %v1855 = vsel %vm503, %v137, %v1383
  %v1858 = vsel %vm503, %v152, %v1385
  %v1861 = vsel %vm503, %v153, %v1387
  %v1864 = vsel %vm503, %v154, %v1389
  %v1867 = vsel %vm503, %v155, %v1391
  %v1870 = vsel %vm503, %v170, %v1393
  %v1873 = vsel %vm503, %v171, %v1395
  %v1876 = vsel %vm503, %v172, %v1397
  %v1879 = vsel %vm503, %v173, %v1399
  %v1882 = vsel %vm503, %v53, %v1721
  %v1885 = vsel %vm503, %v54, %v1723
  %v1888 = vsel %vm503, %v55, %v1725
  %v1891 = vsel %vm503, %v56, %v1727
  %v1894 = vsel %vm503, %v71, %v1729
  %v1897 = vsel %vm503, %v72, %v1731
  %v1900 = vsel %vm503, %v73, %v1733
  %v1903 = vsel %vm503, %v74, %v1735
  %v1906 = vsel %vm503, %v89, %v1737
  %v1909 = vsel %vm503, %v90, %v1739
  %v1912 = vsel %vm503, %v91, %v1741
  %v1915 = vsel %vm503, %v92, %v1743
  %v1918 = vsel %vm503, %v107, %v1745
  %v1921 = vsel %vm503, %v108, %v1747
  %v1924 = vsel %vm503, %v109, %v1749
  %v1927 = vsel %vm503, %v110, %v1751
  %v1930 = vsel %vm503, %v125, %v1753
  %v1933 = vsel %vm503, %v126, %v1755
  %v1936 = vsel %vm503, %v127, %v1757
  %v1939 = vsel %vm503, %v128, %v1759
  %v1942 = vsel %vm503, %v143, %v1761
  %v1945 = vsel %vm503, %v144, %v1763
  %v1948 = vsel %vm503, %v145, %v1765
  %v1951 = vsel %vm503, %v146, %v1767
  %v1954 = vsel %vm503, %v161, %v1769
  %v1957 = vsel %vm503, %v162, %v1771
  %v1960 = vsel %vm503, %v163, %v1773
  %v1963 = vsel %vm503, %v164, %v1775
  %v1966 = vsel %vm503, %v179, %v1777
  %v1969 = vsel %vm503, %v180, %v1779
  %v1972 = vsel %vm503, %v181, %v1781
  %v1975 = vsel %vm503, %v182, %v1783
  %v2040 = vcombine.low %v1786, %v1882
  %v2042 = vunpack.c.l.s4 1983009808
  %v2043 = vunpack.c.0.s8 %v2042
  %v2044 = vlaneseq
  %v2045 = vshrl.u32 %v2044, 7
  %v2046 = vsub.s32 %v2043, %v2045
  %v2047 = vrot.slane %v2040, %v2046
  %v2048 = vcombine.low %v1789, %v1885
  %v2050 = vunpack.c.l.s4 1983009808
  %v2051 = vunpack.c.0.s8 %v2050
  %v2052 = vlaneseq
  %v2053 = vshrl.u32 %v2052, 7
  %v2054 = vsub.s32 %v2051, %v2053
  %v2055 = vrot.slane %v2048, %v2054
  %v2056 = vcombine.low %v1792, %v1888
  %v2058 = vunpack.c.l.s4 1983009808
  %v2059 = vunpack.c.0.s8 %v2058
  %v2060 = vlaneseq
  %v2061 = vshrl.u32 %v2060, 7
  %v2062 = vsub.s32 %v2059, %v2061
  %v2063 = vrot.slane %v2056, %v2062
  %v2064 = vcombine.low %v1795, %v1891
  %v2066 = vunpack.c.l.s4 1983009808
  %v2067 = vunpack.c.0.s8 %v2066
  %v2068 = vlaneseq
  %v2069 = vshrl.u32 %v2068, 7
  %v2070 = vsub.s32 %v2067, %v2069
  %v2071 = vrot.slane %v2064, %v2070
  %v2072 = vcombine.low %v1798, %v1894
  %v2074 = vunpack.c.l.s4 1983009808
  %v2075 = vunpack.c.0.s8 %v2074
  %v2076 = vlaneseq
  %v2077 = vshrl.u32 %v2076, 7
  %v2078 = vsub.s32 %v2075, %v2077
  %v2079 = vrot.slane %v2072, %v2078
  %v2080 = vcombine.low %v1801, %v1897
  %v2082 = vunpack.c.l.s4 1983009808
  %v2083 = vunpack.c.0.s8 %v2082
  %v2084 = vlaneseq
  %v2085 = vshrl.u32 %v2084, 7
  %v2086 = vsub.s32 %v2083, %v2085
  %v2087 = vrot.slane %v2080, %v2086
  %v2088 = vcombine.low %v1804, %v1900
  %v2090 = vunpack.c.l.s4 1983009808
  %v2091 = vunpack.c.0.s8 %v2090
  %v2092 = vlaneseq
  %v2093 = vshrl.u32 %v2092, 7
  %v2094 = vsub.s32 %v2091, %v2093
  %v2095 = vrot.slane %v2088, %v2094
  %v2096 = vcombine.low %v1807, %v1903
  %v2098 = vunpack.c.l.s4 1983009808
  %v2099 = vunpack.c.0.s8 %v2098
  %v2100 = vlaneseq
  %v2101 = vshrl.u32 %v2100, 7
  %v2102 = vsub.s32 %v2099, %v2101
  %v2103 = vrot.slane %v2096, %v2102
  %v2104 = vcombine.low %v1810, %v1906
  %v2106 = vunpack.c.l.s4 1983009808
  %v2107 = vunpack.c.0.s8 %v2106
  %v2108 = vlaneseq
  %v2109 = vshrl.u32 %v2108, 7
  %v2110 = vsub.s32 %v2107, %v2109
  %v2111 = vrot.slane %v2104, %v2110
  %v2112 = vcombine.low %v1813, %v1909
  %v2114 = vunpack.c.l.s4 1983009808
  %v2115 = vunpack.c.0.s8 %v2114
  %v2116 = vlaneseq
  %v2117 = vshrl.u32 %v2116, 7
  %v2118 = vsub.s32 %v2115, %v2117
  %v2119 = vrot.slane %v2112, %v2118
  %v2120 = vcombine.low %v1816, %v1912
  %v2122 = vunpack.c.l.s4 1983009808
  %v2123 = vunpack.c.0.s8 %v2122
  %v2124 = vlaneseq
  %v2125 = vshrl.u32 %v2124, 7
  %v2126 = vsub.s32 %v2123, %v2125
  %v2127 = vrot.slane %v2120, %v2126
  %v2128 = vcombine.low %v1819, %v1915
  %v2130 = vunpack.c.l.s4 1983009808
  %v2131 = vunpack.c.0.s8 %v2130
  %v2132 = vlaneseq
  %v2133 = vshrl.u32 %v2132, 7
  %v2134 = vsub.s32 %v2131, %v2133
  %v2135 = vrot.slane %v2128, %v2134
  %v2136 = vcombine.low %v1822, %v1918
  %v2138 = vunpack.c.l.s4 1983009808
  %v2139 = vunpack.c.0.s8 %v2138
  %v2140 = vlaneseq
  %v2141 = vshrl.u32 %v2140, 7
  %v2142 = vsub.s32 %v2139, %v2141
  %v2143 = vrot.slane %v2136, %v2142
  %v2144 = vcombine.low %v1825, %v1921
  %v2146 = vunpack.c.l.s4 1983009808
  %v2147 = vunpack.c.0.s8 %v2146
  %v2148 = vlaneseq
  %v2149 = vshrl.u32 %v2148, 7
  %v2150 = vsub.s32 %v2147, %v2149
  %v2151 = vrot.slane %v2144, %v2150
  %v2152 = vcombine.low %v1828, %v1924
  %v2154 = vunpack.c.l.s4 1983009808
  %v2155 = vunpack.c.0.s8 %v2154
  %v2156 = vlaneseq
  %v2157 = vshrl.u32 %v2156, 7
  %v2158 = vsub.s32 %v2155, %v2157
  %v2159 = vrot.slane %v2152, %v2158
  %v2160 = vcombine.low %v1831, %v1927
  %v2162 = vunpack.c.l.s4 1983009808
  %v2163 = vunpack.c.0.s8 %v2162
  %v2164 = vlaneseq
  %v2165 = vshrl.u32 %v2164, 7
  %v2166 = vsub.s32 %v2163, %v2165
  %v2167 = vrot.slane %v2160, %v2166
  %v2168 = vcombine.low %v1834, %v1930
  %v2170 = vunpack.c.l.s4 1983009808
  %v2171 = vunpack.c.0.s8 %v2170
  %v2172 = vlaneseq
  %v2173 = vshrl.u32 %v2172, 7
  %v2174 = vsub.s32 %v2171, %v2173
  %v2175 = vrot.slane %v2168, %v2174
  %v2176 = vcombine.low %v1837, %v1933
  %v2178 = vunpack.c.l.s4 1983009808
  %v2179 = vunpack.c.0.s8 %v2178
  %v2180 = vlaneseq
  %v2181 = vshrl.u32 %v2180, 7
  %v2182 = vsub.s32 %v2179, %v2181
  %v2183 = vrot.slane %v2176, %v2182
  %v2184 = vcombine.low %v1840, %v1936
  %v2186 = vunpack.c.l.s4 1983009808
  %v2187 = vunpack.c.0.s8 %v2186
  %v2188 = vlaneseq
  %v2189 = vshrl.u32 %v2188, 7
  %v2190 = vsub.s32 %v2187, %v2189
  %v2191 = vrot.slane %v2184, %v2190
  %v2192 = vcombine.low %v1843, %v1939
  %v2194 = vunpack.c.l.s4 1983009808
  %v2195 = vunpack.c.0.s8 %v2194
  %v2196 = vlaneseq
  %v2197 = vshrl.u32 %v2196, 7
  %v2198 = vsub.s32 %v2195, %v2197
  %v2199 = vrot.slane %v2192, %v2198
  %v2200 = vcombine.low %v1846, %v1942
  %v2202 = vunpack.c.l.s4 1983009808
  %v2203 = vunpack.c.0.s8 %v2202
  %v2204 = vlaneseq
  %v2205 = vshrl.u32 %v2204, 7
  %v2206 = vsub.s32 %v2203, %v2205
  %v2207 = vrot.slane %v2200, %v2206
  %v2208 = vcombine.low %v1849, %v1945
  %v2210 = vunpack.c.l.s4 1983009808
  %v2211 = vunpack.c.0.s8 %v2210
  %v2212 = vlaneseq
  %v2213 = vshrl.u32 %v2212, 7
  %v2214 = vsub.s32 %v2211, %v2213
  %v2215 = vrot.slane %v2208, %v2214
  %v2216 = vcombine.low %v1852, %v1948
  %v2218 = vunpack.c.l.s4 1983009808
  %v2219 = vunpack.c.0.s8 %v2218
  %v2220 = vlaneseq
  %v2221 = vshrl.u32 %v2220, 7
  %v2222 = vsub.s32 %v2219, %v2221
  %v2223 = vrot.slane %v2216, %v2222
  %v2224 = vcombine.low %v1855, %v1951
  %v2226 = vunpack.c.l.s4 1983009808
  %v2227 = vunpack.c.0.s8 %v2226
  %v2228 = vlaneseq
  %v2229 = vshrl.u32 %v2228, 7
  %v2230 = vsub.s32 %v2227, %v2229
  %v2231 = vrot.slane %v2224, %v2230
  %v2232 = vcombine.low %v1858, %v1954
  %v2234 = vunpack.c.l.s4 1983009808
  %v2235 = vunpack.c.0.s8 %v2234
  %v2236 = vlaneseq
  %v2237 = vshrl.u32 %v2236, 7
  %v2238 = vsub.s32 %v2235, %v2237
  %v2239 = vrot.slane %v2232, %v2238
  %v2240 = vcombine.low %v1861, %v1957
  %v2242 = vunpack.c.l.s4 1983009808
  %v2243 = vunpack.c.0.s8 %v2242
  %v2244 = vlaneseq
  %v2245 = vshrl.u32 %v2244, 7
  %v2246 = vsub.s32 %v2243, %v2245
  %v2247 = vrot.slane %v2240, %v2246
  %v2248 = vcombine.low %v1864, %v1960
  %v2250 = vunpack.c.l.s4 1983009808
  %v2251 = vunpack.c.0.s8 %v2250
  %v2252 = vlaneseq
  %v2253 = vshrl.u32 %v2252, 7
  %v2254 = vsub.s32 %v2251, %v2253
  %v2255 = vrot.slane %v2248, %v2254
  %v2256 = vcombine.low %v1867, %v1963
  %v2258 = vunpack.c.l.s4 1983009808
  %v2259 = vunpack.c.0.s8 %v2258
  %v2260 = vlaneseq
  %v2261 = vshrl.u32 %v2260, 7
  %v2262 = vsub.s32 %v2259, %v2261
  %v2263 = vrot.slane %v2256, %v2262
  %v2264 = vcombine.low %v1870, %v1966
  %v2266 = vunpack.c.l.s4 1983009808
  %v2267 = vunpack.c.0.s8 %v2266
  %v2268 = vlaneseq
  %v2269 = vshrl.u32 %v2268, 7
  %v2270 = vsub.s32 %v2267, %v2269
  %v2271 = vrot.slane %v2264, %v2270
  %v2272 = vcombine.low %v1873, %v1969
  %v2274 = vunpack.c.l.s4 1983009808
  %v2275 = vunpack.c.0.s8 %v2274
  %v2276 = vlaneseq
  %v2277 = vshrl.u32 %v2276, 7
  %v2278 = vsub.s32 %v2275, %v2277
  %v2279 = vrot.slane %v2272, %v2278
  %v2280 = vcombine.low %v1876, %v1972
  %v2282 = vunpack.c.l.s4 1983009808
  %v2283 = vunpack.c.0.s8 %v2282
  %v2284 = vlaneseq
  %v2285 = vshrl.u32 %v2284, 7
  %v2286 = vsub.s32 %v2283, %v2285
  %v2287 = vrot.slane %v2280, %v2286
  %v2288 = vcombine.low %v1879, %v1975
  %v2290 = vunpack.c.l.s4 1983009808
  %v2291 = vunpack.c.0.s8 %v2290
  %v2292 = vlaneseq
  %v2293 = vshrl.u32 %v2292, 7
  %v2294 = vsub.s32 %v2291, %v2293
  %v2295 = vrot.slane %v2288, %v2294
  %v2304 = vunpack.c.l.b16 %v48
  %v2305 = vunpack.c.l.b16 %v66
  %v2306 = vunpack.c.l.b16 %v84
  %v2307 = vunpack.c.l.b16 %v102
  %v2308 = vunpack.c.l.b16 %v120
  %v2309 = vunpack.c.l.b16 %v138
  %v2310 = vunpack.c.l.b16 %v156
  %v2311 = vunpack.c.l.b16 %v174
  %v2312 = vpack.c.b16 %v2304, %v2304
  %v2313 = vpack.c.b16 %v2305, %v2305
  %v2314 = vpack.c.b16 %v2306, %v2306
  %v2315 = vpack.c.b16 %v2307, %v2307
  %v2316 = vpack.c.b16 %v2308, %v2308
  %v2317 = vpack.c.b16 %v2309, %v2309
  %v2318 = vpack.c.b16 %v2310, %v2310
  %v2319 = vpack.c.b16 %v2311, %v2311
  %2320 = vrot.lane.b32.xlu0 %v2312, 64
  %v2321 = vpop.permute.xlu0 %2320
  %2322 = vrot.lane.b32.xlu0 %v2313, 64
  %v2323 = vpop.permute.xlu0 %2322
  %2324 = vrot.lane.b32.xlu0 %v2314, 64
  %v2325 = vpop.permute.xlu0 %2324
  %2326 = vrot.lane.b32.xlu0 %v2315, 64
  %v2327 = vpop.permute.xlu0 %2326
  %2328 = vrot.lane.b32.xlu0 %v2316, 64
  %v2329 = vpop.permute.xlu0 %2328
  %2330 = vrot.lane.b32.xlu0 %v2317, 64
  %v2331 = vpop.permute.xlu0 %2330
  %2332 = vrot.lane.b32.xlu0 %v2318, 64
  %v2333 = vpop.permute.xlu0 %2332
  %2334 = vrot.lane.b32.xlu0 %v2319, 64
  %v2335 = vpop.permute.xlu0 %2334
  %v2338 = vsel %vm503, %v43, %v2321
  %v2341 = vsel %vm503, %v61, %v2323
  %v2344 = vsel %vm503, %v79, %v2325
  %v2347 = vsel %vm503, %v97, %v2327
  %v2350 = vsel %vm503, %v115, %v2329
  %v2353 = vsel %vm503, %v133, %v2331
  %v2356 = vsel %vm503, %v151, %v2333
  %v2359 = vsel %vm503, %v169, %v2335
  %v2368 = vcombine.low %v602, %v509
  %v2370 = vunpack.c.l.s4 1983009808
  %v2371 = vunpack.c.0.s8 %v2370
  %v2372 = vlaneseq
  %v2373 = vshrl.u32 %v2372, 7
  %v2374 = vsub.s32 %v2371, %v2373
  %v2375 = vrot.slane %v2368, %v2374
  %v2376 = vcombine.low %v605, %v512
  %v2378 = vunpack.c.l.s4 1983009808
  %v2379 = vunpack.c.0.s8 %v2378
  %v2380 = vlaneseq
  %v2381 = vshrl.u32 %v2380, 7
  %v2382 = vsub.s32 %v2379, %v2381
  %v2383 = vrot.slane %v2376, %v2382
  %v2384 = vcombine.low %v608, %v515
  %v2386 = vunpack.c.l.s4 1983009808
  %v2387 = vunpack.c.0.s8 %v2386
  %v2388 = vlaneseq
  %v2389 = vshrl.u32 %v2388, 7
  %v2390 = vsub.s32 %v2387, %v2389
  %v2391 = vrot.slane %v2384, %v2390
  %v2392 = vcombine.low %v611, %v2338
  %v2394 = vunpack.c.l.s4 1983009808
  %v2395 = vunpack.c.0.s8 %v2394
  %v2396 = vlaneseq
  %v2397 = vshrl.u32 %v2396, 7
  %v2398 = vsub.s32 %v2395, %v2397
  %v2399 = vrot.slane %v2392, %v2398
  %v2400 = vcombine.low %v614, %v521
  %v2402 = vunpack.c.l.s4 1983009808
  %v2403 = vunpack.c.0.s8 %v2402
  %v2404 = vlaneseq
  %v2405 = vshrl.u32 %v2404, 7
  %v2406 = vsub.s32 %v2403, %v2405
  %v2407 = vrot.slane %v2400, %v2406
  %v2408 = vcombine.low %v617, %v524
  %v2410 = vunpack.c.l.s4 1983009808
  %v2411 = vunpack.c.0.s8 %v2410
  %v2412 = vlaneseq
  %v2413 = vshrl.u32 %v2412, 7
  %v2414 = vsub.s32 %v2411, %v2413
  %v2415 = vrot.slane %v2408, %v2414
  %v2416 = vcombine.low %v620, %v527
  %v2418 = vunpack.c.l.s4 1983009808
  %v2419 = vunpack.c.0.s8 %v2418
  %v2420 = vlaneseq
  %v2421 = vshrl.u32 %v2420, 7
  %v2422 = vsub.s32 %v2419, %v2421
  %v2423 = vrot.slane %v2416, %v2422
  %v2424 = vcombine.low %v623, %v2341
  %v2426 = vunpack.c.l.s4 1983009808
  %v2427 = vunpack.c.0.s8 %v2426
  %v2428 = vlaneseq
  %v2429 = vshrl.u32 %v2428, 7
  %v2430 = vsub.s32 %v2427, %v2429
  %v2431 = vrot.slane %v2424, %v2430
  %v2432 = vcombine.low %v626, %v533
  %v2434 = vunpack.c.l.s4 1983009808
  %v2435 = vunpack.c.0.s8 %v2434
  %v2436 = vlaneseq
  %v2437 = vshrl.u32 %v2436, 7
  %v2438 = vsub.s32 %v2435, %v2437
  %v2439 = vrot.slane %v2432, %v2438
  %v2440 = vcombine.low %v629, %v536
  %v2442 = vunpack.c.l.s4 1983009808
  %v2443 = vunpack.c.0.s8 %v2442
  %v2444 = vlaneseq
  %v2445 = vshrl.u32 %v2444, 7
  %v2446 = vsub.s32 %v2443, %v2445
  %v2447 = vrot.slane %v2440, %v2446
  %v2448 = vcombine.low %v632, %v539
  %v2450 = vunpack.c.l.s4 1983009808
  %v2451 = vunpack.c.0.s8 %v2450
  %v2452 = vlaneseq
  %v2453 = vshrl.u32 %v2452, 7
  %v2454 = vsub.s32 %v2451, %v2453
  %v2455 = vrot.slane %v2448, %v2454
  %v2456 = vcombine.low %v635, %v2344
  %v2458 = vunpack.c.l.s4 1983009808
  %v2459 = vunpack.c.0.s8 %v2458
  %v2460 = vlaneseq
  %v2461 = vshrl.u32 %v2460, 7
  %v2462 = vsub.s32 %v2459, %v2461
  %v2463 = vrot.slane %v2456, %v2462
  %v2464 = vcombine.low %v638, %v545
  %v2466 = vunpack.c.l.s4 1983009808
  %v2467 = vunpack.c.0.s8 %v2466
  %v2468 = vlaneseq
  %v2469 = vshrl.u32 %v2468, 7
  %v2470 = vsub.s32 %v2467, %v2469
  %v2471 = vrot.slane %v2464, %v2470
  %v2472 = vcombine.low %v641, %v548
  %v2474 = vunpack.c.l.s4 1983009808
  %v2475 = vunpack.c.0.s8 %v2474
  %v2476 = vlaneseq
  %v2477 = vshrl.u32 %v2476, 7
  %v2478 = vsub.s32 %v2475, %v2477
  %v2479 = vrot.slane %v2472, %v2478
  %v2480 = vcombine.low %v644, %v551
  %v2482 = vunpack.c.l.s4 1983009808
  %v2483 = vunpack.c.0.s8 %v2482
  %v2484 = vlaneseq
  %v2485 = vshrl.u32 %v2484, 7
  %v2486 = vsub.s32 %v2483, %v2485
  %v2487 = vrot.slane %v2480, %v2486
  %v2488 = vcombine.low %v647, %v2347
  %v2490 = vunpack.c.l.s4 1983009808
  %v2491 = vunpack.c.0.s8 %v2490
  %v2492 = vlaneseq
  %v2493 = vshrl.u32 %v2492, 7
  %v2494 = vsub.s32 %v2491, %v2493
  %v2495 = vrot.slane %v2488, %v2494
  %v2496 = vcombine.low %v650, %v557
  %v2498 = vunpack.c.l.s4 1983009808
  %v2499 = vunpack.c.0.s8 %v2498
  %v2500 = vlaneseq
  %v2501 = vshrl.u32 %v2500, 7
  %v2502 = vsub.s32 %v2499, %v2501
  %v2503 = vrot.slane %v2496, %v2502
  %v2504 = vcombine.low %v653, %v560
  %v2506 = vunpack.c.l.s4 1983009808
  %v2507 = vunpack.c.0.s8 %v2506
  %v2508 = vlaneseq
  %v2509 = vshrl.u32 %v2508, 7
  %v2510 = vsub.s32 %v2507, %v2509
  %v2511 = vrot.slane %v2504, %v2510
  %v2512 = vcombine.low %v656, %v563
  %v2514 = vunpack.c.l.s4 1983009808
  %v2515 = vunpack.c.0.s8 %v2514
  %v2516 = vlaneseq
  %v2517 = vshrl.u32 %v2516, 7
  %v2518 = vsub.s32 %v2515, %v2517
  %v2519 = vrot.slane %v2512, %v2518
  %v2520 = vcombine.low %v659, %v2350
  %v2522 = vunpack.c.l.s4 1983009808
  %v2523 = vunpack.c.0.s8 %v2522
  %v2524 = vlaneseq
  %v2525 = vshrl.u32 %v2524, 7
  %v2526 = vsub.s32 %v2523, %v2525
  %v2527 = vrot.slane %v2520, %v2526
  %v2528 = vcombine.low %v662, %v569
  %v2530 = vunpack.c.l.s4 1983009808
  %v2531 = vunpack.c.0.s8 %v2530
  %v2532 = vlaneseq
  %v2533 = vshrl.u32 %v2532, 7
  %v2534 = vsub.s32 %v2531, %v2533
  %v2535 = vrot.slane %v2528, %v2534
  %v2536 = vcombine.low %v665, %v572
  %v2538 = vunpack.c.l.s4 1983009808
  %v2539 = vunpack.c.0.s8 %v2538
  %v2540 = vlaneseq
  %v2541 = vshrl.u32 %v2540, 7
  %v2542 = vsub.s32 %v2539, %v2541
  %v2543 = vrot.slane %v2536, %v2542
  %v2544 = vcombine.low %v668, %v575
  %v2546 = vunpack.c.l.s4 1983009808
  %v2547 = vunpack.c.0.s8 %v2546
  %v2548 = vlaneseq
  %v2549 = vshrl.u32 %v2548, 7
  %v2550 = vsub.s32 %v2547, %v2549
  %v2551 = vrot.slane %v2544, %v2550
  %v2552 = vcombine.low %v671, %v2353
  %v2554 = vunpack.c.l.s4 1983009808
  %v2555 = vunpack.c.0.s8 %v2554
  %v2556 = vlaneseq
  %v2557 = vshrl.u32 %v2556, 7
  %v2558 = vsub.s32 %v2555, %v2557
  %v2559 = vrot.slane %v2552, %v2558
  %v2560 = vcombine.low %v674, %v581
  %v2562 = vunpack.c.l.s4 1983009808
  %v2563 = vunpack.c.0.s8 %v2562
  %v2564 = vlaneseq
  %v2565 = vshrl.u32 %v2564, 7
  %v2566 = vsub.s32 %v2563, %v2565
  %v2567 = vrot.slane %v2560, %v2566
  %v2568 = vcombine.low %v677, %v584
  %v2570 = vunpack.c.l.s4 1983009808
  %v2571 = vunpack.c.0.s8 %v2570
  %v2572 = vlaneseq
  %v2573 = vshrl.u32 %v2572, 7
  %v2574 = vsub.s32 %v2571, %v2573
  %v2575 = vrot.slane %v2568, %v2574
  %v2576 = vcombine.low %v680, %v587
  %v2578 = vunpack.c.l.s4 1983009808
  %v2579 = vunpack.c.0.s8 %v2578
  %v2580 = vlaneseq
  %v2581 = vshrl.u32 %v2580, 7
  %v2582 = vsub.s32 %v2579, %v2581
  %v2583 = vrot.slane %v2576, %v2582
  %v2584 = vcombine.low %v683, %v2356
  %v2586 = vunpack.c.l.s4 1983009808
  %v2587 = vunpack.c.0.s8 %v2586
  %v2588 = vlaneseq
  %v2589 = vshrl.u32 %v2588, 7
  %v2590 = vsub.s32 %v2587, %v2589
  %v2591 = vrot.slane %v2584, %v2590
  %v2592 = vcombine.low %v686, %v593
  %v2594 = vunpack.c.l.s4 1983009808
  %v2595 = vunpack.c.0.s8 %v2594
  %v2596 = vlaneseq
  %v2597 = vshrl.u32 %v2596, 7
  %v2598 = vsub.s32 %v2595, %v2597
  %v2599 = vrot.slane %v2592, %v2598
  %v2600 = vcombine.low %v689, %v596
  %v2602 = vunpack.c.l.s4 1983009808
  %v2603 = vunpack.c.0.s8 %v2602
  %v2604 = vlaneseq
  %v2605 = vshrl.u32 %v2604, 7
  %v2606 = vsub.s32 %v2603, %v2605
  %v2607 = vrot.slane %v2600, %v2606
  %v2608 = vcombine.low %v692, %v599
  %v2610 = vunpack.c.l.s4 1983009808
  %v2611 = vunpack.c.0.s8 %v2610
  %v2612 = vlaneseq
  %v2613 = vshrl.u32 %v2612, 7
  %v2614 = vsub.s32 %v2611, %v2613
  %v2615 = vrot.slane %v2608, %v2614
  %v2616 = vcombine.low %v695, %v2359
  %v2618 = vunpack.c.l.s4 1983009808
  %v2619 = vunpack.c.0.s8 %v2618
  %v2620 = vlaneseq
  %v2621 = vshrl.u32 %v2620, 7
  %v2622 = vsub.s32 %v2619, %v2621
  %v2623 = vrot.slane %v2616, %v2622
  %v2632 = vunpack.c.l.b16 %v43
  %v2633 = vunpack.c.l.b16 %v61
  %v2634 = vunpack.c.l.b16 %v79
  %v2635 = vunpack.c.l.b16 %v97
  %v2636 = vunpack.c.l.b16 %v115
  %v2637 = vunpack.c.l.b16 %v133
  %v2638 = vunpack.c.l.b16 %v151
  %v2639 = vunpack.c.l.b16 %v169
  %v2640 = vpack.c.b16 %v2632, %v2632
  %v2641 = vpack.c.b16 %v2633, %v2633
  %v2642 = vpack.c.b16 %v2634, %v2634
  %v2643 = vpack.c.b16 %v2635, %v2635
  %v2644 = vpack.c.b16 %v2636, %v2636
  %v2645 = vpack.c.b16 %v2637, %v2637
  %v2646 = vpack.c.b16 %v2638, %v2638
  %v2647 = vpack.c.b16 %v2639, %v2639
  %v2649 = vshrl.u32 %v2640, 16
  %v2651 = vshll.u32 %v2640, 16
  %v2653 = vrot.slane %v2651, 1
  %v2654 = vor.u32 %v2649, %v2653
  %v2656 = vshrl.u32 %v2641, 16
  %v2658 = vshll.u32 %v2641, 16
  %v2660 = vrot.slane %v2658, 1
  %v2661 = vor.u32 %v2656, %v2660
  %v2663 = vshrl.u32 %v2642, 16
  %v2665 = vshll.u32 %v2642, 16
  %v2667 = vrot.slane %v2665, 1
  %v2668 = vor.u32 %v2663, %v2667
  %v2670 = vshrl.u32 %v2643, 16
  %v2672 = vshll.u32 %v2643, 16
  %v2674 = vrot.slane %v2672, 1
  %v2675 = vor.u32 %v2670, %v2674
  %v2677 = vshrl.u32 %v2644, 16
  %v2679 = vshll.u32 %v2644, 16
  %v2681 = vrot.slane %v2679, 1
  %v2682 = vor.u32 %v2677, %v2681
  %v2684 = vshrl.u32 %v2645, 16
  %v2686 = vshll.u32 %v2645, 16
  %v2688 = vrot.slane %v2686, 1
  %v2689 = vor.u32 %v2684, %v2688
  %v2691 = vshrl.u32 %v2646, 16
  %v2693 = vshll.u32 %v2646, 16
  %v2695 = vrot.slane %v2693, 1
  %v2696 = vor.u32 %v2691, %v2695
  %v2698 = vshrl.u32 %v2647, 16
  %v2700 = vshll.u32 %v2647, 16
  %v2702 = vrot.slane %v2700, 1
  %v2703 = vor.u32 %v2698, %v2702
  %2704 = vrot.lane.b32.xlu0 %v2654, 64
  %v2705 = vpop.permute.xlu0 %2704
  %2706 = vrot.lane.b32.xlu0 %v2661, 64
  %v2707 = vpop.permute.xlu0 %2706
  %2708 = vrot.lane.b32.xlu0 %v2668, 64
  %v2709 = vpop.permute.xlu0 %2708
  %2710 = vrot.lane.b32.xlu0 %v2675, 64
  %v2711 = vpop.permute.xlu0 %2710
  %2712 = vrot.lane.b32.xlu0 %v2682, 64
  %v2713 = vpop.permute.xlu0 %2712
  %2714 = vrot.lane.b32.xlu0 %v2689, 64
  %v2715 = vpop.permute.xlu0 %2714
  %2716 = vrot.lane.b32.xlu0 %v2696, 64
  %v2717 = vpop.permute.xlu0 %2716
  %2718 = vrot.lane.b32.xlu0 %v2703, 64
  %v2719 = vpop.permute.xlu0 %2718
  %v2722 = vsel %vm503, %v48, %v2705
  %v2725 = vsel %vm503, %v66, %v2707
  %v2728 = vsel %vm503, %v84, %v2709
  %v2731 = vsel %vm503, %v102, %v2711
  %v2734 = vsel %vm503, %v120, %v2713
  %v2737 = vsel %vm503, %v138, %v2715
  %v2740 = vsel %vm503, %v156, %v2717
  %v2743 = vsel %vm503, %v174, %v2719
  %v2752 = vcombine.low %v1882, %v1789
  %v2754 = vunpack.c.l.s4 1983009808
  %v2755 = vunpack.c.0.s8 %v2754
  %v2756 = vlaneseq
  %v2757 = vshrl.u32 %v2756, 7
  %v2758 = vsub.s32 %v2755, %v2757
  %v2759 = vrot.slane %v2752, %v2758
  %v2760 = vcombine.low %v1885, %v1792
  %v2762 = vunpack.c.l.s4 1983009808
  %v2763 = vunpack.c.0.s8 %v2762
  %v2764 = vlaneseq
  %v2765 = vshrl.u32 %v2764, 7
  %v2766 = vsub.s32 %v2763, %v2765
  %v2767 = vrot.slane %v2760, %v2766
  %v2768 = vcombine.low %v1888, %v1795
  %v2770 = vunpack.c.l.s4 1983009808
  %v2771 = vunpack.c.0.s8 %v2770
  %v2772 = vlaneseq
  %v2773 = vshrl.u32 %v2772, 7
  %v2774 = vsub.s32 %v2771, %v2773
  %v2775 = vrot.slane %v2768, %v2774
  %v2776 = vcombine.low %v1891, %v2722
  %v2778 = vunpack.c.l.s4 1983009808
  %v2779 = vunpack.c.0.s8 %v2778
  %v2780 = vlaneseq
  %v2781 = vshrl.u32 %v2780, 7
  %v2782 = vsub.s32 %v2779, %v2781
  %v2783 = vrot.slane %v2776, %v2782
  %v2784 = vcombine.low %v1894, %v1801
  %v2786 = vunpack.c.l.s4 1983009808
  %v2787 = vunpack.c.0.s8 %v2786
  %v2788 = vlaneseq
  %v2789 = vshrl.u32 %v2788, 7
  %v2790 = vsub.s32 %v2787, %v2789
  %v2791 = vrot.slane %v2784, %v2790
  %v2792 = vcombine.low %v1897, %v1804
  %v2794 = vunpack.c.l.s4 1983009808
  %v2795 = vunpack.c.0.s8 %v2794
  %v2796 = vlaneseq
  %v2797 = vshrl.u32 %v2796, 7
  %v2798 = vsub.s32 %v2795, %v2797
  %v2799 = vrot.slane %v2792, %v2798
  %v2800 = vcombine.low %v1900, %v1807
  %v2802 = vunpack.c.l.s4 1983009808
  %v2803 = vunpack.c.0.s8 %v2802
  %v2804 = vlaneseq
  %v2805 = vshrl.u32 %v2804, 7
  %v2806 = vsub.s32 %v2803, %v2805
  %v2807 = vrot.slane %v2800, %v2806
  %v2808 = vcombine.low %v1903, %v2725
  %v2810 = vunpack.c.l.s4 1983009808
  %v2811 = vunpack.c.0.s8 %v2810
  %v2812 = vlaneseq
  %v2813 = vshrl.u32 %v2812, 7
  %v2814 = vsub.s32 %v2811, %v2813
  %v2815 = vrot.slane %v2808, %v2814
  %v2816 = vcombine.low %v1906, %v1813
  %v2818 = vunpack.c.l.s4 1983009808
  %v2819 = vunpack.c.0.s8 %v2818
  %v2820 = vlaneseq
  %v2821 = vshrl.u32 %v2820, 7
  %v2822 = vsub.s32 %v2819, %v2821
  %v2823 = vrot.slane %v2816, %v2822
  %v2824 = vcombine.low %v1909, %v1816
  %v2826 = vunpack.c.l.s4 1983009808
  %v2827 = vunpack.c.0.s8 %v2826
  %v2828 = vlaneseq
  %v2829 = vshrl.u32 %v2828, 7
  %v2830 = vsub.s32 %v2827, %v2829
  %v2831 = vrot.slane %v2824, %v2830
  %v2832 = vcombine.low %v1912, %v1819
  %v2834 = vunpack.c.l.s4 1983009808
  %v2835 = vunpack.c.0.s8 %v2834
  %v2836 = vlaneseq
  %v2837 = vshrl.u32 %v2836, 7
  %v2838 = vsub.s32 %v2835, %v2837
  %v2839 = vrot.slane %v2832, %v2838
  %v2840 = vcombine.low %v1915, %v2728
  %v2842 = vunpack.c.l.s4 1983009808
  %v2843 = vunpack.c.0.s8 %v2842
  %v2844 = vlaneseq
  %v2845 = vshrl.u32 %v2844, 7
  %v2846 = vsub.s32 %v2843, %v2845
  %v2847 = vrot.slane %v2840, %v2846
  %v2848 = vcombine.low %v1918, %v1825
  %v2850 = vunpack.c.l.s4 1983009808
  %v2851 = vunpack.c.0.s8 %v2850
  %v2852 = vlaneseq
  %v2853 = vshrl.u32 %v2852, 7
  %v2854 = vsub.s32 %v2851, %v2853
  %v2855 = vrot.slane %v2848, %v2854
  %v2856 = vcombine.low %v1921, %v1828
  %v2858 = vunpack.c.l.s4 1983009808
  %v2859 = vunpack.c.0.s8 %v2858
  %v2860 = vlaneseq
  %v2861 = vshrl.u32 %v2860, 7
  %v2862 = vsub.s32 %v2859, %v2861
  %v2863 = vrot.slane %v2856, %v2862
  %v2864 = vcombine.low %v1924, %v1831
  %v2866 = vunpack.c.l.s4 1983009808
  %v2867 = vunpack.c.0.s8 %v2866
  %v2868 = vlaneseq
  %v2869 = vshrl.u32 %v2868, 7
  %v2870 = vsub.s32 %v2867, %v2869
  %v2871 = vrot.slane %v2864, %v2870
  %v2872 = vcombine.low %v1927, %v2731
  %v2874 = vunpack.c.l.s4 1983009808
  %v2875 = vunpack.c.0.s8 %v2874
  %v2876 = vlaneseq
  %v2877 = vshrl.u32 %v2876, 7
  %v2878 = vsub.s32 %v2875, %v2877
  %v2879 = vrot.slane %v2872, %v2878
  %v2880 = vcombine.low %v1930, %v1837
  %v2882 = vunpack.c.l.s4 1983009808
  %v2883 = vunpack.c.0.s8 %v2882
  %v2884 = vlaneseq
  %v2885 = vshrl.u32 %v2884, 7
  %v2886 = vsub.s32 %v2883, %v2885
  %v2887 = vrot.slane %v2880, %v2886
  %v2888 = vcombine.low %v1933, %v1840
  %v2890 = vunpack.c.l.s4 1983009808
  %v2891 = vunpack.c.0.s8 %v2890
  %v2892 = vlaneseq
  %v2893 = vshrl.u32 %v2892, 7
  %v2894 = vsub.s32 %v2891, %v2893
  %v2895 = vrot.slane %v2888, %v2894
  %v2896 = vcombine.low %v1936, %v1843
  %v2898 = vunpack.c.l.s4 1983009808
  %v2899 = vunpack.c.0.s8 %v2898
  %v2900 = vlaneseq
  %v2901 = vshrl.u32 %v2900, 7
  %v2902 = vsub.s32 %v2899, %v2901
  %v2903 = vrot.slane %v2896, %v2902
  %v2904 = vcombine.low %v1939, %v2734
  %v2906 = vunpack.c.l.s4 1983009808
  %v2907 = vunpack.c.0.s8 %v2906
  %v2908 = vlaneseq
  %v2909 = vshrl.u32 %v2908, 7
  %v2910 = vsub.s32 %v2907, %v2909
  %v2911 = vrot.slane %v2904, %v2910
  %v2912 = vcombine.low %v1942, %v1849
  %v2914 = vunpack.c.l.s4 1983009808
  %v2915 = vunpack.c.0.s8 %v2914
  %v2916 = vlaneseq
  %v2917 = vshrl.u32 %v2916, 7
  %v2918 = vsub.s32 %v2915, %v2917
  %v2919 = vrot.slane %v2912, %v2918
  %v2920 = vcombine.low %v1945, %v1852
  %v2922 = vunpack.c.l.s4 1983009808
  %v2923 = vunpack.c.0.s8 %v2922
  %v2924 = vlaneseq
  %v2925 = vshrl.u32 %v2924, 7
  %v2926 = vsub.s32 %v2923, %v2925
  %v2927 = vrot.slane %v2920, %v2926
  %v2928 = vcombine.low %v1948, %v1855
  %v2930 = vunpack.c.l.s4 1983009808
  %v2931 = vunpack.c.0.s8 %v2930
  %v2932 = vlaneseq
  %v2933 = vshrl.u32 %v2932, 7
  %v2934 = vsub.s32 %v2931, %v2933
  %v2935 = vrot.slane %v2928, %v2934
  %v2936 = vcombine.low %v1951, %v2737
  %v2938 = vunpack.c.l.s4 1983009808
  %v2939 = vunpack.c.0.s8 %v2938
  %v2940 = vlaneseq
  %v2941 = vshrl.u32 %v2940, 7
  %v2942 = vsub.s32 %v2939, %v2941
  %v2943 = vrot.slane %v2936, %v2942
  %v2944 = vcombine.low %v1954, %v1861
  %v2946 = vunpack.c.l.s4 1983009808
  %v2947 = vunpack.c.0.s8 %v2946
  %v2948 = vlaneseq
  %v2949 = vshrl.u32 %v2948, 7
  %v2950 = vsub.s32 %v2947, %v2949
  %v2951 = vrot.slane %v2944, %v2950
  %v2952 = vcombine.low %v1957, %v1864
  %v2954 = vunpack.c.l.s4 1983009808
  %v2955 = vunpack.c.0.s8 %v2954
  %v2956 = vlaneseq
  %v2957 = vshrl.u32 %v2956, 7
  %v2958 = vsub.s32 %v2955, %v2957
  %v2959 = vrot.slane %v2952, %v2958
  %v2960 = vcombine.low %v1960, %v1867
  %v2962 = vunpack.c.l.s4 1983009808
  %v2963 = vunpack.c.0.s8 %v2962
  %v2964 = vlaneseq
  %v2965 = vshrl.u32 %v2964, 7
  %v2966 = vsub.s32 %v2963, %v2965
  %v2967 = vrot.slane %v2960, %v2966
  %v2968 = vcombine.low %v1963, %v2740
  %v2970 = vunpack.c.l.s4 1983009808
  %v2971 = vunpack.c.0.s8 %v2970
  %v2972 = vlaneseq
  %v2973 = vshrl.u32 %v2972, 7
  %v2974 = vsub.s32 %v2971, %v2973
  %v2975 = vrot.slane %v2968, %v2974
  %v2976 = vcombine.low %v1966, %v1873
  %v2978 = vunpack.c.l.s4 1983009808
  %v2979 = vunpack.c.0.s8 %v2978
  %v2980 = vlaneseq
  %v2981 = vshrl.u32 %v2980, 7
  %v2982 = vsub.s32 %v2979, %v2981
  %v2983 = vrot.slane %v2976, %v2982
  %v2984 = vcombine.low %v1969, %v1876
  %v2986 = vunpack.c.l.s4 1983009808
  %v2987 = vunpack.c.0.s8 %v2986
  %v2988 = vlaneseq
  %v2989 = vshrl.u32 %v2988, 7
  %v2990 = vsub.s32 %v2987, %v2989
  %v2991 = vrot.slane %v2984, %v2990
  %v2992 = vcombine.low %v1972, %v1879
  %v2994 = vunpack.c.l.s4 1983009808
  %v2995 = vunpack.c.0.s8 %v2994
  %v2996 = vlaneseq
  %v2997 = vshrl.u32 %v2996, 7
  %v2998 = vsub.s32 %v2995, %v2997
  %v2999 = vrot.slane %v2992, %v2998
  %v3000 = vcombine.low %v1975, %v2743
  %v3002 = vunpack.c.l.s4 1983009808
  %v3003 = vunpack.c.0.s8 %v3002
  %v3004 = vlaneseq
  %v3005 = vshrl.u32 %v3004, 7
  %v3006 = vsub.s32 %v3003, %v3005
  %v3007 = vrot.slane %v3000, %v3006
  %v3008 = vcombine.low %v767, %v775
  %v3009 = vcombine.low %v783, %v791
  %v3011 = vunpack.c.l.s4 1983009808
  %v3012 = vunpack.c.0.s8 %v3011
  %v3013 = vlaneseq
  %v3014 = vshrl.u32 %v3013, 7
  %v3015 = vsub.s32 %v3012, %v3014
  %v3016 = vrot.slane %v3008, %v3015
  %v3018 = vunpack.c.l.s4 1983009808
  %v3019 = vunpack.c.0.s8 %v3018
  %v3020 = vlaneseq
  %v3021 = vshrl.u32 %v3020, 7
  %v3022 = vsub.s32 %v3019, %v3021
  %v3023 = vrot.slane %v3009, %v3022
  %v3024 = vcombine.low %v3016, %v3023
  %v3025 = vcombine.high %v3016, %v3023
  %v3026 = vcombine.low %v799, %v807
  %v3027 = vcombine.low %v815, %v823
  %v3029 = vunpack.c.l.s4 1983009808
  %v3030 = vunpack.c.0.s8 %v3029
  %v3031 = vlaneseq
  %v3032 = vshrl.u32 %v3031, 7
  %v3033 = vsub.s32 %v3030, %v3032
  %v3034 = vrot.slane %v3026, %v3033
  %v3036 = vunpack.c.l.s4 1983009808
  %v3037 = vunpack.c.0.s8 %v3036
  %v3038 = vlaneseq
  %v3039 = vshrl.u32 %v3038, 7
  %v3040 = vsub.s32 %v3037, %v3039
  %v3041 = vrot.slane %v3027, %v3040
  %v3042 = vcombine.low %v3034, %v3041
  %v3043 = vcombine.high %v3034, %v3041
  %v3044 = vcombine.low %v831, %v839
  %v3045 = vcombine.low %v847, %v855
  %v3047 = vunpack.c.l.s4 1983009808
  %v3048 = vunpack.c.0.s8 %v3047
  %v3049 = vlaneseq
  %v3050 = vshrl.u32 %v3049, 7
  %v3051 = vsub.s32 %v3048, %v3050
  %v3052 = vrot.slane %v3044, %v3051
  %v3054 = vunpack.c.l.s4 1983009808
  %v3055 = vunpack.c.0.s8 %v3054
  %v3056 = vlaneseq
  %v3057 = vshrl.u32 %v3056, 7
  %v3058 = vsub.s32 %v3055, %v3057
  %v3059 = vrot.slane %v3045, %v3058
  %v3060 = vcombine.low %v3052, %v3059
  %v3061 = vcombine.high %v3052, %v3059
  %v3062 = vcombine.low %v863, %v871
  %v3063 = vcombine.low %v879, %v887
  %v3065 = vunpack.c.l.s4 1983009808
  %v3066 = vunpack.c.0.s8 %v3065
  %v3067 = vlaneseq
  %v3068 = vshrl.u32 %v3067, 7
  %v3069 = vsub.s32 %v3066, %v3068
  %v3070 = vrot.slane %v3062, %v3069
  %v3072 = vunpack.c.l.s4 1983009808
  %v3073 = vunpack.c.0.s8 %v3072
  %v3074 = vlaneseq
  %v3075 = vshrl.u32 %v3074, 7
  %v3076 = vsub.s32 %v3073, %v3075
  %v3077 = vrot.slane %v3063, %v3076
  %v3078 = vcombine.low %v3070, %v3077
  %v3079 = vcombine.high %v3070, %v3077
  %v3080 = vcombine.low %v895, %v903
  %v3081 = vcombine.low %v911, %v919
  %v3083 = vunpack.c.l.s4 1983009808
  %v3084 = vunpack.c.0.s8 %v3083
  %v3085 = vlaneseq
  %v3086 = vshrl.u32 %v3085, 7
  %v3087 = vsub.s32 %v3084, %v3086
  %v3088 = vrot.slane %v3080, %v3087
  %v3090 = vunpack.c.l.s4 1983009808
  %v3091 = vunpack.c.0.s8 %v3090
  %v3092 = vlaneseq
  %v3093 = vshrl.u32 %v3092, 7
  %v3094 = vsub.s32 %v3091, %v3093
  %v3095 = vrot.slane %v3081, %v3094
  %v3096 = vcombine.low %v3088, %v3095
  %v3097 = vcombine.high %v3088, %v3095
  %v3098 = vcombine.low %v927, %v935
  %v3099 = vcombine.low %v943, %v951
  %v3101 = vunpack.c.l.s4 1983009808
  %v3102 = vunpack.c.0.s8 %v3101
  %v3103 = vlaneseq
  %v3104 = vshrl.u32 %v3103, 7
  %v3105 = vsub.s32 %v3102, %v3104
  %v3106 = vrot.slane %v3098, %v3105
  %v3108 = vunpack.c.l.s4 1983009808
  %v3109 = vunpack.c.0.s8 %v3108
  %v3110 = vlaneseq
  %v3111 = vshrl.u32 %v3110, 7
  %v3112 = vsub.s32 %v3109, %v3111
  %v3113 = vrot.slane %v3099, %v3112
  %v3114 = vcombine.low %v3106, %v3113
  %v3115 = vcombine.high %v3106, %v3113
  %v3116 = vcombine.low %v959, %v967
  %v3117 = vcombine.low %v975, %v983
  %v3119 = vunpack.c.l.s4 1983009808
  %v3120 = vunpack.c.0.s8 %v3119
  %v3121 = vlaneseq
  %v3122 = vshrl.u32 %v3121, 7
  %v3123 = vsub.s32 %v3120, %v3122
  %v3124 = vrot.slane %v3116, %v3123
  %v3126 = vunpack.c.l.s4 1983009808
  %v3127 = vunpack.c.0.s8 %v3126
  %v3128 = vlaneseq
  %v3129 = vshrl.u32 %v3128, 7
  %v3130 = vsub.s32 %v3127, %v3129
  %v3131 = vrot.slane %v3117, %v3130
  %v3132 = vcombine.low %v3124, %v3131
  %v3133 = vcombine.high %v3124, %v3131
  %v3134 = vcombine.low %v991, %v999
  %v3135 = vcombine.low %v1007, %v1015
  %v3137 = vunpack.c.l.s4 1983009808
  %v3138 = vunpack.c.0.s8 %v3137
  %v3139 = vlaneseq
  %v3140 = vshrl.u32 %v3139, 7
  %v3141 = vsub.s32 %v3138, %v3140
  %v3142 = vrot.slane %v3134, %v3141
  %v3144 = vunpack.c.l.s4 1983009808
  %v3145 = vunpack.c.0.s8 %v3144
  %v3146 = vlaneseq
  %v3147 = vshrl.u32 %v3146, 7
  %v3148 = vsub.s32 %v3145, %v3147
  %v3149 = vrot.slane %v3135, %v3148
  %v3150 = vcombine.low %v3142, %v3149
  %v3151 = vcombine.high %v3142, %v3149
  %v3168 = vcombine.low %v2047, %v2055
  %v3169 = vcombine.low %v2063, %v2071
  %v3171 = vunpack.c.l.s4 1983009808
  %v3172 = vunpack.c.0.s8 %v3171
  %v3173 = vlaneseq
  %v3174 = vshrl.u32 %v3173, 7
  %v3175 = vsub.s32 %v3172, %v3174
  %v3176 = vrot.slane %v3168, %v3175
  %v3178 = vunpack.c.l.s4 1983009808
  %v3179 = vunpack.c.0.s8 %v3178
  %v3180 = vlaneseq
  %v3181 = vshrl.u32 %v3180, 7
  %v3182 = vsub.s32 %v3179, %v3181
  %v3183 = vrot.slane %v3169, %v3182
  %v3184 = vcombine.low %v3176, %v3183
  %v3185 = vcombine.high %v3176, %v3183
  %v3186 = vcombine.low %v2079, %v2087
  %v3187 = vcombine.low %v2095, %v2103
  %v3189 = vunpack.c.l.s4 1983009808
  %v3190 = vunpack.c.0.s8 %v3189
  %v3191 = vlaneseq
  %v3192 = vshrl.u32 %v3191, 7
  %v3193 = vsub.s32 %v3190, %v3192
  %v3194 = vrot.slane %v3186, %v3193
  %v3196 = vunpack.c.l.s4 1983009808
  %v3197 = vunpack.c.0.s8 %v3196
  %v3198 = vlaneseq
  %v3199 = vshrl.u32 %v3198, 7
  %v3200 = vsub.s32 %v3197, %v3199
  %v3201 = vrot.slane %v3187, %v3200
  %v3202 = vcombine.low %v3194, %v3201
  %v3203 = vcombine.high %v3194, %v3201
  %v3204 = vcombine.low %v2111, %v2119
  %v3205 = vcombine.low %v2127, %v2135
  %v3207 = vunpack.c.l.s4 1983009808
  %v3208 = vunpack.c.0.s8 %v3207
  %v3209 = vlaneseq
  %v3210 = vshrl.u32 %v3209, 7
  %v3211 = vsub.s32 %v3208, %v3210
  %v3212 = vrot.slane %v3204, %v3211
  %v3214 = vunpack.c.l.s4 1983009808
  %v3215 = vunpack.c.0.s8 %v3214
  %v3216 = vlaneseq
  %v3217 = vshrl.u32 %v3216, 7
  %v3218 = vsub.s32 %v3215, %v3217
  %v3219 = vrot.slane %v3205, %v3218
  %v3220 = vcombine.low %v3212, %v3219
  %v3221 = vcombine.high %v3212, %v3219
  %v3222 = vcombine.low %v2143, %v2151
  %v3223 = vcombine.low %v2159, %v2167
  %v3225 = vunpack.c.l.s4 1983009808
  %v3226 = vunpack.c.0.s8 %v3225
  %v3227 = vlaneseq
  %v3228 = vshrl.u32 %v3227, 7
  %v3229 = vsub.s32 %v3226, %v3228
  %v3230 = vrot.slane %v3222, %v3229
  %v3232 = vunpack.c.l.s4 1983009808
  %v3233 = vunpack.c.0.s8 %v3232
  %v3234 = vlaneseq
  %v3235 = vshrl.u32 %v3234, 7
  %v3236 = vsub.s32 %v3233, %v3235
  %v3237 = vrot.slane %v3223, %v3236
  %v3238 = vcombine.low %v3230, %v3237
  %v3239 = vcombine.high %v3230, %v3237
  %v3240 = vcombine.low %v2175, %v2183
  %v3241 = vcombine.low %v2191, %v2199
  %v3243 = vunpack.c.l.s4 1983009808
  %v3244 = vunpack.c.0.s8 %v3243
  %v3245 = vlaneseq
  %v3246 = vshrl.u32 %v3245, 7
  %v3247 = vsub.s32 %v3244, %v3246
  %v3248 = vrot.slane %v3240, %v3247
  %v3250 = vunpack.c.l.s4 1983009808
  %v3251 = vunpack.c.0.s8 %v3250
  %v3252 = vlaneseq
  %v3253 = vshrl.u32 %v3252, 7
  %v3254 = vsub.s32 %v3251, %v3253
  %v3255 = vrot.slane %v3241, %v3254
  %v3256 = vcombine.low %v3248, %v3255
  %v3257 = vcombine.high %v3248, %v3255
  %v3258 = vcombine.low %v2207, %v2215
  %v3259 = vcombine.low %v2223, %v2231
  %v3261 = vunpack.c.l.s4 1983009808
  %v3262 = vunpack.c.0.s8 %v3261
  %v3263 = vlaneseq
  %v3264 = vshrl.u32 %v3263, 7
  %v3265 = vsub.s32 %v3262, %v3264
  %v3266 = vrot.slane %v3258, %v3265
  %v3268 = vunpack.c.l.s4 1983009808
  %v3269 = vunpack.c.0.s8 %v3268
  %v3270 = vlaneseq
  %v3271 = vshrl.u32 %v3270, 7
  %v3272 = vsub.s32 %v3269, %v3271
  %v3273 = vrot.slane %v3259, %v3272
  %v3274 = vcombine.low %v3266, %v3273
  %v3275 = vcombine.high %v3266, %v3273
  %v3276 = vcombine.low %v2239, %v2247
  %v3277 = vcombine.low %v2255, %v2263
  %v3279 = vunpack.c.l.s4 1983009808
  %v3280 = vunpack.c.0.s8 %v3279
  %v3281 = vlaneseq
  %v3282 = vshrl.u32 %v3281, 7
  %v3283 = vsub.s32 %v3280, %v3282
  %v3284 = vrot.slane %v3276, %v3283
  %v3286 = vunpack.c.l.s4 1983009808
  %v3287 = vunpack.c.0.s8 %v3286
  %v3288 = vlaneseq
  %v3289 = vshrl.u32 %v3288, 7
  %v3290 = vsub.s32 %v3287, %v3289
  %v3291 = vrot.slane %v3277, %v3290
  %v3292 = vcombine.low %v3284, %v3291
  %v3293 = vcombine.high %v3284, %v3291
  %v3294 = vcombine.low %v2271, %v2279
  %v3295 = vcombine.low %v2287, %v2295
  %v3297 = vunpack.c.l.s4 1983009808
  %v3298 = vunpack.c.0.s8 %v3297
  %v3299 = vlaneseq
  %v3300 = vshrl.u32 %v3299, 7
  %v3301 = vsub.s32 %v3298, %v3300
  %v3302 = vrot.slane %v3294, %v3301
  %v3304 = vunpack.c.l.s4 1983009808
  %v3305 = vunpack.c.0.s8 %v3304
  %v3306 = vlaneseq
  %v3307 = vshrl.u32 %v3306, 7
  %v3308 = vsub.s32 %v3305, %v3307
  %v3309 = vrot.slane %v3295, %v3308
  %v3310 = vcombine.low %v3302, %v3309
  %v3311 = vcombine.high %v3302, %v3309
  %v3328 = vcombine.low %v2375, %v2383
  %v3329 = vcombine.low %v2391, %v2399
  %v3331 = vunpack.c.l.s4 1983009808
  %v3332 = vunpack.c.0.s8 %v3331
  %v3333 = vlaneseq
  %v3334 = vshrl.u32 %v3333, 7
  %v3335 = vsub.s32 %v3332, %v3334
  %v3336 = vrot.slane %v3328, %v3335
  %v3338 = vunpack.c.l.s4 1983009808
  %v3339 = vunpack.c.0.s8 %v3338
  %v3340 = vlaneseq
  %v3341 = vshrl.u32 %v3340, 7
  %v3342 = vsub.s32 %v3339, %v3341
  %v3343 = vrot.slane %v3329, %v3342
  %v3344 = vcombine.low %v3336, %v3343
  %v3345 = vcombine.high %v3336, %v3343
  %v3346 = vcombine.low %v2407, %v2415
  %v3347 = vcombine.low %v2423, %v2431
  %v3349 = vunpack.c.l.s4 1983009808
  %v3350 = vunpack.c.0.s8 %v3349
  %v3351 = vlaneseq
  %v3352 = vshrl.u32 %v3351, 7
  %v3353 = vsub.s32 %v3350, %v3352
  %v3354 = vrot.slane %v3346, %v3353
  %v3356 = vunpack.c.l.s4 1983009808
  %v3357 = vunpack.c.0.s8 %v3356
  %v3358 = vlaneseq
  %v3359 = vshrl.u32 %v3358, 7
  %v3360 = vsub.s32 %v3357, %v3359
  %v3361 = vrot.slane %v3347, %v3360
  %v3362 = vcombine.low %v3354, %v3361
  %v3363 = vcombine.high %v3354, %v3361
  %v3364 = vcombine.low %v2439, %v2447
  %v3365 = vcombine.low %v2455, %v2463
  %v3367 = vunpack.c.l.s4 1983009808
  %v3368 = vunpack.c.0.s8 %v3367
  %v3369 = vlaneseq
  %v3370 = vshrl.u32 %v3369, 7
  %v3371 = vsub.s32 %v3368, %v3370
  %v3372 = vrot.slane %v3364, %v3371
  %v3374 = vunpack.c.l.s4 1983009808
  %v3375 = vunpack.c.0.s8 %v3374
  %v3376 = vlaneseq
  %v3377 = vshrl.u32 %v3376, 7
  %v3378 = vsub.s32 %v3375, %v3377
  %v3379 = vrot.slane %v3365, %v3378
  %v3380 = vcombine.low %v3372, %v3379
  %v3381 = vcombine.high %v3372, %v3379
  %v3382 = vcombine.low %v2471, %v2479
  %v3383 = vcombine.low %v2487, %v2495
  %v3385 = vunpack.c.l.s4 1983009808
  %v3386 = vunpack.c.0.s8 %v3385
  %v3387 = vlaneseq
  %v3388 = vshrl.u32 %v3387, 7
  %v3389 = vsub.s32 %v3386, %v3388
  %v3390 = vrot.slane %v3382, %v3389
  %v3392 = vunpack.c.l.s4 1983009808
  %v3393 = vunpack.c.0.s8 %v3392
  %v3394 = vlaneseq
  %v3395 = vshrl.u32 %v3394, 7
  %v3396 = vsub.s32 %v3393, %v3395
  %v3397 = vrot.slane %v3383, %v3396
  %v3398 = vcombine.low %v3390, %v3397
  %v3399 = vcombine.high %v3390, %v3397
  %v3400 = vcombine.low %v2503, %v2511
  %v3401 = vcombine.low %v2519, %v2527
  %v3403 = vunpack.c.l.s4 1983009808
  %v3404 = vunpack.c.0.s8 %v3403
  %v3405 = vlaneseq
  %v3406 = vshrl.u32 %v3405, 7
  %v3407 = vsub.s32 %v3404, %v3406
  %v3408 = vrot.slane %v3400, %v3407
  %v3410 = vunpack.c.l.s4 1983009808
  %v3411 = vunpack.c.0.s8 %v3410
  %v3412 = vlaneseq
  %v3413 = vshrl.u32 %v3412, 7
  %v3414 = vsub.s32 %v3411, %v3413
  %v3415 = vrot.slane %v3401, %v3414
  %v3416 = vcombine.low %v3408, %v3415
  %v3417 = vcombine.high %v3408, %v3415
  %v3418 = vcombine.low %v2535, %v2543
  %v3419 = vcombine.low %v2551, %v2559
  %v3421 = vunpack.c.l.s4 1983009808
  %v3422 = vunpack.c.0.s8 %v3421
  %v3423 = vlaneseq
  %v3424 = vshrl.u32 %v3423, 7
  %v3425 = vsub.s32 %v3422, %v3424
  %v3426 = vrot.slane %v3418, %v3425
  %v3428 = vunpack.c.l.s4 1983009808
  %v3429 = vunpack.c.0.s8 %v3428
  %v3430 = vlaneseq
  %v3431 = vshrl.u32 %v3430, 7
  %v3432 = vsub.s32 %v3429, %v3431
  %v3433 = vrot.slane %v3419, %v3432
  %v3434 = vcombine.low %v3426, %v3433
  %v3435 = vcombine.high %v3426, %v3433
  %v3436 = vcombine.low %v2567, %v2575
  %v3437 = vcombine.low %v2583, %v2591
  %v3439 = vunpack.c.l.s4 1983009808
  %v3440 = vunpack.c.0.s8 %v3439
  %v3441 = vlaneseq
  %v3442 = vshrl.u32 %v3441, 7
  %v3443 = vsub.s32 %v3440, %v3442
  %v3444 = vrot.slane %v3436, %v3443
  %v3446 = vunpack.c.l.s4 1983009808
  %v3447 = vunpack.c.0.s8 %v3446
  %v3448 = vlaneseq
  %v3449 = vshrl.u32 %v3448, 7
  %v3450 = vsub.s32 %v3447, %v3449
  %v3451 = vrot.slane %v3437, %v3450
  %v3452 = vcombine.low %v3444, %v3451
  %v3453 = vcombine.high %v3444, %v3451
  %v3454 = vcombine.low %v2599, %v2607
  %v3455 = vcombine.low %v2615, %v2623
  %v3457 = vunpack.c.l.s4 1983009808
  %v3458 = vunpack.c.0.s8 %v3457
  %v3459 = vlaneseq
  %v3460 = vshrl.u32 %v3459, 7
  %v3461 = vsub.s32 %v3458, %v3460
  %v3462 = vrot.slane %v3454, %v3461
  %v3464 = vunpack.c.l.s4 1983009808
  %v3465 = vunpack.c.0.s8 %v3464
  %v3466 = vlaneseq
  %v3467 = vshrl.u32 %v3466, 7
  %v3468 = vsub.s32 %v3465, %v3467
  %v3469 = vrot.slane %v3455, %v3468
  %v3470 = vcombine.low %v3462, %v3469
  %v3471 = vcombine.high %v3462, %v3469
  %v3488 = vcombine.low %v2759, %v2767
  %v3489 = vcombine.low %v2775, %v2783
  %v3491 = vunpack.c.l.s4 1983009808
  %v3492 = vunpack.c.0.s8 %v3491
  %v3493 = vlaneseq
  %v3494 = vshrl.u32 %v3493, 7
  %v3495 = vsub.s32 %v3492, %v3494
  %v3496 = vrot.slane %v3488, %v3495
  %v3498 = vunpack.c.l.s4 1983009808
  %v3499 = vunpack.c.0.s8 %v3498
  %v3500 = vlaneseq
  %v3501 = vshrl.u32 %v3500, 7
  %v3502 = vsub.s32 %v3499, %v3501
  %v3503 = vrot.slane %v3489, %v3502
  %v3504 = vcombine.low %v3496, %v3503
  %v3505 = vcombine.high %v3496, %v3503
  %v3506 = vcombine.low %v2791, %v2799
  %v3507 = vcombine.low %v2807, %v2815
  %v3509 = vunpack.c.l.s4 1983009808
  %v3510 = vunpack.c.0.s8 %v3509
  %v3511 = vlaneseq
  %v3512 = vshrl.u32 %v3511, 7
  %v3513 = vsub.s32 %v3510, %v3512
  %v3514 = vrot.slane %v3506, %v3513
  %v3516 = vunpack.c.l.s4 1983009808
  %v3517 = vunpack.c.0.s8 %v3516
  %v3518 = vlaneseq
  %v3519 = vshrl.u32 %v3518, 7
  %v3520 = vsub.s32 %v3517, %v3519
  %v3521 = vrot.slane %v3507, %v3520
  %v3522 = vcombine.low %v3514, %v3521
  %v3523 = vcombine.high %v3514, %v3521
  %v3524 = vcombine.low %v2823, %v2831
  %v3525 = vcombine.low %v2839, %v2847
  %v3527 = vunpack.c.l.s4 1983009808
  %v3528 = vunpack.c.0.s8 %v3527
  %v3529 = vlaneseq
  %v3530 = vshrl.u32 %v3529, 7
  %v3531 = vsub.s32 %v3528, %v3530
  %v3532 = vrot.slane %v3524, %v3531
  %v3534 = vunpack.c.l.s4 1983009808
  %v3535 = vunpack.c.0.s8 %v3534
  %v3536 = vlaneseq
  %v3537 = vshrl.u32 %v3536, 7
  %v3538 = vsub.s32 %v3535, %v3537
  %v3539 = vrot.slane %v3525, %v3538
  %v3540 = vcombine.low %v3532, %v3539
  %v3541 = vcombine.high %v3532, %v3539
  %v3542 = vcombine.low %v2855, %v2863
  %v3543 = vcombine.low %v2871, %v2879
  %v3545 = vunpack.c.l.s4 1983009808
  %v3546 = vunpack.c.0.s8 %v3545
  %v3547 = vlaneseq
  %v3548 = vshrl.u32 %v3547, 7
  %v3549 = vsub.s32 %v3546, %v3548
  %v3550 = vrot.slane %v3542, %v3549
  %v3552 = vunpack.c.l.s4 1983009808
  %v3553 = vunpack.c.0.s8 %v3552
  %v3554 = vlaneseq
  %v3555 = vshrl.u32 %v3554, 7
  %v3556 = vsub.s32 %v3553, %v3555
  %v3557 = vrot.slane %v3543, %v3556
  %v3558 = vcombine.low %v3550, %v3557
  %v3559 = vcombine.high %v3550, %v3557
  %v3560 = vcombine.low %v2887, %v2895
  %v3561 = vcombine.low %v2903, %v2911
  %v3563 = vunpack.c.l.s4 1983009808
  %v3564 = vunpack.c.0.s8 %v3563
  %v3565 = vlaneseq
  %v3566 = vshrl.u32 %v3565, 7
  %v3567 = vsub.s32 %v3564, %v3566
  %v3568 = vrot.slane %v3560, %v3567
  %v3570 = vunpack.c.l.s4 1983009808
  %v3571 = vunpack.c.0.s8 %v3570
  %v3572 = vlaneseq
  %v3573 = vshrl.u32 %v3572, 7
  %v3574 = vsub.s32 %v3571, %v3573
  %v3575 = vrot.slane %v3561, %v3574
  %v3576 = vcombine.low %v3568, %v3575
  %v3577 = vcombine.high %v3568, %v3575
  %v3578 = vcombine.low %v2919, %v2927
  %v3579 = vcombine.low %v2935, %v2943
  %v3581 = vunpack.c.l.s4 1983009808
  %v3582 = vunpack.c.0.s8 %v3581
  %v3583 = vlaneseq
  %v3584 = vshrl.u32 %v3583, 7
  %v3585 = vsub.s32 %v3582, %v3584
  %v3586 = vrot.slane %v3578, %v3585
  %v3588 = vunpack.c.l.s4 1983009808
  %v3589 = vunpack.c.0.s8 %v3588
  %v3590 = vlaneseq
  %v3591 = vshrl.u32 %v3590, 7
  %v3592 = vsub.s32 %v3589, %v3591
  %v3593 = vrot.slane %v3579, %v3592
  %v3594 = vcombine.low %v3586, %v3593
  %v3595 = vcombine.high %v3586, %v3593
  %v3596 = vcombine.low %v2951, %v2959
  %v3597 = vcombine.low %v2967, %v2975
  %v3599 = vunpack.c.l.s4 1983009808
  %v3600 = vunpack.c.0.s8 %v3599
  %v3601 = vlaneseq
  %v3602 = vshrl.u32 %v3601, 7
  %v3603 = vsub.s32 %v3600, %v3602
  %v3604 = vrot.slane %v3596, %v3603
  %v3606 = vunpack.c.l.s4 1983009808
  %v3607 = vunpack.c.0.s8 %v3606
  %v3608 = vlaneseq
  %v3609 = vshrl.u32 %v3608, 7
  %v3610 = vsub.s32 %v3607, %v3609
  %v3611 = vrot.slane %v3597, %v3610
  %v3612 = vcombine.low %v3604, %v3611
  %v3613 = vcombine.high %v3604, %v3611
  %v3614 = vcombine.low %v2983, %v2991
  %v3615 = vcombine.low %v2999, %v3007
  %v3617 = vunpack.c.l.s4 1983009808
  %v3618 = vunpack.c.0.s8 %v3617
  %v3619 = vlaneseq
  %v3620 = vshrl.u32 %v3619, 7
  %v3621 = vsub.s32 %v3618, %v3620
  %v3622 = vrot.slane %v3614, %v3621
  %v3624 = vunpack.c.l.s4 1983009808
  %v3625 = vunpack.c.0.s8 %v3624
  %v3626 = vlaneseq
  %v3627 = vshrl.u32 %v3626, 7
  %v3628 = vsub.s32 %v3625, %v3627
  %v3629 = vrot.slane %v3615, %v3628
  %v3630 = vcombine.low %v3622, %v3629
  %v3631 = vcombine.high %v3622, %v3629
  %v3648 = vld [vmem:[%s1] sm:$0xf]
  %v3649 = vld [vmem:[%s1 + $0x4] sm:$0xf]
  %v3650 = vld [vmem:[%s1 + $0x8] sm:$0xf]
  %v3651 = vld [vmem:[%s1 + $0xc] sm:$0xf]
  %v3652 = vld [vmem:[%s1 + $0x10] sm:$0xf]
  %v3653 = vld [vmem:[%s1 + $0x14] sm:$0xf]
  %v3654 = vld [vmem:[%s1 + $0x18] sm:$0xf]
  %v3655 = vld [vmem:[%s1 + $0x1c] sm:$0xf]
  %v3656 = vld [vmem:[%s1 + $0x20] sm:$0xf]
  %v3657 = vld [vmem:[%s1 + $0x24] sm:$0xf]
  %v3658 = vld [vmem:[%s1 + $0x28] sm:$0xf]
  %v3659 = vld [vmem:[%s1 + $0x2c] sm:$0xf]
  %v3660 = vld [vmem:[%s1 + $0x30] sm:$0xf]
  %v3661 = vld [vmem:[%s1 + $0x34] sm:$0xf]
  %v3662 = vld [vmem:[%s1 + $0x38] sm:$0xf]
  %v3663 = vld [vmem:[%s1 + $0x3c] sm:$0xf]
  %v3664 = vld [vmem:[%s1 + $0x40] sm:$0xf]
  %v3665 = vld [vmem:[%s1 + $0x44] sm:$0xf]
  %v3666 = vld [vmem:[%s1 + $0x48] sm:$0xf]
  %v3667 = vld [vmem:[%s1 + $0x4c] sm:$0xf]
  %v3668 = vld [vmem:[%s1 + $0x50] sm:$0xf]
  %v3669 = vld [vmem:[%s1 + $0x54] sm:$0xf]
  %v3670 = vld [vmem:[%s1 + $0x58] sm:$0xf]
  %v3671 = vld [vmem:[%s1 + $0x5c] sm:$0xf]
  %v3672 = vld [vmem:[%s1 + $0x60] sm:$0xf]
  %v3673 = vld [vmem:[%s1 + $0x64] sm:$0xf]
  %v3674 = vld [vmem:[%s1 + $0x68] sm:$0xf]
  %v3675 = vld [vmem:[%s1 + $0x6c] sm:$0xf]
  %v3676 = vld [vmem:[%s1 + $0x70] sm:$0xf]
  %v3677 = vld [vmem:[%s1 + $0x74] sm:$0xf]
  %v3678 = vld [vmem:[%s1 + $0x78] sm:$0xf]
  %v3679 = vld [vmem:[%s1 + $0x7c] sm:$0xf]
  %v3712 = vunpack.c.l.b16 %v3648
  %v3713 = vunpack.c.l.b16 %v3649
  %v3714 = vunpack.c.l.b16 %v3650
  %v3715 = vunpack.c.l.b16 %v3651
  %v3716 = vunpack.c.l.b16 %v3652
  %v3717 = vunpack.c.l.b16 %v3653
  %v3718 = vunpack.c.l.b16 %v3654
  %v3719 = vunpack.c.l.b16 %v3655
  %v3720 = vunpack.c.l.b16 %v3656
  %v3721 = vunpack.c.l.b16 %v3657
  %v3722 = vunpack.c.l.b16 %v3658
  %v3723 = vunpack.c.l.b16 %v3659
  %v3724 = vunpack.c.l.b16 %v3660
  %v3725 = vunpack.c.l.b16 %v3661
  %v3726 = vunpack.c.l.b16 %v3662
  %v3727 = vunpack.c.l.b16 %v3663
  %v3728 = vunpack.c.l.b16 %v3664
  %v3729 = vunpack.c.l.b16 %v3665
  %v3730 = vunpack.c.l.b16 %v3666
  %v3731 = vunpack.c.l.b16 %v3667
  %v3732 = vunpack.c.l.b16 %v3668
  %v3733 = vunpack.c.l.b16 %v3669
  %v3734 = vunpack.c.l.b16 %v3670
  %v3735 = vunpack.c.l.b16 %v3671
  %v3736 = vunpack.c.l.b16 %v3672
  %v3737 = vunpack.c.l.b16 %v3673
  %v3738 = vunpack.c.l.b16 %v3674
  %v3739 = vunpack.c.l.b16 %v3675
  %v3740 = vunpack.c.l.b16 %v3676
  %v3741 = vunpack.c.l.b16 %v3677
  %v3742 = vunpack.c.l.b16 %v3678
  %v3743 = vunpack.c.l.b16 %v3679
  %v3744 = vpack.c.b16 %v3713, %v3712
  %v3745 = vpack.c.b16 %v3715, %v3714
  %v3746 = vpack.c.b16 %v3717, %v3716
  %v3747 = vpack.c.b16 %v3719, %v3718
  %v3748 = vpack.c.b16 %v3721, %v3720
  %v3749 = vpack.c.b16 %v3723, %v3722
  %v3750 = vpack.c.b16 %v3725, %v3724
  %v3751 = vpack.c.b16 %v3727, %v3726
  %v3752 = vpack.c.b16 %v3729, %v3728
  %v3753 = vpack.c.b16 %v3731, %v3730
  %v3754 = vpack.c.b16 %v3733, %v3732
  %v3755 = vpack.c.b16 %v3735, %v3734
  %v3756 = vpack.c.b16 %v3737, %v3736
  %v3757 = vpack.c.b16 %v3739, %v3738
  %v3758 = vpack.c.b16 %v3741, %v3740
  %v3759 = vpack.c.b16 %v3743, %v3742
  %3776 = vmatprep.subr.bf16.mxu0 0
  %3777 = vmatpush1.bf16.msra.mxu0 %v3744
  %3778 = vmatprep.subr.bf16.mxu0 0
  %3779 = vmatpush1.bf16.msra.mxu0 %v3745
  %3780 = vmatprep.subr.bf16.mxu0 0
  %3781 = vmatpush1.bf16.msra.mxu0 %v3746
  %3782 = vmatprep.subr.bf16.mxu0 0
  %3783 = vmatpush1.bf16.msra.mxu0 %v3747
  %3784 = vmatprep.subr.bf16.mxu0 0
  %3785 = vmatpush1.bf16.msra.mxu0 %v3748
  %3786 = vmatprep.subr.bf16.mxu0 0
  %3787 = vmatpush1.bf16.msra.mxu0 %v3749
  %3788 = vmatprep.subr.bf16.mxu0 0
  %3789 = vmatpush1.bf16.msra.mxu0 %v3750
  %3790 = vmatprep.subr.bf16.mxu0 0
  %3791 = vmatpush1.bf16.msra.mxu0 %v3751
  %3792 = vmatprep.subr.bf16.mxu0 0
  %3793 = vmatpush1.bf16.msra.mxu0 %v3752
  %3794 = vmatprep.subr.bf16.mxu0 0
  %3795 = vmatpush1.bf16.msra.mxu0 %v3753
  %3796 = vmatprep.subr.bf16.mxu0 0
  %3797 = vmatpush1.bf16.msra.mxu0 %v3754
  %3798 = vmatprep.subr.bf16.mxu0 0
  %3799 = vmatpush1.bf16.msra.mxu0 %v3755
  %3800 = vmatprep.subr.bf16.mxu0 0
  %3801 = vmatpush1.bf16.msra.mxu0 %v3756
  %3802 = vmatprep.subr.bf16.mxu0 0
  %3803 = vmatpush1.bf16.msra.mxu0 %v3757
  %3804 = vmatprep.subr.bf16.mxu0 0
  %3805 = vmatpush1.bf16.msra.mxu0 %v3758
  %3806 = vmatprep.subr.bf16.mxu0 0
  %3807 = vmatpush1.bf16.msra.mxu0 %v3759
  %3808 = vmatprep.mubr.bf16.mxu0 %v3025
  %3809 = vmatmul.mubr.bf16.gmra.mrb[0].mxu0 %v3024
  %v3810 = vpop.f32.mrb[0].mxu0
  %v3811 = vadd.f32 0.0, %v3810
  %v3812 = vpop.f32.mrb[0].mxu0
  %v3813 = vpop.f32.mrb[0].mxu0
  %v3814 = vadd.f32 0.0, %v3813
  %v3815 = vpop.f32.mrb[0].mxu0
  %3816 = vmatprep.mubr.bf16.mxu0 %v3043
  %3817 = vmatmul.mubr.bf16.gmra.mrb[0].mxu0 %v3042
  %v3818 = vpop.f32.mrb[0].mxu0
  %v3819 = vadd.f32 0.0, %v3818
  %v3820 = vpop.f32.mrb[0].mxu0
  %v3821 = vpop.f32.mrb[0].mxu0
  %v3822 = vadd.f32 0.0, %v3821
  %v3823 = vpop.f32.mrb[0].mxu0
  %3824 = vmatprep.mubr.bf16.mxu0 %v3061
  %3825 = vmatmul.mubr.bf16.gmra.mrb[0].mxu0 %v3060
  %v3826 = vpop.f32.mrb[0].mxu0
  %v3827 = vadd.f32 0.0, %v3826
  %v3828 = vpop.f32.mrb[0].mxu0
  %v3829 = vpop.f32.mrb[0].mxu0
  %v3830 = vadd.f32 0.0, %v3829
  %v3831 = vpop.f32.mrb[0].mxu0
  %3832 = vmatprep.mubr.bf16.mxu0 %v3079
  %3833 = vmatmul.mubr.bf16.gmra.mrb[0].mxu0 %v3078
  %v3834 = vpop.f32.mrb[0].mxu0
  %v3835 = vadd.f32 0.0, %v3834
  %v3836 = vpop.f32.mrb[0].mxu0
  %v3837 = vpop.f32.mrb[0].mxu0
  %v3838 = vadd.f32 0.0, %v3837
  %v3839 = vpop.f32.mrb[0].mxu0
  %3840 = vmatprep.mubr.bf16.mxu0 %v3097
  %3841 = vmatmul.mubr.bf16.gmra.mrb[0].mxu0 %v3096
  %v3842 = vpop.f32.mrb[0].mxu0
  %v3843 = vadd.f32 0.0, %v3842
  %v3844 = vpop.f32.mrb[0].mxu0
  %v3845 = vpop.f32.mrb[0].mxu0
  %v3846 = vadd.f32 0.0, %v3845
  %v3847 = vpop.f32.mrb[0].mxu0
  %3848 = vmatprep.mubr.bf16.mxu0 %v3115
  %3849 = vmatmul.mubr.bf16.gmra.mrb[0].mxu0 %v3114
  %v3850 = vpop.f32.mrb[0].mxu0
  %v3851 = vadd.f32 0.0, %v3850
  %v3852 = vpop.f32.mrb[0].mxu0
  %v3853 = vpop.f32.mrb[0].mxu0
  %v3854 = vadd.f32 0.0, %v3853
  %v3855 = vpop.f32.mrb[0].mxu0
  %3856 = vmatprep.mubr.bf16.mxu0 %v3133
  %3857 = vmatmul.mubr.bf16.gmra.mrb[0].mxu0 %v3132
  %v3858 = vpop.f32.mrb[0].mxu0
  %v3859 = vadd.f32 0.0, %v3858
  %v3860 = vpop.f32.mrb[0].mxu0
  %v3861 = vpop.f32.mrb[0].mxu0
  %v3862 = vadd.f32 0.0, %v3861
  %v3863 = vpop.f32.mrb[0].mxu0
  %3864 = vmatprep.mubr.bf16.mxu0 %v3151
  %3865 = vmatmul.mubr.bf16.gmra.mrb[0].mxu0 %v3150
  %v3866 = vpop.f32.mrb[0].mxu0
  %v3867 = vadd.f32 0.0, %v3866
  %v3868 = vpop.f32.mrb[0].mxu0
  %v3869 = vpop.f32.mrb[0].mxu0
  %v3870 = vadd.f32 0.0, %v3869
  %v3871 = vpop.f32.mrb[0].mxu0
  %3872 = vmatprep.mubr.bf16.mxu0 %v3185
  %3873 = vmatmul.mubr.bf16.gmra.mrb[0].mxu0 %v3184
  %v3874 = vpop.f32.mrb[0].mxu0
  %v3875 = vadd.f32 0.0, %v3874
  %v3876 = vpop.f32.mrb[0].mxu0
  %v3877 = vpop.f32.mrb[0].mxu0
  %v3878 = vadd.f32 0.0, %v3877
  %v3879 = vpop.f32.mrb[0].mxu0
  %3880 = vmatprep.mubr.bf16.mxu0 %v3203
  %3881 = vmatmul.mubr.bf16.gmra.mrb[0].mxu0 %v3202
  %v3882 = vpop.f32.mrb[0].mxu0
  %v3883 = vadd.f32 0.0, %v3882
  %v3884 = vpop.f32.mrb[0].mxu0
  %v3885 = vpop.f32.mrb[0].mxu0
  %v3886 = vadd.f32 0.0, %v3885
  %v3887 = vpop.f32.mrb[0].mxu0
  %3888 = vmatprep.mubr.bf16.mxu0 %v3221
  %3889 = vmatmul.mubr.bf16.gmra.mrb[0].mxu0 %v3220
  %v3890 = vpop.f32.mrb[0].mxu0
  %v3891 = vadd.f32 0.0, %v3890
  %v3892 = vpop.f32.mrb[0].mxu0
  %v3893 = vpop.f32.mrb[0].mxu0
  %v3894 = vadd.f32 0.0, %v3893
  %v3895 = vpop.f32.mrb[0].mxu0
  %3896 = vmatprep.mubr.bf16.mxu0 %v3239
  %3897 = vmatmul.mubr.bf16.gmra.mrb[0].mxu0 %v3238
  %v3898 = vpop.f32.mrb[0].mxu0
  %v3899 = vadd.f32 0.0, %v3898
  %v3900 = vpop.f32.mrb[0].mxu0
  %v3901 = vpop.f32.mrb[0].mxu0
  %v3902 = vadd.f32 0.0, %v3901
  %v3903 = vpop.f32.mrb[0].mxu0
  %3904 = vmatprep.mubr.bf16.mxu0 %v3257
  %3905 = vmatmul.mubr.bf16.gmra.mrb[0].mxu0 %v3256
  %v3906 = vpop.f32.mrb[0].mxu0
  %v3907 = vadd.f32 0.0, %v3906
  %v3908 = vpop.f32.mrb[0].mxu0
  %v3909 = vpop.f32.mrb[0].mxu0
  %v3910 = vadd.f32 0.0, %v3909
  %v3911 = vpop.f32.mrb[0].mxu0
  %3912 = vmatprep.mubr.bf16.mxu0 %v3275
  %3913 = vmatmul.mubr.bf16.gmra.mrb[0].mxu0 %v3274
  %v3914 = vpop.f32.mrb[0].mxu0
  %v3915 = vadd.f32 0.0, %v3914
  %v3916 = vpop.f32.mrb[0].mxu0
  %v3917 = vpop.f32.mrb[0].mxu0
  %v3918 = vadd.f32 0.0, %v3917
  %v3919 = vpop.f32.mrb[0].mxu0
  %3920 = vmatprep.mubr.bf16.mxu0 %v3293
  %3921 = vmatmul.mubr.bf16.gmra.mrb[0].mxu0 %v3292
  %v3922 = vpop.f32.mrb[0].mxu0
  %v3923 = vadd.f32 0.0, %v3922
  %v3924 = vpop.f32.mrb[0].mxu0
  %v3925 = vpop.f32.mrb[0].mxu0
  %v3926 = vadd.f32 0.0, %v3925
  %v3927 = vpop.f32.mrb[0].mxu0
  %3928 = vmatprep.mubr.bf16.mxu0 %v3311
  %3929 = vmatmul.mubr.bf16.gmra.mrb[0].mxu0 %v3310
  %v3930 = vpop.f32.mrb[0].mxu0
  %v3931 = vadd.f32 0.0, %v3930
  %v3932 = vpop.f32.mrb[0].mxu0
  %v3933 = vpop.f32.mrb[0].mxu0
  %v3934 = vadd.f32 0.0, %v3933
  %v3935 = vpop.f32.mrb[0].mxu0
  %3936 = vmatprep.mubr.bf16.mxu0 %v3345
  %3937 = vmatmul.mubr.bf16.gmra.mrb[0].mxu0 %v3344
  %v3938 = vpop.f32.mrb[0].mxu0
  %v3939 = vadd.f32 0.0, %v3938
  %v3940 = vpop.f32.mrb[0].mxu0
  %v3941 = vpop.f32.mrb[0].mxu0
  %v3942 = vadd.f32 0.0, %v3941
  %v3943 = vpop.f32.mrb[0].mxu0
  %3944 = vmatprep.mubr.bf16.mxu0 %v3363
  %3945 = vmatmul.mubr.bf16.gmra.mrb[0].mxu0 %v3362
  %v3946 = vpop.f32.mrb[0].mxu0
  %v3947 = vadd.f32 0.0, %v3946
  %v3948 = vpop.f32.mrb[0].mxu0
  %v3949 = vpop.f32.mrb[0].mxu0
  %v3950 = vadd.f32 0.0, %v3949
  %v3951 = vpop.f32.mrb[0].mxu0
  %3952 = vmatprep.mubr.bf16.mxu0 %v3381
  %3953 = vmatmul.mubr.bf16.gmra.mrb[0].mxu0 %v3380
  %v3954 = vpop.f32.mrb[0].mxu0
  %v3955 = vadd.f32 0.0, %v3954
  %v3956 = vpop.f32.mrb[0].mxu0
  %v3957 = vpop.f32.mrb[0].mxu0
  %v3958 = vadd.f32 0.0, %v3957
  %v3959 = vpop.f32.mrb[0].mxu0
  %3960 = vmatprep.mubr.bf16.mxu0 %v3399
  %3961 = vmatmul.mubr.bf16.gmra.mrb[0].mxu0 %v3398
  %v3962 = vpop.f32.mrb[0].mxu0
  %v3963 = vadd.f32 0.0, %v3962
  %v3964 = vpop.f32.mrb[0].mxu0
  %v3965 = vpop.f32.mrb[0].mxu0
  %v3966 = vadd.f32 0.0, %v3965
  %v3967 = vpop.f32.mrb[0].mxu0
  %3968 = vmatprep.mubr.bf16.mxu0 %v3417
  %3969 = vmatmul.mubr.bf16.gmra.mrb[0].mxu0 %v3416
  %v3970 = vpop.f32.mrb[0].mxu0
  %v3971 = vadd.f32 0.0, %v3970
  %v3972 = vpop.f32.mrb[0].mxu0
  %v3973 = vpop.f32.mrb[0].mxu0
  %v3974 = vadd.f32 0.0, %v3973
  %v3975 = vpop.f32.mrb[0].mxu0
  %3976 = vmatprep.mubr.bf16.mxu0 %v3435
  %3977 = vmatmul.mubr.bf16.gmra.mrb[0].mxu0 %v3434
  %v3978 = vpop.f32.mrb[0].mxu0
  %v3979 = vadd.f32 0.0, %v3978
  %v3980 = vpop.f32.mrb[0].mxu0
  %v3981 = vpop.f32.mrb[0].mxu0
  %v3982 = vadd.f32 0.0, %v3981
  %v3983 = vpop.f32.mrb[0].mxu0
  %3984 = vmatprep.mubr.bf16.mxu0 %v3453
  %3985 = vmatmul.mubr.bf16.gmra.mrb[0].mxu0 %v3452
  %v3986 = vpop.f32.mrb[0].mxu0
  %v3987 = vadd.f32 0.0, %v3986
  %v3988 = vpop.f32.mrb[0].mxu0
  %v3989 = vpop.f32.mrb[0].mxu0
  %v3990 = vadd.f32 0.0, %v3989
  %v3991 = vpop.f32.mrb[0].mxu0
  %3992 = vmatprep.mubr.bf16.mxu0 %v3471
  %3993 = vmatmul.mubr.bf16.gmra.mrb[0].mxu0 %v3470
  %v3994 = vpop.f32.mrb[0].mxu0
  %v3995 = vadd.f32 0.0, %v3994
  %v3996 = vpop.f32.mrb[0].mxu0
  %v3997 = vpop.f32.mrb[0].mxu0
  %v3998 = vadd.f32 0.0, %v3997
  %v3999 = vpop.f32.mrb[0].mxu0
  %4000 = vmatprep.mubr.bf16.mxu0 %v3505
  %4001 = vmatmul.mubr.bf16.gmra.mrb[0].mxu0 %v3504
  %v4002 = vpop.f32.mrb[0].mxu0
  %v4003 = vadd.f32 0.0, %v4002
  %v4004 = vpop.f32.mrb[0].mxu0
  %v4005 = vpop.f32.mrb[0].mxu0
  %v4006 = vadd.f32 0.0, %v4005
  %v4007 = vpop.f32.mrb[0].mxu0
  %4008 = vmatprep.mubr.bf16.mxu0 %v3523
  %4009 = vmatmul.mubr.bf16.gmra.mrb[0].mxu0 %v3522
  %v4010 = vpop.f32.mrb[0].mxu0
  %v4011 = vadd.f32 0.0, %v4010
  %v4012 = vpop.f32.mrb[0].mxu0
  %v4013 = vpop.f32.mrb[0].mxu0
  %v4014 = vadd.f32 0.0, %v4013
  %v4015 = vpop.f32.mrb[0].mxu0
  %4016 = vmatprep.mubr.bf16.mxu0 %v3541
  %4017 = vmatmul.mubr.bf16.gmra.mrb[0].mxu0 %v3540
  %v4018 = vpop.f32.mrb[0].mxu0
  %v4019 = vadd.f32 0.0, %v4018
  %v4020 = vpop.f32.mrb[0].mxu0
  %v4021 = vpop.f32.mrb[0].mxu0
  %v4022 = vadd.f32 0.0, %v4021
  %v4023 = vpop.f32.mrb[0].mxu0
  %4024 = vmatprep.mubr.bf16.mxu0 %v3559
  %4025 = vmatmul.mubr.bf16.gmra.mrb[0].mxu0 %v3558
  %v4026 = vpop.f32.mrb[0].mxu0
  %v4027 = vadd.f32 0.0, %v4026
  %v4028 = vpop.f32.mrb[0].mxu0
  %v4029 = vpop.f32.mrb[0].mxu0
  %v4030 = vadd.f32 0.0, %v4029
  %v4031 = vpop.f32.mrb[0].mxu0
  %4032 = vmatprep.mubr.bf16.mxu0 %v3577
  %4033 = vmatmul.mubr.bf16.gmra.mrb[0].mxu0 %v3576
  %v4034 = vpop.f32.mrb[0].mxu0
  %v4035 = vadd.f32 0.0, %v4034
  %v4036 = vpop.f32.mrb[0].mxu0
  %v4037 = vpop.f32.mrb[0].mxu0
  %v4038 = vadd.f32 0.0, %v4037
  %v4039 = vpop.f32.mrb[0].mxu0
  %4040 = vmatprep.mubr.bf16.mxu0 %v3595
  %4041 = vmatmul.mubr.bf16.gmra.mrb[0].mxu0 %v3594
  %v4042 = vpop.f32.mrb[0].mxu0
  %v4043 = vadd.f32 0.0, %v4042
  %v4044 = vpop.f32.mrb[0].mxu0
  %v4045 = vpop.f32.mrb[0].mxu0
  %v4046 = vadd.f32 0.0, %v4045
  %v4047 = vpop.f32.mrb[0].mxu0
  %4048 = vmatprep.mubr.bf16.mxu0 %v3613
  %4049 = vmatmul.mubr.bf16.gmra.mrb[0].mxu0 %v3612
  %v4050 = vpop.f32.mrb[0].mxu0
  %v4051 = vadd.f32 0.0, %v4050
  %v4052 = vpop.f32.mrb[0].mxu0
  %v4053 = vpop.f32.mrb[0].mxu0
  %v4054 = vadd.f32 0.0, %v4053
  %v4055 = vpop.f32.mrb[0].mxu0
  %4056 = vmatprep.mubr.bf16.mxu0 %v3631
  %4057 = vmatmul.mubr.bf16.gmra.mrb[0].mxu0 %v3630
  %v4058 = vpop.f32.mrb[0].mxu0
  %v4059 = vadd.f32 0.0, %v4058
  %v4060 = vpop.f32.mrb[0].mxu0
  %v4061 = vpop.f32.mrb[0].mxu0
  %v4062 = vadd.f32 0.0, %v4061
  %v4063 = vpop.f32.mrb[0].mxu0
  %4064 = vdwg.mxu0
  %v4065 = vpack.c.bf16 %v3814, %v3811
  %v4066 = vpack.c.bf16 %v3822, %v3819
  %v4067 = vpack.c.bf16 %v3830, %v3827
  %v4068 = vpack.c.bf16 %v3838, %v3835
  %v4069 = vpack.c.bf16 %v3846, %v3843
  %v4070 = vpack.c.bf16 %v3854, %v3851
  %v4071 = vpack.c.bf16 %v3862, %v3859
  %v4072 = vpack.c.bf16 %v3870, %v3867
  %v4073 = vpack.c.bf16 %v3878, %v3875
  %v4074 = vpack.c.bf16 %v3886, %v3883
  %v4075 = vpack.c.bf16 %v3894, %v3891
  %v4076 = vpack.c.bf16 %v3902, %v3899
  %v4077 = vpack.c.bf16 %v3910, %v3907
  %v4078 = vpack.c.bf16 %v3918, %v3915
  %v4079 = vpack.c.bf16 %v3926, %v3923
  %v4080 = vpack.c.bf16 %v3934, %v3931
  %v4081 = vpack.c.bf16 %v3942, %v3939
  %v4082 = vpack.c.bf16 %v3950, %v3947
  %v4083 = vpack.c.bf16 %v3958, %v3955
  %v4084 = vpack.c.bf16 %v3966, %v3963
  %v4085 = vpack.c.bf16 %v3974, %v3971
  %v4086 = vpack.c.bf16 %v3982, %v3979
  %v4087 = vpack.c.bf16 %v3990, %v3987
  %v4088 = vpack.c.bf16 %v3998, %v3995
  %v4089 = vpack.c.bf16 %v4006, %v4003
  %v4090 = vpack.c.bf16 %v4014, %v4011
  %v4091 = vpack.c.bf16 %v4022, %v4019
  %v4092 = vpack.c.bf16 %v4030, %v4027
  %v4093 = vpack.c.bf16 %v4038, %v4035
  %v4094 = vpack.c.bf16 %v4046, %v4043
  %v4095 = vpack.c.bf16 %v4054, %v4051
  %v4096 = vpack.c.bf16 %v4062, %v4059
  %v4097 = vld [vmem:[%s2] sm:$0x1]
  %v4098 = vpack.c.bf16 %v4097, %v4097
  %v4100 = vpack.i.b16 %v4098, %v4098
  %v4102 = vlaneseq
  %v4103 = vshrl.u32 %v4102, 7
  %v4104 = vsub.s32 0, %v4103
  %v4105 = vrot.slane %v4100, %v4104
  %v4106 = vadd.bf16 %v4065, %v4105
  %v4107 = vadd.bf16 %v4066, %v4105
  %v4108 = vadd.bf16 %v4067, %v4105
  %v4109 = vadd.bf16 %v4068, %v4105
  %v4110 = vadd.bf16 %v4069, %v4105
  %v4111 = vadd.bf16 %v4070, %v4105
  %v4112 = vadd.bf16 %v4071, %v4105
  %v4113 = vadd.bf16 %v4072, %v4105
  %v4114 = vadd.bf16 %v4073, %v4105
  %v4115 = vadd.bf16 %v4074, %v4105
  %v4116 = vadd.bf16 %v4075, %v4105
  %v4117 = vadd.bf16 %v4076, %v4105
  %v4118 = vadd.bf16 %v4077, %v4105
  %v4119 = vadd.bf16 %v4078, %v4105
  %v4120 = vadd.bf16 %v4079, %v4105
  %v4121 = vadd.bf16 %v4080, %v4105
  %v4122 = vadd.bf16 %v4081, %v4105
  %v4123 = vadd.bf16 %v4082, %v4105
  %v4124 = vadd.bf16 %v4083, %v4105
  %v4125 = vadd.bf16 %v4084, %v4105
  %v4126 = vadd.bf16 %v4085, %v4105
  %v4127 = vadd.bf16 %v4086, %v4105
  %v4128 = vadd.bf16 %v4087, %v4105
  %v4129 = vadd.bf16 %v4088, %v4105
  %v4130 = vadd.bf16 %v4089, %v4105
  %v4131 = vadd.bf16 %v4090, %v4105
  %v4132 = vadd.bf16 %v4091, %v4105
  %v4133 = vadd.bf16 %v4092, %v4105
  %v4134 = vadd.bf16 %v4093, %v4105
  %v4135 = vadd.bf16 %v4094, %v4105
  %v4136 = vadd.bf16 %v4095, %v4105
  %v4137 = vadd.bf16 %v4096, %v4105
  %v4138 = vmax.bf16 %v4106, 0
  %v4139 = vmax.bf16 %v4107, 0
  %v4140 = vmax.bf16 %v4108, 0
  %v4141 = vmax.bf16 %v4109, 0
  %v4142 = vmax.bf16 %v4110, 0
  %v4143 = vmax.bf16 %v4111, 0
  %v4144 = vmax.bf16 %v4112, 0
  %v4145 = vmax.bf16 %v4113, 0
  %v4146 = vmax.bf16 %v4114, 0
  %v4147 = vmax.bf16 %v4115, 0
  %v4148 = vmax.bf16 %v4116, 0
  %v4149 = vmax.bf16 %v4117, 0
  %v4150 = vmax.bf16 %v4118, 0
  %v4151 = vmax.bf16 %v4119, 0
  %v4152 = vmax.bf16 %v4120, 0
  %v4153 = vmax.bf16 %v4121, 0
  %v4154 = vmax.bf16 %v4122, 0
  %v4155 = vmax.bf16 %v4123, 0
  %v4156 = vmax.bf16 %v4124, 0
  %v4157 = vmax.bf16 %v4125, 0
  %v4158 = vmax.bf16 %v4126, 0
  %v4159 = vmax.bf16 %v4127, 0
  %v4160 = vmax.bf16 %v4128, 0
  %v4161 = vmax.bf16 %v4129, 0
  %v4162 = vmax.bf16 %v4130, 0
  %v4163 = vmax.bf16 %v4131, 0
  %v4164 = vmax.bf16 %v4132, 0
  %v4165 = vmax.bf16 %v4133, 0
  %v4166 = vmax.bf16 %v4134, 0
  %v4167 = vmax.bf16 %v4135, 0
  %v4168 = vmax.bf16 %v4136, 0
  %v4169 = vmax.bf16 %v4137, 0
  %v4202 = vcombine.high %v4138, %v4138
  %v4204 = vunpack.c.l.s4 1983009808
  %v4205 = vunpack.c.0.s8 %v4204
  %v4206 = vlaneseq
  %v4207 = vshrl.u32 %v4206, 7
  %v4208 = vsub.s32 %v4205, %v4207
  %v4209 = vrot.slane %v4138, %v4208
  %v4211 = vunpack.c.l.s4 1983009808
  %v4212 = vunpack.c.0.s8 %v4211
  %v4213 = vlaneseq
  %v4214 = vshrl.u32 %v4213, 7
  %v4215 = vsub.s32 %v4212, %v4214
  %v4216 = vrot.slane %v4202, %v4215
  %v4217 = vcombine.high %v4209, %v4209
  %v4218 = vcombine.high %v4216, %v4216
  %v4219 = vcombine.high %v4139, %v4139
  %v4221 = vunpack.c.l.s4 1983009808
  %v4222 = vunpack.c.0.s8 %v4221
  %v4223 = vlaneseq
  %v4224 = vshrl.u32 %v4223, 7
  %v4225 = vsub.s32 %v4222, %v4224
  %v4226 = vrot.slane %v4139, %v4225
  %v4228 = vunpack.c.l.s4 1983009808
  %v4229 = vunpack.c.0.s8 %v4228
  %v4230 = vlaneseq
  %v4231 = vshrl.u32 %v4230, 7
  %v4232 = vsub.s32 %v4229, %v4231
  %v4233 = vrot.slane %v4219, %v4232
  %v4234 = vcombine.high %v4226, %v4226
  %v4235 = vcombine.high %v4233, %v4233
  %v4236 = vcombine.high %v4140, %v4140
  %v4238 = vunpack.c.l.s4 1983009808
  %v4239 = vunpack.c.0.s8 %v4238
  %v4240 = vlaneseq
  %v4241 = vshrl.u32 %v4240, 7
  %v4242 = vsub.s32 %v4239, %v4241
  %v4243 = vrot.slane %v4140, %v4242
  %v4245 = vunpack.c.l.s4 1983009808
  %v4246 = vunpack.c.0.s8 %v4245
  %v4247 = vlaneseq
  %v4248 = vshrl.u32 %v4247, 7
  %v4249 = vsub.s32 %v4246, %v4248
  %v4250 = vrot.slane %v4236, %v4249
  %v4251 = vcombine.high %v4243, %v4243
  %v4252 = vcombine.high %v4250, %v4250
  %v4253 = vcombine.high %v4141, %v4141
  %v4255 = vunpack.c.l.s4 1983009808
  %v4256 = vunpack.c.0.s8 %v4255
  %v4257 = vlaneseq
  %v4258 = vshrl.u32 %v4257, 7
  %v4259 = vsub.s32 %v4256, %v4258
  %v4260 = vrot.slane %v4141, %v4259
  %v4262 = vunpack.c.l.s4 1983009808
  %v4263 = vunpack.c.0.s8 %v4262
  %v4264 = vlaneseq
  %v4265 = vshrl.u32 %v4264, 7
  %v4266 = vsub.s32 %v4263, %v4265
  %v4267 = vrot.slane %v4253, %v4266
  %v4268 = vcombine.high %v4260, %v4260
  %v4269 = vcombine.high %v4267, %v4267
  %v4270 = vcombine.high %v4142, %v4142
  %v4272 = vunpack.c.l.s4 1983009808
  %v4273 = vunpack.c.0.s8 %v4272
  %v4274 = vlaneseq
  %v4275 = vshrl.u32 %v4274, 7
  %v4276 = vsub.s32 %v4273, %v4275
  %v4277 = vrot.slane %v4142, %v4276
  %v4279 = vunpack.c.l.s4 1983009808
  %v4280 = vunpack.c.0.s8 %v4279
  %v4281 = vlaneseq
  %v4282 = vshrl.u32 %v4281, 7
  %v4283 = vsub.s32 %v4280, %v4282
  %v4284 = vrot.slane %v4270, %v4283
  %v4285 = vcombine.high %v4277, %v4277
  %v4286 = vcombine.high %v4284, %v4284
  %v4287 = vcombine.high %v4143, %v4143
  %v4289 = vunpack.c.l.s4 1983009808
  %v4290 = vunpack.c.0.s8 %v4289
  %v4291 = vlaneseq
  %v4292 = vshrl.u32 %v4291, 7
  %v4293 = vsub.s32 %v4290, %v4292
  %v4294 = vrot.slane %v4143, %v4293
  %v4296 = vunpack.c.l.s4 1983009808
  %v4297 = vunpack.c.0.s8 %v4296
  %v4298 = vlaneseq
  %v4299 = vshrl.u32 %v4298, 7
  %v4300 = vsub.s32 %v4297, %v4299
  %v4301 = vrot.slane %v4287, %v4300
  %v4302 = vcombine.high %v4294, %v4294
  %v4303 = vcombine.high %v4301, %v4301
  %v4304 = vcombine.high %v4144, %v4144
  %v4306 = vunpack.c.l.s4 1983009808
  %v4307 = vunpack.c.0.s8 %v4306
  %v4308 = vlaneseq
  %v4309 = vshrl.u32 %v4308, 7
  %v4310 = vsub.s32 %v4307, %v4309
  %v4311 = vrot.slane %v4144, %v4310
  %v4313 = vunpack.c.l.s4 1983009808
  %v4314 = vunpack.c.0.s8 %v4313
  %v4315 = vlaneseq
  %v4316 = vshrl.u32 %v4315, 7
  %v4317 = vsub.s32 %v4314, %v4316
  %v4318 = vrot.slane %v4304, %v4317
  %v4319 = vcombine.high %v4311, %v4311
  %v4320 = vcombine.high %v4318, %v4318
  %v4321 = vcombine.high %v4145, %v4145
  %v4323 = vunpack.c.l.s4 1983009808
  %v4324 = vunpack.c.0.s8 %v4323
  %v4325 = vlaneseq
  %v4326 = vshrl.u32 %v4325, 7
  %v4327 = vsub.s32 %v4324, %v4326
  %v4328 = vrot.slane %v4145, %v4327
  %v4330 = vunpack.c.l.s4 1983009808
  %v4331 = vunpack.c.0.s8 %v4330
  %v4332 = vlaneseq
  %v4333 = vshrl.u32 %v4332, 7
  %v4334 = vsub.s32 %v4331, %v4333
  %v4335 = vrot.slane %v4321, %v4334
  %v4336 = vcombine.high %v4328, %v4328
  %v4337 = vcombine.high %v4335, %v4335
  %v4338 = vcombine.high %v4146, %v4146
  %v4340 = vunpack.c.l.s4 1983009808
  %v4341 = vunpack.c.0.s8 %v4340
  %v4342 = vlaneseq
  %v4343 = vshrl.u32 %v4342, 7
  %v4344 = vsub.s32 %v4341, %v4343
  %v4345 = vrot.slane %v4146, %v4344
  %v4347 = vunpack.c.l.s4 1983009808
  %v4348 = vunpack.c.0.s8 %v4347
  %v4349 = vlaneseq
  %v4350 = vshrl.u32 %v4349, 7
  %v4351 = vsub.s32 %v4348, %v4350
  %v4352 = vrot.slane %v4338, %v4351
  %v4353 = vcombine.high %v4345, %v4345
  %v4354 = vcombine.high %v4352, %v4352
  %v4355 = vcombine.high %v4147, %v4147
  %v4357 = vunpack.c.l.s4 1983009808
  %v4358 = vunpack.c.0.s8 %v4357
  %v4359 = vlaneseq
  %v4360 = vshrl.u32 %v4359, 7
  %v4361 = vsub.s32 %v4358, %v4360
  %v4362 = vrot.slane %v4147, %v4361
  %v4364 = vunpack.c.l.s4 1983009808
  %v4365 = vunpack.c.0.s8 %v4364
  %v4366 = vlaneseq
  %v4367 = vshrl.u32 %v4366, 7
  %v4368 = vsub.s32 %v4365, %v4367
  %v4369 = vrot.slane %v4355, %v4368
  %v4370 = vcombine.high %v4362, %v4362
  %v4371 = vcombine.high %v4369, %v4369
  %v4372 = vcombine.high %v4148, %v4148
  %v4374 = vunpack.c.l.s4 1983009808
  %v4375 = vunpack.c.0.s8 %v4374
  %v4376 = vlaneseq
  %v4377 = vshrl.u32 %v4376, 7
  %v4378 = vsub.s32 %v4375, %v4377
  %v4379 = vrot.slane %v4148, %v4378
  %v4381 = vunpack.c.l.s4 1983009808
  %v4382 = vunpack.c.0.s8 %v4381
  %v4383 = vlaneseq
  %v4384 = vshrl.u32 %v4383, 7
  %v4385 = vsub.s32 %v4382, %v4384
  %v4386 = vrot.slane %v4372, %v4385
  %v4387 = vcombine.high %v4379, %v4379
  %v4388 = vcombine.high %v4386, %v4386
  %v4389 = vcombine.high %v4149, %v4149
  %v4391 = vunpack.c.l.s4 1983009808
  %v4392 = vunpack.c.0.s8 %v4391
  %v4393 = vlaneseq
  %v4394 = vshrl.u32 %v4393, 7
  %v4395 = vsub.s32 %v4392, %v4394
  %v4396 = vrot.slane %v4149, %v4395
  %v4398 = vunpack.c.l.s4 1983009808
  %v4399 = vunpack.c.0.s8 %v4398
  %v4400 = vlaneseq
  %v4401 = vshrl.u32 %v4400, 7
  %v4402 = vsub.s32 %v4399, %v4401
  %v4403 = vrot.slane %v4389, %v4402
  %v4404 = vcombine.high %v4396, %v4396
  %v4405 = vcombine.high %v4403, %v4403
  %v4406 = vcombine.high %v4150, %v4150
  %v4408 = vunpack.c.l.s4 1983009808
  %v4409 = vunpack.c.0.s8 %v4408
  %v4410 = vlaneseq
  %v4411 = vshrl.u32 %v4410, 7
  %v4412 = vsub.s32 %v4409, %v4411
  %v4413 = vrot.slane %v4150, %v4412
  %v4415 = vunpack.c.l.s4 1983009808
  %v4416 = vunpack.c.0.s8 %v4415
  %v4417 = vlaneseq
  %v4418 = vshrl.u32 %v4417, 7
  %v4419 = vsub.s32 %v4416, %v4418
  %v4420 = vrot.slane %v4406, %v4419
  %v4421 = vcombine.high %v4413, %v4413
  %v4422 = vcombine.high %v4420, %v4420
  %v4423 = vcombine.high %v4151, %v4151
  %v4425 = vunpack.c.l.s4 1983009808
  %v4426 = vunpack.c.0.s8 %v4425
  %v4427 = vlaneseq
  %v4428 = vshrl.u32 %v4427, 7
  %v4429 = vsub.s32 %v4426, %v4428
  %v4430 = vrot.slane %v4151, %v4429
  %v4432 = vunpack.c.l.s4 1983009808
  %v4433 = vunpack.c.0.s8 %v4432
  %v4434 = vlaneseq
  %v4435 = vshrl.u32 %v4434, 7
  %v4436 = vsub.s32 %v4433, %v4435
  %v4437 = vrot.slane %v4423, %v4436
  %v4438 = vcombine.high %v4430, %v4430
  %v4439 = vcombine.high %v4437, %v4437
  %v4440 = vcombine.high %v4152, %v4152
  %v4442 = vunpack.c.l.s4 1983009808
  %v4443 = vunpack.c.0.s8 %v4442
  %v4444 = vlaneseq
  %v4445 = vshrl.u32 %v4444, 7
  %v4446 = vsub.s32 %v4443, %v4445
  %v4447 = vrot.slane %v4152, %v4446
  %v4449 = vunpack.c.l.s4 1983009808
  %v4450 = vunpack.c.0.s8 %v4449
  %v4451 = vlaneseq
  %v4452 = vshrl.u32 %v4451, 7
  %v4453 = vsub.s32 %v4450, %v4452
  %v4454 = vrot.slane %v4440, %v4453
  %v4455 = vcombine.high %v4447, %v4447
  %v4456 = vcombine.high %v4454, %v4454
  %v4457 = vcombine.high %v4153, %v4153
  %v4459 = vunpack.c.l.s4 1983009808
  %v4460 = vunpack.c.0.s8 %v4459
  %v4461 = vlaneseq
  %v4462 = vshrl.u32 %v4461, 7
  %v4463 = vsub.s32 %v4460, %v4462
  %v4464 = vrot.slane %v4153, %v4463
  %v4466 = vunpack.c.l.s4 1983009808
  %v4467 = vunpack.c.0.s8 %v4466
  %v4468 = vlaneseq
  %v4469 = vshrl.u32 %v4468, 7
  %v4470 = vsub.s32 %v4467, %v4469
  %v4471 = vrot.slane %v4457, %v4470
  %v4472 = vcombine.high %v4464, %v4464
  %v4473 = vcombine.high %v4471, %v4471
  %v4474 = vcombine.high %v4154, %v4154
  %v4476 = vunpack.c.l.s4 1983009808
  %v4477 = vunpack.c.0.s8 %v4476
  %v4478 = vlaneseq
  %v4479 = vshrl.u32 %v4478, 7
  %v4480 = vsub.s32 %v4477, %v4479
  %v4481 = vrot.slane %v4154, %v4480
  %v4483 = vunpack.c.l.s4 1983009808
  %v4484 = vunpack.c.0.s8 %v4483
  %v4485 = vlaneseq
  %v4486 = vshrl.u32 %v4485, 7
  %v4487 = vsub.s32 %v4484, %v4486
  %v4488 = vrot.slane %v4474, %v4487
  %v4489 = vcombine.high %v4481, %v4481
  %v4490 = vcombine.high %v4488, %v4488
  %v4491 = vcombine.high %v4155, %v4155
  %v4493 = vunpack.c.l.s4 1983009808
  %v4494 = vunpack.c.0.s8 %v4493
  %v4495 = vlaneseq
  %v4496 = vshrl.u32 %v4495, 7
  %v4497 = vsub.s32 %v4494, %v4496
  %v4498 = vrot.slane %v4155, %v4497
  %v4500 = vunpack.c.l.s4 1983009808
  %v4501 = vunpack.c.0.s8 %v4500
  %v4502 = vlaneseq
  %v4503 = vshrl.u32 %v4502, 7
  %v4504 = vsub.s32 %v4501, %v4503
  %v4505 = vrot.slane %v4491, %v4504
  %v4506 = vcombine.high %v4498, %v4498
  %v4507 = vcombine.high %v4505, %v4505
  %v4508 = vcombine.high %v4156, %v4156
  %v4510 = vunpack.c.l.s4 1983009808
  %v4511 = vunpack.c.0.s8 %v4510
  %v4512 = vlaneseq
  %v4513 = vshrl.u32 %v4512, 7
  %v4514 = vsub.s32 %v4511, %v4513
  %v4515 = vrot.slane %v4156, %v4514
  %v4517 = vunpack.c.l.s4 1983009808
  %v4518 = vunpack.c.0.s8 %v4517
  %v4519 = vlaneseq
  %v4520 = vshrl.u32 %v4519, 7
  %v4521 = vsub.s32 %v4518, %v4520
  %v4522 = vrot.slane %v4508, %v4521
  %v4523 = vcombine.high %v4515, %v4515
  %v4524 = vcombine.high %v4522, %v4522
  %v4525 = vcombine.high %v4157, %v4157
  %v4527 = vunpack.c.l.s4 1983009808
  %v4528 = vunpack.c.0.s8 %v4527
  %v4529 = vlaneseq
  %v4530 = vshrl.u32 %v4529, 7
  %v4531 = vsub.s32 %v4528, %v4530
  %v4532 = vrot.slane %v4157, %v4531
  %v4534 = vunpack.c.l.s4 1983009808
  %v4535 = vunpack.c.0.s8 %v4534
  %v4536 = vlaneseq
  %v4537 = vshrl.u32 %v4536, 7
  %v4538 = vsub.s32 %v4535, %v4537
  %v4539 = vrot.slane %v4525, %v4538
  %v4540 = vcombine.high %v4532, %v4532
  %v4541 = vcombine.high %v4539, %v4539
  %v4542 = vcombine.high %v4158, %v4158
  %v4544 = vunpack.c.l.s4 1983009808
  %v4545 = vunpack.c.0.s8 %v4544
  %v4546 = vlaneseq
  %v4547 = vshrl.u32 %v4546, 7
  %v4548 = vsub.s32 %v4545, %v4547
  %v4549 = vrot.slane %v4158, %v4548
  %v4551 = vunpack.c.l.s4 1983009808
  %v4552 = vunpack.c.0.s8 %v4551
  %v4553 = vlaneseq
  %v4554 = vshrl.u32 %v4553, 7
  %v4555 = vsub.s32 %v4552, %v4554
  %v4556 = vrot.slane %v4542, %v4555
  %v4557 = vcombine.high %v4549, %v4549
  %v4558 = vcombine.high %v4556, %v4556
  %v4559 = vcombine.high %v4159, %v4159
  %v4561 = vunpack.c.l.s4 1983009808
  %v4562 = vunpack.c.0.s8 %v4561
  %v4563 = vlaneseq
  %v4564 = vshrl.u32 %v4563, 7
  %v4565 = vsub.s32 %v4562, %v4564
  %v4566 = vrot.slane %v4159, %v4565
  %v4568 = vunpack.c.l.s4 1983009808
  %v4569 = vunpack.c.0.s8 %v4568
  %v4570 = vlaneseq
  %v4571 = vshrl.u32 %v4570, 7
  %v4572 = vsub.s32 %v4569, %v4571
  %v4573 = vrot.slane %v4559, %v4572
  %v4574 = vcombine.high %v4566, %v4566
  %v4575 = vcombine.high %v4573, %v4573
  %v4576 = vcombine.high %v4160, %v4160
  %v4578 = vunpack.c.l.s4 1983009808
  %v4579 = vunpack.c.0.s8 %v4578
  %v4580 = vlaneseq
  %v4581 = vshrl.u32 %v4580, 7
  %v4582 = vsub.s32 %v4579, %v4581
  %v4583 = vrot.slane %v4160, %v4582
  %v4585 = vunpack.c.l.s4 1983009808
  %v4586 = vunpack.c.0.s8 %v4585
  %v4587 = vlaneseq
  %v4588 = vshrl.u32 %v4587, 7
  %v4589 = vsub.s32 %v4586, %v4588
  %v4590 = vrot.slane %v4576, %v4589
  %v4591 = vcombine.high %v4583, %v4583
  %v4592 = vcombine.high %v4590, %v4590
  %v4593 = vcombine.high %v4161, %v4161
  %v4595 = vunpack.c.l.s4 1983009808
  %v4596 = vunpack.c.0.s8 %v4595
  %v4597 = vlaneseq
  %v4598 = vshrl.u32 %v4597, 7
  %v4599 = vsub.s32 %v4596, %v4598
  %v4600 = vrot.slane %v4161, %v4599
  %v4602 = vunpack.c.l.s4 1983009808
  %v4603 = vunpack.c.0.s8 %v4602
  %v4604 = vlaneseq
  %v4605 = vshrl.u32 %v4604, 7
  %v4606 = vsub.s32 %v4603, %v4605
  %v4607 = vrot.slane %v4593, %v4606
  %v4608 = vcombine.high %v4600, %v4600
  %v4609 = vcombine.high %v4607, %v4607
  %v4610 = vcombine.high %v4162, %v4162
  %v4612 = vunpack.c.l.s4 1983009808
  %v4613 = vunpack.c.0.s8 %v4612
  %v4614 = vlaneseq
  %v4615 = vshrl.u32 %v4614, 7
  %v4616 = vsub.s32 %v4613, %v4615
  %v4617 = vrot.slane %v4162, %v4616
  %v4619 = vunpack.c.l.s4 1983009808
  %v4620 = vunpack.c.0.s8 %v4619
  %v4621 = vlaneseq
  %v4622 = vshrl.u32 %v4621, 7
  %v4623 = vsub.s32 %v4620, %v4622
  %v4624 = vrot.slane %v4610, %v4623
  %v4625 = vcombine.high %v4617, %v4617
  %v4626 = vcombine.high %v4624, %v4624
  %v4627 = vcombine.high %v4163, %v4163
  %v4629 = vunpack.c.l.s4 1983009808
  %v4630 = vunpack.c.0.s8 %v4629
  %v4631 = vlaneseq
  %v4632 = vshrl.u32 %v4631, 7
  %v4633 = vsub.s32 %v4630, %v4632
  %v4634 = vrot.slane %v4163, %v4633
  %v4636 = vunpack.c.l.s4 1983009808
  %v4637 = vunpack.c.0.s8 %v4636
  %v4638 = vlaneseq
  %v4639 = vshrl.u32 %v4638, 7
  %v4640 = vsub.s32 %v4637, %v4639
  %v4641 = vrot.slane %v4627, %v4640
  %v4642 = vcombine.high %v4634, %v4634
  %v4643 = vcombine.high %v4641, %v4641
  %v4644 = vcombine.high %v4164, %v4164
  %v4646 = vunpack.c.l.s4 1983009808
  %v4647 = vunpack.c.0.s8 %v4646
  %v4648 = vlaneseq
  %v4649 = vshrl.u32 %v4648, 7
  %v4650 = vsub.s32 %v4647, %v4649
  %v4651 = vrot.slane %v4164, %v4650
  %v4653 = vunpack.c.l.s4 1983009808
  %v4654 = vunpack.c.0.s8 %v4653
  %v4655 = vlaneseq
  %v4656 = vshrl.u32 %v4655, 7
  %v4657 = vsub.s32 %v4654, %v4656
  %v4658 = vrot.slane %v4644, %v4657
  %v4659 = vcombine.high %v4651, %v4651
  %v4660 = vcombine.high %v4658, %v4658
  %v4661 = vcombine.high %v4165, %v4165
  %v4663 = vunpack.c.l.s4 1983009808
  %v4664 = vunpack.c.0.s8 %v4663
  %v4665 = vlaneseq
  %v4666 = vshrl.u32 %v4665, 7
  %v4667 = vsub.s32 %v4664, %v4666
  %v4668 = vrot.slane %v4165, %v4667
  %v4670 = vunpack.c.l.s4 1983009808
  %v4671 = vunpack.c.0.s8 %v4670
  %v4672 = vlaneseq
  %v4673 = vshrl.u32 %v4672, 7
  %v4674 = vsub.s32 %v4671, %v4673
  %v4675 = vrot.slane %v4661, %v4674
  %v4676 = vcombine.high %v4668, %v4668
  %v4677 = vcombine.high %v4675, %v4675
  %v4678 = vcombine.high %v4166, %v4166
  %v4680 = vunpack.c.l.s4 1983009808
  %v4681 = vunpack.c.0.s8 %v4680
  %v4682 = vlaneseq
  %v4683 = vshrl.u32 %v4682, 7
  %v4684 = vsub.s32 %v4681, %v4683
  %v4685 = vrot.slane %v4166, %v4684
  %v4687 = vunpack.c.l.s4 1983009808
  %v4688 = vunpack.c.0.s8 %v4687
  %v4689 = vlaneseq
  %v4690 = vshrl.u32 %v4689, 7
  %v4691 = vsub.s32 %v4688, %v4690
  %v4692 = vrot.slane %v4678, %v4691
  %v4693 = vcombine.high %v4685, %v4685
  %v4694 = vcombine.high %v4692, %v4692
  %v4695 = vcombine.high %v4167, %v4167
  %v4697 = vunpack.c.l.s4 1983009808
  %v4698 = vunpack.c.0.s8 %v4697
  %v4699 = vlaneseq
  %v4700 = vshrl.u32 %v4699, 7
  %v4701 = vsub.s32 %v4698, %v4700
  %v4702 = vrot.slane %v4167, %v4701
  %v4704 = vunpack.c.l.s4 1983009808
  %v4705 = vunpack.c.0.s8 %v4704
  %v4706 = vlaneseq
  %v4707 = vshrl.u32 %v4706, 7
  %v4708 = vsub.s32 %v4705, %v4707
  %v4709 = vrot.slane %v4695, %v4708
  %v4710 = vcombine.high %v4702, %v4702
  %v4711 = vcombine.high %v4709, %v4709
  %v4712 = vcombine.high %v4168, %v4168
  %v4714 = vunpack.c.l.s4 1983009808
  %v4715 = vunpack.c.0.s8 %v4714
  %v4716 = vlaneseq
  %v4717 = vshrl.u32 %v4716, 7
  %v4718 = vsub.s32 %v4715, %v4717
  %v4719 = vrot.slane %v4168, %v4718
  %v4721 = vunpack.c.l.s4 1983009808
  %v4722 = vunpack.c.0.s8 %v4721
  %v4723 = vlaneseq
  %v4724 = vshrl.u32 %v4723, 7
  %v4725 = vsub.s32 %v4722, %v4724
  %v4726 = vrot.slane %v4712, %v4725
  %v4727 = vcombine.high %v4719, %v4719
  %v4728 = vcombine.high %v4726, %v4726
  %v4729 = vcombine.high %v4169, %v4169
  %v4731 = vunpack.c.l.s4 1983009808
  %v4732 = vunpack.c.0.s8 %v4731
  %v4733 = vlaneseq
  %v4734 = vshrl.u32 %v4733, 7
  %v4735 = vsub.s32 %v4732, %v4734
  %v4736 = vrot.slane %v4169, %v4735
  %v4738 = vunpack.c.l.s4 1983009808
  %v4739 = vunpack.c.0.s8 %v4738
  %v4740 = vlaneseq
  %v4741 = vshrl.u32 %v4740, 7
  %v4742 = vsub.s32 %v4739, %v4741
  %v4743 = vrot.slane %v4729, %v4742
  %v4744 = vcombine.high %v4736, %v4736
  %v4745 = vcombine.high %v4743, %v4743
  %v4747 = vunpack.c.l.s4 1983009808
  %v4748 = vunpack.c.0.s8 %v4747
  %v4749 = vlaneseq
  %v4750 = vshrl.u32 %v4749, 7
  %v4751 = vsub.s32 %v4748, %v4750
  %v4752 = vrot.slane %v4345, %v4751
  %v4754 = vunpack.c.l.s4 1983009808
  %v4755 = vunpack.c.0.s8 %v4754
  %v4756 = vlaneseq
  %v4757 = vshrl.u32 %v4756, 7
  %v4758 = vsub.s32 %v4755, %v4757
  %v4759 = vrot.slane %v4353, %v4758
  %v4761 = vunpack.c.l.s4 1983009808
  %v4762 = vunpack.c.0.s8 %v4761
  %v4763 = vlaneseq
  %v4764 = vshrl.u32 %v4763, 7
  %v4765 = vsub.s32 %v4762, %v4764
  %v4766 = vrot.slane %v4352, %v4765
  %v4768 = vunpack.c.l.s4 1983009808
  %v4769 = vunpack.c.0.s8 %v4768
  %v4770 = vlaneseq
  %v4771 = vshrl.u32 %v4770, 7
  %v4772 = vsub.s32 %v4769, %v4771
  %v4773 = vrot.slane %v4362, %v4772
  %v4775 = vunpack.c.l.s4 1983009808
  %v4776 = vunpack.c.0.s8 %v4775
  %v4777 = vlaneseq
  %v4778 = vshrl.u32 %v4777, 7
  %v4779 = vsub.s32 %v4776, %v4778
  %v4780 = vrot.slane %v4370, %v4779
  %v4782 = vunpack.c.l.s4 1983009808
  %v4783 = vunpack.c.0.s8 %v4782
  %v4784 = vlaneseq
  %v4785 = vshrl.u32 %v4784, 7
  %v4786 = vsub.s32 %v4783, %v4785
  %v4787 = vrot.slane %v4369, %v4786
  %v4789 = vunpack.c.l.s4 1983009808
  %v4790 = vunpack.c.0.s8 %v4789
  %v4791 = vlaneseq
  %v4792 = vshrl.u32 %v4791, 7
  %v4793 = vsub.s32 %v4790, %v4792
  %v4794 = vrot.slane %v4379, %v4793
  %v4796 = vunpack.c.l.s4 1983009808
  %v4797 = vunpack.c.0.s8 %v4796
  %v4798 = vlaneseq
  %v4799 = vshrl.u32 %v4798, 7
  %v4800 = vsub.s32 %v4797, %v4799
  %v4801 = vrot.slane %v4387, %v4800
  %v4803 = vunpack.c.l.s4 1983009808
  %v4804 = vunpack.c.0.s8 %v4803
  %v4805 = vlaneseq
  %v4806 = vshrl.u32 %v4805, 7
  %v4807 = vsub.s32 %v4804, %v4806
  %v4808 = vrot.slane %v4386, %v4807
  %v4810 = vunpack.c.l.s4 1983009808
  %v4811 = vunpack.c.0.s8 %v4810
  %v4812 = vlaneseq
  %v4813 = vshrl.u32 %v4812, 7
  %v4814 = vsub.s32 %v4811, %v4813
  %v4815 = vrot.slane %v4396, %v4814
  %v4817 = vunpack.c.l.s4 1983009808
  %v4818 = vunpack.c.0.s8 %v4817
  %v4819 = vlaneseq
  %v4820 = vshrl.u32 %v4819, 7
  %v4821 = vsub.s32 %v4818, %v4820
  %v4822 = vrot.slane %v4404, %v4821
  %v4824 = vunpack.c.l.s4 1983009808
  %v4825 = vunpack.c.0.s8 %v4824
  %v4826 = vlaneseq
  %v4827 = vshrl.u32 %v4826, 7
  %v4828 = vsub.s32 %v4825, %v4827
  %v4829 = vrot.slane %v4403, %v4828
  %v4831 = vunpack.c.l.s4 1983009808
  %v4832 = vunpack.c.0.s8 %v4831
  %v4833 = vlaneseq
  %v4834 = vshrl.u32 %v4833, 7
  %v4835 = vsub.s32 %v4832, %v4834
  %v4836 = vrot.slane %v4413, %v4835
  %v4838 = vunpack.c.l.s4 1983009808
  %v4839 = vunpack.c.0.s8 %v4838
  %v4840 = vlaneseq
  %v4841 = vshrl.u32 %v4840, 7
  %v4842 = vsub.s32 %v4839, %v4841
  %v4843 = vrot.slane %v4421, %v4842
  %v4845 = vunpack.c.l.s4 1983009808
  %v4846 = vunpack.c.0.s8 %v4845
  %v4847 = vlaneseq
  %v4848 = vshrl.u32 %v4847, 7
  %v4849 = vsub.s32 %v4846, %v4848
  %v4850 = vrot.slane %v4420, %v4849
  %v4852 = vunpack.c.l.s4 1983009808
  %v4853 = vunpack.c.0.s8 %v4852
  %v4854 = vlaneseq
  %v4855 = vshrl.u32 %v4854, 7
  %v4856 = vsub.s32 %v4853, %v4855
  %v4857 = vrot.slane %v4430, %v4856
  %v4859 = vunpack.c.l.s4 1983009808
  %v4860 = vunpack.c.0.s8 %v4859
  %v4861 = vlaneseq
  %v4862 = vshrl.u32 %v4861, 7
  %v4863 = vsub.s32 %v4860, %v4862
  %v4864 = vrot.slane %v4438, %v4863
  %v4866 = vunpack.c.l.s4 1983009808
  %v4867 = vunpack.c.0.s8 %v4866
  %v4868 = vlaneseq
  %v4869 = vshrl.u32 %v4868, 7
  %v4870 = vsub.s32 %v4867, %v4869
  %v4871 = vrot.slane %v4437, %v4870
  %v4873 = vunpack.c.l.s4 1983009808
  %v4874 = vunpack.c.0.s8 %v4873
  %v4875 = vlaneseq
  %v4876 = vshrl.u32 %v4875, 7
  %v4877 = vsub.s32 %v4874, %v4876
  %v4878 = vrot.slane %v4447, %v4877
  %v4880 = vunpack.c.l.s4 1983009808
  %v4881 = vunpack.c.0.s8 %v4880
  %v4882 = vlaneseq
  %v4883 = vshrl.u32 %v4882, 7
  %v4884 = vsub.s32 %v4881, %v4883
  %v4885 = vrot.slane %v4455, %v4884
  %v4887 = vunpack.c.l.s4 1983009808
  %v4888 = vunpack.c.0.s8 %v4887
  %v4889 = vlaneseq
  %v4890 = vshrl.u32 %v4889, 7
  %v4891 = vsub.s32 %v4888, %v4890
  %v4892 = vrot.slane %v4454, %v4891
  %v4894 = vunpack.c.l.s4 1983009808
  %v4895 = vunpack.c.0.s8 %v4894
  %v4896 = vlaneseq
  %v4897 = vshrl.u32 %v4896, 7
  %v4898 = vsub.s32 %v4895, %v4897
  %v4899 = vrot.slane %v4464, %v4898
  %v4901 = vunpack.c.l.s4 1983009808
  %v4902 = vunpack.c.0.s8 %v4901
  %v4903 = vlaneseq
  %v4904 = vshrl.u32 %v4903, 7
  %v4905 = vsub.s32 %v4902, %v4904
  %v4906 = vrot.slane %v4472, %v4905
  %v4908 = vunpack.c.l.s4 1983009808
  %v4909 = vunpack.c.0.s8 %v4908
  %v4910 = vlaneseq
  %v4911 = vshrl.u32 %v4910, 7
  %v4912 = vsub.s32 %v4909, %v4911
  %v4913 = vrot.slane %v4471, %v4912
  %4914 = vrot.lane.b32.xlu0 %v4752, 32
  %v4915 = vpop.permute.xlu0 %4914
  %4916 = vrot.lane.b32.xlu0 %v4759, 32
  %v4917 = vpop.permute.xlu0 %4916
  %4918 = vrot.lane.b32.xlu0 %v4766, 32
  %v4919 = vpop.permute.xlu0 %4918
  %4920 = vrot.lane.b32.xlu0 %v4773, 32
  %v4921 = vpop.permute.xlu0 %4920
  %4922 = vrot.lane.b32.xlu0 %v4780, 32
  %v4923 = vpop.permute.xlu0 %4922
  %4924 = vrot.lane.b32.xlu0 %v4787, 32
  %v4925 = vpop.permute.xlu0 %4924
  %4926 = vrot.lane.b32.xlu0 %v4794, 32
  %v4927 = vpop.permute.xlu0 %4926
  %4928 = vrot.lane.b32.xlu0 %v4801, 32
  %v4929 = vpop.permute.xlu0 %4928
  %4930 = vrot.lane.b32.xlu0 %v4808, 32
  %v4931 = vpop.permute.xlu0 %4930
  %4932 = vrot.lane.b32.xlu0 %v4815, 32
  %v4933 = vpop.permute.xlu0 %4932
  %4934 = vrot.lane.b32.xlu0 %v4822, 32
  %v4935 = vpop.permute.xlu0 %4934
  %4936 = vrot.lane.b32.xlu0 %v4829, 32
  %v4937 = vpop.permute.xlu0 %4936
  %4938 = vrot.lane.b32.xlu0 %v4836, 32
  %v4939 = vpop.permute.xlu0 %4938
  %4940 = vrot.lane.b32.xlu0 %v4843, 32
  %v4941 = vpop.permute.xlu0 %4940
  %4942 = vrot.lane.b32.xlu0 %v4850, 32
  %v4943 = vpop.permute.xlu0 %4942
  %4944 = vrot.lane.b32.xlu0 %v4857, 32
  %v4945 = vpop.permute.xlu0 %4944
  %4946 = vrot.lane.b32.xlu0 %v4864, 32
  %v4947 = vpop.permute.xlu0 %4946
  %4948 = vrot.lane.b32.xlu0 %v4871, 32
  %v4949 = vpop.permute.xlu0 %4948
  %4950 = vrot.lane.b32.xlu0 %v4878, 32
  %v4951 = vpop.permute.xlu0 %4950
  %4952 = vrot.lane.b32.xlu0 %v4885, 32
  %v4953 = vpop.permute.xlu0 %4952
  %4954 = vrot.lane.b32.xlu0 %v4892, 32
  %v4955 = vpop.permute.xlu0 %4954
  %4956 = vrot.lane.b32.xlu0 %v4899, 32
  %v4957 = vpop.permute.xlu0 %4956
  %4958 = vrot.lane.b32.xlu0 %v4906, 32
  %v4959 = vpop.permute.xlu0 %4958
  %4960 = vrot.lane.b32.xlu0 %v4913, 32
  %v4961 = vpop.permute.xlu0 %4960
  %v4963 = vunpack.c.l.s4 1983009808
  %v4964 = vunpack.c.0.s8 %v4963
  %v4965 = vlaneseq
  %v4966 = vshrl.u32 %v4965, 7
  %v4967 = vsub.s32 %v4964, %v4966
  %v4968 = vrot.slane %v4209, %v4967
  %v4970 = vunpack.c.l.s4 1983009808
  %v4971 = vunpack.c.0.s8 %v4970
  %v4972 = vlaneseq
  %v4973 = vshrl.u32 %v4972, 7
  %v4974 = vsub.s32 %v4971, %v4973
  %v4975 = vrot.slane %v4217, %v4974
  %v4977 = vunpack.c.l.s4 1983009808
  %v4978 = vunpack.c.0.s8 %v4977
  %v4979 = vlaneseq
  %v4980 = vshrl.u32 %v4979, 7
  %v4981 = vsub.s32 %v4978, %v4980
  %v4982 = vrot.slane %v4216, %v4981
  %v4984 = vunpack.c.l.s4 1983009808
  %v4985 = vunpack.c.0.s8 %v4984
  %v4986 = vlaneseq
  %v4987 = vshrl.u32 %v4986, 7
  %v4988 = vsub.s32 %v4985, %v4987
  %v4989 = vrot.slane %v4226, %v4988
  %v4991 = vunpack.c.l.s4 1983009808
  %v4992 = vunpack.c.0.s8 %v4991
  %v4993 = vlaneseq
  %v4994 = vshrl.u32 %v4993, 7
  %v4995 = vsub.s32 %v4992, %v4994
  %v4996 = vrot.slane %v4234, %v4995
  %v4998 = vunpack.c.l.s4 1983009808
  %v4999 = vunpack.c.0.s8 %v4998
  %v5000 = vlaneseq
  %v5001 = vshrl.u32 %v5000, 7
  %v5002 = vsub.s32 %v4999, %v5001
  %v5003 = vrot.slane %v4233, %v5002
  %v5005 = vunpack.c.l.s4 1983009808
  %v5006 = vunpack.c.0.s8 %v5005
  %v5007 = vlaneseq
  %v5008 = vshrl.u32 %v5007, 7
  %v5009 = vsub.s32 %v5006, %v5008
  %v5010 = vrot.slane %v4243, %v5009
  %v5012 = vunpack.c.l.s4 1983009808
  %v5013 = vunpack.c.0.s8 %v5012
  %v5014 = vlaneseq
  %v5015 = vshrl.u32 %v5014, 7
  %v5016 = vsub.s32 %v5013, %v5015
  %v5017 = vrot.slane %v4251, %v5016
  %v5019 = vunpack.c.l.s4 1983009808
  %v5020 = vunpack.c.0.s8 %v5019
  %v5021 = vlaneseq
  %v5022 = vshrl.u32 %v5021, 7
  %v5023 = vsub.s32 %v5020, %v5022
  %v5024 = vrot.slane %v4250, %v5023
  %v5026 = vunpack.c.l.s4 1983009808
  %v5027 = vunpack.c.0.s8 %v5026
  %v5028 = vlaneseq
  %v5029 = vshrl.u32 %v5028, 7
  %v5030 = vsub.s32 %v5027, %v5029
  %v5031 = vrot.slane %v4260, %v5030
  %v5033 = vunpack.c.l.s4 1983009808
  %v5034 = vunpack.c.0.s8 %v5033
  %v5035 = vlaneseq
  %v5036 = vshrl.u32 %v5035, 7
  %v5037 = vsub.s32 %v5034, %v5036
  %v5038 = vrot.slane %v4268, %v5037
  %v5040 = vunpack.c.l.s4 1983009808
  %v5041 = vunpack.c.0.s8 %v5040
  %v5042 = vlaneseq
  %v5043 = vshrl.u32 %v5042, 7
  %v5044 = vsub.s32 %v5041, %v5043
  %v5045 = vrot.slane %v4267, %v5044
  %v5047 = vunpack.c.l.s4 1983009808
  %v5048 = vunpack.c.0.s8 %v5047
  %v5049 = vlaneseq
  %v5050 = vshrl.u32 %v5049, 7
  %v5051 = vsub.s32 %v5048, %v5050
  %v5052 = vrot.slane %v4277, %v5051
  %v5054 = vunpack.c.l.s4 1983009808
  %v5055 = vunpack.c.0.s8 %v5054
  %v5056 = vlaneseq
  %v5057 = vshrl.u32 %v5056, 7
  %v5058 = vsub.s32 %v5055, %v5057
  %v5059 = vrot.slane %v4285, %v5058
  %v5061 = vunpack.c.l.s4 1983009808
  %v5062 = vunpack.c.0.s8 %v5061
  %v5063 = vlaneseq
  %v5064 = vshrl.u32 %v5063, 7
  %v5065 = vsub.s32 %v5062, %v5064
  %v5066 = vrot.slane %v4284, %v5065
  %v5068 = vunpack.c.l.s4 1983009808
  %v5069 = vunpack.c.0.s8 %v5068
  %v5070 = vlaneseq
  %v5071 = vshrl.u32 %v5070, 7
  %v5072 = vsub.s32 %v5069, %v5071
  %v5073 = vrot.slane %v4294, %v5072
  %v5075 = vunpack.c.l.s4 1983009808
  %v5076 = vunpack.c.0.s8 %v5075
  %v5077 = vlaneseq
  %v5078 = vshrl.u32 %v5077, 7
  %v5079 = vsub.s32 %v5076, %v5078
  %v5080 = vrot.slane %v4302, %v5079
  %v5082 = vunpack.c.l.s4 1983009808
  %v5083 = vunpack.c.0.s8 %v5082
  %v5084 = vlaneseq
  %v5085 = vshrl.u32 %v5084, 7
  %v5086 = vsub.s32 %v5083, %v5085
  %v5087 = vrot.slane %v4301, %v5086
  %v5089 = vunpack.c.l.s4 1983009808
  %v5090 = vunpack.c.0.s8 %v5089
  %v5091 = vlaneseq
  %v5092 = vshrl.u32 %v5091, 7
  %v5093 = vsub.s32 %v5090, %v5092
  %v5094 = vrot.slane %v4311, %v5093
  %v5096 = vunpack.c.l.s4 1983009808
  %v5097 = vunpack.c.0.s8 %v5096
  %v5098 = vlaneseq
  %v5099 = vshrl.u32 %v5098, 7
  %v5100 = vsub.s32 %v5097, %v5099
  %v5101 = vrot.slane %v4319, %v5100
  %v5103 = vunpack.c.l.s4 1983009808
  %v5104 = vunpack.c.0.s8 %v5103
  %v5105 = vlaneseq
  %v5106 = vshrl.u32 %v5105, 7
  %v5107 = vsub.s32 %v5104, %v5106
  %v5108 = vrot.slane %v4318, %v5107
  %v5110 = vunpack.c.l.s4 1983009808
  %v5111 = vunpack.c.0.s8 %v5110
  %v5112 = vlaneseq
  %v5113 = vshrl.u32 %v5112, 7
  %v5114 = vsub.s32 %v5111, %v5113
  %v5115 = vrot.slane %v4328, %v5114
  %v5117 = vunpack.c.l.s4 1983009808
  %v5118 = vunpack.c.0.s8 %v5117
  %v5119 = vlaneseq
  %v5120 = vshrl.u32 %v5119, 7
  %v5121 = vsub.s32 %v5118, %v5120
  %v5122 = vrot.slane %v4336, %v5121
  %v5124 = vunpack.c.l.s4 1983009808
  %v5125 = vunpack.c.0.s8 %v5124
  %v5126 = vlaneseq
  %v5127 = vshrl.u32 %v5126, 7
  %v5128 = vsub.s32 %v5125, %v5127
  %v5129 = vrot.slane %v4335, %v5128
  %v5131 = vshrl.u32 %v4968, 16
  %v5133 = vshll.u32 %v4968, 16
  %v5135 = vrot.slane %v5133, 1
  %v5136 = vor.u32 %v5131, %v5135
  %v5138 = vshrl.u32 %v4975, 16
  %v5140 = vshll.u32 %v4975, 16
  %v5142 = vrot.slane %v5140, 1
  %v5143 = vor.u32 %v5138, %v5142
  %v5145 = vshrl.u32 %v4982, 16
  %v5147 = vshll.u32 %v4982, 16
  %v5149 = vrot.slane %v5147, 1
  %v5150 = vor.u32 %v5145, %v5149
  %v5152 = vshrl.u32 %v4989, 16
  %v5154 = vshll.u32 %v4989, 16
  %v5156 = vrot.slane %v5154, 1
  %v5157 = vor.u32 %v5152, %v5156
  %v5159 = vshrl.u32 %v4996, 16
  %v5161 = vshll.u32 %v4996, 16
  %v5163 = vrot.slane %v5161, 1
  %v5164 = vor.u32 %v5159, %v5163
  %v5166 = vshrl.u32 %v5003, 16
  %v5168 = vshll.u32 %v5003, 16
  %v5170 = vrot.slane %v5168, 1
  %v5171 = vor.u32 %v5166, %v5170
  %v5173 = vshrl.u32 %v5010, 16
  %v5175 = vshll.u32 %v5010, 16
  %v5177 = vrot.slane %v5175, 1
  %v5178 = vor.u32 %v5173, %v5177
  %v5180 = vshrl.u32 %v5017, 16
  %v5182 = vshll.u32 %v5017, 16
  %v5184 = vrot.slane %v5182, 1
  %v5185 = vor.u32 %v5180, %v5184
  %v5187 = vshrl.u32 %v5024, 16
  %v5189 = vshll.u32 %v5024, 16
  %v5191 = vrot.slane %v5189, 1
  %v5192 = vor.u32 %v5187, %v5191
  %v5194 = vshrl.u32 %v5031, 16
  %v5196 = vshll.u32 %v5031, 16
  %v5198 = vrot.slane %v5196, 1
  %v5199 = vor.u32 %v5194, %v5198
  %v5201 = vshrl.u32 %v5038, 16
  %v5203 = vshll.u32 %v5038, 16
  %v5205 = vrot.slane %v5203, 1
  %v5206 = vor.u32 %v5201, %v5205
  %v5208 = vshrl.u32 %v5045, 16
  %v5210 = vshll.u32 %v5045, 16
  %v5212 = vrot.slane %v5210, 1
  %v5213 = vor.u32 %v5208, %v5212
  %v5215 = vshrl.u32 %v5052, 16
  %v5217 = vshll.u32 %v5052, 16
  %v5219 = vrot.slane %v5217, 1
  %v5220 = vor.u32 %v5215, %v5219
  %v5222 = vshrl.u32 %v5059, 16
  %v5224 = vshll.u32 %v5059, 16
  %v5226 = vrot.slane %v5224, 1
  %v5227 = vor.u32 %v5222, %v5226
  %v5229 = vshrl.u32 %v5066, 16
  %v5231 = vshll.u32 %v5066, 16
  %v5233 = vrot.slane %v5231, 1
  %v5234 = vor.u32 %v5229, %v5233
  %v5236 = vshrl.u32 %v5073, 16
  %v5238 = vshll.u32 %v5073, 16
  %v5240 = vrot.slane %v5238, 1
  %v5241 = vor.u32 %v5236, %v5240
  %v5243 = vshrl.u32 %v5080, 16
  %v5245 = vshll.u32 %v5080, 16
  %v5247 = vrot.slane %v5245, 1
  %v5248 = vor.u32 %v5243, %v5247
  %v5250 = vshrl.u32 %v5087, 16
  %v5252 = vshll.u32 %v5087, 16
  %v5254 = vrot.slane %v5252, 1
  %v5255 = vor.u32 %v5250, %v5254
  %v5257 = vshrl.u32 %v5094, 16
  %v5259 = vshll.u32 %v5094, 16
  %v5261 = vrot.slane %v5259, 1
  %v5262 = vor.u32 %v5257, %v5261
  %v5264 = vshrl.u32 %v5101, 16
  %v5266 = vshll.u32 %v5101, 16
  %v5268 = vrot.slane %v5266, 1
  %v5269 = vor.u32 %v5264, %v5268
  %v5271 = vshrl.u32 %v5108, 16
  %v5273 = vshll.u32 %v5108, 16
  %v5275 = vrot.slane %v5273, 1
  %v5276 = vor.u32 %v5271, %v5275
  %v5278 = vshrl.u32 %v5115, 16
  %v5280 = vshll.u32 %v5115, 16
  %v5282 = vrot.slane %v5280, 1
  %v5283 = vor.u32 %v5278, %v5282
  %v5285 = vshrl.u32 %v5122, 16
  %v5287 = vshll.u32 %v5122, 16
  %v5289 = vrot.slane %v5287, 1
  %v5290 = vor.u32 %v5285, %v5289
  %v5292 = vshrl.u32 %v5129, 16
  %v5294 = vshll.u32 %v5129, 16
  %v5296 = vrot.slane %v5294, 1
  %v5297 = vor.u32 %v5292, %v5296
  %5298 = vrot.lane.b32.xlu0 %v5136, 64
  %v5299 = vpop.permute.xlu0 %5298
  %5300 = vrot.lane.b32.xlu0 %v5143, 64
  %v5301 = vpop.permute.xlu0 %5300
  %5302 = vrot.lane.b32.xlu0 %v5150, 64
  %v5303 = vpop.permute.xlu0 %5302
  %5304 = vrot.lane.b32.xlu0 %v5157, 64
  %v5305 = vpop.permute.xlu0 %5304
  %5306 = vrot.lane.b32.xlu0 %v5164, 64
  %v5307 = vpop.permute.xlu0 %5306
  %5308 = vrot.lane.b32.xlu0 %v5171, 64
  %v5309 = vpop.permute.xlu0 %5308
  %5310 = vrot.lane.b32.xlu0 %v5178, 64
  %v5311 = vpop.permute.xlu0 %5310
  %5312 = vrot.lane.b32.xlu0 %v5185, 64
  %v5313 = vpop.permute.xlu0 %5312
  %5314 = vrot.lane.b32.xlu0 %v5192, 64
  %v5315 = vpop.permute.xlu0 %5314
  %5316 = vrot.lane.b32.xlu0 %v5199, 64
  %v5317 = vpop.permute.xlu0 %5316
  %5318 = vrot.lane.b32.xlu0 %v5206, 64
  %v5319 = vpop.permute.xlu0 %5318
  %5320 = vrot.lane.b32.xlu0 %v5213, 64
  %v5321 = vpop.permute.xlu0 %5320
  %5322 = vrot.lane.b32.xlu0 %v5220, 64
  %v5323 = vpop.permute.xlu0 %5322
  %5324 = vrot.lane.b32.xlu0 %v5227, 64
  %v5325 = vpop.permute.xlu0 %5324
  %5326 = vrot.lane.b32.xlu0 %v5234, 64
  %v5327 = vpop.permute.xlu0 %5326
  %5328 = vrot.lane.b32.xlu0 %v5241, 64
  %v5329 = vpop.permute.xlu0 %5328
  %5330 = vrot.lane.b32.xlu0 %v5248, 64
  %v5331 = vpop.permute.xlu0 %5330
  %5332 = vrot.lane.b32.xlu0 %v5255, 64
  %v5333 = vpop.permute.xlu0 %5332
  %5334 = vrot.lane.b32.xlu0 %v5262, 64
  %v5335 = vpop.permute.xlu0 %5334
  %5336 = vrot.lane.b32.xlu0 %v5269, 64
  %v5337 = vpop.permute.xlu0 %5336
  %5338 = vrot.lane.b32.xlu0 %v5276, 64
  %v5339 = vpop.permute.xlu0 %5338
  %5340 = vrot.lane.b32.xlu0 %v5283, 64
  %v5341 = vpop.permute.xlu0 %5340
  %5342 = vrot.lane.b32.xlu0 %v5290, 64
  %v5343 = vpop.permute.xlu0 %5342
  %5344 = vrot.lane.b32.xlu0 %v5297, 64
  %v5345 = vpop.permute.xlu0 %5344
  %v5347 = vshrl.u32 %v4752, 16
  %v5349 = vshll.u32 %v4752, 16
  %v5351 = vrot.slane %v5349, 1
  %v5352 = vor.u32 %v5347, %v5351
  %v5354 = vshrl.u32 %v4759, 16
  %v5356 = vshll.u32 %v4759, 16
  %v5358 = vrot.slane %v5356, 1
  %v5359 = vor.u32 %v5354, %v5358
  %v5361 = vshrl.u32 %v4766, 16
  %v5363 = vshll.u32 %v4766, 16
  %v5365 = vrot.slane %v5363, 1
  %v5366 = vor.u32 %v5361, %v5365
  %v5368 = vshrl.u32 %v4773, 16
  %v5370 = vshll.u32 %v4773, 16
  %v5372 = vrot.slane %v5370, 1
  %v5373 = vor.u32 %v5368, %v5372
  %v5375 = vshrl.u32 %v4780, 16
  %v5377 = vshll.u32 %v4780, 16
  %v5379 = vrot.slane %v5377, 1
  %v5380 = vor.u32 %v5375, %v5379
  %v5382 = vshrl.u32 %v4787, 16
  %v5384 = vshll.u32 %v4787, 16
  %v5386 = vrot.slane %v5384, 1
  %v5387 = vor.u32 %v5382, %v5386
  %v5389 = vshrl.u32 %v4794, 16
  %v5391 = vshll.u32 %v4794, 16
  %v5393 = vrot.slane %v5391, 1
  %v5394 = vor.u32 %v5389, %v5393
  %v5396 = vshrl.u32 %v4801, 16
  %v5398 = vshll.u32 %v4801, 16
  %v5400 = vrot.slane %v5398, 1
  %v5401 = vor.u32 %v5396, %v5400
  %v5403 = vshrl.u32 %v4808, 16
  %v5405 = vshll.u32 %v4808, 16
  %v5407 = vrot.slane %v5405, 1
  %v5408 = vor.u32 %v5403, %v5407
  %v5410 = vshrl.u32 %v4815, 16
  %v5412 = vshll.u32 %v4815, 16
  %v5414 = vrot.slane %v5412, 1
  %v5415 = vor.u32 %v5410, %v5414
  %v5417 = vshrl.u32 %v4822, 16
  %v5419 = vshll.u32 %v4822, 16
  %v5421 = vrot.slane %v5419, 1
  %v5422 = vor.u32 %v5417, %v5421
  %v5424 = vshrl.u32 %v4829, 16
  %v5426 = vshll.u32 %v4829, 16
  %v5428 = vrot.slane %v5426, 1
  %v5429 = vor.u32 %v5424, %v5428
  %v5431 = vshrl.u32 %v4836, 16
  %v5433 = vshll.u32 %v4836, 16
  %v5435 = vrot.slane %v5433, 1
  %v5436 = vor.u32 %v5431, %v5435
  %v5438 = vshrl.u32 %v4843, 16
  %v5440 = vshll.u32 %v4843, 16
  %v5442 = vrot.slane %v5440, 1
  %v5443 = vor.u32 %v5438, %v5442
  %v5445 = vshrl.u32 %v4850, 16
  %v5447 = vshll.u32 %v4850, 16
  %v5449 = vrot.slane %v5447, 1
  %v5450 = vor.u32 %v5445, %v5449
  %v5452 = vshrl.u32 %v4857, 16
  %v5454 = vshll.u32 %v4857, 16
  %v5456 = vrot.slane %v5454, 1
  %v5457 = vor.u32 %v5452, %v5456
  %v5459 = vshrl.u32 %v4864, 16
  %v5461 = vshll.u32 %v4864, 16
  %v5463 = vrot.slane %v5461, 1
  %v5464 = vor.u32 %v5459, %v5463
  %v5466 = vshrl.u32 %v4871, 16
  %v5468 = vshll.u32 %v4871, 16
  %v5470 = vrot.slane %v5468, 1
  %v5471 = vor.u32 %v5466, %v5470
  %v5473 = vshrl.u32 %v4878, 16
  %v5475 = vshll.u32 %v4878, 16
  %v5477 = vrot.slane %v5475, 1
  %v5478 = vor.u32 %v5473, %v5477
  %v5480 = vshrl.u32 %v4885, 16
  %v5482 = vshll.u32 %v4885, 16
  %v5484 = vrot.slane %v5482, 1
  %v5485 = vor.u32 %v5480, %v5484
  %v5487 = vshrl.u32 %v4892, 16
  %v5489 = vshll.u32 %v4892, 16
  %v5491 = vrot.slane %v5489, 1
  %v5492 = vor.u32 %v5487, %v5491
  %v5494 = vshrl.u32 %v4899, 16
  %v5496 = vshll.u32 %v4899, 16
  %v5498 = vrot.slane %v5496, 1
  %v5499 = vor.u32 %v5494, %v5498
  %v5501 = vshrl.u32 %v4906, 16
  %v5503 = vshll.u32 %v4906, 16
  %v5505 = vrot.slane %v5503, 1
  %v5506 = vor.u32 %v5501, %v5505
  %v5508 = vshrl.u32 %v4913, 16
  %v5510 = vshll.u32 %v4913, 16
  %v5512 = vrot.slane %v5510, 1
  %v5513 = vor.u32 %v5508, %v5512
  %5514 = vrot.lane.b32.xlu0 %v5352, 96
  %v5515 = vpop.permute.xlu0 %5514
  %5516 = vrot.lane.b32.xlu0 %v5359, 96
  %v5517 = vpop.permute.xlu0 %5516
  %5518 = vrot.lane.b32.xlu0 %v5366, 96
  %v5519 = vpop.permute.xlu0 %5518
  %5520 = vrot.lane.b32.xlu0 %v5373, 96
  %v5521 = vpop.permute.xlu0 %5520
  %5522 = vrot.lane.b32.xlu0 %v5380, 96
  %v5523 = vpop.permute.xlu0 %5522
  %5524 = vrot.lane.b32.xlu0 %v5387, 96
  %v5525 = vpop.permute.xlu0 %5524
  %5526 = vrot.lane.b32.xlu0 %v5394, 96
  %v5527 = vpop.permute.xlu0 %5526
  %5528 = vrot.lane.b32.xlu0 %v5401, 96
  %v5529 = vpop.permute.xlu0 %5528
  %5530 = vrot.lane.b32.xlu0 %v5408, 96
  %v5531 = vpop.permute.xlu0 %5530
  %5532 = vrot.lane.b32.xlu0 %v5415, 96
  %v5533 = vpop.permute.xlu0 %5532
  %5534 = vrot.lane.b32.xlu0 %v5422, 96
  %v5535 = vpop.permute.xlu0 %5534
  %5536 = vrot.lane.b32.xlu0 %v5429, 96
  %v5537 = vpop.permute.xlu0 %5536
  %5538 = vrot.lane.b32.xlu0 %v5436, 96
  %v5539 = vpop.permute.xlu0 %5538
  %5540 = vrot.lane.b32.xlu0 %v5443, 96
  %v5541 = vpop.permute.xlu0 %5540
  %5542 = vrot.lane.b32.xlu0 %v5450, 96
  %v5543 = vpop.permute.xlu0 %5542
  %5544 = vrot.lane.b32.xlu0 %v5457, 96
  %v5545 = vpop.permute.xlu0 %5544
  %5546 = vrot.lane.b32.xlu0 %v5464, 96
  %v5547 = vpop.permute.xlu0 %5546
  %5548 = vrot.lane.b32.xlu0 %v5471, 96
  %v5549 = vpop.permute.xlu0 %5548
  %5550 = vrot.lane.b32.xlu0 %v5478, 96
  %v5551 = vpop.permute.xlu0 %5550
  %5552 = vrot.lane.b32.xlu0 %v5485, 96
  %v5553 = vpop.permute.xlu0 %5552
  %5554 = vrot.lane.b32.xlu0 %v5492, 96
  %v5555 = vpop.permute.xlu0 %5554
  %5556 = vrot.lane.b32.xlu0 %v5499, 96
  %v5557 = vpop.permute.xlu0 %5556
  %5558 = vrot.lane.b32.xlu0 %v5506, 96
  %v5559 = vpop.permute.xlu0 %5558
  %5560 = vrot.lane.b32.xlu0 %v5513, 96
  %v5561 = vpop.permute.xlu0 %5560
  %v5563 = vunpack.c.l.s4 1983009808
  %v5564 = vunpack.c.0.s8 %v5563
  %v5565 = vlaneseq
  %v5566 = vshrl.u32 %v5565, 7
  %v5567 = vsub.s32 %v5564, %v5566
  %v5568 = vrot.slane %v4617, %v5567
  %v5570 = vunpack.c.l.s4 1983009808
  %v5571 = vunpack.c.0.s8 %v5570
  %v5572 = vlaneseq
  %v5573 = vshrl.u32 %v5572, 7
  %v5574 = vsub.s32 %v5571, %v5573
  %v5575 = vrot.slane %v4625, %v5574
  %v5577 = vunpack.c.l.s4 1983009808
  %v5578 = vunpack.c.0.s8 %v5577
  %v5579 = vlaneseq
  %v5580 = vshrl.u32 %v5579, 7
  %v5581 = vsub.s32 %v5578, %v5580
  %v5582 = vrot.slane %v4624, %v5581
  %v5584 = vunpack.c.l.s4 1983009808
  %v5585 = vunpack.c.0.s8 %v5584
  %v5586 = vlaneseq
  %v5587 = vshrl.u32 %v5586, 7
  %v5588 = vsub.s32 %v5585, %v5587
  %v5589 = vrot.slane %v4634, %v5588
  %v5591 = vunpack.c.l.s4 1983009808
  %v5592 = vunpack.c.0.s8 %v5591
  %v5593 = vlaneseq
  %v5594 = vshrl.u32 %v5593, 7
  %v5595 = vsub.s32 %v5592, %v5594
  %v5596 = vrot.slane %v4642, %v5595
  %v5598 = vunpack.c.l.s4 1983009808
  %v5599 = vunpack.c.0.s8 %v5598
  %v5600 = vlaneseq
  %v5601 = vshrl.u32 %v5600, 7
  %v5602 = vsub.s32 %v5599, %v5601
  %v5603 = vrot.slane %v4641, %v5602
  %v5605 = vunpack.c.l.s4 1983009808
  %v5606 = vunpack.c.0.s8 %v5605
  %v5607 = vlaneseq
  %v5608 = vshrl.u32 %v5607, 7
  %v5609 = vsub.s32 %v5606, %v5608
  %v5610 = vrot.slane %v4651, %v5609
  %v5612 = vunpack.c.l.s4 1983009808
  %v5613 = vunpack.c.0.s8 %v5612
  %v5614 = vlaneseq
  %v5615 = vshrl.u32 %v5614, 7
  %v5616 = vsub.s32 %v5613, %v5615
  %v5617 = vrot.slane %v4659, %v5616
  %v5619 = vunpack.c.l.s4 1983009808
  %v5620 = vunpack.c.0.s8 %v5619
  %v5621 = vlaneseq
  %v5622 = vshrl.u32 %v5621, 7
  %v5623 = vsub.s32 %v5620, %v5622
  %v5624 = vrot.slane %v4658, %v5623
  %v5626 = vunpack.c.l.s4 1983009808
  %v5627 = vunpack.c.0.s8 %v5626
  %v5628 = vlaneseq
  %v5629 = vshrl.u32 %v5628, 7
  %v5630 = vsub.s32 %v5627, %v5629
  %v5631 = vrot.slane %v4668, %v5630
  %v5633 = vunpack.c.l.s4 1983009808
  %v5634 = vunpack.c.0.s8 %v5633
  %v5635 = vlaneseq
  %v5636 = vshrl.u32 %v5635, 7
  %v5637 = vsub.s32 %v5634, %v5636
  %v5638 = vrot.slane %v4676, %v5637
  %v5640 = vunpack.c.l.s4 1983009808
  %v5641 = vunpack.c.0.s8 %v5640
  %v5642 = vlaneseq
  %v5643 = vshrl.u32 %v5642, 7
  %v5644 = vsub.s32 %v5641, %v5643
  %v5645 = vrot.slane %v4675, %v5644
  %v5647 = vunpack.c.l.s4 1983009808
  %v5648 = vunpack.c.0.s8 %v5647
  %v5649 = vlaneseq
  %v5650 = vshrl.u32 %v5649, 7
  %v5651 = vsub.s32 %v5648, %v5650
  %v5652 = vrot.slane %v4685, %v5651
  %v5654 = vunpack.c.l.s4 1983009808
  %v5655 = vunpack.c.0.s8 %v5654
  %v5656 = vlaneseq
  %v5657 = vshrl.u32 %v5656, 7
  %v5658 = vsub.s32 %v5655, %v5657
  %v5659 = vrot.slane %v4693, %v5658
  %v5661 = vunpack.c.l.s4 1983009808
  %v5662 = vunpack.c.0.s8 %v5661
  %v5663 = vlaneseq
  %v5664 = vshrl.u32 %v5663, 7
  %v5665 = vsub.s32 %v5662, %v5664
  %v5666 = vrot.slane %v4692, %v5665
  %v5668 = vunpack.c.l.s4 1983009808
  %v5669 = vunpack.c.0.s8 %v5668
  %v5670 = vlaneseq
  %v5671 = vshrl.u32 %v5670, 7
  %v5672 = vsub.s32 %v5669, %v5671
  %v5673 = vrot.slane %v4702, %v5672
  %v5675 = vunpack.c.l.s4 1983009808
  %v5676 = vunpack.c.0.s8 %v5675
  %v5677 = vlaneseq
  %v5678 = vshrl.u32 %v5677, 7
  %v5679 = vsub.s32 %v5676, %v5678
  %v5680 = vrot.slane %v4710, %v5679
  %v5682 = vunpack.c.l.s4 1983009808
  %v5683 = vunpack.c.0.s8 %v5682
  %v5684 = vlaneseq
  %v5685 = vshrl.u32 %v5684, 7
  %v5686 = vsub.s32 %v5683, %v5685
  %v5687 = vrot.slane %v4709, %v5686
  %v5689 = vunpack.c.l.s4 1983009808
  %v5690 = vunpack.c.0.s8 %v5689
  %v5691 = vlaneseq
  %v5692 = vshrl.u32 %v5691, 7
  %v5693 = vsub.s32 %v5690, %v5692
  %v5694 = vrot.slane %v4719, %v5693
  %v5696 = vunpack.c.l.s4 1983009808
  %v5697 = vunpack.c.0.s8 %v5696
  %v5698 = vlaneseq
  %v5699 = vshrl.u32 %v5698, 7
  %v5700 = vsub.s32 %v5697, %v5699
  %v5701 = vrot.slane %v4727, %v5700
  %v5703 = vunpack.c.l.s4 1983009808
  %v5704 = vunpack.c.0.s8 %v5703
  %v5705 = vlaneseq
  %v5706 = vshrl.u32 %v5705, 7
  %v5707 = vsub.s32 %v5704, %v5706
  %v5708 = vrot.slane %v4726, %v5707
  %v5710 = vunpack.c.l.s4 1983009808
  %v5711 = vunpack.c.0.s8 %v5710
  %v5712 = vlaneseq
  %v5713 = vshrl.u32 %v5712, 7
  %v5714 = vsub.s32 %v5711, %v5713
  %v5715 = vrot.slane %v4736, %v5714
  %v5717 = vunpack.c.l.s4 1983009808
  %v5718 = vunpack.c.0.s8 %v5717
  %v5719 = vlaneseq
  %v5720 = vshrl.u32 %v5719, 7
  %v5721 = vsub.s32 %v5718, %v5720
  %v5722 = vrot.slane %v4744, %v5721
  %v5724 = vunpack.c.l.s4 1983009808
  %v5725 = vunpack.c.0.s8 %v5724
  %v5726 = vlaneseq
  %v5727 = vshrl.u32 %v5726, 7
  %v5728 = vsub.s32 %v5725, %v5727
  %v5729 = vrot.slane %v4743, %v5728
  %5730 = vrot.lane.b32.xlu0 %v5568, 32
  %v5731 = vpop.permute.xlu0 %5730
  %5732 = vrot.lane.b32.xlu0 %v5575, 32
  %v5733 = vpop.permute.xlu0 %5732
  %5734 = vrot.lane.b32.xlu0 %v5582, 32
  %v5735 = vpop.permute.xlu0 %5734
  %5736 = vrot.lane.b32.xlu0 %v5589, 32
  %v5737 = vpop.permute.xlu0 %5736
  %5738 = vrot.lane.b32.xlu0 %v5596, 32
  %v5739 = vpop.permute.xlu0 %5738
  %5740 = vrot.lane.b32.xlu0 %v5603, 32
  %v5741 = vpop.permute.xlu0 %5740
  %5742 = vrot.lane.b32.xlu0 %v5610, 32
  %v5743 = vpop.permute.xlu0 %5742
  %5744 = vrot.lane.b32.xlu0 %v5617, 32
  %v5745 = vpop.permute.xlu0 %5744
  %5746 = vrot.lane.b32.xlu0 %v5624, 32
  %v5747 = vpop.permute.xlu0 %5746
  %5748 = vrot.lane.b32.xlu0 %v5631, 32
  %v5749 = vpop.permute.xlu0 %5748
  %5750 = vrot.lane.b32.xlu0 %v5638, 32
  %v5751 = vpop.permute.xlu0 %5750
  %5752 = vrot.lane.b32.xlu0 %v5645, 32
  %v5753 = vpop.permute.xlu0 %5752
  %5754 = vrot.lane.b32.xlu0 %v5652, 32
  %v5755 = vpop.permute.xlu0 %5754
  %5756 = vrot.lane.b32.xlu0 %v5659, 32
  %v5757 = vpop.permute.xlu0 %5756
  %5758 = vrot.lane.b32.xlu0 %v5666, 32
  %v5759 = vpop.permute.xlu0 %5758
  %5760 = vrot.lane.b32.xlu0 %v5673, 32
  %v5761 = vpop.permute.xlu0 %5760
  %5762 = vrot.lane.b32.xlu0 %v5680, 32
  %v5763 = vpop.permute.xlu0 %5762
  %5764 = vrot.lane.b32.xlu0 %v5687, 32
  %v5765 = vpop.permute.xlu0 %5764
  %5766 = vrot.lane.b32.xlu0 %v5694, 32
  %v5767 = vpop.permute.xlu0 %5766
  %5768 = vrot.lane.b32.xlu0 %v5701, 32
  %v5769 = vpop.permute.xlu0 %5768
  %5770 = vrot.lane.b32.xlu0 %v5708, 32
  %v5771 = vpop.permute.xlu0 %5770
  %5772 = vrot.lane.b32.xlu0 %v5715, 32
  %v5773 = vpop.permute.xlu0 %5772
  %5774 = vrot.lane.b32.xlu0 %v5722, 32
  %v5775 = vpop.permute.xlu0 %5774
  %5776 = vrot.lane.b32.xlu0 %v5729, 32
  %v5777 = vpop.permute.xlu0 %5776
  %v5779 = vunpack.c.l.s4 1983009808
  %v5780 = vunpack.c.0.s8 %v5779
  %v5781 = vlaneseq
  %v5782 = vshrl.u32 %v5781, 7
  %v5783 = vsub.s32 %v5780, %v5782
  %v5784 = vrot.slane %v4481, %v5783
  %v5786 = vunpack.c.l.s4 1983009808
  %v5787 = vunpack.c.0.s8 %v5786
  %v5788 = vlaneseq
  %v5789 = vshrl.u32 %v5788, 7
  %v5790 = vsub.s32 %v5787, %v5789
  %v5791 = vrot.slane %v4489, %v5790
  %v5793 = vunpack.c.l.s4 1983009808
  %v5794 = vunpack.c.0.s8 %v5793
  %v5795 = vlaneseq
  %v5796 = vshrl.u32 %v5795, 7
  %v5797 = vsub.s32 %v5794, %v5796
  %v5798 = vrot.slane %v4488, %v5797
  %v5800 = vunpack.c.l.s4 1983009808
  %v5801 = vunpack.c.0.s8 %v5800
  %v5802 = vlaneseq
  %v5803 = vshrl.u32 %v5802, 7
  %v5804 = vsub.s32 %v5801, %v5803
  %v5805 = vrot.slane %v4498, %v5804
  %v5807 = vunpack.c.l.s4 1983009808
  %v5808 = vunpack.c.0.s8 %v5807
  %v5809 = vlaneseq
  %v5810 = vshrl.u32 %v5809, 7
  %v5811 = vsub.s32 %v5808, %v5810
  %v5812 = vrot.slane %v4506, %v5811
  %v5814 = vunpack.c.l.s4 1983009808
  %v5815 = vunpack.c.0.s8 %v5814
  %v5816 = vlaneseq
  %v5817 = vshrl.u32 %v5816, 7
  %v5818 = vsub.s32 %v5815, %v5817
  %v5819 = vrot.slane %v4505, %v5818
  %v5821 = vunpack.c.l.s4 1983009808
  %v5822 = vunpack.c.0.s8 %v5821
  %v5823 = vlaneseq
  %v5824 = vshrl.u32 %v5823, 7
  %v5825 = vsub.s32 %v5822, %v5824
  %v5826 = vrot.slane %v4515, %v5825
  %v5828 = vunpack.c.l.s4 1983009808
  %v5829 = vunpack.c.0.s8 %v5828
  %v5830 = vlaneseq
  %v5831 = vshrl.u32 %v5830, 7
  %v5832 = vsub.s32 %v5829, %v5831
  %v5833 = vrot.slane %v4523, %v5832
  %v5835 = vunpack.c.l.s4 1983009808
  %v5836 = vunpack.c.0.s8 %v5835
  %v5837 = vlaneseq
  %v5838 = vshrl.u32 %v5837, 7
  %v5839 = vsub.s32 %v5836, %v5838
  %v5840 = vrot.slane %v4522, %v5839
  %v5842 = vunpack.c.l.s4 1983009808
  %v5843 = vunpack.c.0.s8 %v5842
  %v5844 = vlaneseq
  %v5845 = vshrl.u32 %v5844, 7
  %v5846 = vsub.s32 %v5843, %v5845
  %v5847 = vrot.slane %v4532, %v5846
  %v5849 = vunpack.c.l.s4 1983009808
  %v5850 = vunpack.c.0.s8 %v5849
  %v5851 = vlaneseq
  %v5852 = vshrl.u32 %v5851, 7
  %v5853 = vsub.s32 %v5850, %v5852
  %v5854 = vrot.slane %v4540, %v5853
  %v5856 = vunpack.c.l.s4 1983009808
  %v5857 = vunpack.c.0.s8 %v5856
  %v5858 = vlaneseq
  %v5859 = vshrl.u32 %v5858, 7
  %v5860 = vsub.s32 %v5857, %v5859
  %v5861 = vrot.slane %v4539, %v5860
  %v5863 = vunpack.c.l.s4 1983009808
  %v5864 = vunpack.c.0.s8 %v5863
  %v5865 = vlaneseq
  %v5866 = vshrl.u32 %v5865, 7
  %v5867 = vsub.s32 %v5864, %v5866
  %v5868 = vrot.slane %v4549, %v5867
  %v5870 = vunpack.c.l.s4 1983009808
  %v5871 = vunpack.c.0.s8 %v5870
  %v5872 = vlaneseq
  %v5873 = vshrl.u32 %v5872, 7
  %v5874 = vsub.s32 %v5871, %v5873
  %v5875 = vrot.slane %v4557, %v5874
  %v5877 = vunpack.c.l.s4 1983009808
  %v5878 = vunpack.c.0.s8 %v5877
  %v5879 = vlaneseq
  %v5880 = vshrl.u32 %v5879, 7
  %v5881 = vsub.s32 %v5878, %v5880
  %v5882 = vrot.slane %v4556, %v5881
  %v5884 = vunpack.c.l.s4 1983009808
  %v5885 = vunpack.c.0.s8 %v5884
  %v5886 = vlaneseq
  %v5887 = vshrl.u32 %v5886, 7
  %v5888 = vsub.s32 %v5885, %v5887
  %v5889 = vrot.slane %v4566, %v5888
  %v5891 = vunpack.c.l.s4 1983009808
  %v5892 = vunpack.c.0.s8 %v5891
  %v5893 = vlaneseq
  %v5894 = vshrl.u32 %v5893, 7
  %v5895 = vsub.s32 %v5892, %v5894
  %v5896 = vrot.slane %v4574, %v5895
  %v5898 = vunpack.c.l.s4 1983009808
  %v5899 = vunpack.c.0.s8 %v5898
  %v5900 = vlaneseq
  %v5901 = vshrl.u32 %v5900, 7
  %v5902 = vsub.s32 %v5899, %v5901
  %v5903 = vrot.slane %v4573, %v5902
  %v5905 = vunpack.c.l.s4 1983009808
  %v5906 = vunpack.c.0.s8 %v5905
  %v5907 = vlaneseq
  %v5908 = vshrl.u32 %v5907, 7
  %v5909 = vsub.s32 %v5906, %v5908
  %v5910 = vrot.slane %v4583, %v5909
  %v5912 = vunpack.c.l.s4 1983009808
  %v5913 = vunpack.c.0.s8 %v5912
  %v5914 = vlaneseq
  %v5915 = vshrl.u32 %v5914, 7
  %v5916 = vsub.s32 %v5913, %v5915
  %v5917 = vrot.slane %v4591, %v5916
  %v5919 = vunpack.c.l.s4 1983009808
  %v5920 = vunpack.c.0.s8 %v5919
  %v5921 = vlaneseq
  %v5922 = vshrl.u32 %v5921, 7
  %v5923 = vsub.s32 %v5920, %v5922
  %v5924 = vrot.slane %v4590, %v5923
  %v5926 = vunpack.c.l.s4 1983009808
  %v5927 = vunpack.c.0.s8 %v5926
  %v5928 = vlaneseq
  %v5929 = vshrl.u32 %v5928, 7
  %v5930 = vsub.s32 %v5927, %v5929
  %v5931 = vrot.slane %v4600, %v5930
  %v5933 = vunpack.c.l.s4 1983009808
  %v5934 = vunpack.c.0.s8 %v5933
  %v5935 = vlaneseq
  %v5936 = vshrl.u32 %v5935, 7
  %v5937 = vsub.s32 %v5934, %v5936
  %v5938 = vrot.slane %v4608, %v5937
  %v5940 = vunpack.c.l.s4 1983009808
  %v5941 = vunpack.c.0.s8 %v5940
  %v5942 = vlaneseq
  %v5943 = vshrl.u32 %v5942, 7
  %v5944 = vsub.s32 %v5941, %v5943
  %v5945 = vrot.slane %v4607, %v5944
  %v5947 = vshrl.u32 %v5784, 16
  %v5949 = vshll.u32 %v5784, 16
  %v5951 = vrot.slane %v5949, 1
  %v5952 = vor.u32 %v5947, %v5951
  %v5954 = vshrl.u32 %v5791, 16
  %v5956 = vshll.u32 %v5791, 16
  %v5958 = vrot.slane %v5956, 1
  %v5959 = vor.u32 %v5954, %v5958
  %v5961 = vshrl.u32 %v5798, 16
  %v5963 = vshll.u32 %v5798, 16
  %v5965 = vrot.slane %v5963, 1
  %v5966 = vor.u32 %v5961, %v5965
  %v5968 = vshrl.u32 %v5805, 16
  %v5970 = vshll.u32 %v5805, 16
  %v5972 = vrot.slane %v5970, 1
  %v5973 = vor.u32 %v5968, %v5972
  %v5975 = vshrl.u32 %v5812, 16
  %v5977 = vshll.u32 %v5812, 16
  %v5979 = vrot.slane %v5977, 1
  %v5980 = vor.u32 %v5975, %v5979
  %v5982 = vshrl.u32 %v5819, 16
  %v5984 = vshll.u32 %v5819, 16
  %v5986 = vrot.slane %v5984, 1
  %v5987 = vor.u32 %v5982, %v5986
  %v5989 = vshrl.u32 %v5826, 16
  %v5991 = vshll.u32 %v5826, 16
  %v5993 = vrot.slane %v5991, 1
  %v5994 = vor.u32 %v5989, %v5993
  %v5996 = vshrl.u32 %v5833, 16
  %v5998 = vshll.u32 %v5833, 16
  %v6000 = vrot.slane %v5998, 1
  %v6001 = vor.u32 %v5996, %v6000
  %v6003 = vshrl.u32 %v5840, 16
  %v6005 = vshll.u32 %v5840, 16
  %v6007 = vrot.slane %v6005, 1
  %v6008 = vor.u32 %v6003, %v6007
  %v6010 = vshrl.u32 %v5847, 16
  %v6012 = vshll.u32 %v5847, 16
  %v6014 = vrot.slane %v6012, 1
  %v6015 = vor.u32 %v6010, %v6014
  %v6017 = vshrl.u32 %v5854, 16
  %v6019 = vshll.u32 %v5854, 16
  %v6021 = vrot.slane %v6019, 1
  %v6022 = vor.u32 %v6017, %v6021
  %v6024 = vshrl.u32 %v5861, 16
  %v6026 = vshll.u32 %v5861, 16
  %v6028 = vrot.slane %v6026, 1
  %v6029 = vor.u32 %v6024, %v6028
  %v6031 = vshrl.u32 %v5868, 16
  %v6033 = vshll.u32 %v5868, 16
  %v6035 = vrot.slane %v6033, 1
  %v6036 = vor.u32 %v6031, %v6035
  %v6038 = vshrl.u32 %v5875, 16
  %v6040 = vshll.u32 %v5875, 16
  %v6042 = vrot.slane %v6040, 1
  %v6043 = vor.u32 %v6038, %v6042
  %v6045 = vshrl.u32 %v5882, 16
  %v6047 = vshll.u32 %v5882, 16
  %v6049 = vrot.slane %v6047, 1
  %v6050 = vor.u32 %v6045, %v6049
  %v6052 = vshrl.u32 %v5889, 16
  %v6054 = vshll.u32 %v5889, 16
  %v6056 = vrot.slane %v6054, 1
  %v6057 = vor.u32 %v6052, %v6056
  %v6059 = vshrl.u32 %v5896, 16
  %v6061 = vshll.u32 %v5896, 16
  %v6063 = vrot.slane %v6061, 1
  %v6064 = vor.u32 %v6059, %v6063
  %v6066 = vshrl.u32 %v5903, 16
  %v6068 = vshll.u32 %v5903, 16
  %v6070 = vrot.slane %v6068, 1
  %v6071 = vor.u32 %v6066, %v6070
  %v6073 = vshrl.u32 %v5910, 16
  %v6075 = vshll.u32 %v5910, 16
  %v6077 = vrot.slane %v6075, 1
  %v6078 = vor.u32 %v6073, %v6077
  %v6080 = vshrl.u32 %v5917, 16
  %v6082 = vshll.u32 %v5917, 16
  %v6084 = vrot.slane %v6082, 1
  %v6085 = vor.u32 %v6080, %v6084
  %v6087 = vshrl.u32 %v5924, 16
  %v6089 = vshll.u32 %v5924, 16
  %v6091 = vrot.slane %v6089, 1
  %v6092 = vor.u32 %v6087, %v6091
  %v6094 = vshrl.u32 %v5931, 16
  %v6096 = vshll.u32 %v5931, 16
  %v6098 = vrot.slane %v6096, 1
  %v6099 = vor.u32 %v6094, %v6098
  %v6101 = vshrl.u32 %v5938, 16
  %v6103 = vshll.u32 %v5938, 16
  %v6105 = vrot.slane %v6103, 1
  %v6106 = vor.u32 %v6101, %v6105
  %v6108 = vshrl.u32 %v5945, 16
  %v6110 = vshll.u32 %v5945, 16
  %v6112 = vrot.slane %v6110, 1
  %v6113 = vor.u32 %v6108, %v6112
  %6114 = vrot.lane.b32.xlu0 %v5952, 64
  %v6115 = vpop.permute.xlu0 %6114
  %6116 = vrot.lane.b32.xlu0 %v5959, 64
  %v6117 = vpop.permute.xlu0 %6116
  %6118 = vrot.lane.b32.xlu0 %v5966, 64
  %v6119 = vpop.permute.xlu0 %6118
  %6120 = vrot.lane.b32.xlu0 %v5973, 64
  %v6121 = vpop.permute.xlu0 %6120
  %6122 = vrot.lane.b32.xlu0 %v5980, 64
  %v6123 = vpop.permute.xlu0 %6122
  %6124 = vrot.lane.b32.xlu0 %v5987, 64
  %v6125 = vpop.permute.xlu0 %6124
  %6126 = vrot.lane.b32.xlu0 %v5994, 64
  %v6127 = vpop.permute.xlu0 %6126
  %6128 = vrot.lane.b32.xlu0 %v6001, 64
  %v6129 = vpop.permute.xlu0 %6128
  %6130 = vrot.lane.b32.xlu0 %v6008, 64
  %v6131 = vpop.permute.xlu0 %6130
  %6132 = vrot.lane.b32.xlu0 %v6015, 64
  %v6133 = vpop.permute.xlu0 %6132
  %6134 = vrot.lane.b32.xlu0 %v6022, 64
  %v6135 = vpop.permute.xlu0 %6134
  %6136 = vrot.lane.b32.xlu0 %v6029, 64
  %v6137 = vpop.permute.xlu0 %6136
  %6138 = vrot.lane.b32.xlu0 %v6036, 64
  %v6139 = vpop.permute.xlu0 %6138
  %6140 = vrot.lane.b32.xlu0 %v6043, 64
  %v6141 = vpop.permute.xlu0 %6140
  %6142 = vrot.lane.b32.xlu0 %v6050, 64
  %v6143 = vpop.permute.xlu0 %6142
  %6144 = vrot.lane.b32.xlu0 %v6057, 64
  %v6145 = vpop.permute.xlu0 %6144
  %6146 = vrot.lane.b32.xlu0 %v6064, 64
  %v6147 = vpop.permute.xlu0 %6146
  %6148 = vrot.lane.b32.xlu0 %v6071, 64
  %v6149 = vpop.permute.xlu0 %6148
  %6150 = vrot.lane.b32.xlu0 %v6078, 64
  %v6151 = vpop.permute.xlu0 %6150
  %6152 = vrot.lane.b32.xlu0 %v6085, 64
  %v6153 = vpop.permute.xlu0 %6152
  %6154 = vrot.lane.b32.xlu0 %v6092, 64
  %v6155 = vpop.permute.xlu0 %6154
  %6156 = vrot.lane.b32.xlu0 %v6099, 64
  %v6157 = vpop.permute.xlu0 %6156
  %6158 = vrot.lane.b32.xlu0 %v6106, 64
  %v6159 = vpop.permute.xlu0 %6158
  %6160 = vrot.lane.b32.xlu0 %v6113, 64
  %v6161 = vpop.permute.xlu0 %6160
  %v6163 = vshrl.u32 %v5568, 16
  %v6165 = vshll.u32 %v5568, 16
  %v6167 = vrot.slane %v6165, 1
  %v6168 = vor.u32 %v6163, %v6167
  %v6170 = vshrl.u32 %v5575, 16
  %v6172 = vshll.u32 %v5575, 16
  %v6174 = vrot.slane %v6172, 1
  %v6175 = vor.u32 %v6170, %v6174
  %v6177 = vshrl.u32 %v5582, 16
  %v6179 = vshll.u32 %v5582, 16
  %v6181 = vrot.slane %v6179, 1
  %v6182 = vor.u32 %v6177, %v6181
  %v6184 = vshrl.u32 %v5589, 16
  %v6186 = vshll.u32 %v5589, 16
  %v6188 = vrot.slane %v6186, 1
  %v6189 = vor.u32 %v6184, %v6188
  %v6191 = vshrl.u32 %v5596, 16
  %v6193 = vshll.u32 %v5596, 16
  %v6195 = vrot.slane %v6193, 1
  %v6196 = vor.u32 %v6191, %v6195
  %v6198 = vshrl.u32 %v5603, 16
  %v6200 = vshll.u32 %v5603, 16
  %v6202 = vrot.slane %v6200, 1
  %v6203 = vor.u32 %v6198, %v6202
  %v6205 = vshrl.u32 %v5610, 16
  %v6207 = vshll.u32 %v5610, 16
  %v6209 = vrot.slane %v6207, 1
  %v6210 = vor.u32 %v6205, %v6209
  %v6212 = vshrl.u32 %v5617, 16
  %v6214 = vshll.u32 %v5617, 16
  %v6216 = vrot.slane %v6214, 1
  %v6217 = vor.u32 %v6212, %v6216
  %v6219 = vshrl.u32 %v5624, 16
  %v6221 = vshll.u32 %v5624, 16
  %v6223 = vrot.slane %v6221, 1
  %v6224 = vor.u32 %v6219, %v6223
  %v6226 = vshrl.u32 %v5631, 16
  %v6228 = vshll.u32 %v5631, 16
  %v6230 = vrot.slane %v6228, 1
  %v6231 = vor.u32 %v6226, %v6230
  %v6233 = vshrl.u32 %v5638, 16
  %v6235 = vshll.u32 %v5638, 16
  %v6237 = vrot.slane %v6235, 1
  %v6238 = vor.u32 %v6233, %v6237
  %v6240 = vshrl.u32 %v5645, 16
  %v6242 = vshll.u32 %v5645, 16
  %v6244 = vrot.slane %v6242, 1
  %v6245 = vor.u32 %v6240, %v6244
  %v6247 = vshrl.u32 %v5652, 16
  %v6249 = vshll.u32 %v5652, 16
  %v6251 = vrot.slane %v6249, 1
  %v6252 = vor.u32 %v6247, %v6251
  %v6254 = vshrl.u32 %v5659, 16
  %v6256 = vshll.u32 %v5659, 16
  %v6258 = vrot.slane %v6256, 1
  %v6259 = vor.u32 %v6254, %v6258
  %v6261 = vshrl.u32 %v5666, 16
  %v6263 = vshll.u32 %v5666, 16
  %v6265 = vrot.slane %v6263, 1
  %v6266 = vor.u32 %v6261, %v6265
  %v6268 = vshrl.u32 %v5673, 16
  %v6270 = vshll.u32 %v5673, 16
  %v6272 = vrot.slane %v6270, 1
  %v6273 = vor.u32 %v6268, %v6272
  %v6275 = vshrl.u32 %v5680, 16
  %v6277 = vshll.u32 %v5680, 16
  %v6279 = vrot.slane %v6277, 1
  %v6280 = vor.u32 %v6275, %v6279
  %v6282 = vshrl.u32 %v5687, 16
  %v6284 = vshll.u32 %v5687, 16
  %v6286 = vrot.slane %v6284, 1
  %v6287 = vor.u32 %v6282, %v6286
  %v6289 = vshrl.u32 %v5694, 16
  %v6291 = vshll.u32 %v5694, 16
  %v6293 = vrot.slane %v6291, 1
  %v6294 = vor.u32 %v6289, %v6293
  %v6296 = vshrl.u32 %v5701, 16
  %v6298 = vshll.u32 %v5701, 16
  %v6300 = vrot.slane %v6298, 1
  %v6301 = vor.u32 %v6296, %v6300
  %v6303 = vshrl.u32 %v5708, 16
  %v6305 = vshll.u32 %v5708, 16
  %v6307 = vrot.slane %v6305, 1
  %v6308 = vor.u32 %v6303, %v6307
  %v6310 = vshrl.u32 %v5715, 16
  %v6312 = vshll.u32 %v5715, 16
  %v6314 = vrot.slane %v6312, 1
  %v6315 = vor.u32 %v6310, %v6314
  %v6317 = vshrl.u32 %v5722, 16
  %v6319 = vshll.u32 %v5722, 16
  %v6321 = vrot.slane %v6319, 1
  %v6322 = vor.u32 %v6317, %v6321
  %v6324 = vshrl.u32 %v5729, 16
  %v6326 = vshll.u32 %v5729, 16
  %v6328 = vrot.slane %v6326, 1
  %v6329 = vor.u32 %v6324, %v6328
  %6330 = vrot.lane.b32.xlu0 %v6168, 96
  %v6331 = vpop.permute.xlu0 %6330
  %6332 = vrot.lane.b32.xlu0 %v6175, 96
  %v6333 = vpop.permute.xlu0 %6332
  %6334 = vrot.lane.b32.xlu0 %v6182, 96
  %v6335 = vpop.permute.xlu0 %6334
  %6336 = vrot.lane.b32.xlu0 %v6189, 96
  %v6337 = vpop.permute.xlu0 %6336
  %6338 = vrot.lane.b32.xlu0 %v6196, 96
  %v6339 = vpop.permute.xlu0 %6338
  %6340 = vrot.lane.b32.xlu0 %v6203, 96
  %v6341 = vpop.permute.xlu0 %6340
  %6342 = vrot.lane.b32.xlu0 %v6210, 96
  %v6343 = vpop.permute.xlu0 %6342
  %6344 = vrot.lane.b32.xlu0 %v6217, 96
  %v6345 = vpop.permute.xlu0 %6344
  %6346 = vrot.lane.b32.xlu0 %v6224, 96
  %v6347 = vpop.permute.xlu0 %6346
  %6348 = vrot.lane.b32.xlu0 %v6231, 96
  %v6349 = vpop.permute.xlu0 %6348
  %6350 = vrot.lane.b32.xlu0 %v6238, 96
  %v6351 = vpop.permute.xlu0 %6350
  %6352 = vrot.lane.b32.xlu0 %v6245, 96
  %v6353 = vpop.permute.xlu0 %6352
  %6354 = vrot.lane.b32.xlu0 %v6252, 96
  %v6355 = vpop.permute.xlu0 %6354
  %6356 = vrot.lane.b32.xlu0 %v6259, 96
  %v6357 = vpop.permute.xlu0 %6356
  %6358 = vrot.lane.b32.xlu0 %v6266, 96
  %v6359 = vpop.permute.xlu0 %6358
  %6360 = vrot.lane.b32.xlu0 %v6273, 96
  %v6361 = vpop.permute.xlu0 %6360
  %6362 = vrot.lane.b32.xlu0 %v6280, 96
  %v6363 = vpop.permute.xlu0 %6362
  %6364 = vrot.lane.b32.xlu0 %v6287, 96
  %v6365 = vpop.permute.xlu0 %6364
  %6366 = vrot.lane.b32.xlu0 %v6294, 96
  %v6367 = vpop.permute.xlu0 %6366
  %6368 = vrot.lane.b32.xlu0 %v6301, 96
  %v6369 = vpop.permute.xlu0 %6368
  %6370 = vrot.lane.b32.xlu0 %v6308, 96
  %v6371 = vpop.permute.xlu0 %6370
  %6372 = vrot.lane.b32.xlu0 %v6315, 96
  %v6373 = vpop.permute.xlu0 %6372
  %6374 = vrot.lane.b32.xlu0 %v6322, 96
  %v6375 = vpop.permute.xlu0 %6374
  %6376 = vrot.lane.b32.xlu0 %v6329, 96
  %v6377 = vpop.permute.xlu0 %6376
  %v6379 = vunpack.c.l.s4 1983009808
  %v6380 = vunpack.c.0.s8 %v6379
  %v6381 = vlaneseq
  %v6382 = vshrl.u32 %v6381, 7
  %v6383 = vsub.s32 %v6380, %v6382
  %v6384 = vrot.slane %v4354, %v6383
  %v6386 = vunpack.c.l.s4 1983009808
  %v6387 = vunpack.c.0.s8 %v6386
  %v6388 = vlaneseq
  %v6389 = vshrl.u32 %v6388, 7
  %v6390 = vsub.s32 %v6387, %v6389
  %v6391 = vrot.slane %v4371, %v6390
  %v6393 = vunpack.c.l.s4 1983009808
  %v6394 = vunpack.c.0.s8 %v6393
  %v6395 = vlaneseq
  %v6396 = vshrl.u32 %v6395, 7
  %v6397 = vsub.s32 %v6394, %v6396
  %v6398 = vrot.slane %v4388, %v6397
  %v6400 = vunpack.c.l.s4 1983009808
  %v6401 = vunpack.c.0.s8 %v6400
  %v6402 = vlaneseq
  %v6403 = vshrl.u32 %v6402, 7
  %v6404 = vsub.s32 %v6401, %v6403
  %v6405 = vrot.slane %v4405, %v6404
  %v6407 = vunpack.c.l.s4 1983009808
  %v6408 = vunpack.c.0.s8 %v6407
  %v6409 = vlaneseq
  %v6410 = vshrl.u32 %v6409, 7
  %v6411 = vsub.s32 %v6408, %v6410
  %v6412 = vrot.slane %v4422, %v6411
  %v6414 = vunpack.c.l.s4 1983009808
  %v6415 = vunpack.c.0.s8 %v6414
  %v6416 = vlaneseq
  %v6417 = vshrl.u32 %v6416, 7
  %v6418 = vsub.s32 %v6415, %v6417
  %v6419 = vrot.slane %v4439, %v6418
  %v6421 = vunpack.c.l.s4 1983009808
  %v6422 = vunpack.c.0.s8 %v6421
  %v6423 = vlaneseq
  %v6424 = vshrl.u32 %v6423, 7
  %v6425 = vsub.s32 %v6422, %v6424
  %v6426 = vrot.slane %v4456, %v6425
  %v6428 = vunpack.c.l.s4 1983009808
  %v6429 = vunpack.c.0.s8 %v6428
  %v6430 = vlaneseq
  %v6431 = vshrl.u32 %v6430, 7
  %v6432 = vsub.s32 %v6429, %v6431
  %v6433 = vrot.slane %v4473, %v6432
  %6434 = vrot.lane.b32.xlu0 %v6384, 32
  %v6435 = vpop.permute.xlu0 %6434
  %6436 = vrot.lane.b32.xlu0 %v6391, 32
  %v6437 = vpop.permute.xlu0 %6436
  %6438 = vrot.lane.b32.xlu0 %v6398, 32
  %v6439 = vpop.permute.xlu0 %6438
  %6440 = vrot.lane.b32.xlu0 %v6405, 32
  %v6441 = vpop.permute.xlu0 %6440
  %6442 = vrot.lane.b32.xlu0 %v6412, 32
  %v6443 = vpop.permute.xlu0 %6442
  %6444 = vrot.lane.b32.xlu0 %v6419, 32
  %v6445 = vpop.permute.xlu0 %6444
  %6446 = vrot.lane.b32.xlu0 %v6426, 32
  %v6447 = vpop.permute.xlu0 %6446
  %6448 = vrot.lane.b32.xlu0 %v6433, 32
  %v6449 = vpop.permute.xlu0 %6448
  %v6451 = vunpack.c.l.s4 1983009808
  %v6452 = vunpack.c.0.s8 %v6451
  %v6453 = vlaneseq
  %v6454 = vshrl.u32 %v6453, 7
  %v6455 = vsub.s32 %v6452, %v6454
  %v6456 = vrot.slane %v4218, %v6455
  %v6458 = vunpack.c.l.s4 1983009808
  %v6459 = vunpack.c.0.s8 %v6458
  %v6460 = vlaneseq
  %v6461 = vshrl.u32 %v6460, 7
  %v6462 = vsub.s32 %v6459, %v6461
  %v6463 = vrot.slane %v4235, %v6462
  %v6465 = vunpack.c.l.s4 1983009808
  %v6466 = vunpack.c.0.s8 %v6465
  %v6467 = vlaneseq
  %v6468 = vshrl.u32 %v6467, 7
  %v6469 = vsub.s32 %v6466, %v6468
  %v6470 = vrot.slane %v4252, %v6469
  %v6472 = vunpack.c.l.s4 1983009808
  %v6473 = vunpack.c.0.s8 %v6472
  %v6474 = vlaneseq
  %v6475 = vshrl.u32 %v6474, 7
  %v6476 = vsub.s32 %v6473, %v6475
  %v6477 = vrot.slane %v4269, %v6476
  %v6479 = vunpack.c.l.s4 1983009808
  %v6480 = vunpack.c.0.s8 %v6479
  %v6481 = vlaneseq
  %v6482 = vshrl.u32 %v6481, 7
  %v6483 = vsub.s32 %v6480, %v6482
  %v6484 = vrot.slane %v4286, %v6483
  %v6486 = vunpack.c.l.s4 1983009808
  %v6487 = vunpack.c.0.s8 %v6486
  %v6488 = vlaneseq
  %v6489 = vshrl.u32 %v6488, 7
  %v6490 = vsub.s32 %v6487, %v6489
  %v6491 = vrot.slane %v4303, %v6490
  %v6493 = vunpack.c.l.s4 1983009808
  %v6494 = vunpack.c.0.s8 %v6493
  %v6495 = vlaneseq
  %v6496 = vshrl.u32 %v6495, 7
  %v6497 = vsub.s32 %v6494, %v6496
  %v6498 = vrot.slane %v4320, %v6497
  %v6500 = vunpack.c.l.s4 1983009808
  %v6501 = vunpack.c.0.s8 %v6500
  %v6502 = vlaneseq
  %v6503 = vshrl.u32 %v6502, 7
  %v6504 = vsub.s32 %v6501, %v6503
  %v6505 = vrot.slane %v4337, %v6504
  %v6507 = vshrl.u32 %v6456, 16
  %v6509 = vshll.u32 %v6456, 16
  %v6511 = vrot.slane %v6509, 1
  %v6512 = vor.u32 %v6507, %v6511
  %v6514 = vshrl.u32 %v6463, 16
  %v6516 = vshll.u32 %v6463, 16
  %v6518 = vrot.slane %v6516, 1
  %v6519 = vor.u32 %v6514, %v6518
  %v6521 = vshrl.u32 %v6470, 16
  %v6523 = vshll.u32 %v6470, 16
  %v6525 = vrot.slane %v6523, 1
  %v6526 = vor.u32 %v6521, %v6525
  %v6528 = vshrl.u32 %v6477, 16
  %v6530 = vshll.u32 %v6477, 16
  %v6532 = vrot.slane %v6530, 1
  %v6533 = vor.u32 %v6528, %v6532
  %v6535 = vshrl.u32 %v6484, 16
  %v6537 = vshll.u32 %v6484, 16
  %v6539 = vrot.slane %v6537, 1
  %v6540 = vor.u32 %v6535, %v6539
  %v6542 = vshrl.u32 %v6491, 16
  %v6544 = vshll.u32 %v6491, 16
  %v6546 = vrot.slane %v6544, 1
  %v6547 = vor.u32 %v6542, %v6546
  %v6549 = vshrl.u32 %v6498, 16
  %v6551 = vshll.u32 %v6498, 16
  %v6553 = vrot.slane %v6551, 1
  %v6554 = vor.u32 %v6549, %v6553
  %v6556 = vshrl.u32 %v6505, 16
  %v6558 = vshll.u32 %v6505, 16
  %v6560 = vrot.slane %v6558, 1
  %v6561 = vor.u32 %v6556, %v6560
  %6562 = vrot.lane.b32.xlu0 %v6512, 64
  %v6563 = vpop.permute.xlu0 %6562
  %6564 = vrot.lane.b32.xlu0 %v6519, 64
  %v6565 = vpop.permute.xlu0 %6564
  %6566 = vrot.lane.b32.xlu0 %v6526, 64
  %v6567 = vpop.permute.xlu0 %6566
  %6568 = vrot.lane.b32.xlu0 %v6533, 64
  %v6569 = vpop.permute.xlu0 %6568
  %6570 = vrot.lane.b32.xlu0 %v6540, 64
  %v6571 = vpop.permute.xlu0 %6570
  %6572 = vrot.lane.b32.xlu0 %v6547, 64
  %v6573 = vpop.permute.xlu0 %6572
  %6574 = vrot.lane.b32.xlu0 %v6554, 64
  %v6575 = vpop.permute.xlu0 %6574
  %6576 = vrot.lane.b32.xlu0 %v6561, 64
  %v6577 = vpop.permute.xlu0 %6576
  %v6579 = vshrl.u32 %v6384, 16
  %v6581 = vshll.u32 %v6384, 16
  %v6583 = vrot.slane %v6581, 1
  %v6584 = vor.u32 %v6579, %v6583
  %v6586 = vshrl.u32 %v6391, 16
  %v6588 = vshll.u32 %v6391, 16
  %v6590 = vrot.slane %v6588, 1
  %v6591 = vor.u32 %v6586, %v6590
  %v6593 = vshrl.u32 %v6398, 16
  %v6595 = vshll.u32 %v6398, 16
  %v6597 = vrot.slane %v6595, 1
  %v6598 = vor.u32 %v6593, %v6597
  %v6600 = vshrl.u32 %v6405, 16
  %v6602 = vshll.u32 %v6405, 16
  %v6604 = vrot.slane %v6602, 1
  %v6605 = vor.u32 %v6600, %v6604
  %v6607 = vshrl.u32 %v6412, 16
  %v6609 = vshll.u32 %v6412, 16
  %v6611 = vrot.slane %v6609, 1
  %v6612 = vor.u32 %v6607, %v6611
  %v6614 = vshrl.u32 %v6419, 16
  %v6616 = vshll.u32 %v6419, 16
  %v6618 = vrot.slane %v6616, 1
  %v6619 = vor.u32 %v6614, %v6618
  %v6621 = vshrl.u32 %v6426, 16
  %v6623 = vshll.u32 %v6426, 16
  %v6625 = vrot.slane %v6623, 1
  %v6626 = vor.u32 %v6621, %v6625
  %v6628 = vshrl.u32 %v6433, 16
  %v6630 = vshll.u32 %v6433, 16
  %v6632 = vrot.slane %v6630, 1
  %v6633 = vor.u32 %v6628, %v6632
  %6634 = vrot.lane.b32.xlu0 %v6584, 96
  %v6635 = vpop.permute.xlu0 %6634
  %6636 = vrot.lane.b32.xlu0 %v6591, 96
  %v6637 = vpop.permute.xlu0 %6636
  %6638 = vrot.lane.b32.xlu0 %v6598, 96
  %v6639 = vpop.permute.xlu0 %6638
  %6640 = vrot.lane.b32.xlu0 %v6605, 96
  %v6641 = vpop.permute.xlu0 %6640
  %6642 = vrot.lane.b32.xlu0 %v6612, 96
  %v6643 = vpop.permute.xlu0 %6642
  %6644 = vrot.lane.b32.xlu0 %v6619, 96
  %v6645 = vpop.permute.xlu0 %6644
  %6646 = vrot.lane.b32.xlu0 %v6626, 96
  %v6647 = vpop.permute.xlu0 %6646
  %6648 = vrot.lane.b32.xlu0 %v6633, 96
  %v6649 = vpop.permute.xlu0 %6648
  %v6651 = vunpack.c.l.s4 1983009808
  %v6652 = vunpack.c.0.s8 %v6651
  %v6653 = vlaneseq
  %v6654 = vshrl.u32 %v6653, 7
  %v6655 = vsub.s32 %v6652, %v6654
  %v6656 = vrot.slane %v4626, %v6655
  %v6658 = vunpack.c.l.s4 1983009808
  %v6659 = vunpack.c.0.s8 %v6658
  %v6660 = vlaneseq
  %v6661 = vshrl.u32 %v6660, 7
  %v6662 = vsub.s32 %v6659, %v6661
  %v6663 = vrot.slane %v4643, %v6662
  %v6665 = vunpack.c.l.s4 1983009808
  %v6666 = vunpack.c.0.s8 %v6665
  %v6667 = vlaneseq
  %v6668 = vshrl.u32 %v6667, 7
  %v6669 = vsub.s32 %v6666, %v6668
  %v6670 = vrot.slane %v4660, %v6669
  %v6672 = vunpack.c.l.s4 1983009808
  %v6673 = vunpack.c.0.s8 %v6672
  %v6674 = vlaneseq
  %v6675 = vshrl.u32 %v6674, 7
  %v6676 = vsub.s32 %v6673, %v6675
  %v6677 = vrot.slane %v4677, %v6676
  %v6679 = vunpack.c.l.s4 1983009808
  %v6680 = vunpack.c.0.s8 %v6679
  %v6681 = vlaneseq
  %v6682 = vshrl.u32 %v6681, 7
  %v6683 = vsub.s32 %v6680, %v6682
  %v6684 = vrot.slane %v4694, %v6683
  %v6686 = vunpack.c.l.s4 1983009808
  %v6687 = vunpack.c.0.s8 %v6686
  %v6688 = vlaneseq
  %v6689 = vshrl.u32 %v6688, 7
  %v6690 = vsub.s32 %v6687, %v6689
  %v6691 = vrot.slane %v4711, %v6690
  %v6693 = vunpack.c.l.s4 1983009808
  %v6694 = vunpack.c.0.s8 %v6693
  %v6695 = vlaneseq
  %v6696 = vshrl.u32 %v6695, 7
  %v6697 = vsub.s32 %v6694, %v6696
  %v6698 = vrot.slane %v4728, %v6697
  %v6700 = vunpack.c.l.s4 1983009808
  %v6701 = vunpack.c.0.s8 %v6700
  %v6702 = vlaneseq
  %v6703 = vshrl.u32 %v6702, 7
  %v6704 = vsub.s32 %v6701, %v6703
  %v6705 = vrot.slane %v4745, %v6704
  %6706 = vrot.lane.b32.xlu0 %v6656, 32
  %v6707 = vpop.permute.xlu0 %6706
  %6708 = vrot.lane.b32.xlu0 %v6663, 32
  %v6709 = vpop.permute.xlu0 %6708
  %6710 = vrot.lane.b32.xlu0 %v6670, 32
  %v6711 = vpop.permute.xlu0 %6710
  %6712 = vrot.lane.b32.xlu0 %v6677, 32
  %v6713 = vpop.permute.xlu0 %6712
  %6714 = vrot.lane.b32.xlu0 %v6684, 32
  %v6715 = vpop.permute.xlu0 %6714
  %6716 = vrot.lane.b32.xlu0 %v6691, 32
  %v6717 = vpop.permute.xlu0 %6716
  %6718 = vrot.lane.b32.xlu0 %v6698, 32
  %v6719 = vpop.permute.xlu0 %6718
  %6720 = vrot.lane.b32.xlu0 %v6705, 32
  %v6721 = vpop.permute.xlu0 %6720
  %v6723 = vunpack.c.l.s4 1983009808
  %v6724 = vunpack.c.0.s8 %v6723
  %v6725 = vlaneseq
  %v6726 = vshrl.u32 %v6725, 7
  %v6727 = vsub.s32 %v6724, %v6726
  %v6728 = vrot.slane %v4490, %v6727
  %v6730 = vunpack.c.l.s4 1983009808
  %v6731 = vunpack.c.0.s8 %v6730
  %v6732 = vlaneseq
  %v6733 = vshrl.u32 %v6732, 7
  %v6734 = vsub.s32 %v6731, %v6733
  %v6735 = vrot.slane %v4507, %v6734
  %v6737 = vunpack.c.l.s4 1983009808
  %v6738 = vunpack.c.0.s8 %v6737
  %v6739 = vlaneseq
  %v6740 = vshrl.u32 %v6739, 7
  %v6741 = vsub.s32 %v6738, %v6740
  %v6742 = vrot.slane %v4524, %v6741
  %v6744 = vunpack.c.l.s4 1983009808
  %v6745 = vunpack.c.0.s8 %v6744
  %v6746 = vlaneseq
  %v6747 = vshrl.u32 %v6746, 7
  %v6748 = vsub.s32 %v6745, %v6747
  %v6749 = vrot.slane %v4541, %v6748
  %v6751 = vunpack.c.l.s4 1983009808
  %v6752 = vunpack.c.0.s8 %v6751
  %v6753 = vlaneseq
  %v6754 = vshrl.u32 %v6753, 7
  %v6755 = vsub.s32 %v6752, %v6754
  %v6756 = vrot.slane %v4558, %v6755
  %v6758 = vunpack.c.l.s4 1983009808
  %v6759 = vunpack.c.0.s8 %v6758
  %v6760 = vlaneseq
  %v6761 = vshrl.u32 %v6760, 7
  %v6762 = vsub.s32 %v6759, %v6761
  %v6763 = vrot.slane %v4575, %v6762
  %v6765 = vunpack.c.l.s4 1983009808
  %v6766 = vunpack.c.0.s8 %v6765
  %v6767 = vlaneseq
  %v6768 = vshrl.u32 %v6767, 7
  %v6769 = vsub.s32 %v6766, %v6768
  %v6770 = vrot.slane %v4592, %v6769
  %v6772 = vunpack.c.l.s4 1983009808
  %v6773 = vunpack.c.0.s8 %v6772
  %v6774 = vlaneseq
  %v6775 = vshrl.u32 %v6774, 7
  %v6776 = vsub.s32 %v6773, %v6775
  %v6777 = vrot.slane %v4609, %v6776
  %v6779 = vshrl.u32 %v6728, 16
  %v6781 = vshll.u32 %v6728, 16
  %v6783 = vrot.slane %v6781, 1
  %v6784 = vor.u32 %v6779, %v6783
  %v6786 = vshrl.u32 %v6735, 16
  %v6788 = vshll.u32 %v6735, 16
  %v6790 = vrot.slane %v6788, 1
  %v6791 = vor.u32 %v6786, %v6790
  %v6793 = vshrl.u32 %v6742, 16
  %v6795 = vshll.u32 %v6742, 16
  %v6797 = vrot.slane %v6795, 1
  %v6798 = vor.u32 %v6793, %v6797
  %v6800 = vshrl.u32 %v6749, 16
  %v6802 = vshll.u32 %v6749, 16
  %v6804 = vrot.slane %v6802, 1
  %v6805 = vor.u32 %v6800, %v6804
  %v6807 = vshrl.u32 %v6756, 16
  %v6809 = vshll.u32 %v6756, 16
  %v6811 = vrot.slane %v6809, 1
  %v6812 = vor.u32 %v6807, %v6811
  %v6814 = vshrl.u32 %v6763, 16
  %v6816 = vshll.u32 %v6763, 16
  %v6818 = vrot.slane %v6816, 1
  %v6819 = vor.u32 %v6814, %v6818
  %v6821 = vshrl.u32 %v6770, 16
  %v6823 = vshll.u32 %v6770, 16
  %v6825 = vrot.slane %v6823, 1
  %v6826 = vor.u32 %v6821, %v6825
  %v6828 = vshrl.u32 %v6777, 16
  %v6830 = vshll.u32 %v6777, 16
  %v6832 = vrot.slane %v6830, 1
  %v6833 = vor.u32 %v6828, %v6832
  %6834 = vrot.lane.b32.xlu0 %v6784, 64
  %v6835 = vpop.permute.xlu0 %6834
  %6836 = vrot.lane.b32.xlu0 %v6791, 64
  %v6837 = vpop.permute.xlu0 %6836
  %6838 = vrot.lane.b32.xlu0 %v6798, 64
  %v6839 = vpop.permute.xlu0 %6838
  %6840 = vrot.lane.b32.xlu0 %v6805, 64
  %v6841 = vpop.permute.xlu0 %6840
  %6842 = vrot.lane.b32.xlu0 %v6812, 64
  %v6843 = vpop.permute.xlu0 %6842
  %6844 = vrot.lane.b32.xlu0 %v6819, 64
  %v6845 = vpop.permute.xlu0 %6844
  %6846 = vrot.lane.b32.xlu0 %v6826, 64
  %v6847 = vpop.permute.xlu0 %6846
  %6848 = vrot.lane.b32.xlu0 %v6833, 64
  %v6849 = vpop.permute.xlu0 %6848
  %v6851 = vshrl.u32 %v6656, 16
  %v6853 = vshll.u32 %v6656, 16
  %v6855 = vrot.slane %v6853, 1
  %v6856 = vor.u32 %v6851, %v6855
  %v6858 = vshrl.u32 %v6663, 16
  %v6860 = vshll.u32 %v6663, 16
  %v6862 = vrot.slane %v6860, 1
  %v6863 = vor.u32 %v6858, %v6862
  %v6865 = vshrl.u32 %v6670, 16
  %v6867 = vshll.u32 %v6670, 16
  %v6869 = vrot.slane %v6867, 1
  %v6870 = vor.u32 %v6865, %v6869
  %v6872 = vshrl.u32 %v6677, 16
  %v6874 = vshll.u32 %v6677, 16
  %v6876 = vrot.slane %v6874, 1
  %v6877 = vor.u32 %v6872, %v6876
  %v6879 = vshrl.u32 %v6684, 16
  %v6881 = vshll.u32 %v6684, 16
  %v6883 = vrot.slane %v6881, 1
  %v6884 = vor.u32 %v6879, %v6883
  %v6886 = vshrl.u32 %v6691, 16
  %v6888 = vshll.u32 %v6691, 16
  %v6890 = vrot.slane %v6888, 1
  %v6891 = vor.u32 %v6886, %v6890
  %v6893 = vshrl.u32 %v6698, 16
  %v6895 = vshll.u32 %v6698, 16
  %v6897 = vrot.slane %v6895, 1
  %v6898 = vor.u32 %v6893, %v6897
  %v6900 = vshrl.u32 %v6705, 16
  %v6902 = vshll.u32 %v6705, 16
  %v6904 = vrot.slane %v6902, 1
  %v6905 = vor.u32 %v6900, %v6904
  %6906 = vrot.lane.b32.xlu0 %v6856, 96
  %v6907 = vpop.permute.xlu0 %6906
  %6908 = vrot.lane.b32.xlu0 %v6863, 96
  %v6909 = vpop.permute.xlu0 %6908
  %6910 = vrot.lane.b32.xlu0 %v6870, 96
  %v6911 = vpop.permute.xlu0 %6910
  %6912 = vrot.lane.b32.xlu0 %v6877, 96
  %v6913 = vpop.permute.xlu0 %6912
  %6914 = vrot.lane.b32.xlu0 %v6884, 96
  %v6915 = vpop.permute.xlu0 %6914
  %6916 = vrot.lane.b32.xlu0 %v6891, 96
  %v6917 = vpop.permute.xlu0 %6916
  %6918 = vrot.lane.b32.xlu0 %v6898, 96
  %v6919 = vpop.permute.xlu0 %6918
  %6920 = vrot.lane.b32.xlu0 %v6905, 96
  %v6921 = vpop.permute.xlu0 %6920
  %vm6922 = vcmask 261120
  %v6925 = vsel %vm6922, %v4209, %v4915
  %v6928 = vsel %vm6922, %v4217, %v4917
  %v6931 = vsel %vm6922, %v4216, %v4919
  %v6934 = vsel %vm6922, %v4226, %v4921
  %v6937 = vsel %vm6922, %v4234, %v4923
  %v6940 = vsel %vm6922, %v4233, %v4925
  %v6943 = vsel %vm6922, %v4243, %v4927
  %v6946 = vsel %vm6922, %v4251, %v4929
  %v6949 = vsel %vm6922, %v4250, %v4931
  %v6952 = vsel %vm6922, %v4260, %v4933
  %v6955 = vsel %vm6922, %v4268, %v4935
  %v6958 = vsel %vm6922, %v4267, %v4937
  %v6961 = vsel %vm6922, %v4277, %v4939
  %v6964 = vsel %vm6922, %v4285, %v4941
  %v6967 = vsel %vm6922, %v4284, %v4943
  %v6970 = vsel %vm6922, %v4294, %v4945
  %v6973 = vsel %vm6922, %v4302, %v4947
  %v6976 = vsel %vm6922, %v4301, %v4949
  %v6979 = vsel %vm6922, %v4311, %v4951
  %v6982 = vsel %vm6922, %v4319, %v4953
  %v6985 = vsel %vm6922, %v4318, %v4955
  %v6988 = vsel %vm6922, %v4328, %v4957
  %v6991 = vsel %vm6922, %v4336, %v4959
  %v6994 = vsel %vm6922, %v4335, %v4961
  %v6996 = vsel %vm503, %v6925, %v5299
  %v6998 = vsel %vm503, %v6928, %v5301
  %v7000 = vsel %vm503, %v6931, %v5303
  %v7002 = vsel %vm503, %v6934, %v5305
  %v7004 = vsel %vm503, %v6937, %v5307
  %v7006 = vsel %vm503, %v6940, %v5309
  %v7008 = vsel %vm503, %v6943, %v5311
  %v7010 = vsel %vm503, %v6946, %v5313
  %v7012 = vsel %vm503, %v6949, %v5315
  %v7014 = vsel %vm503, %v6952, %v5317
  %v7016 = vsel %vm503, %v6955, %v5319
  %v7018 = vsel %vm503, %v6958, %v5321
  %v7020 = vsel %vm503, %v6961, %v5323
  %v7022 = vsel %vm503, %v6964, %v5325
  %v7024 = vsel %vm503, %v6967, %v5327
  %v7026 = vsel %vm503, %v6970, %v5329
  %v7028 = vsel %vm503, %v6973, %v5331
  %v7030 = vsel %vm503, %v6976, %v5333
  %v7032 = vsel %vm503, %v6979, %v5335
  %v7034 = vsel %vm503, %v6982, %v5337
  %v7036 = vsel %vm503, %v6985, %v5339
  %v7038 = vsel %vm503, %v6988, %v5341
  %v7040 = vsel %vm503, %v6991, %v5343
  %v7042 = vsel %vm503, %v6994, %v5345
  %vm7043 = vcmask 785408
  %v7045 = vsel %vm7043, %v6996, %v5515
  %v7047 = vsel %vm7043, %v6998, %v5517
  %v7049 = vsel %vm7043, %v7000, %v5519
  %v7051 = vsel %vm7043, %v7002, %v5521
  %v7053 = vsel %vm7043, %v7004, %v5523
  %v7055 = vsel %vm7043, %v7006, %v5525
  %v7057 = vsel %vm7043, %v7008, %v5527
  %v7059 = vsel %vm7043, %v7010, %v5529
  %v7061 = vsel %vm7043, %v7012, %v5531
  %v7063 = vsel %vm7043, %v7014, %v5533
  %v7065 = vsel %vm7043, %v7016, %v5535
  %v7067 = vsel %vm7043, %v7018, %v5537
  %v7069 = vsel %vm7043, %v7020, %v5539
  %v7071 = vsel %vm7043, %v7022, %v5541
  %v7073 = vsel %vm7043, %v7024, %v5543
  %v7075 = vsel %vm7043, %v7026, %v5545
  %v7077 = vsel %vm7043, %v7028, %v5547
  %v7079 = vsel %vm7043, %v7030, %v5549
  %v7081 = vsel %vm7043, %v7032, %v5551
  %v7083 = vsel %vm7043, %v7034, %v5553
  %v7085 = vsel %vm7043, %v7036, %v5555
  %v7087 = vsel %vm7043, %v7038, %v5557
  %v7089 = vsel %vm7043, %v7040, %v5559
  %v7091 = vsel %vm7043, %v7042, %v5561
  %v7094 = vsel %vm6922, %v4481, %v5731
  %v7097 = vsel %vm6922, %v4489, %v5733
  %v7100 = vsel %vm6922, %v4488, %v5735
  %v7103 = vsel %vm6922, %v4498, %v5737
  %v7106 = vsel %vm6922, %v4506, %v5739
  %v7109 = vsel %vm6922, %v4505, %v5741
  %v7112 = vsel %vm6922, %v4515, %v5743
  %v7115 = vsel %vm6922, %v4523, %v5745
  %v7118 = vsel %vm6922, %v4522, %v5747
  %v7121 = vsel %vm6922, %v4532, %v5749
  %v7124 = vsel %vm6922, %v4540, %v5751
  %v7127 = vsel %vm6922, %v4539, %v5753
  %v7130 = vsel %vm6922, %v4549, %v5755
  %v7133 = vsel %vm6922, %v4557, %v5757
  %v7136 = vsel %vm6922, %v4556, %v5759
  %v7139 = vsel %vm6922, %v4566, %v5761
  %v7142 = vsel %vm6922, %v4574, %v5763
  %v7145 = vsel %vm6922, %v4573, %v5765
  %v7148 = vsel %vm6922, %v4583, %v5767
  %v7151 = vsel %vm6922, %v4591, %v5769
  %v7154 = vsel %vm6922, %v4590, %v5771
  %v7157 = vsel %vm6922, %v4600, %v5773
  %v7160 = vsel %vm6922, %v4608, %v5775
  %v7163 = vsel %vm6922, %v4607, %v5777
  %v7165 = vsel %vm503, %v7094, %v6115
  %v7167 = vsel %vm503, %v7097, %v6117
  %v7169 = vsel %vm503, %v7100, %v6119
  %v7171 = vsel %vm503, %v7103, %v6121
  %v7173 = vsel %vm503, %v7106, %v6123
  %v7175 = vsel %vm503, %v7109, %v6125
  %v7177 = vsel %vm503, %v7112, %v6127
  %v7179 = vsel %vm503, %v7115, %v6129
  %v7181 = vsel %vm503, %v7118, %v6131
  %v7183 = vsel %vm503, %v7121, %v6133
  %v7185 = vsel %vm503, %v7124, %v6135
  %v7187 = vsel %vm503, %v7127, %v6137
  %v7189 = vsel %vm503, %v7130, %v6139
  %v7191 = vsel %vm503, %v7133, %v6141
  %v7193 = vsel %vm503, %v7136, %v6143
  %v7195 = vsel %vm503, %v7139, %v6145
  %v7197 = vsel %vm503, %v7142, %v6147
  %v7199 = vsel %vm503, %v7145, %v6149
  %v7201 = vsel %vm503, %v7148, %v6151
  %v7203 = vsel %vm503, %v7151, %v6153
  %v7205 = vsel %vm503, %v7154, %v6155
  %v7207 = vsel %vm503, %v7157, %v6157
  %v7209 = vsel %vm503, %v7160, %v6159
  %v7211 = vsel %vm503, %v7163, %v6161
  %v7213 = vsel %vm7043, %v7165, %v6331
  %v7215 = vsel %vm7043, %v7167, %v6333
  %v7217 = vsel %vm7043, %v7169, %v6335
  %v7219 = vsel %vm7043, %v7171, %v6337
  %v7221 = vsel %vm7043, %v7173, %v6339
  %v7223 = vsel %vm7043, %v7175, %v6341
  %v7225 = vsel %vm7043, %v7177, %v6343
  %v7227 = vsel %vm7043, %v7179, %v6345
  %v7229 = vsel %vm7043, %v7181, %v6347
  %v7231 = vsel %vm7043, %v7183, %v6349
  %v7233 = vsel %vm7043, %v7185, %v6351
  %v7235 = vsel %vm7043, %v7187, %v6353
  %v7237 = vsel %vm7043, %v7189, %v6355
  %v7239 = vsel %vm7043, %v7191, %v6357
  %v7241 = vsel %vm7043, %v7193, %v6359
  %v7243 = vsel %vm7043, %v7195, %v6361
  %v7245 = vsel %vm7043, %v7197, %v6363
  %v7247 = vsel %vm7043, %v7199, %v6365
  %v7249 = vsel %vm7043, %v7201, %v6367
  %v7251 = vsel %vm7043, %v7203, %v6369
  %v7253 = vsel %vm7043, %v7205, %v6371
  %v7255 = vsel %vm7043, %v7207, %v6373
  %v7257 = vsel %vm7043, %v7209, %v6375
  %v7259 = vsel %vm7043, %v7211, %v6377
  %v7262 = vsel %vm6922, %v4218, %v6435
  %v7265 = vsel %vm6922, %v4235, %v6437
  %v7268 = vsel %vm6922, %v4252, %v6439
  %v7271 = vsel %vm6922, %v4269, %v6441
  %v7274 = vsel %vm6922, %v4286, %v6443
  %v7277 = vsel %vm6922, %v4303, %v6445
  %v7280 = vsel %vm6922, %v4320, %v6447
  %v7283 = vsel %vm6922, %v4337, %v6449
  %v7285 = vsel %vm503, %v7262, %v6563
  %v7287 = vsel %vm503, %v7265, %v6565
  %v7289 = vsel %vm503, %v7268, %v6567
  %v7291 = vsel %vm503, %v7271, %v6569
  %v7293 = vsel %vm503, %v7274, %v6571
  %v7295 = vsel %vm503, %v7277, %v6573
  %v7297 = vsel %vm503, %v7280, %v6575
  %v7299 = vsel %vm503, %v7283, %v6577
  %v7301 = vsel %vm7043, %v7285, %v6635
  %v7303 = vsel %vm7043, %v7287, %v6637
  %v7305 = vsel %vm7043, %v7289, %v6639
  %v7307 = vsel %vm7043, %v7291, %v6641
  %v7309 = vsel %vm7043, %v7293, %v6643
  %v7311 = vsel %vm7043, %v7295, %v6645
  %v7313 = vsel %vm7043, %v7297, %v6647
  %v7315 = vsel %vm7043, %v7299, %v6649
  %v7318 = vsel %vm6922, %v4490, %v6707
  %v7321 = vsel %vm6922, %v4507, %v6709
  %v7324 = vsel %vm6922, %v4524, %v6711
  %v7327 = vsel %vm6922, %v4541, %v6713
  %v7330 = vsel %vm6922, %v4558, %v6715
  %v7333 = vsel %vm6922, %v4575, %v6717
  %v7336 = vsel %vm6922, %v4592, %v6719
  %v7339 = vsel %vm6922, %v4609, %v6721
  %v7341 = vsel %vm503, %v7318, %v6835
  %v7343 = vsel %vm503, %v7321, %v6837
  %v7345 = vsel %vm503, %v7324, %v6839
  %v7347 = vsel %vm503, %v7327, %v6841
  %v7349 = vsel %vm503, %v7330, %v6843
  %v7351 = vsel %vm503, %v7333, %v6845
  %v7353 = vsel %vm503, %v7336, %v6847
  %v7355 = vsel %vm503, %v7339, %v6849
  %v7357 = vsel %vm7043, %v7341, %v6907
  %v7359 = vsel %vm7043, %v7343, %v6909
  %v7361 = vsel %vm7043, %v7345, %v6911
  %v7363 = vsel %vm7043, %v7347, %v6913
  %v7365 = vsel %vm7043, %v7349, %v6915
  %v7367 = vsel %vm7043, %v7351, %v6917
  %v7369 = vsel %vm7043, %v7353, %v6919
  %v7371 = vsel %vm7043, %v7355, %v6921
  %v7436 = vcombine.low %v7045, %v7213
  %v7437 = vcombine.low %v7047, %v7215
  %v7439 = vunpack.c.l.s4 1966171168
  %v7440 = vunpack.c.0.s8 %v7439
  %v7441 = vlaneseq
  %v7442 = vshrl.u32 %v7441, 7
  %v7443 = vsub.s32 %v7440, %v7442
  %v7444 = vrot.slane %v7436, %v7443
  %v7446 = vunpack.c.l.s4 1966171168
  %v7447 = vunpack.c.0.s8 %v7446
  %v7448 = vlaneseq
  %v7449 = vshrl.u32 %v7448, 7
  %v7450 = vsub.s32 %v7447, %v7449
  %v7451 = vrot.slane %v7437, %v7450
  %v7452 = vcombine.low %v7444, %v7451
  %v7453 = vcombine.high %v7444, %v7451
  %v7455 = vunpack.c.l.s4 1966171168
  %v7456 = vunpack.c.0.s8 %v7455
  %v7457 = vlaneseq
  %v7458 = vshrl.u32 %v7457, 7
  %v7459 = vsub.s32 %v7456, %v7458
  %v7460 = vrot.slane %v7452, %v7459
  %v7462 = vunpack.c.l.s4 1966171168
  %v7463 = vunpack.c.0.s8 %v7462
  %v7464 = vlaneseq
  %v7465 = vshrl.u32 %v7464, 7
  %v7466 = vsub.s32 %v7463, %v7465
  %v7467 = vrot.slane %v7453, %v7466
  %v7468 = vcombine.low %v7049, %v7217
  %v7470 = vunpack.c.l.s4 1966171168
  %v7471 = vunpack.c.0.s8 %v7470
  %v7472 = vlaneseq
  %v7473 = vshrl.u32 %v7472, 7
  %v7474 = vsub.s32 %v7471, %v7473
  %v7475 = vrot.slane %v7468, %v7474
  %v7476 = vcombine.low %v7451, %v7475
  %v7477 = vcombine.high %v7451, %v7475
  %v7479 = vunpack.c.l.s4 1966171168
  %v7480 = vunpack.c.0.s8 %v7479
  %v7481 = vlaneseq
  %v7482 = vshrl.u32 %v7481, 7
  %v7483 = vsub.s32 %v7480, %v7482
  %v7484 = vrot.slane %v7476, %v7483
  %v7486 = vunpack.c.l.s4 1966171168
  %v7487 = vunpack.c.0.s8 %v7486
  %v7488 = vlaneseq
  %v7489 = vshrl.u32 %v7488, 7
  %v7490 = vsub.s32 %v7487, %v7489
  %v7491 = vrot.slane %v7477, %v7490
  %v7492 = vcombine.low %v7301, %v7357
  %v7494 = vunpack.c.l.s4 1966171168
  %v7495 = vunpack.c.0.s8 %v7494
  %v7496 = vlaneseq
  %v7497 = vshrl.u32 %v7496, 7
  %v7498 = vsub.s32 %v7495, %v7497
  %v7499 = vrot.slane %v7492, %v7498
  %v7500 = vcombine.low %v7475, %v7499
  %v7501 = vcombine.high %v7475, %v7499
  %v7503 = vunpack.c.l.s4 1966171168
  %v7504 = vunpack.c.0.s8 %v7503
  %v7505 = vlaneseq
  %v7506 = vshrl.u32 %v7505, 7
  %v7507 = vsub.s32 %v7504, %v7506
  %v7508 = vrot.slane %v7500, %v7507
  %v7510 = vunpack.c.l.s4 1966171168
  %v7511 = vunpack.c.0.s8 %v7510
  %v7512 = vlaneseq
  %v7513 = vshrl.u32 %v7512, 7
  %v7514 = vsub.s32 %v7511, %v7513
  %v7515 = vrot.slane %v7501, %v7514
  %v7516 = vcombine.low %v7051, %v7219
  %v7517 = vcombine.low %v7053, %v7221
  %v7519 = vunpack.c.l.s4 1966171168
  %v7520 = vunpack.c.0.s8 %v7519
  %v7521 = vlaneseq
  %v7522 = vshrl.u32 %v7521, 7
  %v7523 = vsub.s32 %v7520, %v7522
  %v7524 = vrot.slane %v7516, %v7523
  %v7526 = vunpack.c.l.s4 1966171168
  %v7527 = vunpack.c.0.s8 %v7526
  %v7528 = vlaneseq
  %v7529 = vshrl.u32 %v7528, 7
  %v7530 = vsub.s32 %v7527, %v7529
  %v7531 = vrot.slane %v7517, %v7530
  %v7532 = vcombine.low %v7524, %v7531
  %v7533 = vcombine.high %v7524, %v7531
  %v7535 = vunpack.c.l.s4 1966171168
  %v7536 = vunpack.c.0.s8 %v7535
  %v7537 = vlaneseq
  %v7538 = vshrl.u32 %v7537, 7
  %v7539 = vsub.s32 %v7536, %v7538
  %v7540 = vrot.slane %v7532, %v7539
  %v7542 = vunpack.c.l.s4 1966171168
  %v7543 = vunpack.c.0.s8 %v7542
  %v7544 = vlaneseq
  %v7545 = vshrl.u32 %v7544, 7
  %v7546 = vsub.s32 %v7543, %v7545
  %v7547 = vrot.slane %v7533, %v7546
  %v7548 = vcombine.low %v7055, %v7223
  %v7550 = vunpack.c.l.s4 1966171168
  %v7551 = vunpack.c.0.s8 %v7550
  %v7552 = vlaneseq
  %v7553 = vshrl.u32 %v7552, 7
  %v7554 = vsub.s32 %v7551, %v7553
  %v7555 = vrot.slane %v7548, %v7554
  %v7556 = vcombine.low %v7531, %v7555
  %v7557 = vcombine.high %v7531, %v7555
  %v7559 = vunpack.c.l.s4 1966171168
  %v7560 = vunpack.c.0.s8 %v7559
  %v7561 = vlaneseq
  %v7562 = vshrl.u32 %v7561, 7
  %v7563 = vsub.s32 %v7560, %v7562
  %v7564 = vrot.slane %v7556, %v7563
  %v7566 = vunpack.c.l.s4 1966171168
  %v7567 = vunpack.c.0.s8 %v7566
  %v7568 = vlaneseq
  %v7569 = vshrl.u32 %v7568, 7
  %v7570 = vsub.s32 %v7567, %v7569
  %v7571 = vrot.slane %v7557, %v7570
  %v7572 = vcombine.low %v7303, %v7359
  %v7574 = vunpack.c.l.s4 1966171168
  %v7575 = vunpack.c.0.s8 %v7574
  %v7576 = vlaneseq
  %v7577 = vshrl.u32 %v7576, 7
  %v7578 = vsub.s32 %v7575, %v7577
  %v7579 = vrot.slane %v7572, %v7578
  %v7580 = vcombine.low %v7555, %v7579
  %v7581 = vcombine.high %v7555, %v7579
  %v7583 = vunpack.c.l.s4 1966171168
  %v7584 = vunpack.c.0.s8 %v7583
  %v7585 = vlaneseq
  %v7586 = vshrl.u32 %v7585, 7
  %v7587 = vsub.s32 %v7584, %v7586
  %v7588 = vrot.slane %v7580, %v7587
  %v7590 = vunpack.c.l.s4 1966171168
  %v7591 = vunpack.c.0.s8 %v7590
  %v7592 = vlaneseq
  %v7593 = vshrl.u32 %v7592, 7
  %v7594 = vsub.s32 %v7591, %v7593
  %v7595 = vrot.slane %v7581, %v7594
  %v7596 = vcombine.low %v7057, %v7225
  %v7597 = vcombine.low %v7059, %v7227
  %v7599 = vunpack.c.l.s4 1966171168
  %v7600 = vunpack.c.0.s8 %v7599
  %v7601 = vlaneseq
  %v7602 = vshrl.u32 %v7601, 7
  %v7603 = vsub.s32 %v7600, %v7602
  %v7604 = vrot.slane %v7596, %v7603
  %v7606 = vunpack.c.l.s4 1966171168
  %v7607 = vunpack.c.0.s8 %v7606
  %v7608 = vlaneseq
  %v7609 = vshrl.u32 %v7608, 7
  %v7610 = vsub.s32 %v7607, %v7609
  %v7611 = vrot.slane %v7597, %v7610
  %v7612 = vcombine.low %v7604, %v7611
  %v7613 = vcombine.high %v7604, %v7611
  %v7615 = vunpack.c.l.s4 1966171168
  %v7616 = vunpack.c.0.s8 %v7615
  %v7617 = vlaneseq
  %v7618 = vshrl.u32 %v7617, 7
  %v7619 = vsub.s32 %v7616, %v7618
  %v7620 = vrot.slane %v7612, %v7619
  %v7622 = vunpack.c.l.s4 1966171168
  %v7623 = vunpack.c.0.s8 %v7622
  %v7624 = vlaneseq
  %v7625 = vshrl.u32 %v7624, 7
  %v7626 = vsub.s32 %v7623, %v7625
  %v7627 = vrot.slane %v7613, %v7626
  %v7628 = vcombine.low %v7061, %v7229
  %v7630 = vunpack.c.l.s4 1966171168
  %v7631 = vunpack.c.0.s8 %v7630
  %v7632 = vlaneseq
  %v7633 = vshrl.u32 %v7632, 7
  %v7634 = vsub.s32 %v7631, %v7633
  %v7635 = vrot.slane %v7628, %v7634
  %v7636 = vcombine.low %v7611, %v7635
  %v7637 = vcombine.high %v7611, %v7635
  %v7639 = vunpack.c.l.s4 1966171168
  %v7640 = vunpack.c.0.s8 %v7639
  %v7641 = vlaneseq
  %v7642 = vshrl.u32 %v7641, 7
  %v7643 = vsub.s32 %v7640, %v7642
  %v7644 = vrot.slane %v7636, %v7643
  %v7646 = vunpack.c.l.s4 1966171168
  %v7647 = vunpack.c.0.s8 %v7646
  %v7648 = vlaneseq
  %v7649 = vshrl.u32 %v7648, 7
  %v7650 = vsub.s32 %v7647, %v7649
  %v7651 = vrot.slane %v7637, %v7650
  %v7652 = vcombine.low %v7305, %v7361
  %v7654 = vunpack.c.l.s4 1966171168
  %v7655 = vunpack.c.0.s8 %v7654
  %v7656 = vlaneseq
  %v7657 = vshrl.u32 %v7656, 7
  %v7658 = vsub.s32 %v7655, %v7657
  %v7659 = vrot.slane %v7652, %v7658
  %v7660 = vcombine.low %v7635, %v7659
  %v7661 = vcombine.high %v7635, %v7659
  %v7663 = vunpack.c.l.s4 1966171168
  %v7664 = vunpack.c.0.s8 %v7663
  %v7665 = vlaneseq
  %v7666 = vshrl.u32 %v7665, 7
  %v7667 = vsub.s32 %v7664, %v7666
  %v7668 = vrot.slane %v7660, %v7667
  %v7670 = vunpack.c.l.s4 1966171168
  %v7671 = vunpack.c.0.s8 %v7670
  %v7672 = vlaneseq
  %v7673 = vshrl.u32 %v7672, 7
  %v7674 = vsub.s32 %v7671, %v7673
  %v7675 = vrot.slane %v7661, %v7674
  %v7676 = vcombine.low %v7063, %v7231
  %v7677 = vcombine.low %v7065, %v7233
  %v7679 = vunpack.c.l.s4 1966171168
  %v7680 = vunpack.c.0.s8 %v7679
  %v7681 = vlaneseq
  %v7682 = vshrl.u32 %v7681, 7
  %v7683 = vsub.s32 %v7680, %v7682
  %v7684 = vrot.slane %v7676, %v7683
  %v7686 = vunpack.c.l.s4 1966171168
  %v7687 = vunpack.c.0.s8 %v7686
  %v7688 = vlaneseq
  %v7689 = vshrl.u32 %v7688, 7
  %v7690 = vsub.s32 %v7687, %v7689
  %v7691 = vrot.slane %v7677, %v7690
  %v7692 = vcombine.low %v7684, %v7691
  %v7693 = vcombine.high %v7684, %v7691
  %v7695 = vunpack.c.l.s4 1966171168
  %v7696 = vunpack.c.0.s8 %v7695
  %v7697 = vlaneseq
  %v7698 = vshrl.u32 %v7697, 7
  %v7699 = vsub.s32 %v7696, %v7698
  %v7700 = vrot.slane %v7692, %v7699
  %v7702 = vunpack.c.l.s4 1966171168
  %v7703 = vunpack.c.0.s8 %v7702
  %v7704 = vlaneseq
  %v7705 = vshrl.u32 %v7704, 7
  %v7706 = vsub.s32 %v7703, %v7705
  %v7707 = vrot.slane %v7693, %v7706
  %v7708 = vcombine.low %v7067, %v7235
  %v7710 = vunpack.c.l.s4 1966171168
  %v7711 = vunpack.c.0.s8 %v7710
  %v7712 = vlaneseq
  %v7713 = vshrl.u32 %v7712, 7
  %v7714 = vsub.s32 %v7711, %v7713
  %v7715 = vrot.slane %v7708, %v7714
  %v7716 = vcombine.low %v7691, %v7715
  %v7717 = vcombine.high %v7691, %v7715
  %v7719 = vunpack.c.l.s4 1966171168
  %v7720 = vunpack.c.0.s8 %v7719
  %v7721 = vlaneseq
  %v7722 = vshrl.u32 %v7721, 7
  %v7723 = vsub.s32 %v7720, %v7722
  %v7724 = vrot.slane %v7716, %v7723
  %v7726 = vunpack.c.l.s4 1966171168
  %v7727 = vunpack.c.0.s8 %v7726
  %v7728 = vlaneseq
  %v7729 = vshrl.u32 %v7728, 7
  %v7730 = vsub.s32 %v7727, %v7729
  %v7731 = vrot.slane %v7717, %v7730
  %v7732 = vcombine.low %v7307, %v7363
  %v7734 = vunpack.c.l.s4 1966171168
  %v7735 = vunpack.c.0.s8 %v7734
  %v7736 = vlaneseq
  %v7737 = vshrl.u32 %v7736, 7
  %v7738 = vsub.s32 %v7735, %v7737
  %v7739 = vrot.slane %v7732, %v7738
  %v7740 = vcombine.low %v7715, %v7739
  %v7741 = vcombine.high %v7715, %v7739
  %v7743 = vunpack.c.l.s4 1966171168
  %v7744 = vunpack.c.0.s8 %v7743
  %v7745 = vlaneseq
  %v7746 = vshrl.u32 %v7745, 7
  %v7747 = vsub.s32 %v7744, %v7746
  %v7748 = vrot.slane %v7740, %v7747
  %v7750 = vunpack.c.l.s4 1966171168
  %v7751 = vunpack.c.0.s8 %v7750
  %v7752 = vlaneseq
  %v7753 = vshrl.u32 %v7752, 7
  %v7754 = vsub.s32 %v7751, %v7753
  %v7755 = vrot.slane %v7741, %v7754
  %v7756 = vcombine.low %v7069, %v7237
  %v7757 = vcombine.low %v7071, %v7239
  %v7759 = vunpack.c.l.s4 1966171168
  %v7760 = vunpack.c.0.s8 %v7759
  %v7761 = vlaneseq
  %v7762 = vshrl.u32 %v7761, 7
  %v7763 = vsub.s32 %v7760, %v7762
  %v7764 = vrot.slane %v7756, %v7763
  %v7766 = vunpack.c.l.s4 1966171168
  %v7767 = vunpack.c.0.s8 %v7766
  %v7768 = vlaneseq
  %v7769 = vshrl.u32 %v7768, 7
  %v7770 = vsub.s32 %v7767, %v7769
  %v7771 = vrot.slane %v7757, %v7770
  %v7772 = vcombine.low %v7764, %v7771
  %v7773 = vcombine.high %v7764, %v7771
  %v7775 = vunpack.c.l.s4 1966171168
  %v7776 = vunpack.c.0.s8 %v7775
  %v7777 = vlaneseq
  %v7778 = vshrl.u32 %v7777, 7
  %v7779 = vsub.s32 %v7776, %v7778
  %v7780 = vrot.slane %v7772, %v7779
  %v7782 = vunpack.c.l.s4 1966171168
  %v7783 = vunpack.c.0.s8 %v7782
  %v7784 = vlaneseq
  %v7785 = vshrl.u32 %v7784, 7
  %v7786 = vsub.s32 %v7783, %v7785
  %v7787 = vrot.slane %v7773, %v7786
  %v7788 = vcombine.low %v7073, %v7241
  %v7790 = vunpack.c.l.s4 1966171168
  %v7791 = vunpack.c.0.s8 %v7790
  %v7792 = vlaneseq
  %v7793 = vshrl.u32 %v7792, 7
  %v7794 = vsub.s32 %v7791, %v7793
  %v7795 = vrot.slane %v7788, %v7794
  %v7796 = vcombine.low %v7771, %v7795
  %v7797 = vcombine.high %v7771, %v7795
  %v7799 = vunpack.c.l.s4 1966171168
  %v7800 = vunpack.c.0.s8 %v7799
  %v7801 = vlaneseq
  %v7802 = vshrl.u32 %v7801, 7
  %v7803 = vsub.s32 %v7800, %v7802
  %v7804 = vrot.slane %v7796, %v7803
  %v7806 = vunpack.c.l.s4 1966171168
  %v7807 = vunpack.c.0.s8 %v7806
  %v7808 = vlaneseq
  %v7809 = vshrl.u32 %v7808, 7
  %v7810 = vsub.s32 %v7807, %v7809
  %v7811 = vrot.slane %v7797, %v7810
  %v7812 = vcombine.low %v7309, %v7365
  %v7814 = vunpack.c.l.s4 1966171168
  %v7815 = vunpack.c.0.s8 %v7814
  %v7816 = vlaneseq
  %v7817 = vshrl.u32 %v7816, 7
  %v7818 = vsub.s32 %v7815, %v7817
  %v7819 = vrot.slane %v7812, %v7818
  %v7820 = vcombine.low %v7795, %v7819
  %v7821 = vcombine.high %v7795, %v7819
  %v7823 = vunpack.c.l.s4 1966171168
  %v7824 = vunpack.c.0.s8 %v7823
  %v7825 = vlaneseq
  %v7826 = vshrl.u32 %v7825, 7
  %v7827 = vsub.s32 %v7824, %v7826
  %v7828 = vrot.slane %v7820, %v7827
  %v7830 = vunpack.c.l.s4 1966171168
  %v7831 = vunpack.c.0.s8 %v7830
  %v7832 = vlaneseq
  %v7833 = vshrl.u32 %v7832, 7
  %v7834 = vsub.s32 %v7831, %v7833
  %v7835 = vrot.slane %v7821, %v7834
  %v7836 = vcombine.low %v7075, %v7243
  %v7837 = vcombine.low %v7077, %v7245
  %v7839 = vunpack.c.l.s4 1966171168
  %v7840 = vunpack.c.0.s8 %v7839
  %v7841 = vlaneseq
  %v7842 = vshrl.u32 %v7841, 7
  %v7843 = vsub.s32 %v7840, %v7842
  %v7844 = vrot.slane %v7836, %v7843
  %v7846 = vunpack.c.l.s4 1966171168
  %v7847 = vunpack.c.0.s8 %v7846
  %v7848 = vlaneseq
  %v7849 = vshrl.u32 %v7848, 7
  %v7850 = vsub.s32 %v7847, %v7849
  %v7851 = vrot.slane %v7837, %v7850
  %v7852 = vcombine.low %v7844, %v7851
  %v7853 = vcombine.high %v7844, %v7851
  %v7855 = vunpack.c.l.s4 1966171168
  %v7856 = vunpack.c.0.s8 %v7855
  %v7857 = vlaneseq
  %v7858 = vshrl.u32 %v7857, 7
  %v7859 = vsub.s32 %v7856, %v7858
  %v7860 = vrot.slane %v7852, %v7859
  %v7862 = vunpack.c.l.s4 1966171168
  %v7863 = vunpack.c.0.s8 %v7862
  %v7864 = vlaneseq
  %v7865 = vshrl.u32 %v7864, 7
  %v7866 = vsub.s32 %v7863, %v7865
  %v7867 = vrot.slane %v7853, %v7866
  %v7868 = vcombine.low %v7079, %v7247
  %v7870 = vunpack.c.l.s4 1966171168
  %v7871 = vunpack.c.0.s8 %v7870
  %v7872 = vlaneseq
  %v7873 = vshrl.u32 %v7872, 7
  %v7874 = vsub.s32 %v7871, %v7873
  %v7875 = vrot.slane %v7868, %v7874
  %v7876 = vcombine.low %v7851, %v7875
  %v7877 = vcombine.high %v7851, %v7875
  %v7879 = vunpack.c.l.s4 1966171168
  %v7880 = vunpack.c.0.s8 %v7879
  %v7881 = vlaneseq
  %v7882 = vshrl.u32 %v7881, 7
  %v7883 = vsub.s32 %v7880, %v7882
  %v7884 = vrot.slane %v7876, %v7883
  %v7886 = vunpack.c.l.s4 1966171168
  %v7887 = vunpack.c.0.s8 %v7886
  %v7888 = vlaneseq
  %v7889 = vshrl.u32 %v7888, 7
  %v7890 = vsub.s32 %v7887, %v7889
  %v7891 = vrot.slane %v7877, %v7890
  %v7892 = vcombine.low %v7311, %v7367
  %v7894 = vunpack.c.l.s4 1966171168
  %v7895 = vunpack.c.0.s8 %v7894
  %v7896 = vlaneseq
  %v7897 = vshrl.u32 %v7896, 7
  %v7898 = vsub.s32 %v7895, %v7897
  %v7899 = vrot.slane %v7892, %v7898
  %v7900 = vcombine.low %v7875, %v7899
  %v7901 = vcombine.high %v7875, %v7899
  %v7903 = vunpack.c.l.s4 1966171168
  %v7904 = vunpack.c.0.s8 %v7903
  %v7905 = vlaneseq
  %v7906 = vshrl.u32 %v7905, 7
  %v7907 = vsub.s32 %v7904, %v7906
  %v7908 = vrot.slane %v7900, %v7907
  %v7910 = vunpack.c.l.s4 1966171168
  %v7911 = vunpack.c.0.s8 %v7910
  %v7912 = vlaneseq
  %v7913 = vshrl.u32 %v7912, 7
  %v7914 = vsub.s32 %v7911, %v7913
  %v7915 = vrot.slane %v7901, %v7914
  %v7916 = vcombine.low %v7081, %v7249
  %v7917 = vcombine.low %v7083, %v7251
  %v7919 = vunpack.c.l.s4 1966171168
  %v7920 = vunpack.c.0.s8 %v7919
  %v7921 = vlaneseq
  %v7922 = vshrl.u32 %v7921, 7
  %v7923 = vsub.s32 %v7920, %v7922
  %v7924 = vrot.slane %v7916, %v7923
  %v7926 = vunpack.c.l.s4 1966171168
  %v7927 = vunpack.c.0.s8 %v7926
  %v7928 = vlaneseq
  %v7929 = vshrl.u32 %v7928, 7
  %v7930 = vsub.s32 %v7927, %v7929
  %v7931 = vrot.slane %v7917, %v7930
  %v7932 = vcombine.low %v7924, %v7931
  %v7933 = vcombine.high %v7924, %v7931
  %v7935 = vunpack.c.l.s4 1966171168
  %v7936 = vunpack.c.0.s8 %v7935
  %v7937 = vlaneseq
  %v7938 = vshrl.u32 %v7937, 7
  %v7939 = vsub.s32 %v7936, %v7938
  %v7940 = vrot.slane %v7932, %v7939
  %v7942 = vunpack.c.l.s4 1966171168
  %v7943 = vunpack.c.0.s8 %v7942
  %v7944 = vlaneseq
  %v7945 = vshrl.u32 %v7944, 7
  %v7946 = vsub.s32 %v7943, %v7945
  %v7947 = vrot.slane %v7933, %v7946
  %v7948 = vcombine.low %v7085, %v7253
  %v7950 = vunpack.c.l.s4 1966171168
  %v7951 = vunpack.c.0.s8 %v7950
  %v7952 = vlaneseq
  %v7953 = vshrl.u32 %v7952, 7
  %v7954 = vsub.s32 %v7951, %v7953
  %v7955 = vrot.slane %v7948, %v7954
  %v7956 = vcombine.low %v7931, %v7955
  %v7957 = vcombine.high %v7931, %v7955
  %v7959 = vunpack.c.l.s4 1966171168
  %v7960 = vunpack.c.0.s8 %v7959
  %v7961 = vlaneseq
  %v7962 = vshrl.u32 %v7961, 7
  %v7963 = vsub.s32 %v7960, %v7962
  %v7964 = vrot.slane %v7956, %v7963
  %v7966 = vunpack.c.l.s4 1966171168
  %v7967 = vunpack.c.0.s8 %v7966
  %v7968 = vlaneseq
  %v7969 = vshrl.u32 %v7968, 7
  %v7970 = vsub.s32 %v7967, %v7969
  %v7971 = vrot.slane %v7957, %v7970
  %v7972 = vcombine.low %v7313, %v7369
  %v7974 = vunpack.c.l.s4 1966171168
  %v7975 = vunpack.c.0.s8 %v7974
  %v7976 = vlaneseq
  %v7977 = vshrl.u32 %v7976, 7
  %v7978 = vsub.s32 %v7975, %v7977
  %v7979 = vrot.slane %v7972, %v7978
  %v7980 = vcombine.low %v7955, %v7979
  %v7981 = vcombine.high %v7955, %v7979
  %v7983 = vunpack.c.l.s4 1966171168
  %v7984 = vunpack.c.0.s8 %v7983
  %v7985 = vlaneseq
  %v7986 = vshrl.u32 %v7985, 7
  %v7987 = vsub.s32 %v7984, %v7986
  %v7988 = vrot.slane %v7980, %v7987
  %v7990 = vunpack.c.l.s4 1966171168
  %v7991 = vunpack.c.0.s8 %v7990
  %v7992 = vlaneseq
  %v7993 = vshrl.u32 %v7992, 7
  %v7994 = vsub.s32 %v7991, %v7993
  %v7995 = vrot.slane %v7981, %v7994
  %v7996 = vcombine.low %v7087, %v7255
  %v7997 = vcombine.low %v7089, %v7257
  %v7999 = vunpack.c.l.s4 1966171168
  %v8000 = vunpack.c.0.s8 %v7999
  %v8001 = vlaneseq
  %v8002 = vshrl.u32 %v8001, 7
  %v8003 = vsub.s32 %v8000, %v8002
  %v8004 = vrot.slane %v7996, %v8003
  %v8006 = vunpack.c.l.s4 1966171168
  %v8007 = vunpack.c.0.s8 %v8006
  %v8008 = vlaneseq
  %v8009 = vshrl.u32 %v8008, 7
  %v8010 = vsub.s32 %v8007, %v8009
  %v8011 = vrot.slane %v7997, %v8010
  %v8012 = vcombine.low %v8004, %v8011
  %v8013 = vcombine.high %v8004, %v8011
  %v8015 = vunpack.c.l.s4 1966171168
  %v8016 = vunpack.c.0.s8 %v8015
  %v8017 = vlaneseq
  %v8018 = vshrl.u32 %v8017, 7
  %v8019 = vsub.s32 %v8016, %v8018
  %v8020 = vrot.slane %v8012, %v8019
  %v8022 = vunpack.c.l.s4 1966171168
  %v8023 = vunpack.c.0.s8 %v8022
  %v8024 = vlaneseq
  %v8025 = vshrl.u32 %v8024, 7
  %v8026 = vsub.s32 %v8023, %v8025
  %v8027 = vrot.slane %v8013, %v8026
  %v8028 = vcombine.low %v7091, %v7259
  %v8030 = vunpack.c.l.s4 1966171168
  %v8031 = vunpack.c.0.s8 %v8030
  %v8032 = vlaneseq
  %v8033 = vshrl.u32 %v8032, 7
  %v8034 = vsub.s32 %v8031, %v8033
  %v8035 = vrot.slane %v8028, %v8034
  %v8036 = vcombine.low %v8011, %v8035
  %v8037 = vcombine.high %v8011, %v8035
  %v8039 = vunpack.c.l.s4 1966171168
  %v8040 = vunpack.c.0.s8 %v8039
  %v8041 = vlaneseq
  %v8042 = vshrl.u32 %v8041, 7
  %v8043 = vsub.s32 %v8040, %v8042
  %v8044 = vrot.slane %v8036, %v8043
  %v8046 = vunpack.c.l.s4 1966171168
  %v8047 = vunpack.c.0.s8 %v8046
  %v8048 = vlaneseq
  %v8049 = vshrl.u32 %v8048, 7
  %v8050 = vsub.s32 %v8047, %v8049
  %v8051 = vrot.slane %v8037, %v8050
  %v8052 = vcombine.low %v7315, %v7371
  %v8054 = vunpack.c.l.s4 1966171168
  %v8055 = vunpack.c.0.s8 %v8054
  %v8056 = vlaneseq
  %v8057 = vshrl.u32 %v8056, 7
  %v8058 = vsub.s32 %v8055, %v8057
  %v8059 = vrot.slane %v8052, %v8058
  %v8060 = vcombine.low %v8035, %v8059
  %v8061 = vcombine.high %v8035, %v8059
  %v8063 = vunpack.c.l.s4 1966171168
  %v8064 = vunpack.c.0.s8 %v8063
  %v8065 = vlaneseq
  %v8066 = vshrl.u32 %v8065, 7
  %v8067 = vsub.s32 %v8064, %v8066
  %v8068 = vrot.slane %v8060, %v8067
  %v8070 = vunpack.c.l.s4 1966171168
  %v8071 = vunpack.c.0.s8 %v8070
  %v8072 = vlaneseq
  %v8073 = vshrl.u32 %v8072, 7
  %v8074 = vsub.s32 %v8071, %v8073
  %v8075 = vrot.slane %v8061, %v8074
  %v8076 = vunpack.i.l.s16 %v7460
  %v8077 = vunpack.i.h.s16 %v7460
  %v8078 = vunpack.i.l.s16 %v7467
  %v8079 = vunpack.i.l.s16 %v7484
  %v8080 = vunpack.i.h.s16 %v7484
  %v8081 = vunpack.i.l.s16 %v7491
  %v8082 = vunpack.i.l.s16 %v7508
  %v8083 = vunpack.i.h.s16 %v7508
  %v8084 = vunpack.i.l.s16 %v7515
  %v8085 = vunpack.i.l.s16 %v7540
  %v8086 = vunpack.i.h.s16 %v7540
  %v8087 = vunpack.i.l.s16 %v7547
  %v8088 = vunpack.i.l.s16 %v7564
  %v8089 = vunpack.i.h.s16 %v7564
  %v8090 = vunpack.i.l.s16 %v7571
  %v8091 = vunpack.i.l.s16 %v7588
  %v8092 = vunpack.i.h.s16 %v7588
  %v8093 = vunpack.i.l.s16 %v7595
  %v8094 = vunpack.i.l.s16 %v7620
  %v8095 = vunpack.i.h.s16 %v7620
  %v8096 = vunpack.i.l.s16 %v7627
  %v8097 = vunpack.i.l.s16 %v7644
  %v8098 = vunpack.i.h.s16 %v7644
  %v8099 = vunpack.i.l.s16 %v7651
  %v8100 = vunpack.i.l.s16 %v7668
  %v8101 = vunpack.i.h.s16 %v7668
  %v8102 = vunpack.i.l.s16 %v7675
  %v8103 = vunpack.i.l.s16 %v7700
  %v8104 = vunpack.i.h.s16 %v7700
  %v8105 = vunpack.i.l.s16 %v7707
  %v8106 = vunpack.i.l.s16 %v7724
  %v8107 = vunpack.i.h.s16 %v7724
  %v8108 = vunpack.i.l.s16 %v7731
  %v8109 = vunpack.i.l.s16 %v7748
  %v8110 = vunpack.i.h.s16 %v7748
  %v8111 = vunpack.i.l.s16 %v7755
  %v8112 = vunpack.i.l.s16 %v7780
  %v8113 = vunpack.i.h.s16 %v7780
  %v8114 = vunpack.i.l.s16 %v7787
  %v8115 = vunpack.i.l.s16 %v7804
  %v8116 = vunpack.i.h.s16 %v7804
  %v8117 = vunpack.i.l.s16 %v7811
  %v8118 = vunpack.i.l.s16 %v7828
  %v8119 = vunpack.i.h.s16 %v7828
  %v8120 = vunpack.i.l.s16 %v7835
  %v8121 = vunpack.i.l.s16 %v7860
  %v8122 = vunpack.i.h.s16 %v7860
  %v8123 = vunpack.i.l.s16 %v7867
  %v8124 = vunpack.i.l.s16 %v7884
  %v8125 = vunpack.i.h.s16 %v7884
  %v8126 = vunpack.i.l.s16 %v7891
  %v8127 = vunpack.i.l.s16 %v7908
  %v8128 = vunpack.i.h.s16 %v7908
  %v8129 = vunpack.i.l.s16 %v7915
  %v8130 = vunpack.i.l.s16 %v7940
  %v8131 = vunpack.i.h.s16 %v7940
  %v8132 = vunpack.i.l.s16 %v7947
  %v8133 = vunpack.i.l.s16 %v7964
  %v8134 = vunpack.i.h.s16 %v7964
  %v8135 = vunpack.i.l.s16 %v7971
  %v8136 = vunpack.i.l.s16 %v7988
  %v8137 = vunpack.i.h.s16 %v7988
  %v8138 = vunpack.i.l.s16 %v7995
  %v8139 = vunpack.i.l.s16 %v8020
  %v8140 = vunpack.i.h.s16 %v8020
  %v8141 = vunpack.i.l.s16 %v8027
  %v8142 = vunpack.i.l.s16 %v8044
  %v8143 = vunpack.i.h.s16 %v8044
  %v8144 = vunpack.i.l.s16 %v8051
  %v8145 = vunpack.i.l.s16 %v8068
  %v8146 = vunpack.i.h.s16 %v8068
  %v8147 = vunpack.i.l.s16 %v8075
  %v8148 = vld [vmem:[%s3] sm:$0xf]
  %v8149 = vld [vmem:[%s3 + $0x4] sm:$0xf]
  %v8150 = vld [vmem:[%s3 + $0x8] sm:$0xf]
  %v8151 = vld [vmem:[%s3 + $0xc] sm:$0xf]
  %v8152 = vld [vmem:[%s3 + $0x10] sm:$0xf]
  %v8153 = vld [vmem:[%s3 + $0x14] sm:$0xf]
  %v8154 = vld [vmem:[%s3 + $0x18] sm:$0xf]
  %v8155 = vld [vmem:[%s3 + $0x1c] sm:$0xf]
  %v8156 = vld [vmem:[%s3 + $0x20] sm:$0xf]
  %v8157 = vld [vmem:[%s3 + $0x24] sm:$0xf]
  %v8158 = vld [vmem:[%s3 + $0x28] sm:$0xf]
  %v8159 = vld [vmem:[%s3 + $0x2c] sm:$0xf]
  %v8160 = vld [vmem:[%s3 + $0x30] sm:$0xf]
  %v8161 = vld [vmem:[%s3 + $0x34] sm:$0xf]
  %v8162 = vld [vmem:[%s3 + $0x38] sm:$0xf]
  %v8163 = vld [vmem:[%s3 + $0x3c] sm:$0xf]
  %v8164 = vld [vmem:[%s3 + $0x40] sm:$0xf]
  %v8165 = vld [vmem:[%s3 + $0x44] sm:$0xf]
  %v8166 = vld [vmem:[%s3 + $0x48] sm:$0xf]
  %v8167 = vld [vmem:[%s3 + $0x4c] sm:$0xf]
  %v8168 = vld [vmem:[%s3 + $0x50] sm:$0xf]
  %v8169 = vld [vmem:[%s3 + $0x54] sm:$0xf]
  %v8170 = vld [vmem:[%s3 + $0x58] sm:$0xf]
  %v8171 = vld [vmem:[%s3 + $0x5c] sm:$0xf]
  %v8172 = vld [vmem:[%s3 + $0x60] sm:$0xf]
  %v8173 = vld [vmem:[%s3 + $0x64] sm:$0xf]
  %v8174 = vld [vmem:[%s3 + $0x68] sm:$0xf]
  %v8175 = vld [vmem:[%s3 + $0x6c] sm:$0xf]
  %v8176 = vld [vmem:[%s3 + $0x70] sm:$0xf]
  %v8177 = vld [vmem:[%s3 + $0x74] sm:$0xf]
  %v8178 = vld [vmem:[%s3 + $0x78] sm:$0xf]
  %v8179 = vld [vmem:[%s3 + $0x7c] sm:$0xf]
  %v8180 = vld [vmem:[%s3 + $0x80] sm:$0xf]
  %v8181 = vld [vmem:[%s3 + $0x84] sm:$0xf]
  %v8182 = vld [vmem:[%s3 + $0x88] sm:$0xf]
  %v8183 = vld [vmem:[%s3 + $0x8c] sm:$0xf]
  %v8184 = vld [vmem:[%s3 + $0x90] sm:$0xf]
  %v8185 = vld [vmem:[%s3 + $0x94] sm:$0xf]
  %v8186 = vld [vmem:[%s3 + $0x98] sm:$0xf]
  %v8187 = vld [vmem:[%s3 + $0x9c] sm:$0xf]
  %v8188 = vld [vmem:[%s3 + $0xa0] sm:$0xf]
  %v8189 = vld [vmem:[%s3 + $0xa4] sm:$0xf]
  %v8190 = vld [vmem:[%s3 + $0xa8] sm:$0xf]
  %v8191 = vld [vmem:[%s3 + $0xac] sm:$0xf]
  %v8192 = vld [vmem:[%s3 + $0xb0] sm:$0xf]
  %v8193 = vld [vmem:[%s3 + $0xb4] sm:$0xf]
  %v8194 = vld [vmem:[%s3 + $0xb8] sm:$0xf]
  %v8195 = vld [vmem:[%s3 + $0xbc] sm:$0xf]
  %v8196 = vld [vmem:[%s3 + $0xc0] sm:$0xf]
  %v8197 = vld [vmem:[%s3 + $0xc4] sm:$0xf]
  %v8198 = vld [vmem:[%s3 + $0xc8] sm:$0xf]
  %v8199 = vld [vmem:[%s3 + $0xcc] sm:$0xf]
  %v8200 = vld [vmem:[%s3 + $0xd0] sm:$0xf]
  %v8201 = vld [vmem:[%s3 + $0xd4] sm:$0xf]
  %v8202 = vld [vmem:[%s3 + $0xd8] sm:$0xf]
  %v8203 = vld [vmem:[%s3 + $0xdc] sm:$0xf]
  %v8204 = vld [vmem:[%s3 + $0xe0] sm:$0xf]
  %v8205 = vld [vmem:[%s3 + $0xe4] sm:$0xf]
  %v8206 = vld [vmem:[%s3 + $0xe8] sm:$0xf]
  %v8207 = vld [vmem:[%s3 + $0xec] sm:$0xf]
  %v8208 = vld [vmem:[%s3 + $0xf0] sm:$0xf]
  %v8209 = vld [vmem:[%s3 + $0xf4] sm:$0xf]
  %v8210 = vld [vmem:[%s3 + $0xf8] sm:$0xf]
  %v8211 = vld [vmem:[%s3 + $0xfc] sm:$0xf]
  %v8212 = vpack.i.b16 %v8077, %v8076
  %v8213 = vpack.i.b16 %v8079, %v8078
  %v8214 = vpack.i.b16 %v8081, %v8080
  %v8215 = vpack.i.b16 %v8083, %v8082
  %v8216 = vpack.i.b16 %v8085, %v8084
  %v8217 = vpack.i.b16 %v8087, %v8086
  %v8218 = vpack.i.b16 %v8089, %v8088
  %v8219 = vpack.i.b16 %v8091, %v8090
  %v8220 = vpack.i.b16 %v8093, %v8092
  %v8221 = vpack.i.b16 %v8095, %v8094
  %v8222 = vpack.i.b16 %v8097, %v8096
  %v8223 = vpack.i.b16 %v8099, %v8098
  %v8224 = vpack.i.b16 %v8101, %v8100
  %v8225 = vpack.i.b16 %v8103, %v8102
  %v8226 = vpack.i.b16 %v8105, %v8104
  %v8227 = vpack.i.b16 %v8107, %v8106
  %v8228 = vpack.i.b16 %v8109, %v8108
  %v8229 = vpack.i.b16 %v8111, %v8110
  %v8230 = vpack.i.b16 %v8113, %v8112
  %v8231 = vpack.i.b16 %v8115, %v8114
  %v8232 = vpack.i.b16 %v8117, %v8116
  %v8233 = vpack.i.b16 %v8119, %v8118
  %v8234 = vpack.i.b16 %v8121, %v8120
  %v8235 = vpack.i.b16 %v8123, %v8122
  %v8236 = vpack.i.b16 %v8125, %v8124
  %v8237 = vpack.i.b16 %v8127, %v8126
  %v8238 = vpack.i.b16 %v8129, %v8128
  %v8239 = vpack.i.b16 %v8131, %v8130
  %v8240 = vpack.i.b16 %v8133, %v8132
  %v8241 = vpack.i.b16 %v8135, %v8134
  %v8242 = vpack.i.b16 %v8137, %v8136
  %v8243 = vpack.i.b16 %v8139, %v8138
  %v8244 = vpack.i.b16 %v8141, %v8140
  %v8245 = vpack.i.b16 %v8143, %v8142
  %v8246 = vpack.i.b16 %v8145, %v8144
  %v8247 = vpack.i.b16 %v8147, %v8146
  %v8248 = vcombine.low %v8212, %v8213
  %v8249 = vcombine.low %v8214, %v8215
  %v8250 = vcombine.low %v8216, %v8217
  %v8251 = vcombine.low %v8218, %v8219
  %v8253 = vunpack.c.l.s4 1966171168
  %v8254 = vunpack.c.0.s8 %v8253
  %v8255 = vlaneseq
  %v8256 = vshrl.u32 %v8255, 7
  %v8257 = vsub.s32 %v8254, %v8256
  %v8258 = vrot.slane %v8248, %v8257
  %v8260 = vunpack.c.l.s4 1966171168
  %v8261 = vunpack.c.0.s8 %v8260
  %v8262 = vlaneseq
  %v8263 = vshrl.u32 %v8262, 7
  %v8264 = vsub.s32 %v8261, %v8263
  %v8265 = vrot.slane %v8249, %v8264
  %v8267 = vunpack.c.l.s4 1966171168
  %v8268 = vunpack.c.0.s8 %v8267
  %v8269 = vlaneseq
  %v8270 = vshrl.u32 %v8269, 7
  %v8271 = vsub.s32 %v8268, %v8270
  %v8272 = vrot.slane %v8250, %v8271
  %v8274 = vunpack.c.l.s4 1966171168
  %v8275 = vunpack.c.0.s8 %v8274
  %v8276 = vlaneseq
  %v8277 = vshrl.u32 %v8276, 7
  %v8278 = vsub.s32 %v8275, %v8277
  %v8279 = vrot.slane %v8251, %v8278
  %v8280 = vcombine.low %v8258, %v8265
  %v8281 = vcombine.high %v8258, %v8265
  %v8282 = vcombine.low %v8272, %v8279
  %v8283 = vcombine.high %v8272, %v8279
  %v8285 = vunpack.c.l.s4 1966171168
  %v8286 = vunpack.c.0.s8 %v8285
  %v8287 = vlaneseq
  %v8288 = vshrl.u32 %v8287, 7
  %v8289 = vsub.s32 %v8286, %v8288
  %v8290 = vrot.slane %v8280, %v8289
  %v8292 = vunpack.c.l.s4 1966171168
  %v8293 = vunpack.c.0.s8 %v8292
  %v8294 = vlaneseq
  %v8295 = vshrl.u32 %v8294, 7
  %v8296 = vsub.s32 %v8293, %v8295
  %v8297 = vrot.slane %v8281, %v8296
  %v8299 = vunpack.c.l.s4 1966171168
  %v8300 = vunpack.c.0.s8 %v8299
  %v8301 = vlaneseq
  %v8302 = vshrl.u32 %v8301, 7
  %v8303 = vsub.s32 %v8300, %v8302
  %v8304 = vrot.slane %v8282, %v8303
  %v8306 = vunpack.c.l.s4 1966171168
  %v8307 = vunpack.c.0.s8 %v8306
  %v8308 = vlaneseq
  %v8309 = vshrl.u32 %v8308, 7
  %v8310 = vsub.s32 %v8307, %v8309
  %v8311 = vrot.slane %v8283, %v8310
  %v8312 = vcombine.low %v8290, %v8304
  %v8313 = vcombine.high %v8290, %v8304
  %v8314 = vcombine.low %v8297, %v8311
  %v8315 = vcombine.high %v8297, %v8311
  %v8316 = vcombine.low %v8220, %v8221
  %v8317 = vcombine.low %v8222, %v8223
  %v8318 = vcombine.low %v8224, %v8225
  %v8319 = vcombine.low %v8226, %v8227
  %v8321 = vunpack.c.l.s4 1966171168
  %v8322 = vunpack.c.0.s8 %v8321
  %v8323 = vlaneseq
  %v8324 = vshrl.u32 %v8323, 7
  %v8325 = vsub.s32 %v8322, %v8324
  %v8326 = vrot.slane %v8316, %v8325
  %v8328 = vunpack.c.l.s4 1966171168
  %v8329 = vunpack.c.0.s8 %v8328
  %v8330 = vlaneseq
  %v8331 = vshrl.u32 %v8330, 7
  %v8332 = vsub.s32 %v8329, %v8331
  %v8333 = vrot.slane %v8317, %v8332
  %v8335 = vunpack.c.l.s4 1966171168
  %v8336 = vunpack.c.0.s8 %v8335
  %v8337 = vlaneseq
  %v8338 = vshrl.u32 %v8337, 7
  %v8339 = vsub.s32 %v8336, %v8338
  %v8340 = vrot.slane %v8318, %v8339
  %v8342 = vunpack.c.l.s4 1966171168
  %v8343 = vunpack.c.0.s8 %v8342
  %v8344 = vlaneseq
  %v8345 = vshrl.u32 %v8344, 7
  %v8346 = vsub.s32 %v8343, %v8345
  %v8347 = vrot.slane %v8319, %v8346
  %v8348 = vcombine.low %v8326, %v8333
  %v8349 = vcombine.high %v8326, %v8333
  %v8350 = vcombine.low %v8340, %v8347
  %v8351 = vcombine.high %v8340, %v8347
  %v8353 = vunpack.c.l.s4 1966171168
  %v8354 = vunpack.c.0.s8 %v8353
  %v8355 = vlaneseq
  %v8356 = vshrl.u32 %v8355, 7
  %v8357 = vsub.s32 %v8354, %v8356
  %v8358 = vrot.slane %v8348, %v8357
  %v8360 = vunpack.c.l.s4 1966171168
  %v8361 = vunpack.c.0.s8 %v8360
  %v8362 = vlaneseq
  %v8363 = vshrl.u32 %v8362, 7
  %v8364 = vsub.s32 %v8361, %v8363
  %v8365 = vrot.slane %v8349, %v8364
  %v8367 = vunpack.c.l.s4 1966171168
  %v8368 = vunpack.c.0.s8 %v8367
  %v8369 = vlaneseq
  %v8370 = vshrl.u32 %v8369, 7
  %v8371 = vsub.s32 %v8368, %v8370
  %v8372 = vrot.slane %v8350, %v8371
  %v8374 = vunpack.c.l.s4 1966171168
  %v8375 = vunpack.c.0.s8 %v8374
  %v8376 = vlaneseq
  %v8377 = vshrl.u32 %v8376, 7
  %v8378 = vsub.s32 %v8375, %v8377
  %v8379 = vrot.slane %v8351, %v8378
  %v8380 = vcombine.low %v8358, %v8372
  %v8381 = vcombine.high %v8358, %v8372
  %v8382 = vcombine.low %v8365, %v8379
  %v8383 = vcombine.high %v8365, %v8379
  %v8384 = vcombine.low %v8228, %v8229
  %v8385 = vcombine.low %v8230, %v8231
  %v8386 = vcombine.low %v8232, %v8233
  %v8387 = vcombine.low %v8234, %v8235
  %v8389 = vunpack.c.l.s4 1966171168
  %v8390 = vunpack.c.0.s8 %v8389
  %v8391 = vlaneseq
  %v8392 = vshrl.u32 %v8391, 7
  %v8393 = vsub.s32 %v8390, %v8392
  %v8394 = vrot.slane %v8384, %v8393
  %v8396 = vunpack.c.l.s4 1966171168
  %v8397 = vunpack.c.0.s8 %v8396
  %v8398 = vlaneseq
  %v8399 = vshrl.u32 %v8398, 7
  %v8400 = vsub.s32 %v8397, %v8399
  %v8401 = vrot.slane %v8385, %v8400
  %v8403 = vunpack.c.l.s4 1966171168
  %v8404 = vunpack.c.0.s8 %v8403
  %v8405 = vlaneseq
  %v8406 = vshrl.u32 %v8405, 7
  %v8407 = vsub.s32 %v8404, %v8406
  %v8408 = vrot.slane %v8386, %v8407
  %v8410 = vunpack.c.l.s4 1966171168
  %v8411 = vunpack.c.0.s8 %v8410
  %v8412 = vlaneseq
  %v8413 = vshrl.u32 %v8412, 7
  %v8414 = vsub.s32 %v8411, %v8413
  %v8415 = vrot.slane %v8387, %v8414
  %v8416 = vcombine.low %v8394, %v8401
  %v8417 = vcombine.high %v8394, %v8401
  %v8418 = vcombine.low %v8408, %v8415
  %v8419 = vcombine.high %v8408, %v8415
  %v8421 = vunpack.c.l.s4 1966171168
  %v8422 = vunpack.c.0.s8 %v8421
  %v8423 = vlaneseq
  %v8424 = vshrl.u32 %v8423, 7
  %v8425 = vsub.s32 %v8422, %v8424
  %v8426 = vrot.slane %v8416, %v8425
  %v8428 = vunpack.c.l.s4 1966171168
  %v8429 = vunpack.c.0.s8 %v8428
  %v8430 = vlaneseq
  %v8431 = vshrl.u32 %v8430, 7
  %v8432 = vsub.s32 %v8429, %v8431
  %v8433 = vrot.slane %v8417, %v8432
  %v8435 = vunpack.c.l.s4 1966171168
  %v8436 = vunpack.c.0.s8 %v8435
  %v8437 = vlaneseq
  %v8438 = vshrl.u32 %v8437, 7
  %v8439 = vsub.s32 %v8436, %v8438
  %v8440 = vrot.slane %v8418, %v8439
  %v8442 = vunpack.c.l.s4 1966171168
  %v8443 = vunpack.c.0.s8 %v8442
  %v8444 = vlaneseq
  %v8445 = vshrl.u32 %v8444, 7
  %v8446 = vsub.s32 %v8443, %v8445
  %v8447 = vrot.slane %v8419, %v8446
  %v8448 = vcombine.low %v8426, %v8440
  %v8449 = vcombine.high %v8426, %v8440
  %v8450 = vcombine.low %v8433, %v8447
  %v8451 = vcombine.high %v8433, %v8447
  %v8452 = vcombine.low %v8236, %v8237
  %v8453 = vcombine.low %v8238, %v8239
  %v8454 = vcombine.low %v8240, %v8241
  %v8455 = vcombine.low %v8242, %v8243
  %v8457 = vunpack.c.l.s4 1966171168
  %v8458 = vunpack.c.0.s8 %v8457
  %v8459 = vlaneseq
  %v8460 = vshrl.u32 %v8459, 7
  %v8461 = vsub.s32 %v8458, %v8460
  %v8462 = vrot.slane %v8452, %v8461
  %v8464 = vunpack.c.l.s4 1966171168
  %v8465 = vunpack.c.0.s8 %v8464
  %v8466 = vlaneseq
  %v8467 = vshrl.u32 %v8466, 7
  %v8468 = vsub.s32 %v8465, %v8467
  %v8469 = vrot.slane %v8453, %v8468
  %v8471 = vunpack.c.l.s4 1966171168
  %v8472 = vunpack.c.0.s8 %v8471
  %v8473 = vlaneseq
  %v8474 = vshrl.u32 %v8473, 7
  %v8475 = vsub.s32 %v8472, %v8474
  %v8476 = vrot.slane %v8454, %v8475
  %v8478 = vunpack.c.l.s4 1966171168
  %v8479 = vunpack.c.0.s8 %v8478
  %v8480 = vlaneseq
  %v8481 = vshrl.u32 %v8480, 7
  %v8482 = vsub.s32 %v8479, %v8481
  %v8483 = vrot.slane %v8455, %v8482
  %v8484 = vcombine.low %v8462, %v8469
  %v8485 = vcombine.high %v8462, %v8469
  %v8486 = vcombine.low %v8476, %v8483
  %v8487 = vcombine.high %v8476, %v8483
  %v8489 = vunpack.c.l.s4 1966171168
  %v8490 = vunpack.c.0.s8 %v8489
  %v8491 = vlaneseq
  %v8492 = vshrl.u32 %v8491, 7
  %v8493 = vsub.s32 %v8490, %v8492
  %v8494 = vrot.slane %v8484, %v8493
  %v8496 = vunpack.c.l.s4 1966171168
  %v8497 = vunpack.c.0.s8 %v8496
  %v8498 = vlaneseq
  %v8499 = vshrl.u32 %v8498, 7
  %v8500 = vsub.s32 %v8497, %v8499
  %v8501 = vrot.slane %v8485, %v8500
  %v8503 = vunpack.c.l.s4 1966171168
  %v8504 = vunpack.c.0.s8 %v8503
  %v8505 = vlaneseq
  %v8506 = vshrl.u32 %v8505, 7
  %v8507 = vsub.s32 %v8504, %v8506
  %v8508 = vrot.slane %v8486, %v8507
  %v8510 = vunpack.c.l.s4 1966171168
  %v8511 = vunpack.c.0.s8 %v8510
  %v8512 = vlaneseq
  %v8513 = vshrl.u32 %v8512, 7
  %v8514 = vsub.s32 %v8511, %v8513
  %v8515 = vrot.slane %v8487, %v8514
  %v8516 = vcombine.low %v8494, %v8508
  %v8517 = vcombine.high %v8494, %v8508
  %v8518 = vcombine.low %v8501, %v8515
  %v8519 = vcombine.high %v8501, %v8515
  %v8520 = vcombine.low %v8244, %v8245
  %v8521 = vcombine.low %v8246, %v8247
  %v8523 = vunpack.c.l.s4 1966171168
  %v8524 = vunpack.c.0.s8 %v8523
  %v8525 = vlaneseq
  %v8526 = vshrl.u32 %v8525, 7
  %v8527 = vsub.s32 %v8524, %v8526
  %v8528 = vrot.slane %v8520, %v8527
  %v8530 = vunpack.c.l.s4 1966171168
  %v8531 = vunpack.c.0.s8 %v8530
  %v8532 = vlaneseq
  %v8533 = vshrl.u32 %v8532, 7
  %v8534 = vsub.s32 %v8531, %v8533
  %v8535 = vrot.slane %v8521, %v8534
  %v8536 = vcombine.low %v8528, %v8535
  %v8537 = vcombine.high %v8528, %v8535
  %v8539 = vunpack.c.l.s4 1966171168
  %v8540 = vunpack.c.0.s8 %v8539
  %v8541 = vlaneseq
  %v8542 = vshrl.u32 %v8541, 7
  %v8543 = vsub.s32 %v8540, %v8542
  %v8544 = vrot.slane %v8536, %v8543
  %v8546 = vunpack.c.l.s4 1966171168
  %v8547 = vunpack.c.0.s8 %v8546
  %v8548 = vlaneseq
  %v8549 = vshrl.u32 %v8548, 7
  %v8550 = vsub.s32 %v8547, %v8549
  %v8551 = vrot.slane %v8537, %v8550
  %v8552 = vcombine.high %v8544, %v8544
  %v8553 = vcombine.high %v8551, %v8551
  %v8638 = vunpack.c.l.b16 %v8148
  %v8639 = vunpack.c.l.b16 %v8149
  %v8640 = vunpack.c.l.b16 %v8150
  %v8641 = vunpack.c.l.b16 %v8151
  %v8642 = vunpack.c.l.b16 %v8152
  %v8643 = vunpack.c.l.b16 %v8153
  %v8644 = vunpack.c.l.b16 %v8154
  %v8645 = vunpack.c.l.b16 %v8155
  %v8646 = vunpack.c.l.b16 %v8156
  %v8647 = vunpack.c.l.b16 %v8157
  %v8648 = vunpack.c.l.b16 %v8158
  %v8649 = vunpack.c.l.b16 %v8159
  %v8650 = vunpack.c.l.b16 %v8160
  %v8651 = vunpack.c.l.b16 %v8161
  %v8652 = vunpack.c.l.b16 %v8162
  %v8653 = vunpack.c.l.b16 %v8163
  %v8654 = vunpack.c.l.b16 %v8164
  %v8655 = vunpack.c.l.b16 %v8165
  %v8656 = vunpack.c.l.b16 %v8166
  %v8657 = vunpack.c.l.b16 %v8167
  %v8658 = vunpack.c.l.b16 %v8168
  %v8659 = vunpack.c.l.b16 %v8169
  %v8660 = vunpack.c.l.b16 %v8170
  %v8661 = vunpack.c.l.b16 %v8171
  %v8662 = vunpack.c.l.b16 %v8172
  %v8663 = vunpack.c.l.b16 %v8173
  %v8664 = vunpack.c.l.b16 %v8174
  %v8665 = vunpack.c.l.b16 %v8175
  %v8666 = vunpack.c.l.b16 %v8176
  %v8667 = vunpack.c.l.b16 %v8177
  %v8668 = vunpack.c.l.b16 %v8178
  %v8669 = vunpack.c.l.b16 %v8179
  %v8670 = vunpack.c.l.b16 %v8180
  %v8671 = vunpack.c.l.b16 %v8181
  %v8672 = vunpack.c.l.b16 %v8182
  %v8673 = vunpack.c.l.b16 %v8183
  %v8674 = vunpack.c.l.b16 %v8184
  %v8675 = vunpack.c.l.b16 %v8185
  %v8676 = vunpack.c.l.b16 %v8186
  %v8677 = vunpack.c.l.b16 %v8187
  %v8678 = vunpack.c.l.b16 %v8188
  %v8679 = vunpack.c.l.b16 %v8189
  %v8680 = vunpack.c.l.b16 %v8190
  %v8681 = vunpack.c.l.b16 %v8191
  %v8682 = vunpack.c.l.b16 %v8192
  %v8683 = vunpack.c.l.b16 %v8193
  %v8684 = vunpack.c.l.b16 %v8194
  %v8685 = vunpack.c.l.b16 %v8195
  %v8686 = vunpack.c.l.b16 %v8196
  %v8687 = vunpack.c.l.b16 %v8197
  %v8688 = vunpack.c.l.b16 %v8198
  %v8689 = vunpack.c.l.b16 %v8199
  %v8690 = vunpack.c.l.b16 %v8200
  %v8691 = vunpack.c.l.b16 %v8201
  %v8692 = vunpack.c.l.b16 %v8202
  %v8693 = vunpack.c.l.b16 %v8203
  %v8694 = vunpack.c.l.b16 %v8204
  %v8695 = vunpack.c.l.b16 %v8205
  %v8696 = vunpack.c.l.b16 %v8206
  %v8697 = vunpack.c.l.b16 %v8207
  %v8698 = vunpack.c.l.b16 %v8208
  %v8699 = vunpack.c.l.b16 %v8209
  %v8700 = vunpack.c.l.b16 %v8210
  %v8701 = vunpack.c.l.b16 %v8211
  %v8702 = vpack.c.b16 %v8639, %v8638
  %v8703 = vpack.c.b16 %v8641, %v8640
  %v8704 = vpack.c.b16 %v8643, %v8642
  %v8705 = vpack.c.b16 %v8645, %v8644
  %v8706 = vpack.c.b16 %v8647, %v8646
  %v8707 = vpack.c.b16 %v8649, %v8648
  %v8708 = vpack.c.b16 %v8651, %v8650
  %v8709 = vpack.c.b16 %v8653, %v8652
  %v8710 = vpack.c.b16 %v8655, %v8654
  %v8711 = vpack.c.b16 %v8657, %v8656
  %v8712 = vpack.c.b16 %v8659, %v8658
  %v8713 = vpack.c.b16 %v8661, %v8660
  %v8714 = vpack.c.b16 %v8663, %v8662
  %v8715 = vpack.c.b16 %v8665, %v8664
  %v8716 = vpack.c.b16 %v8667, %v8666
  %v8717 = vpack.c.b16 %v8669, %v8668
  %v8718 = vpack.c.b16 %v8671, %v8670
  %v8719 = vpack.c.b16 %v8673, %v8672
  %v8720 = vpack.c.b16 %v8675, %v8674
  %v8721 = vpack.c.b16 %v8677, %v8676
  %v8722 = vpack.c.b16 %v8679, %v8678
  %v8723 = vpack.c.b16 %v8681, %v8680
  %v8724 = vpack.c.b16 %v8683, %v8682
  %v8725 = vpack.c.b16 %v8685, %v8684
  %v8726 = vpack.c.b16 %v8687, %v8686
  %v8727 = vpack.c.b16 %v8689, %v8688
  %v8728 = vpack.c.b16 %v8691, %v8690
  %v8729 = vpack.c.b16 %v8693, %v8692
  %v8730 = vpack.c.b16 %v8695, %v8694
  %v8731 = vpack.c.b16 %v8697, %v8696
  %v8732 = vpack.c.b16 %v8699, %v8698
  %v8733 = vpack.c.b16 %v8701, %v8700
  %8766 = vmatprep.subr.bf16.mxu0 0
  %8767 = vmatpush1.bf16.msra.mxu0 %v8702
  %8768 = vmatprep.subr.bf16.mxu0 0
  %8769 = vmatpush1.bf16.msra.mxu0 %v8703
  %8770 = vmatprep.subr.bf16.mxu0 0
  %8771 = vmatpush1.bf16.msra.mxu0 %v8704
  %8772 = vmatprep.subr.bf16.mxu0 0
  %8773 = vmatpush1.bf16.msra.mxu0 %v8705
  %8774 = vmatprep.subr.bf16.mxu0 0
  %8775 = vmatpush1.bf16.msra.mxu0 %v8706
  %8776 = vmatprep.subr.bf16.mxu0 0
  %8777 = vmatpush1.bf16.msra.mxu0 %v8707
  %8778 = vmatprep.subr.bf16.mxu0 0
  %8779 = vmatpush1.bf16.msra.mxu0 %v8708
  %8780 = vmatprep.subr.bf16.mxu0 0
  %8781 = vmatpush1.bf16.msra.mxu0 %v8709
  %8782 = vmatprep.subr.bf16.mxu0 0
  %8783 = vmatpush1.bf16.msra.mxu0 %v8710
  %8784 = vmatprep.subr.bf16.mxu0 0
  %8785 = vmatpush1.bf16.msra.mxu0 %v8711
  %8786 = vmatprep.subr.bf16.mxu0 0
  %8787 = vmatpush1.bf16.msra.mxu0 %v8712
  %8788 = vmatprep.subr.bf16.mxu0 0
  %8789 = vmatpush1.bf16.msra.mxu0 %v8713
  %8790 = vmatprep.subr.bf16.mxu0 0
  %8791 = vmatpush1.bf16.msra.mxu0 %v8714
  %8792 = vmatprep.subr.bf16.mxu0 0
  %8793 = vmatpush1.bf16.msra.mxu0 %v8715
  %8794 = vmatprep.subr.bf16.mxu0 0
  %8795 = vmatpush1.bf16.msra.mxu0 %v8716
  %8796 = vmatprep.subr.bf16.mxu0 0
  %8797 = vmatpush1.bf16.msra.mxu0 %v8717
  %8798 = vmatprep.mubr.bf16.mxu0 %v8314
  %8799 = vmatmul.mubr.bf16.gmra.mrb[0].mxu0 %v8312
  %v8800 = vpop.f32.mrb[0].mxu0
  %v8801 = vadd.f32 0.0, %v8800
  %v8802 = vpop.f32.mrb[0].mxu0
  %v8803 = vpop.f32.mrb[0].mxu0
  %v8804 = vadd.f32 0.0, %v8803
  %v8805 = vpop.f32.mrb[0].mxu0
  %8806 = vmatprep.mubr.bf16.mxu0 %v8382
  %8807 = vmatmul.mubr.bf16.gmra.mrb[0].mxu0 %v8380
  %v8808 = vpop.f32.mrb[0].mxu0
  %v8809 = vadd.f32 0.0, %v8808
  %v8810 = vpop.f32.mrb[0].mxu0
  %v8811 = vpop.f32.mrb[0].mxu0
  %v8812 = vadd.f32 0.0, %v8811
  %v8813 = vpop.f32.mrb[0].mxu0
  %8814 = vmatprep.mubr.bf16.mxu0 %v8450
  %8815 = vmatmul.mubr.bf16.gmra.mrb[0].mxu0 %v8448
  %v8816 = vpop.f32.mrb[0].mxu0
  %v8817 = vadd.f32 0.0, %v8816
  %v8818 = vpop.f32.mrb[0].mxu0
  %v8819 = vpop.f32.mrb[0].mxu0
  %v8820 = vadd.f32 0.0, %v8819
  %v8821 = vpop.f32.mrb[0].mxu0
  %8822 = vmatprep.mubr.bf16.mxu0 %v8518
  %8823 = vmatmul.mubr.bf16.gmra.mrb[0].mxu0 %v8516
  %v8824 = vpop.f32.mrb[0].mxu0
  %v8825 = vadd.f32 0.0, %v8824
  %v8826 = vpop.f32.mrb[0].mxu0
  %v8827 = vpop.f32.mrb[0].mxu0
  %v8828 = vadd.f32 0.0, %v8827
  %v8829 = vpop.f32.mrb[0].mxu0
  %8830 = vmatprep.mubr.bf16.mxu0 %v8551
  %8831 = vmatmul.mubr.bf16.gmra.mrb[0].mxu0 %v8544
  %v8832 = vpop.f32.mrb[0].mxu0
  %v8833 = vadd.f32 0.0, %v8832
  %v8834 = vpop.f32.mrb[0].mxu0
  %v8835 = vpop.f32.mrb[0].mxu0
  %v8836 = vpop.f32.mrb[0].mxu0
  %8837 = vdwg.mxu0
  %8838 = vmatprep.subr.bf16.mxu0 0
  %8839 = vmatpush1.bf16.msra.mxu0 %v8718
  %8840 = vmatprep.subr.bf16.mxu0 0
  %8841 = vmatpush1.bf16.msra.mxu0 %v8719
  %8842 = vmatprep.subr.bf16.mxu0 0
  %8843 = vmatpush1.bf16.msra.mxu0 %v8720
  %8844 = vmatprep.subr.bf16.mxu0 0
  %8845 = vmatpush1.bf16.msra.mxu0 %v8721
  %8846 = vmatprep.subr.bf16.mxu0 0
  %8847 = vmatpush1.bf16.msra.mxu0 %v8722
  %8848 = vmatprep.subr.bf16.mxu0 0
  %8849 = vmatpush1.bf16.msra.mxu0 %v8723
  %8850 = vmatprep.subr.bf16.mxu0 0
  %8851 = vmatpush1.bf16.msra.mxu0 %v8724
  %8852 = vmatprep.subr.bf16.mxu0 0
  %8853 = vmatpush1.bf16.msra.mxu0 %v8725
  %8854 = vmatprep.subr.bf16.mxu0 0
  %8855 = vmatpush1.bf16.msra.mxu0 %v8726
  %8856 = vmatprep.subr.bf16.mxu0 0
  %8857 = vmatpush1.bf16.msra.mxu0 %v8727
  %8858 = vmatprep.subr.bf16.mxu0 0
  %8859 = vmatpush1.bf16.msra.mxu0 %v8728
  %8860 = vmatprep.subr.bf16.mxu0 0
  %8861 = vmatpush1.bf16.msra.mxu0 %v8729
  %8862 = vmatprep.subr.bf16.mxu0 0
  %8863 = vmatpush1.bf16.msra.mxu0 %v8730
  %8864 = vmatprep.subr.bf16.mxu0 0
  %8865 = vmatpush1.bf16.msra.mxu0 %v8731
  %8866 = vmatprep.subr.bf16.mxu0 0
  %8867 = vmatpush1.bf16.msra.mxu0 %v8732
  %8868 = vmatprep.subr.bf16.mxu0 0
  %8869 = vmatpush1.bf16.msra.mxu0 %v8733
  %8870 = vmatprep.mubr.bf16.mxu0 %v8315
  %8871 = vmatmul.mubr.bf16.gmra.mrb[0].mxu0 %v8313
  %v8872 = vpop.f32.mrb[0].mxu0
  %v8873 = vadd.f32 %v8801, %v8872
  %v8874 = vpop.f32.mrb[0].mxu0
  %v8875 = vpop.f32.mrb[0].mxu0
  %v8876 = vadd.f32 %v8804, %v8875
  %v8877 = vpop.f32.mrb[0].mxu0
  %8878 = vmatprep.mubr.bf16.mxu0 %v8383
  %8879 = vmatmul.mubr.bf16.gmra.mrb[0].mxu0 %v8381
  %v8880 = vpop.f32.mrb[0].mxu0
  %v8881 = vadd.f32 %v8809, %v8880
  %v8882 = vpop.f32.mrb[0].mxu0
  %v8883 = vpop.f32.mrb[0].mxu0
  %v8884 = vadd.f32 %v8812, %v8883
  %v8885 = vpop.f32.mrb[0].mxu0
  %8886 = vmatprep.mubr.bf16.mxu0 %v8451
  %8887 = vmatmul.mubr.bf16.gmra.mrb[0].mxu0 %v8449
  %v8888 = vpop.f32.mrb[0].mxu0
  %v8889 = vadd.f32 %v8817, %v8888
  %v8890 = vpop.f32.mrb[0].mxu0
  %v8891 = vpop.f32.mrb[0].mxu0
  %v8892 = vadd.f32 %v8820, %v8891
  %v8893 = vpop.f32.mrb[0].mxu0
  %8894 = vmatprep.mubr.bf16.mxu0 %v8519
  %8895 = vmatmul.mubr.bf16.gmra.mrb[0].mxu0 %v8517
  %v8896 = vpop.f32.mrb[0].mxu0
  %v8897 = vadd.f32 %v8825, %v8896
  %v8898 = vpop.f32.mrb[0].mxu0
  %v8899 = vpop.f32.mrb[0].mxu0
  %v8900 = vadd.f32 %v8828, %v8899
  %v8901 = vpop.f32.mrb[0].mxu0
  %8902 = vmatprep.mubr.bf16.mxu0 %v8553
  %8903 = vmatmul.mubr.bf16.gmra.mrb[0].mxu0 %v8552
  %v8904 = vpop.f32.mrb[0].mxu0
  %v8905 = vadd.f32 %v8833, %v8904
  %v8906 = vpop.f32.mrb[0].mxu0
  %v8907 = vpop.f32.mrb[0].mxu0
  %v8908 = vpop.f32.mrb[0].mxu0
  %8909 = vdwg.mxu0
  %v8910 = vpack.c.bf16 %v8876, %v8873
  %v8911 = vpack.c.bf16 %v8884, %v8881
  %v8912 = vpack.c.bf16 %v8892, %v8889
  %v8913 = vpack.c.bf16 %v8900, %v8897
  %v8914 = vpack.c.bf16 %v8905, %v8905
  %v8915 = vld [vmem:[%s4] sm:$0x1]
  %v8916 = vpack.c.bf16 %v8915, %v8915
  %v8918 = vpack.i.b16 %v8916, %v8916
  %v8920 = vlaneseq
  %v8921 = vshrl.u32 %v8920, 7
  %v8922 = vsub.s32 0, %v8921
  %v8923 = vrot.slane %v8918, %v8922
  %v8924 = vadd.bf16 %v8910, %v8923
  %v8925 = vadd.bf16 %v8911, %v8923
  %v8926 = vadd.bf16 %v8912, %v8923
  %v8927 = vadd.bf16 %v8913, %v8923
  %v8928 = vadd.bf16 %v8914, %v8923
  %v8929 = vmax.bf16 %v8924, 0
  %v8930 = vmax.bf16 %v8925, 0
  %v8931 = vmax.bf16 %v8926, 0
  %v8932 = vmax.bf16 %v8927, 0
  %v8933 = vmax.bf16 %v8928, 0
  %v8939 = vcombine.high %v8929, %v8929
  %v8941 = vunpack.c.l.s4 1966171168
  %v8942 = vunpack.c.0.s8 %v8941
  %v8943 = vlaneseq
  %v8944 = vshrl.u32 %v8943, 7
  %v8945 = vsub.s32 %v8942, %v8944
  %v8946 = vrot.slane %v8929, %v8945
  %v8948 = vunpack.c.l.s4 1966171168
  %v8949 = vunpack.c.0.s8 %v8948
  %v8950 = vlaneseq
  %v8951 = vshrl.u32 %v8950, 7
  %v8952 = vsub.s32 %v8949, %v8951
  %v8953 = vrot.slane %v8939, %v8952
  %v8954 = vcombine.high %v8946, %v8946
  %v8955 = vcombine.high %v8953, %v8953
  %v8957 = vunpack.c.l.s4 1966171168
  %v8958 = vunpack.c.0.s8 %v8957
  %v8959 = vlaneseq
  %v8960 = vshrl.u32 %v8959, 7
  %v8961 = vsub.s32 %v8958, %v8960
  %v8962 = vrot.slane %v8946, %v8961
  %v8964 = vunpack.c.l.s4 1966171168
  %v8965 = vunpack.c.0.s8 %v8964
  %v8966 = vlaneseq
  %v8967 = vshrl.u32 %v8966, 7
  %v8968 = vsub.s32 %v8965, %v8967
  %v8969 = vrot.slane %v8953, %v8968
  %v8971 = vunpack.c.l.s4 1966171168
  %v8972 = vunpack.c.0.s8 %v8971
  %v8973 = vlaneseq
  %v8974 = vshrl.u32 %v8973, 7
  %v8975 = vsub.s32 %v8972, %v8974
  %v8976 = vrot.slane %v8954, %v8975
  %v8978 = vunpack.c.l.s4 1966171168
  %v8979 = vunpack.c.0.s8 %v8978
  %v8980 = vlaneseq
  %v8981 = vshrl.u32 %v8980, 7
  %v8982 = vsub.s32 %v8979, %v8981
  %v8983 = vrot.slane %v8955, %v8982
  %v8984 = vcombine.high %v8962, %v8962
  %v8985 = vcombine.high %v8969, %v8969
  %v8986 = vcombine.high %v8976, %v8976
  %v8987 = vcombine.high %v8983, %v8983
  %v8988 = vcombine.high %v8930, %v8930
  %v8990 = vunpack.c.l.s4 1966171168
  %v8991 = vunpack.c.0.s8 %v8990
  %v8992 = vlaneseq
  %v8993 = vshrl.u32 %v8992, 7
  %v8994 = vsub.s32 %v8991, %v8993
  %v8995 = vrot.slane %v8930, %v8994
  %v8997 = vunpack.c.l.s4 1966171168
  %v8998 = vunpack.c.0.s8 %v8997
  %v8999 = vlaneseq
  %v9000 = vshrl.u32 %v8999, 7
  %v9001 = vsub.s32 %v8998, %v9000
  %v9002 = vrot.slane %v8988, %v9001
  %v9003 = vcombine.high %v8995, %v8995
  %v9004 = vcombine.high %v9002, %v9002
  %v9006 = vunpack.c.l.s4 1966171168
  %v9007 = vunpack.c.0.s8 %v9006
  %v9008 = vlaneseq
  %v9009 = vshrl.u32 %v9008, 7
  %v9010 = vsub.s32 %v9007, %v9009
  %v9011 = vrot.slane %v8995, %v9010
  %v9013 = vunpack.c.l.s4 1966171168
  %v9014 = vunpack.c.0.s8 %v9013
  %v9015 = vlaneseq
  %v9016 = vshrl.u32 %v9015, 7
  %v9017 = vsub.s32 %v9014, %v9016
  %v9018 = vrot.slane %v9002, %v9017
  %v9020 = vunpack.c.l.s4 1966171168
  %v9021 = vunpack.c.0.s8 %v9020
  %v9022 = vlaneseq
  %v9023 = vshrl.u32 %v9022, 7
  %v9024 = vsub.s32 %v9021, %v9023
  %v9025 = vrot.slane %v9003, %v9024
  %v9027 = vunpack.c.l.s4 1966171168
  %v9028 = vunpack.c.0.s8 %v9027
  %v9029 = vlaneseq
  %v9030 = vshrl.u32 %v9029, 7
  %v9031 = vsub.s32 %v9028, %v9030
  %v9032 = vrot.slane %v9004, %v9031
  %v9033 = vcombine.high %v9011, %v9011
  %v9034 = vcombine.high %v9018, %v9018
  %v9035 = vcombine.high %v9025, %v9025
  %v9036 = vcombine.high %v9032, %v9032
  %v9037 = vcombine.high %v8931, %v8931
  %v9039 = vunpack.c.l.s4 1966171168
  %v9040 = vunpack.c.0.s8 %v9039
  %v9041 = vlaneseq
  %v9042 = vshrl.u32 %v9041, 7
  %v9043 = vsub.s32 %v9040, %v9042
  %v9044 = vrot.slane %v8931, %v9043
  %v9046 = vunpack.c.l.s4 1966171168
  %v9047 = vunpack.c.0.s8 %v9046
  %v9048 = vlaneseq
  %v9049 = vshrl.u32 %v9048, 7
  %v9050 = vsub.s32 %v9047, %v9049
  %v9051 = vrot.slane %v9037, %v9050
  %v9052 = vcombine.high %v9044, %v9044
  %v9053 = vcombine.high %v9051, %v9051
  %v9055 = vunpack.c.l.s4 1966171168
  %v9056 = vunpack.c.0.s8 %v9055
  %v9057 = vlaneseq
  %v9058 = vshrl.u32 %v9057, 7
  %v9059 = vsub.s32 %v9056, %v9058
  %v9060 = vrot.slane %v9044, %v9059
  %v9062 = vunpack.c.l.s4 1966171168
  %v9063 = vunpack.c.0.s8 %v9062
  %v9064 = vlaneseq
  %v9065 = vshrl.u32 %v9064, 7
  %v9066 = vsub.s32 %v9063, %v9065
  %v9067 = vrot.slane %v9051, %v9066
  %v9069 = vunpack.c.l.s4 1966171168
  %v9070 = vunpack.c.0.s8 %v9069
  %v9071 = vlaneseq
  %v9072 = vshrl.u32 %v9071, 7
  %v9073 = vsub.s32 %v9070, %v9072
  %v9074 = vrot.slane %v9052, %v9073
  %v9076 = vunpack.c.l.s4 1966171168
  %v9077 = vunpack.c.0.s8 %v9076
  %v9078 = vlaneseq
  %v9079 = vshrl.u32 %v9078, 7
  %v9080 = vsub.s32 %v9077, %v9079
  %v9081 = vrot.slane %v9053, %v9080
  %v9082 = vcombine.high %v9060, %v9060
  %v9083 = vcombine.high %v9067, %v9067
  %v9084 = vcombine.high %v9074, %v9074
  %v9085 = vcombine.high %v9081, %v9081
  %v9086 = vcombine.high %v8932, %v8932
  %v9088 = vunpack.c.l.s4 1966171168
  %v9089 = vunpack.c.0.s8 %v9088
  %v9090 = vlaneseq
  %v9091 = vshrl.u32 %v9090, 7
  %v9092 = vsub.s32 %v9089, %v9091
  %v9093 = vrot.slane %v8932, %v9092
  %v9095 = vunpack.c.l.s4 1966171168
  %v9096 = vunpack.c.0.s8 %v9095
  %v9097 = vlaneseq
  %v9098 = vshrl.u32 %v9097, 7
  %v9099 = vsub.s32 %v9096, %v9098
  %v9100 = vrot.slane %v9086, %v9099
  %v9101 = vcombine.high %v9093, %v9093
  %v9102 = vcombine.high %v9100, %v9100
  %v9104 = vunpack.c.l.s4 1966171168
  %v9105 = vunpack.c.0.s8 %v9104
  %v9106 = vlaneseq
  %v9107 = vshrl.u32 %v9106, 7
  %v9108 = vsub.s32 %v9105, %v9107
  %v9109 = vrot.slane %v9093, %v9108
  %v9111 = vunpack.c.l.s4 1966171168
  %v9112 = vunpack.c.0.s8 %v9111
  %v9113 = vlaneseq
  %v9114 = vshrl.u32 %v9113, 7
  %v9115 = vsub.s32 %v9112, %v9114
  %v9116 = vrot.slane %v9100, %v9115
  %v9118 = vunpack.c.l.s4 1966171168
  %v9119 = vunpack.c.0.s8 %v9118
  %v9120 = vlaneseq
  %v9121 = vshrl.u32 %v9120, 7
  %v9122 = vsub.s32 %v9119, %v9121
  %v9123 = vrot.slane %v9101, %v9122
  %v9125 = vunpack.c.l.s4 1966171168
  %v9126 = vunpack.c.0.s8 %v9125
  %v9127 = vlaneseq
  %v9128 = vshrl.u32 %v9127, 7
  %v9129 = vsub.s32 %v9126, %v9128
  %v9130 = vrot.slane %v9102, %v9129
  %v9131 = vcombine.high %v9109, %v9109
  %v9132 = vcombine.high %v9116, %v9116
  %v9133 = vcombine.high %v9123, %v9123
  %v9134 = vcombine.high %v9130, %v9130
  %v9136 = vunpack.c.l.s4 1966171168
  %v9137 = vunpack.c.0.s8 %v9136
  %v9138 = vlaneseq
  %v9139 = vshrl.u32 %v9138, 7
  %v9140 = vsub.s32 %v9137, %v9139
  %v9141 = vrot.slane %v8933, %v9140
  %v9142 = vcombine.high %v9141, %v9141
  %v9144 = vunpack.c.l.s4 1966171168
  %v9145 = vunpack.c.0.s8 %v9144
  %v9146 = vlaneseq
  %v9147 = vshrl.u32 %v9146, 7
  %v9148 = vsub.s32 %v9145, %v9147
  %v9149 = vrot.slane %v9141, %v9148
  %v9151 = vunpack.c.l.s4 1966171168
  %v9152 = vunpack.c.0.s8 %v9151
  %v9153 = vlaneseq
  %v9154 = vshrl.u32 %v9153, 7
  %v9155 = vsub.s32 %v9152, %v9154
  %v9156 = vrot.slane %v9142, %v9155
  %v9157 = vcombine.high %v9149, %v9149
  %v9158 = vcombine.high %v9156, %v9156
  %v9159 = vunpack.i.l.s16 %v8962
  %v9160 = vunpack.i.h.s16 %v8962
  %v9161 = vunpack.i.l.s16 %v8976
  %v9162 = vunpack.i.h.s16 %v8976
  %v9163 = vunpack.i.l.s16 %v8984
  %v9164 = vunpack.i.h.s16 %v8984
  %v9165 = vunpack.i.l.s16 %v8986
  %v9166 = vunpack.i.h.s16 %v8986
  %v9167 = vunpack.i.l.s16 %v8969
  %v9168 = vunpack.i.h.s16 %v8969
  %v9169 = vunpack.i.l.s16 %v8983
  %v9170 = vunpack.i.h.s16 %v8983
  %v9171 = vunpack.i.l.s16 %v8985
  %v9172 = vunpack.i.h.s16 %v8985
  %v9173 = vunpack.i.l.s16 %v8987
  %v9174 = vunpack.i.h.s16 %v8987
  %v9175 = vunpack.i.l.s16 %v9011
  %v9176 = vunpack.i.h.s16 %v9011
  %v9177 = vunpack.i.l.s16 %v9025
  %v9178 = vunpack.i.h.s16 %v9025
  %v9179 = vunpack.i.l.s16 %v9033
  %v9180 = vunpack.i.h.s16 %v9033
  %v9181 = vunpack.i.l.s16 %v9035
  %v9182 = vunpack.i.h.s16 %v9035
  %v9183 = vunpack.i.l.s16 %v9018
  %v9184 = vunpack.i.h.s16 %v9018
  %v9185 = vunpack.i.l.s16 %v9032
  %v9186 = vunpack.i.h.s16 %v9032
  %v9187 = vunpack.i.l.s16 %v9034
  %v9188 = vunpack.i.h.s16 %v9034
  %v9189 = vunpack.i.l.s16 %v9036
  %v9190 = vunpack.i.h.s16 %v9036
  %v9191 = vunpack.i.l.s16 %v9060
  %v9192 = vunpack.i.h.s16 %v9060
  %v9193 = vunpack.i.l.s16 %v9074
  %v9194 = vunpack.i.h.s16 %v9074
  %v9195 = vunpack.i.l.s16 %v9082
  %v9196 = vunpack.i.h.s16 %v9082
  %v9197 = vunpack.i.l.s16 %v9084
  %v9198 = vunpack.i.h.s16 %v9084
  %v9199 = vunpack.i.l.s16 %v9067
  %v9200 = vunpack.i.h.s16 %v9067
  %v9201 = vunpack.i.l.s16 %v9081
  %v9202 = vunpack.i.h.s16 %v9081
  %v9203 = vunpack.i.l.s16 %v9083
  %v9204 = vunpack.i.h.s16 %v9083
  %v9205 = vunpack.i.l.s16 %v9085
  %v9206 = vunpack.i.h.s16 %v9085
  %v9207 = vunpack.i.l.s16 %v9109
  %v9208 = vunpack.i.h.s16 %v9109
  %v9209 = vunpack.i.l.s16 %v9123
  %v9210 = vunpack.i.h.s16 %v9123
  %v9211 = vunpack.i.l.s16 %v9131
  %v9212 = vunpack.i.h.s16 %v9131
  %v9213 = vunpack.i.l.s16 %v9133
  %v9214 = vunpack.i.h.s16 %v9133
  %v9215 = vunpack.i.l.s16 %v9116
  %v9216 = vunpack.i.h.s16 %v9116
  %v9217 = vunpack.i.l.s16 %v9130
  %v9218 = vunpack.i.h.s16 %v9130
  %v9219 = vunpack.i.l.s16 %v9132
  %v9220 = vunpack.i.h.s16 %v9132
  %v9221 = vunpack.i.l.s16 %v9134
  %v9222 = vunpack.i.h.s16 %v9134
  %v9223 = vunpack.i.l.s16 %v9149
  %v9224 = vunpack.i.h.s16 %v9149
  %v9225 = vunpack.i.l.s16 %v9156
  %v9226 = vunpack.i.h.s16 %v9156
  %v9227 = vunpack.i.l.s16 %v9157
  %v9228 = vunpack.i.h.s16 %v9157
  %v9229 = vunpack.i.l.s16 %v9158
  %v9230 = vunpack.i.h.s16 %v9158
  %v9231 = vpack.i.b16 %v9159, %v9159
  %v9232 = vpack.i.b16 %v9168, %v9168
  %v9233 = vpack.i.b16 %v9177, %v9177
  %v9234 = vpack.i.b16 %v9186, %v9186
  %v9235 = vpack.i.b16 %v9195, %v9195
  %v9236 = vpack.i.b16 %v9204, %v9204
  %v9237 = vpack.i.b16 %v9213, %v9213
  %v9238 = vpack.i.b16 %v9222, %v9222
  %v9239 = vlaneseq
  %v9240 = vshrl.u32 %v9239, 7
  %v9241 = vsub.s32 0, %v9240
  %v9242 = vrot.slane %v9231, %v9241
  %v9243 = vlaneseq
  %v9244 = vshrl.u32 %v9243, 7
  %v9245 = vsub.s32 0, %v9244
  %v9246 = vrot.slane %v9232, %v9245
  %v9247 = vlaneseq
  %v9248 = vshrl.u32 %v9247, 7
  %v9249 = vsub.s32 0, %v9248
  %v9250 = vrot.slane %v9233, %v9249
  %v9251 = vlaneseq
  %v9252 = vshrl.u32 %v9251, 7
  %v9253 = vsub.s32 0, %v9252
  %v9254 = vrot.slane %v9234, %v9253
  %v9255 = vlaneseq
  %v9256 = vshrl.u32 %v9255, 7
  %v9257 = vsub.s32 0, %v9256
  %v9258 = vrot.slane %v9235, %v9257
  %v9259 = vlaneseq
  %v9260 = vshrl.u32 %v9259, 7
  %v9261 = vsub.s32 0, %v9260
  %v9262 = vrot.slane %v9236, %v9261
  %v9263 = vlaneseq
  %v9264 = vshrl.u32 %v9263, 7
  %v9265 = vsub.s32 0, %v9264
  %v9266 = vrot.slane %v9237, %v9265
  %v9267 = vlaneseq
  %v9268 = vshrl.u32 %v9267, 7
  %v9269 = vsub.s32 0, %v9268
  %v9270 = vrot.slane %v9238, %v9269
  %v9271 = vpack.i.b16 %v9160, %v9160
  %v9272 = vpack.i.b16 %v9169, %v9169
  %v9273 = vpack.i.b16 %v9178, %v9178
  %v9274 = vpack.i.b16 %v9187, %v9187
  %v9275 = vpack.i.b16 %v9196, %v9196
  %v9276 = vpack.i.b16 %v9205, %v9205
  %v9277 = vpack.i.b16 %v9214, %v9214
  %v9278 = vpack.i.b16 %v9223, %v9223
  %v9279 = vlaneseq
  %v9280 = vshrl.u32 %v9279, 7
  %v9281 = vsub.s32 0, %v9280
  %v9282 = vrot.slane %v9271, %v9281
  %v9283 = vlaneseq
  %v9284 = vshrl.u32 %v9283, 7
  %v9285 = vsub.s32 0, %v9284
  %v9286 = vrot.slane %v9272, %v9285
  %v9287 = vlaneseq
  %v9288 = vshrl.u32 %v9287, 7
  %v9289 = vsub.s32 0, %v9288
  %v9290 = vrot.slane %v9273, %v9289
  %v9291 = vlaneseq
  %v9292 = vshrl.u32 %v9291, 7
  %v9293 = vsub.s32 0, %v9292
  %v9294 = vrot.slane %v9274, %v9293
  %v9295 = vlaneseq
  %v9296 = vshrl.u32 %v9295, 7
  %v9297 = vsub.s32 0, %v9296
  %v9298 = vrot.slane %v9275, %v9297
  %v9299 = vlaneseq
  %v9300 = vshrl.u32 %v9299, 7
  %v9301 = vsub.s32 0, %v9300
  %v9302 = vrot.slane %v9276, %v9301
  %v9303 = vlaneseq
  %v9304 = vshrl.u32 %v9303, 7
  %v9305 = vsub.s32 0, %v9304
  %v9306 = vrot.slane %v9277, %v9305
  %v9307 = vlaneseq
  %v9308 = vshrl.u32 %v9307, 7
  %v9309 = vsub.s32 0, %v9308
  %v9310 = vrot.slane %v9278, %v9309
  %9311 = vrot.lane.b32.xlu0 %v9282, 64
  %v9312 = vpop.permute.xlu0 %9311
  %9313 = vrot.lane.b32.xlu0 %v9286, 64
  %v9314 = vpop.permute.xlu0 %9313
  %9315 = vrot.lane.b32.xlu0 %v9290, 64
  %v9316 = vpop.permute.xlu0 %9315
  %9317 = vrot.lane.b32.xlu0 %v9294, 64
  %v9318 = vpop.permute.xlu0 %9317
  %9319 = vrot.lane.b32.xlu0 %v9298, 64
  %v9320 = vpop.permute.xlu0 %9319
  %9321 = vrot.lane.b32.xlu0 %v9302, 64
  %v9322 = vpop.permute.xlu0 %9321
  %9323 = vrot.lane.b32.xlu0 %v9306, 64
  %v9324 = vpop.permute.xlu0 %9323
  %9325 = vrot.lane.b32.xlu0 %v9310, 64
  %v9326 = vpop.permute.xlu0 %9325
  %v9327 = vpack.i.b16 %v9161, %v9161
  %v9328 = vpack.i.b16 %v9170, %v9170
  %v9329 = vpack.i.b16 %v9179, %v9179
  %v9330 = vpack.i.b16 %v9188, %v9188
  %v9331 = vpack.i.b16 %v9197, %v9197
  %v9332 = vpack.i.b16 %v9206, %v9206
  %v9333 = vpack.i.b16 %v9215, %v9215
  %v9334 = vpack.i.b16 %v9224, %v9224
  %v9335 = vlaneseq
  %v9336 = vshrl.u32 %v9335, 7
  %v9337 = vsub.s32 0, %v9336
  %v9338 = vrot.slane %v9327, %v9337
  %v9339 = vlaneseq
  %v9340 = vshrl.u32 %v9339, 7
  %v9341 = vsub.s32 0, %v9340
  %v9342 = vrot.slane %v9328, %v9341
  %v9343 = vlaneseq
  %v9344 = vshrl.u32 %v9343, 7
  %v9345 = vsub.s32 0, %v9344
  %v9346 = vrot.slane %v9329, %v9345
  %v9347 = vlaneseq
  %v9348 = vshrl.u32 %v9347, 7
  %v9349 = vsub.s32 0, %v9348
  %v9350 = vrot.slane %v9330, %v9349
  %v9351 = vlaneseq
  %v9352 = vshrl.u32 %v9351, 7
  %v9353 = vsub.s32 0, %v9352
  %v9354 = vrot.slane %v9331, %v9353
  %v9355 = vlaneseq
  %v9356 = vshrl.u32 %v9355, 7
  %v9357 = vsub.s32 0, %v9356
  %v9358 = vrot.slane %v9332, %v9357
  %v9359 = vlaneseq
  %v9360 = vshrl.u32 %v9359, 7
  %v9361 = vsub.s32 0, %v9360
  %v9362 = vrot.slane %v9333, %v9361
  %v9363 = vlaneseq
  %v9364 = vshrl.u32 %v9363, 7
  %v9365 = vsub.s32 0, %v9364
  %v9366 = vrot.slane %v9334, %v9365
  %v9367 = vpack.i.b16 %v9162, %v9162
  %v9368 = vpack.i.b16 %v9171, %v9171
  %v9369 = vpack.i.b16 %v9180, %v9180
  %v9370 = vpack.i.b16 %v9189, %v9189
  %v9371 = vpack.i.b16 %v9198, %v9198
  %v9372 = vpack.i.b16 %v9207, %v9207
  %v9373 = vpack.i.b16 %v9216, %v9216
  %v9374 = vpack.i.b16 %v9225, %v9225
  %v9375 = vlaneseq
  %v9376 = vshrl.u32 %v9375, 7
  %v9377 = vsub.s32 0, %v9376
  %v9378 = vrot.slane %v9367, %v9377
  %v9379 = vlaneseq
  %v9380 = vshrl.u32 %v9379, 7
  %v9381 = vsub.s32 0, %v9380
  %v9382 = vrot.slane %v9368, %v9381
  %v9383 = vlaneseq
  %v9384 = vshrl.u32 %v9383, 7
  %v9385 = vsub.s32 0, %v9384
  %v9386 = vrot.slane %v9369, %v9385
  %v9387 = vlaneseq
  %v9388 = vshrl.u32 %v9387, 7
  %v9389 = vsub.s32 0, %v9388
  %v9390 = vrot.slane %v9370, %v9389
  %v9391 = vlaneseq
  %v9392 = vshrl.u32 %v9391, 7
  %v9393 = vsub.s32 0, %v9392
  %v9394 = vrot.slane %v9371, %v9393
  %v9395 = vlaneseq
  %v9396 = vshrl.u32 %v9395, 7
  %v9397 = vsub.s32 0, %v9396
  %v9398 = vrot.slane %v9372, %v9397
  %v9399 = vlaneseq
  %v9400 = vshrl.u32 %v9399, 7
  %v9401 = vsub.s32 0, %v9400
  %v9402 = vrot.slane %v9373, %v9401
  %v9403 = vlaneseq
  %v9404 = vshrl.u32 %v9403, 7
  %v9405 = vsub.s32 0, %v9404
  %v9406 = vrot.slane %v9374, %v9405
  %9407 = vrot.lane.b32.xlu0 %v9378, 64
  %v9408 = vpop.permute.xlu0 %9407
  %9409 = vrot.lane.b32.xlu0 %v9382, 64
  %v9410 = vpop.permute.xlu0 %9409
  %9411 = vrot.lane.b32.xlu0 %v9386, 64
  %v9412 = vpop.permute.xlu0 %9411
  %9413 = vrot.lane.b32.xlu0 %v9390, 64
  %v9414 = vpop.permute.xlu0 %9413
  %9415 = vrot.lane.b32.xlu0 %v9394, 64
  %v9416 = vpop.permute.xlu0 %9415
  %9417 = vrot.lane.b32.xlu0 %v9398, 64
  %v9418 = vpop.permute.xlu0 %9417
  %9419 = vrot.lane.b32.xlu0 %v9402, 64
  %v9420 = vpop.permute.xlu0 %9419
  %9421 = vrot.lane.b32.xlu0 %v9406, 64
  %v9422 = vpop.permute.xlu0 %9421
  %v9423 = vpack.i.b16 %v9163, %v9163
  %v9424 = vpack.i.b16 %v9172, %v9172
  %v9425 = vpack.i.b16 %v9181, %v9181
  %v9426 = vpack.i.b16 %v9190, %v9190
  %v9427 = vpack.i.b16 %v9199, %v9199
  %v9428 = vpack.i.b16 %v9208, %v9208
  %v9429 = vpack.i.b16 %v9217, %v9217
  %v9430 = vpack.i.b16 %v9226, %v9226
  %v9431 = vlaneseq
  %v9432 = vshrl.u32 %v9431, 7
  %v9433 = vsub.s32 0, %v9432
  %v9434 = vrot.slane %v9423, %v9433
  %v9435 = vlaneseq
  %v9436 = vshrl.u32 %v9435, 7
  %v9437 = vsub.s32 0, %v9436
  %v9438 = vrot.slane %v9424, %v9437
  %v9439 = vlaneseq
  %v9440 = vshrl.u32 %v9439, 7
  %v9441 = vsub.s32 0, %v9440
  %v9442 = vrot.slane %v9425, %v9441
  %v9443 = vlaneseq
  %v9444 = vshrl.u32 %v9443, 7
  %v9445 = vsub.s32 0, %v9444
  %v9446 = vrot.slane %v9426, %v9445
  %v9447 = vlaneseq
  %v9448 = vshrl.u32 %v9447, 7
  %v9449 = vsub.s32 0, %v9448
  %v9450 = vrot.slane %v9427, %v9449
  %v9451 = vlaneseq
  %v9452 = vshrl.u32 %v9451, 7
  %v9453 = vsub.s32 0, %v9452
  %v9454 = vrot.slane %v9428, %v9453
  %v9455 = vlaneseq
  %v9456 = vshrl.u32 %v9455, 7
  %v9457 = vsub.s32 0, %v9456
  %v9458 = vrot.slane %v9429, %v9457
  %v9459 = vlaneseq
  %v9460 = vshrl.u32 %v9459, 7
  %v9461 = vsub.s32 0, %v9460
  %v9462 = vrot.slane %v9430, %v9461
  %v9463 = vpack.i.b16 %v9164, %v9164
  %v9464 = vpack.i.b16 %v9173, %v9173
  %v9465 = vpack.i.b16 %v9182, %v9182
  %v9466 = vpack.i.b16 %v9191, %v9191
  %v9467 = vpack.i.b16 %v9200, %v9200
  %v9468 = vpack.i.b16 %v9209, %v9209
  %v9469 = vpack.i.b16 %v9218, %v9218
  %v9470 = vpack.i.b16 %v9227, %v9227
  %v9471 = vlaneseq
  %v9472 = vshrl.u32 %v9471, 7
  %v9473 = vsub.s32 0, %v9472
  %v9474 = vrot.slane %v9463, %v9473
  %v9475 = vlaneseq
  %v9476 = vshrl.u32 %v9475, 7
  %v9477 = vsub.s32 0, %v9476
  %v9478 = vrot.slane %v9464, %v9477
  %v9479 = vlaneseq
  %v9480 = vshrl.u32 %v9479, 7
  %v9481 = vsub.s32 0, %v9480
  %v9482 = vrot.slane %v9465, %v9481
  %v9483 = vlaneseq
  %v9484 = vshrl.u32 %v9483, 7
  %v9485 = vsub.s32 0, %v9484
  %v9486 = vrot.slane %v9466, %v9485
  %v9487 = vlaneseq
  %v9488 = vshrl.u32 %v9487, 7
  %v9489 = vsub.s32 0, %v9488
  %v9490 = vrot.slane %v9467, %v9489
  %v9491 = vlaneseq
  %v9492 = vshrl.u32 %v9491, 7
  %v9493 = vsub.s32 0, %v9492
  %v9494 = vrot.slane %v9468, %v9493
  %v9495 = vlaneseq
  %v9496 = vshrl.u32 %v9495, 7
  %v9497 = vsub.s32 0, %v9496
  %v9498 = vrot.slane %v9469, %v9497
  %v9499 = vlaneseq
  %v9500 = vshrl.u32 %v9499, 7
  %v9501 = vsub.s32 0, %v9500
  %v9502 = vrot.slane %v9470, %v9501
  %9503 = vrot.lane.b32.xlu0 %v9474, 64
  %v9504 = vpop.permute.xlu0 %9503
  %9505 = vrot.lane.b32.xlu0 %v9478, 64
  %v9506 = vpop.permute.xlu0 %9505
  %9507 = vrot.lane.b32.xlu0 %v9482, 64
  %v9508 = vpop.permute.xlu0 %9507
  %9509 = vrot.lane.b32.xlu0 %v9486, 64
  %v9510 = vpop.permute.xlu0 %9509
  %9511 = vrot.lane.b32.xlu0 %v9490, 64
  %v9512 = vpop.permute.xlu0 %9511
  %9513 = vrot.lane.b32.xlu0 %v9494, 64
  %v9514 = vpop.permute.xlu0 %9513
  %9515 = vrot.lane.b32.xlu0 %v9498, 64
  %v9516 = vpop.permute.xlu0 %9515
  %9517 = vrot.lane.b32.xlu0 %v9502, 64
  %v9518 = vpop.permute.xlu0 %9517
  %v9519 = vpack.i.b16 %v9165, %v9165
  %v9520 = vpack.i.b16 %v9174, %v9174
  %v9521 = vpack.i.b16 %v9183, %v9183
  %v9522 = vpack.i.b16 %v9192, %v9192
  %v9523 = vpack.i.b16 %v9201, %v9201
  %v9524 = vpack.i.b16 %v9210, %v9210
  %v9525 = vpack.i.b16 %v9219, %v9219
  %v9526 = vpack.i.b16 %v9228, %v9228
  %v9527 = vlaneseq
  %v9528 = vshrl.u32 %v9527, 7
  %v9529 = vsub.s32 0, %v9528
  %v9530 = vrot.slane %v9519, %v9529
  %v9531 = vlaneseq
  %v9532 = vshrl.u32 %v9531, 7
  %v9533 = vsub.s32 0, %v9532
  %v9534 = vrot.slane %v9520, %v9533
  %v9535 = vlaneseq
  %v9536 = vshrl.u32 %v9535, 7
  %v9537 = vsub.s32 0, %v9536
  %v9538 = vrot.slane %v9521, %v9537
  %v9539 = vlaneseq
  %v9540 = vshrl.u32 %v9539, 7
  %v9541 = vsub.s32 0, %v9540
  %v9542 = vrot.slane %v9522, %v9541
  %v9543 = vlaneseq
  %v9544 = vshrl.u32 %v9543, 7
  %v9545 = vsub.s32 0, %v9544
  %v9546 = vrot.slane %v9523, %v9545
  %v9547 = vlaneseq
  %v9548 = vshrl.u32 %v9547, 7
  %v9549 = vsub.s32 0, %v9548
  %v9550 = vrot.slane %v9524, %v9549
  %v9551 = vlaneseq
  %v9552 = vshrl.u32 %v9551, 7
  %v9553 = vsub.s32 0, %v9552
  %v9554 = vrot.slane %v9525, %v9553
  %v9555 = vlaneseq
  %v9556 = vshrl.u32 %v9555, 7
  %v9557 = vsub.s32 0, %v9556
  %v9558 = vrot.slane %v9526, %v9557
  %v9559 = vpack.i.b16 %v9166, %v9166
  %v9560 = vpack.i.b16 %v9175, %v9175
  %v9561 = vpack.i.b16 %v9184, %v9184
  %v9562 = vpack.i.b16 %v9193, %v9193
  %v9563 = vpack.i.b16 %v9202, %v9202
  %v9564 = vpack.i.b16 %v9211, %v9211
  %v9565 = vpack.i.b16 %v9220, %v9220
  %v9566 = vpack.i.b16 %v9229, %v9229
  %v9567 = vlaneseq
  %v9568 = vshrl.u32 %v9567, 7
  %v9569 = vsub.s32 0, %v9568
  %v9570 = vrot.slane %v9559, %v9569
  %v9571 = vlaneseq
  %v9572 = vshrl.u32 %v9571, 7
  %v9573 = vsub.s32 0, %v9572
  %v9574 = vrot.slane %v9560, %v9573
  %v9575 = vlaneseq
  %v9576 = vshrl.u32 %v9575, 7
  %v9577 = vsub.s32 0, %v9576
  %v9578 = vrot.slane %v9561, %v9577
  %v9579 = vlaneseq
  %v9580 = vshrl.u32 %v9579, 7
  %v9581 = vsub.s32 0, %v9580
  %v9582 = vrot.slane %v9562, %v9581
  %v9583 = vlaneseq
  %v9584 = vshrl.u32 %v9583, 7
  %v9585 = vsub.s32 0, %v9584
  %v9586 = vrot.slane %v9563, %v9585
  %v9587 = vlaneseq
  %v9588 = vshrl.u32 %v9587, 7
  %v9589 = vsub.s32 0, %v9588
  %v9590 = vrot.slane %v9564, %v9589
  %v9591 = vlaneseq
  %v9592 = vshrl.u32 %v9591, 7
  %v9593 = vsub.s32 0, %v9592
  %v9594 = vrot.slane %v9565, %v9593
  %v9595 = vlaneseq
  %v9596 = vshrl.u32 %v9595, 7
  %v9597 = vsub.s32 0, %v9596
  %v9598 = vrot.slane %v9566, %v9597
  %9599 = vrot.lane.b32.xlu0 %v9570, 64
  %v9600 = vpop.permute.xlu0 %9599
  %9601 = vrot.lane.b32.xlu0 %v9574, 64
  %v9602 = vpop.permute.xlu0 %9601
  %9603 = vrot.lane.b32.xlu0 %v9578, 64
  %v9604 = vpop.permute.xlu0 %9603
  %9605 = vrot.lane.b32.xlu0 %v9582, 64
  %v9606 = vpop.permute.xlu0 %9605
  %9607 = vrot.lane.b32.xlu0 %v9586, 64
  %v9608 = vpop.permute.xlu0 %9607
  %9609 = vrot.lane.b32.xlu0 %v9590, 64
  %v9610 = vpop.permute.xlu0 %9609
  %9611 = vrot.lane.b32.xlu0 %v9594, 64
  %v9612 = vpop.permute.xlu0 %9611
  %9613 = vrot.lane.b32.xlu0 %v9598, 64
  %v9614 = vpop.permute.xlu0 %9613
  %v9615 = vpack.i.b16 %v9167, %v9167
  %v9616 = vpack.i.b16 %v9176, %v9176
  %v9617 = vpack.i.b16 %v9185, %v9185
  %v9618 = vpack.i.b16 %v9194, %v9194
  %v9619 = vpack.i.b16 %v9203, %v9203
  %v9620 = vpack.i.b16 %v9212, %v9212
  %v9621 = vpack.i.b16 %v9221, %v9221
  %v9622 = vpack.i.b16 %v9230, %v9230
  %v9623 = vlaneseq
  %v9624 = vshrl.u32 %v9623, 7
  %v9625 = vsub.s32 0, %v9624
  %v9626 = vrot.slane %v9615, %v9625
  %v9627 = vlaneseq
  %v9628 = vshrl.u32 %v9627, 7
  %v9629 = vsub.s32 0, %v9628
  %v9630 = vrot.slane %v9616, %v9629
  %v9631 = vlaneseq
  %v9632 = vshrl.u32 %v9631, 7
  %v9633 = vsub.s32 0, %v9632
  %v9634 = vrot.slane %v9617, %v9633
  %v9635 = vlaneseq
  %v9636 = vshrl.u32 %v9635, 7
  %v9637 = vsub.s32 0, %v9636
  %v9638 = vrot.slane %v9618, %v9637
  %v9639 = vlaneseq
  %v9640 = vshrl.u32 %v9639, 7
  %v9641 = vsub.s32 0, %v9640
  %v9642 = vrot.slane %v9619, %v9641
  %v9643 = vlaneseq
  %v9644 = vshrl.u32 %v9643, 7
  %v9645 = vsub.s32 0, %v9644
  %v9646 = vrot.slane %v9620, %v9645
  %v9647 = vlaneseq
  %v9648 = vshrl.u32 %v9647, 7
  %v9649 = vsub.s32 0, %v9648
  %v9650 = vrot.slane %v9621, %v9649
  %v9651 = vlaneseq
  %v9652 = vshrl.u32 %v9651, 7
  %v9653 = vsub.s32 0, %v9652
  %v9654 = vrot.slane %v9622, %v9653
  %v9657 = vsel %vm503, %v9242, %v9312
  %v9660 = vsel %vm503, %v9246, %v9314
  %v9663 = vsel %vm503, %v9250, %v9316
  %v9666 = vsel %vm503, %v9254, %v9318
  %v9669 = vsel %vm503, %v9258, %v9320
  %v9672 = vsel %vm503, %v9262, %v9322
  %v9675 = vsel %vm503, %v9266, %v9324
  %v9678 = vsel %vm503, %v9270, %v9326
  %v9681 = vsel %vm503, %v9338, %v9408
  %v9684 = vsel %vm503, %v9342, %v9410
  %v9687 = vsel %vm503, %v9346, %v9412
  %v9690 = vsel %vm503, %v9350, %v9414
  %v9693 = vsel %vm503, %v9354, %v9416
  %v9696 = vsel %vm503, %v9358, %v9418
  %v9699 = vsel %vm503, %v9362, %v9420
  %v9702 = vsel %vm503, %v9366, %v9422
  %v9705 = vsel %vm503, %v9434, %v9504
  %v9708 = vsel %vm503, %v9438, %v9506
  %v9711 = vsel %vm503, %v9442, %v9508
  %v9714 = vsel %vm503, %v9446, %v9510
  %v9717 = vsel %vm503, %v9450, %v9512
  %v9720 = vsel %vm503, %v9454, %v9514
  %v9723 = vsel %vm503, %v9458, %v9516
  %v9726 = vsel %vm503, %v9462, %v9518
  %v9729 = vsel %vm503, %v9530, %v9600
  %v9732 = vsel %vm503, %v9534, %v9602
  %v9735 = vsel %vm503, %v9538, %v9604
  %v9738 = vsel %vm503, %v9542, %v9606
  %v9741 = vsel %vm503, %v9546, %v9608
  %v9744 = vsel %vm503, %v9550, %v9610
  %v9747 = vsel %vm503, %v9554, %v9612
  %v9750 = vsel %vm503, %v9558, %v9614
  %v9751 = vld [vmem:[%s5] sm:$0xf]
  %v9752 = vld [vmem:[%s5 + $0x4] sm:$0xf]
  %v9753 = vld [vmem:[%s5 + $0x8] sm:$0xf]
  %v9754 = vld [vmem:[%s5 + $0xc] sm:$0xf]
  %v9755 = vld [vmem:[%s5 + $0x10] sm:$0xf]
  %v9756 = vld [vmem:[%s5 + $0x14] sm:$0xf]
  %v9757 = vld [vmem:[%s5 + $0x18] sm:$0xf]
  %v9758 = vld [vmem:[%s5 + $0x1c] sm:$0xf]
  %v9759 = vld [vmem:[%s5 + $0x20] sm:$0xf]
  %v9760 = vld [vmem:[%s5 + $0x24] sm:$0xf]
  %v9761 = vld [vmem:[%s5 + $0x28] sm:$0xf]
  %v9762 = vld [vmem:[%s5 + $0x2c] sm:$0xf]
  %v9763 = vld [vmem:[%s5 + $0x30] sm:$0xf]
  %v9764 = vld [vmem:[%s5 + $0x34] sm:$0xf]
  %v9765 = vld [vmem:[%s5 + $0x38] sm:$0xf]
  %v9766 = vld [vmem:[%s5 + $0x3c] sm:$0xf]
  %v9767 = vld [vmem:[%s5 + $0x40] sm:$0xf]
  %v9768 = vld [vmem:[%s5 + $0x44] sm:$0xf]
  %v9769 = vld [vmem:[%s5 + $0x48] sm:$0xf]
  %v9770 = vld [vmem:[%s5 + $0x4c] sm:$0xf]
  %v9771 = vld [vmem:[%s5 + $0x50] sm:$0xf]
  %v9772 = vld [vmem:[%s5 + $0x54] sm:$0xf]
  %v9773 = vld [vmem:[%s5 + $0x58] sm:$0xf]
  %v9774 = vld [vmem:[%s5 + $0x5c] sm:$0xf]
  %v9775 = vld [vmem:[%s5 + $0x60] sm:$0xf]
  %v9776 = vld [vmem:[%s5 + $0x64] sm:$0xf]
  %v9777 = vld [vmem:[%s5 + $0x68] sm:$0xf]
  %v9778 = vld [vmem:[%s5 + $0x6c] sm:$0xf]
  %v9779 = vld [vmem:[%s5 + $0x70] sm:$0xf]
  %v9780 = vld [vmem:[%s5 + $0x74] sm:$0xf]
  %v9781 = vld [vmem:[%s5 + $0x78] sm:$0xf]
  %v9782 = vld [vmem:[%s5 + $0x7c] sm:$0xf]
  %v9783 = vld [vmem:[%s5 + $0x80] sm:$0xf]
  %v9784 = vld [vmem:[%s5 + $0x84] sm:$0xf]
  %v9785 = vld [vmem:[%s5 + $0x88] sm:$0xf]
  %v9786 = vld [vmem:[%s5 + $0x8c] sm:$0xf]
  %v9787 = vld [vmem:[%s5 + $0x90] sm:$0xf]
  %v9788 = vld [vmem:[%s5 + $0x94] sm:$0xf]
  %v9789 = vld [vmem:[%s5 + $0x98] sm:$0xf]
  %v9790 = vld [vmem:[%s5 + $0x9c] sm:$0xf]
  %v9791 = vld [vmem:[%s5 + $0xa0] sm:$0xf]
  %v9792 = vld [vmem:[%s5 + $0xa4] sm:$0xf]
  %v9793 = vld [vmem:[%s5 + $0xa8] sm:$0xf]
  %v9794 = vld [vmem:[%s5 + $0xac] sm:$0xf]
  %v9795 = vld [vmem:[%s5 + $0xb0] sm:$0xf]
  %v9796 = vld [vmem:[%s5 + $0xb4] sm:$0xf]
  %v9797 = vld [vmem:[%s5 + $0xb8] sm:$0xf]
  %v9798 = vld [vmem:[%s5 + $0xbc] sm:$0xf]
  %v9799 = vld [vmem:[%s5 + $0xc0] sm:$0xf]
  %v9800 = vld [vmem:[%s5 + $0xc4] sm:$0xf]
  %v9801 = vld [vmem:[%s5 + $0xc8] sm:$0xf]
  %v9802 = vld [vmem:[%s5 + $0xcc] sm:$0xf]
  %v9803 = vld [vmem:[%s5 + $0xd0] sm:$0xf]
  %v9804 = vld [vmem:[%s5 + $0xd4] sm:$0xf]
  %v9805 = vld [vmem:[%s5 + $0xd8] sm:$0xf]
  %v9806 = vld [vmem:[%s5 + $0xdc] sm:$0xf]
  %v9807 = vld [vmem:[%s5 + $0xe0] sm:$0xf]
  %v9808 = vld [vmem:[%s5 + $0xe4] sm:$0xf]
  %v9809 = vld [vmem:[%s5 + $0xe8] sm:$0xf]
  %v9810 = vld [vmem:[%s5 + $0xec] sm:$0xf]
  %v9811 = vld [vmem:[%s5 + $0xf0] sm:$0xf]
  %v9812 = vld [vmem:[%s5 + $0xf4] sm:$0xf]
  %v9813 = vld [vmem:[%s5 + $0xf8] sm:$0xf]
  %v9814 = vld [vmem:[%s5 + $0xfc] sm:$0xf]
  %v9815 = vld [vmem:[%s5 + $0x100] sm:$0xf]
  %v9816 = vld [vmem:[%s5 + $0x104] sm:$0xf]
  %v9817 = vld [vmem:[%s5 + $0x108] sm:$0xf]
  %v9818 = vld [vmem:[%s5 + $0x10c] sm:$0xf]
  %v9819 = vld [vmem:[%s5 + $0x110] sm:$0xf]
  %v9820 = vld [vmem:[%s5 + $0x114] sm:$0xf]
  %v9821 = vld [vmem:[%s5 + $0x118] sm:$0xf]
  %v9822 = vld [vmem:[%s5 + $0x11c] sm:$0xf]
  %v9855 = vunpack.c.l.b16 %v9657
  %v9856 = vunpack.c.l.b16 %v9681
  %v9857 = vunpack.c.l.b16 %v9705
  %v9858 = vunpack.c.l.b16 %v9729
  %v9859 = vunpack.c.l.b16 %v9626
  %v9860 = vunpack.c.l.b16 %v9660
  %v9861 = vunpack.c.l.b16 %v9684
  %v9862 = vunpack.c.l.b16 %v9708
  %v9863 = vunpack.c.l.b16 %v9732
  %v9864 = vunpack.c.l.b16 %v9630
  %v9865 = vunpack.c.l.b16 %v9663
  %v9866 = vunpack.c.l.b16 %v9687
  %v9867 = vunpack.c.l.b16 %v9711
  %v9868 = vunpack.c.l.b16 %v9735
  %v9869 = vunpack.c.l.b16 %v9634
  %v9870 = vunpack.c.l.b16 %v9666
  %v9871 = vunpack.c.l.b16 %v9690
  %v9872 = vunpack.c.l.b16 %v9714
  %v9873 = vunpack.c.l.b16 %v9738
  %v9874 = vunpack.c.l.b16 %v9638
  %v9875 = vunpack.c.l.b16 %v9669
  %v9876 = vunpack.c.l.b16 %v9693
  %v9877 = vunpack.c.l.b16 %v9717
  %v9878 = vunpack.c.l.b16 %v9741
  %v9879 = vunpack.c.l.b16 %v9642
  %v9880 = vunpack.c.l.b16 %v9672
  %v9881 = vunpack.c.l.b16 %v9696
  %v9882 = vunpack.c.l.b16 %v9720
  %v9883 = vunpack.c.l.b16 %v9744
  %v9884 = vunpack.c.l.b16 %v9646
  %v9885 = vunpack.c.l.b16 %v9675
  %v9886 = vunpack.c.l.b16 %v9699
  %v9887 = vunpack.c.l.b16 %v9723
  %v9888 = vunpack.c.l.b16 %v9747
  %v9889 = vunpack.c.l.b16 %v9650
  %v9890 = vunpack.c.l.b16 %v9678
  %v9891 = vunpack.c.l.b16 %v9702
  %v9892 = vunpack.c.l.b16 %v9726
  %v9893 = vunpack.c.l.b16 %v9750
  %v9894 = vunpack.c.l.b16 %v9654
  %v9895 = vrot.slane %v9860, 7
  %vm9896 = vcmask 1041409
  %v9897 = vsel %vm9896, %v9895, %v9855
  %v9898 = vrot.slane %v9865, 6
  %vm9899 = vcmask 1042434
  %v9900 = vsel %vm9899, %v9898, %v9897
  %v9901 = vrot.slane %v9870, 5
  %vm9902 = vcmask 1043459
  %v9903 = vsel %vm9902, %v9901, %v9900
  %v9904 = vrot.slane %v9875, 4
  %vm9905 = vcmask 1044484
  %v9906 = vsel %vm9905, %v9904, %v9903
  %v9907 = vrot.slane %v9880, 3
  %vm9908 = vcmask 1045509
  %v9909 = vsel %vm9908, %v9907, %v9906
  %v9910 = vrot.slane %v9885, 2
  %vm9911 = vcmask 1046534
  %v9912 = vsel %vm9911, %v9910, %v9909
  %v9913 = vrot.slane %v9890, 1
  %vm9914 = vcmask 1047559
  %v9915 = vsel %vm9914, %v9913, %v9912
  %v9916 = vrot.slane %v9861, 7
  %v9917 = vsel %vm9896, %v9916, %v9856
  %v9918 = vrot.slane %v9866, 6
  %v9919 = vsel %vm9899, %v9918, %v9917
  %v9920 = vrot.slane %v9871, 5
  %v9921 = vsel %vm9902, %v9920, %v9919
  %v9922 = vrot.slane %v9876, 4
  %v9923 = vsel %vm9905, %v9922, %v9921
  %v9924 = vrot.slane %v9881, 3
  %v9925 = vsel %vm9908, %v9924, %v9923
  %v9926 = vrot.slane %v9886, 2
  %v9927 = vsel %vm9911, %v9926, %v9925
  %v9928 = vrot.slane %v9891, 1
  %v9929 = vsel %vm9914, %v9928, %v9927
  %v9930 = vrot.slane %v9862, 7
  %v9931 = vsel %vm9896, %v9930, %v9857
  %v9932 = vrot.slane %v9867, 6
  %v9933 = vsel %vm9899, %v9932, %v9931
  %v9934 = vrot.slane %v9872, 5
  %v9935 = vsel %vm9902, %v9934, %v9933
  %v9936 = vrot.slane %v9877, 4
  %v9937 = vsel %vm9905, %v9936, %v9935
  %v9938 = vrot.slane %v9882, 3
  %v9939 = vsel %vm9908, %v9938, %v9937
  %v9940 = vrot.slane %v9887, 2
  %v9941 = vsel %vm9911, %v9940, %v9939
  %v9942 = vrot.slane %v9892, 1
  %v9943 = vsel %vm9914, %v9942, %v9941
  %v9944 = vrot.slane %v9863, 7
  %v9945 = vsel %vm9896, %v9944, %v9858
  %v9946 = vrot.slane %v9868, 6
  %v9947 = vsel %vm9899, %v9946, %v9945
  %v9948 = vrot.slane %v9873, 5
  %v9949 = vsel %vm9902, %v9948, %v9947
  %v9950 = vrot.slane %v9878, 4
  %v9951 = vsel %vm9905, %v9950, %v9949
  %v9952 = vrot.slane %v9883, 3
  %v9953 = vsel %vm9908, %v9952, %v9951
  %v9954 = vrot.slane %v9888, 2
  %v9955 = vsel %vm9911, %v9954, %v9953
  %v9956 = vrot.slane %v9893, 1
  %v9957 = vsel %vm9914, %v9956, %v9955
  %v9958 = vrot.slane %v9864, 7
  %v9959 = vsel %vm9896, %v9958, %v9859
  %v9960 = vrot.slane %v9869, 6
  %v9961 = vsel %vm9899, %v9960, %v9959
  %v9962 = vrot.slane %v9874, 5
  %v9963 = vsel %vm9902, %v9962, %v9961
  %v9964 = vrot.slane %v9879, 4
  %v9965 = vsel %vm9905, %v9964, %v9963
  %v9966 = vrot.slane %v9884, 3
  %v9967 = vsel %vm9908, %v9966, %v9965
  %v9968 = vrot.slane %v9889, 2
  %v9969 = vsel %vm9911, %v9968, %v9967
  %v9970 = vrot.slane %v9894, 1
  %v9971 = vsel %vm9914, %v9970, %v9969
  %v9972 = vpack.c.b16 %v9915, %v9915
  %v9973 = vpack.c.b16 %v9929, %v9929
  %v9974 = vpack.c.b16 %v9943, %v9943
  %v9975 = vpack.c.b16 %v9957, %v9957
  %v9976 = vpack.c.b16 %v9971, %v9971
  %v10053 = vunpack.c.l.b16 %v9751
  %v10054 = vunpack.c.l.b16 %v9752
  %v10055 = vunpack.c.l.b16 %v9753
  %v10056 = vunpack.c.l.b16 %v9754
  %v10057 = vunpack.c.l.b16 %v9755
  %v10058 = vunpack.c.l.b16 %v9756
  %v10059 = vunpack.c.l.b16 %v9757
  %v10060 = vunpack.c.l.b16 %v9758
  %v10061 = vunpack.c.l.b16 %v9759
  %v10062 = vunpack.c.l.b16 %v9760
  %v10063 = vunpack.c.l.b16 %v9761
  %v10064 = vunpack.c.l.b16 %v9762
  %v10065 = vunpack.c.l.b16 %v9763
  %v10066 = vunpack.c.l.b16 %v9764
  %v10067 = vunpack.c.l.b16 %v9765
  %v10068 = vunpack.c.l.b16 %v9766
  %v10069 = vunpack.c.l.b16 %v9767
  %v10070 = vunpack.c.l.b16 %v9768
  %v10071 = vunpack.c.l.b16 %v9769
  %v10072 = vunpack.c.l.b16 %v9770
  %v10073 = vunpack.c.l.b16 %v9771
  %v10074 = vunpack.c.l.b16 %v9772
  %v10075 = vunpack.c.l.b16 %v9773
  %v10076 = vunpack.c.l.b16 %v9774
  %v10077 = vunpack.c.l.b16 %v9775
  %v10078 = vunpack.c.l.b16 %v9776
  %v10079 = vunpack.c.l.b16 %v9777
  %v10080 = vunpack.c.l.b16 %v9778
  %v10081 = vunpack.c.l.b16 %v9779
  %v10082 = vunpack.c.l.b16 %v9780
  %v10083 = vunpack.c.l.b16 %v9781
  %v10084 = vunpack.c.l.b16 %v9782
  %v10085 = vunpack.c.l.b16 %v9783
  %v10086 = vunpack.c.l.b16 %v9784
  %v10087 = vunpack.c.l.b16 %v9785
  %v10088 = vunpack.c.l.b16 %v9786
  %v10089 = vunpack.c.l.b16 %v9787
  %v10090 = vunpack.c.l.b16 %v9788
  %v10091 = vunpack.c.l.b16 %v9789
  %v10092 = vunpack.c.l.b16 %v9790
  %v10093 = vunpack.c.l.b16 %v9791
  %v10094 = vunpack.c.l.b16 %v9792
  %v10095 = vunpack.c.l.b16 %v9793
  %v10096 = vunpack.c.l.b16 %v9794
  %v10097 = vunpack.c.l.b16 %v9795
  %v10098 = vunpack.c.l.b16 %v9796
  %v10099 = vunpack.c.l.b16 %v9797
  %v10100 = vunpack.c.l.b16 %v9798
  %v10101 = vunpack.c.l.b16 %v9799
  %v10102 = vunpack.c.l.b16 %v9800
  %v10103 = vunpack.c.l.b16 %v9801
  %v10104 = vunpack.c.l.b16 %v9802
  %v10105 = vunpack.c.l.b16 %v9803
  %v10106 = vunpack.c.l.b16 %v9804
  %v10107 = vunpack.c.l.b16 %v9805
  %v10108 = vunpack.c.l.b16 %v9806
  %v10109 = vunpack.c.l.b16 %v9807
  %v10110 = vunpack.c.l.b16 %v9808
  %v10111 = vunpack.c.l.b16 %v9809
  %v10112 = vunpack.c.l.b16 %v9810
  %v10113 = vunpack.c.l.b16 %v9811
  %v10114 = vunpack.c.l.b16 %v9812
  %v10115 = vunpack.c.l.b16 %v9813
  %v10116 = vunpack.c.l.b16 %v9814
  %v10117 = vunpack.c.l.b16 %v9815
  %v10118 = vunpack.c.l.b16 %v9816
  %v10119 = vunpack.c.l.b16 %v9817
  %v10120 = vunpack.c.l.b16 %v9818
  %v10121 = vunpack.c.l.b16 %v9819
  %v10122 = vunpack.c.l.b16 %v9820
  %v10123 = vunpack.c.l.b16 %v9821
  %v10124 = vunpack.c.l.b16 %v9822
  %v10125 = vpack.c.b16 %v10054, %v10053
  %v10126 = vpack.c.b16 %v10056, %v10055
  %v10127 = vpack.c.b16 %v10058, %v10057
  %v10128 = vpack.c.b16 %v10060, %v10059
  %v10129 = vpack.c.b16 %v10062, %v10061
  %v10130 = vpack.c.b16 %v10064, %v10063
  %v10131 = vpack.c.b16 %v10066, %v10065
  %v10132 = vpack.c.b16 %v10068, %v10067
  %v10133 = vpack.c.b16 %v10070, %v10069
  %v10134 = vpack.c.b16 %v10072, %v10071
  %v10135 = vpack.c.b16 %v10074, %v10073
  %v10136 = vpack.c.b16 %v10076, %v10075
  %v10137 = vpack.c.b16 %v10078, %v10077
  %v10138 = vpack.c.b16 %v10080, %v10079
  %v10139 = vpack.c.b16 %v10082, %v10081
  %v10140 = vpack.c.b16 %v10084, %v10083
  %v10141 = vpack.c.b16 %v10086, %v10085
  %v10142 = vpack.c.b16 %v10088, %v10087
  %v10143 = vpack.c.b16 %v10090, %v10089
  %v10144 = vpack.c.b16 %v10092, %v10091
  %v10145 = vpack.c.b16 %v10094, %v10093
  %v10146 = vpack.c.b16 %v10096, %v10095
  %v10147 = vpack.c.b16 %v10098, %v10097
  %v10148 = vpack.c.b16 %v10100, %v10099
  %v10149 = vpack.c.b16 %v10102, %v10101
  %v10150 = vpack.c.b16 %v10104, %v10103
  %v10151 = vpack.c.b16 %v10106, %v10105
  %v10152 = vpack.c.b16 %v10108, %v10107
  %v10153 = vpack.c.b16 %v10110, %v10109
  %v10154 = vpack.c.b16 %v10112, %v10111
  %v10155 = vpack.c.b16 %v10114, %v10113
  %v10156 = vpack.c.b16 %v10116, %v10115
  %v10157 = vpack.c.b16 %v10118, %v10117
  %v10158 = vpack.c.b16 %v10120, %v10119
  %v10159 = vpack.c.b16 %v10122, %v10121
  %v10160 = vpack.c.b16 %v10124, %v10123
  %v10198 = vsel %vm503, %v9976, 0
  %10200 = vmatprep.subr.bf16.mxu0 0
  %10201 = vmatpush1.bf16.msra.mxu0 %v10125
  %10202 = vmatprep.subr.bf16.mxu0 0
  %10203 = vmatpush1.bf16.msra.mxu0 %v10126
  %10204 = vmatprep.subr.bf16.mxu0 0
  %10205 = vmatpush1.bf16.msra.mxu0 %v10127
  %10206 = vmatprep.subr.bf16.mxu0 0
  %10207 = vmatpush1.bf16.msra.mxu0 %v10128
  %10208 = vmatprep.subr.bf16.mxu0 0
  %10209 = vmatpush1.bf16.msra.mxu0 %v10129
  %10210 = vmatprep.subr.bf16.mxu0 0
  %10211 = vmatpush1.bf16.msra.mxu0 %v10130
  %10212 = vmatprep.subr.bf16.mxu0 0
  %10213 = vmatpush1.bf16.msra.mxu0 %v10131
  %10214 = vmatprep.subr.bf16.mxu0 0
  %10215 = vmatpush1.bf16.msra.mxu0 %v10132
  %10216 = vmatprep.subr.bf16.mxu0 0
  %10217 = vmatpush1.bf16.msra.mxu0 %v10133
  %10218 = vmatprep.subr.bf16.mxu0 0
  %10219 = vmatpush1.bf16.msra.mxu0 %v10134
  %10220 = vmatprep.subr.bf16.mxu0 0
  %10221 = vmatpush1.bf16.msra.mxu0 %v10135
  %10222 = vmatprep.subr.bf16.mxu0 0
  %10223 = vmatpush1.bf16.msra.mxu0 %v10136
  %10224 = vmatprep.subr.bf16.mxu0 0
  %10225 = vmatpush1.bf16.msra.mxu0 %v10137
  %10226 = vmatprep.subr.bf16.mxu0 0
  %10227 = vmatpush1.bf16.msra.mxu0 %v10138
  %10228 = vmatprep.subr.bf16.mxu0 0
  %10229 = vmatpush1.bf16.msra.mxu0 %v10139
  %10230 = vmatprep.subr.bf16.mxu0 0
  %10231 = vmatpush1.bf16.msra.mxu0 %v10140
  %10232 = vmatprep.mubr.bf16.mxu0 %v9973
  %10233 = vmatmul.mubr.bf16.gmra.mrb[0].mxu0 %v9972
  %v10234 = vpop.f32.mrb[0].mxu0
  %v10235 = vadd.f32 0.0, %v10234
  %v10236 = vpop.f32.mrb[0].mxu0
  %v10237 = vpop.f32.mrb[0].mxu0
  %v10238 = vpop.f32.mrb[0].mxu0
  %10239 = vdwg.mxu0
  %10240 = vmatprep.subr.bf16.mxu0 0
  %10241 = vmatpush1.bf16.msra.mxu0 %v10141
  %10242 = vmatprep.subr.bf16.mxu0 0
  %10243 = vmatpush1.bf16.msra.mxu0 %v10142
  %10244 = vmatprep.subr.bf16.mxu0 0
  %10245 = vmatpush1.bf16.msra.mxu0 %v10143
  %10246 = vmatprep.subr.bf16.mxu0 0
  %10247 = vmatpush1.bf16.msra.mxu0 %v10144
  %10248 = vmatprep.subr.bf16.mxu0 0
  %10249 = vmatpush1.bf16.msra.mxu0 %v10145
  %10250 = vmatprep.subr.bf16.mxu0 0
  %10251 = vmatpush1.bf16.msra.mxu0 %v10146
  %10252 = vmatprep.subr.bf16.mxu0 0
  %10253 = vmatpush1.bf16.msra.mxu0 %v10147
  %10254 = vmatprep.subr.bf16.mxu0 0
  %10255 = vmatpush1.bf16.msra.mxu0 %v10148
  %10256 = vmatprep.subr.bf16.mxu0 0
  %10257 = vmatpush1.bf16.msra.mxu0 %v10149
  %10258 = vmatprep.subr.bf16.mxu0 0
  %10259 = vmatpush1.bf16.msra.mxu0 %v10150
  %10260 = vmatprep.subr.bf16.mxu0 0
  %10261 = vmatpush1.bf16.msra.mxu0 %v10151
  %10262 = vmatprep.subr.bf16.mxu0 0
  %10263 = vmatpush1.bf16.msra.mxu0 %v10152
  %10264 = vmatprep.subr.bf16.mxu0 0
  %10265 = vmatpush1.bf16.msra.mxu0 %v10153
  %10266 = vmatprep.subr.bf16.mxu0 0
  %10267 = vmatpush1.bf16.msra.mxu0 %v10154
  %10268 = vmatprep.subr.bf16.mxu0 0
  %10269 = vmatpush1.bf16.msra.mxu0 %v10155
  %10270 = vmatprep.subr.bf16.mxu0 0
  %10271 = vmatpush1.bf16.msra.mxu0 %v10156
  %10272 = vmatprep.mubr.bf16.mxu0 %v9975
  %10273 = vmatmul.mubr.bf16.gmra.mrb[0].mxu0 %v9974
  %v10274 = vpop.f32.mrb[0].mxu0
  %v10275 = vadd.f32 %v10235, %v10274
  %v10276 = vpop.f32.mrb[0].mxu0
  %v10277 = vpop.f32.mrb[0].mxu0
  %v10278 = vpop.f32.mrb[0].mxu0
  %10279 = vdwg.mxu0
  %10280 = vmatprep.subr.bf16.mxu0 0
  %10281 = vmatpush1.bf16.msra.mxu0 %v10157
  %10282 = vmatprep.subr.bf16.mxu0 0
  %10283 = vmatpush1.bf16.msra.mxu0 %v10158
  %10284 = vmatprep.subr.bf16.mxu0 0
  %10285 = vmatpush1.bf16.msra.mxu0 %v10159
  %10286 = vmatprep.subr.bf16.mxu0 0
  %10287 = vmatpush1.bf16.msra.mxu0 %v10160
  %10288 = vmatprep.subr.bf16.mxu0 0
  %10289 = vmatpush1.bf16.msra.mxu0 0
  %10290 = vmatprep.subr.bf16.mxu0 0
  %10291 = vmatpush1.bf16.msra.mxu0 0
  %10292 = vmatprep.subr.bf16.mxu0 0
  %10293 = vmatpush1.bf16.msra.mxu0 0
  %10294 = vmatprep.subr.bf16.mxu0 0
  %10295 = vmatpush1.bf16.msra.mxu0 0
  %10296 = vmatprep.subr.bf16.mxu0 0
  %10297 = vmatpush1.bf16.msra.mxu0 0
  %10298 = vmatprep.subr.bf16.mxu0 0
  %10299 = vmatpush1.bf16.msra.mxu0 0
  %10300 = vmatprep.subr.bf16.mxu0 0
  %10301 = vmatpush1.bf16.msra.mxu0 0
  %10302 = vmatprep.subr.bf16.mxu0 0
  %10303 = vmatpush1.bf16.msra.mxu0 0
  %10304 = vmatprep.subr.bf16.mxu0 0
  %10305 = vmatpush1.bf16.msra.mxu0 0
  %10306 = vmatprep.subr.bf16.mxu0 0
  %10307 = vmatpush1.bf16.msra.mxu0 0
  %10308 = vmatprep.subr.bf16.mxu0 0
  %10309 = vmatpush1.bf16.msra.mxu0 0
  %10310 = vmatprep.subr.bf16.mxu0 0
  %10311 = vmatpush1.bf16.msra.mxu0 0
  %10312 = vmatprep.mubr.bf16.mxu0 0
  %10313 = vmatmul.mubr.bf16.gmra.mrb[0].mxu0 %v10198
  %v10314 = vpop.f32.mrb[0].mxu0
  %v10315 = vadd.f32 %v10275, %v10314
  %v10316 = vpop.f32.mrb[0].mxu0
  %v10317 = vpop.f32.mrb[0].mxu0
  %v10318 = vpop.f32.mrb[0].mxu0
  %10319 = vdwg.mxu0
  %v10320 = vpack.c.bf16 %v10315, %v10315
  %v10321 = vld [vmem:[%s6] sm:$0x1]
  %v10322 = vpack.c.bf16 %v10321, %v10321
  %v10324 = vpack.i.b16 %v10322, %v10322
  %v10326 = vlaneseq
  %v10327 = vshrl.u32 %v10326, 7
  %v10328 = vsub.s32 0, %v10327
  %v10329 = vrot.slane %v10324, %v10328
  %v10330 = vadd.bf16 %v10320, %v10329
  %v10331 = vmax.bf16 %v10330, 0
  %v10332 = vld [vmem:[%s7] sm:$0xff]
  %v10333 = vld [vmem:[%s7 + $0x8] sm:$0xff]
  %v10334 = vld [vmem:[%s7 + $0x10] sm:$0xff]
  %v10335 = vld [vmem:[%s7 + $0x18] sm:$0xff]
  %v10336 = vld [vmem:[%s7 + $0x20] sm:$0xff]
  %v10337 = vld [vmem:[%s7 + $0x28] sm:$0xff]
  %v10338 = vld [vmem:[%s7 + $0x30] sm:$0xff]
  %v10339 = vld [vmem:[%s7 + $0x38] sm:$0xff]
  %v10348 = vunpack.c.l.b16 %v10332
  %v10349 = vunpack.c.h.b16 %v10332
  %v10350 = vunpack.c.l.b16 %v10333
  %v10351 = vunpack.c.h.b16 %v10333
  %v10352 = vunpack.c.l.b16 %v10334
  %v10353 = vunpack.c.h.b16 %v10334
  %v10354 = vunpack.c.l.b16 %v10335
  %v10355 = vunpack.c.h.b16 %v10335
  %v10356 = vunpack.c.l.b16 %v10336
  %v10357 = vunpack.c.h.b16 %v10336
  %v10358 = vunpack.c.l.b16 %v10337
  %v10359 = vunpack.c.h.b16 %v10337
  %v10360 = vunpack.c.l.b16 %v10338
  %v10361 = vunpack.c.h.b16 %v10338
  %v10362 = vunpack.c.l.b16 %v10339
  %v10363 = vunpack.c.h.b16 %v10339
  %v10364 = vpack.c.b16 %v10350, %v10348
  %v10365 = vpack.c.b16 %v10351, %v10349
  %v10366 = vpack.c.b16 %v10354, %v10352
  %v10367 = vpack.c.b16 %v10355, %v10353
  %v10368 = vpack.c.b16 %v10358, %v10356
  %v10369 = vpack.c.b16 %v10359, %v10357
  %v10370 = vpack.c.b16 %v10362, %v10360
  %v10371 = vpack.c.b16 %v10363, %v10361
  %v10381 = vsel %vm503, %v10331, 0
  %10383 = vmatprep.subr.bf16.mxu0 %v10365
  %10384 = vmatpush1.bf16.msra.mxu0 %v10364
  %10385 = vmatprep.subr.bf16.mxu0 %v10367
  %10386 = vmatpush1.bf16.msra.mxu0 %v10366
  %10387 = vmatprep.subr.bf16.mxu0 %v10369
  %10388 = vmatpush1.bf16.msra.mxu0 %v10368
  %10389 = vmatprep.subr.bf16.mxu0 %v10371
  %10390 = vmatpush1.bf16.msra.mxu0 %v10370
  %10391 = vmatprep.subr.bf16.mxu0 0
  %10392 = vmatpush1.bf16.msra.mxu0 0
  %10393 = vmatprep.subr.bf16.mxu0 0
  %10394 = vmatpush1.bf16.msra.mxu0 0
  %10395 = vmatprep.subr.bf16.mxu0 0
  %10396 = vmatpush1.bf16.msra.mxu0 0
  %10397 = vmatprep.subr.bf16.mxu0 0
  %10398 = vmatpush1.bf16.msra.mxu0 0
  %10399 = vmatprep.subr.bf16.mxu0 0
  %10400 = vmatpush1.bf16.msra.mxu0 0
  %10401 = vmatprep.subr.bf16.mxu0 0
  %10402 = vmatpush1.bf16.msra.mxu0 0
  %10403 = vmatprep.subr.bf16.mxu0 0
  %10404 = vmatpush1.bf16.msra.mxu0 0
  %10405 = vmatprep.subr.bf16.mxu0 0
  %10406 = vmatpush1.bf16.msra.mxu0 0
  %10407 = vmatprep.subr.bf16.mxu0 0
  %10408 = vmatpush1.bf16.msra.mxu0 0
  %10409 = vmatprep.subr.bf16.mxu0 0
  %10410 = vmatpush1.bf16.msra.mxu0 0
  %10411 = vmatprep.subr.bf16.mxu0 0
  %10412 = vmatpush1.bf16.msra.mxu0 0
  %10413 = vmatprep.subr.bf16.mxu0 0
  %10414 = vmatpush1.bf16.msra.mxu0 0
  %10415 = vmatprep.mubr.bf16.mxu0 0
  %10416 = vmatmul.mubr.bf16.gmra.mrb[0].mxu0 %v10381
  %v10417 = vpop.f32.mrb[0].mxu0
  %v10418 = vadd.f32 0.0, %v10417
  %v10419 = vpop.f32.mrb[0].mxu0
  %v10420 = vadd.f32 0.0, %v10419
  %v10421 = vpop.f32.mrb[0].mxu0
  %v10422 = vpop.f32.mrb[0].mxu0
  %10423 = vdwg.mxu0
  %v10424 = vpack.c.bf16 %v10418, %v10418
  %v10425 = vpack.c.bf16 %v10420, %v10420
  %v10426 = vld [vmem:[%s8] sm:$0x3]
  %v10428 = vlaneseq
  %v10429 = vshrl.u32 %v10428, 7
  %v10430 = vsub.s32 0, %v10429
  %v10431 = vrot.slane %v10426, %v10430
  %v10432 = vlaneseq
  %v10433 = vshrl.u32 %v10432, 7
  %v10434 = vsub.s32 1, %v10433
  %v10435 = vrot.slane %v10426, %v10434
  %v10438 = vpack.c.bf16 %v10431, %v10431
  %v10439 = vpack.c.bf16 %v10435, %v10435
  %v10441 = vpack.i.b16 %v10438, %v10438
  %v10443 = vlaneseq
  %v10444 = vshrl.u32 %v10443, 7
  %v10445 = vsub.s32 0, %v10444
  %v10446 = vrot.slane %v10441, %v10445
  %v10448 = vpack.i.b16 %v10439, %v10439
  %v10450 = vlaneseq
  %v10451 = vshrl.u32 %v10450, 7
  %v10452 = vsub.s32 0, %v10451
  %v10453 = vrot.slane %v10448, %v10452
  %v10454 = vadd.bf16 %v10424, %v10446
  %v10455 = vadd.bf16 %v10425, %v10453
  %v10456 = vmax.bf16 %v10454, 0
  %v10457 = vmax.bf16 %v10455, 0
  %v10458 = vld [vmem:[%s9] sm:$0xf]
  %v10459 = vld [vmem:[%s9 + $0x4] sm:$0xf]
  %v10460 = vld [vmem:[%s9 + $0x8] sm:$0xf]
  %v10461 = vld [vmem:[%s9 + $0xc] sm:$0xf]
  %v10462 = vld [vmem:[%s9 + $0x10] sm:$0xf]
  %v10463 = vld [vmem:[%s9 + $0x14] sm:$0xf]
  %v10464 = vld [vmem:[%s9 + $0x18] sm:$0xf]
  %v10465 = vld [vmem:[%s9 + $0x1c] sm:$0xf]
  %v10466 = vld [vmem:[%s9 + $0x20] sm:$0xf]
  %v10467 = vld [vmem:[%s9 + $0x24] sm:$0xf]
  %v10468 = vld [vmem:[%s9 + $0x28] sm:$0xf]
  %v10469 = vld [vmem:[%s9 + $0x2c] sm:$0xf]
  %v10470 = vld [vmem:[%s9 + $0x30] sm:$0xf]
  %v10471 = vld [vmem:[%s9 + $0x34] sm:$0xf]
  %v10472 = vld [vmem:[%s9 + $0x38] sm:$0xf]
  %v10473 = vld [vmem:[%s9 + $0x3c] sm:$0xf]
  %v10474 = vld [vmem:[%s9 + $0x40] sm:$0xf]
  %v10475 = vld [vmem:[%s9 + $0x44] sm:$0xf]
  %v10476 = vld [vmem:[%s9 + $0x48] sm:$0xf]
  %v10477 = vld [vmem:[%s9 + $0x4c] sm:$0xf]
  %v10478 = vld [vmem:[%s9 + $0x50] sm:$0xf]
  %v10479 = vld [vmem:[%s9 + $0x54] sm:$0xf]
  %v10480 = vld [vmem:[%s9 + $0x58] sm:$0xf]
  %v10481 = vld [vmem:[%s9 + $0x5c] sm:$0xf]
  %v10482 = vld [vmem:[%s9 + $0x60] sm:$0xf]
  %v10483 = vld [vmem:[%s9 + $0x64] sm:$0xf]
  %v10484 = vld [vmem:[%s9 + $0x68] sm:$0xf]
  %v10485 = vld [vmem:[%s9 + $0x6c] sm:$0xf]
  %v10486 = vld [vmem:[%s9 + $0x70] sm:$0xf]
  %v10487 = vld [vmem:[%s9 + $0x74] sm:$0xf]
  %v10488 = vld [vmem:[%s9 + $0x78] sm:$0xf]
  %v10489 = vld [vmem:[%s9 + $0x7c] sm:$0xf]
  %v10490 = vld [vmem:[%s10] sm:$0x1]
  %v10492 = vlaneseq
  %v10493 = vshrl.u32 %v10492, 7
  %v10494 = vsub.s32 0, %v10493
  %v10495 = vrot.slane %v10490, %v10494
  %v10529 = vunpack.c.l.b16 %v10458
  %v10530 = vunpack.c.l.b16 %v10459
  %v10531 = vunpack.c.l.b16 %v10460
  %v10532 = vunpack.c.l.b16 %v10461
  %v10533 = vunpack.c.l.b16 %v10462
  %v10534 = vunpack.c.l.b16 %v10463
  %v10535 = vunpack.c.l.b16 %v10464
  %v10536 = vunpack.c.l.b16 %v10465
  %v10537 = vunpack.c.l.b16 %v10466
  %v10538 = vunpack.c.l.b16 %v10467
  %v10539 = vunpack.c.l.b16 %v10468
  %v10540 = vunpack.c.l.b16 %v10469
  %v10541 = vunpack.c.l.b16 %v10470
  %v10542 = vunpack.c.l.b16 %v10471
  %v10543 = vunpack.c.l.b16 %v10472
  %v10544 = vunpack.c.l.b16 %v10473
  %v10545 = vunpack.c.l.b16 %v10474
  %v10546 = vunpack.c.l.b16 %v10475
  %v10547 = vunpack.c.l.b16 %v10476
  %v10548 = vunpack.c.l.b16 %v10477
  %v10549 = vunpack.c.l.b16 %v10478
  %v10550 = vunpack.c.l.b16 %v10479
  %v10551 = vunpack.c.l.b16 %v10480
  %v10552 = vunpack.c.l.b16 %v10481
  %v10553 = vunpack.c.l.b16 %v10482
  %v10554 = vunpack.c.l.b16 %v10483
  %v10555 = vunpack.c.l.b16 %v10484
  %v10556 = vunpack.c.l.b16 %v10485
  %v10557 = vunpack.c.l.b16 %v10486
  %v10558 = vunpack.c.l.b16 %v10487
  %v10559 = vunpack.c.l.b16 %v10488
  %v10560 = vunpack.c.l.b16 %v10489
  %v10561 = vpack.c.b16 %v10530, %v10529
  %v10562 = vpack.c.b16 %v10532, %v10531
  %v10563 = vpack.c.b16 %v10534, %v10533
  %v10564 = vpack.c.b16 %v10536, %v10535
  %v10565 = vpack.c.b16 %v10538, %v10537
  %v10566 = vpack.c.b16 %v10540, %v10539
  %v10567 = vpack.c.b16 %v10542, %v10541
  %v10568 = vpack.c.b16 %v10544, %v10543
  %v10569 = vpack.c.b16 %v10546, %v10545
  %v10570 = vpack.c.b16 %v10548, %v10547
  %v10571 = vpack.c.b16 %v10550, %v10549
  %v10572 = vpack.c.b16 %v10552, %v10551
  %v10573 = vpack.c.b16 %v10554, %v10553
  %v10574 = vpack.c.b16 %v10556, %v10555
  %v10575 = vpack.c.b16 %v10558, %v10557
  %v10576 = vpack.c.b16 %v10560, %v10559
  %10593 = vmatprep.subr.bf16.mxu0 0
  %10594 = vmatpush1.bf16.msra.mxu0 %v10561
  %10595 = vmatprep.subr.bf16.mxu0 0
  %10596 = vmatpush1.bf16.msra.mxu0 %v10562
  %10597 = vmatprep.subr.bf16.mxu0 0
  %10598 = vmatpush1.bf16.msra.mxu0 %v10563
  %10599 = vmatprep.subr.bf16.mxu0 0
  %10600 = vmatpush1.bf16.msra.mxu0 %v10564
  %10601 = vmatprep.subr.bf16.mxu0 0
  %10602 = vmatpush1.bf16.msra.mxu0 %v10565
  %10603 = vmatprep.subr.bf16.mxu0 0
  %10604 = vmatpush1.bf16.msra.mxu0 %v10566
  %10605 = vmatprep.subr.bf16.mxu0 0
  %10606 = vmatpush1.bf16.msra.mxu0 %v10567
  %10607 = vmatprep.subr.bf16.mxu0 0
  %10608 = vmatpush1.bf16.msra.mxu0 %v10568
  %10609 = vmatprep.subr.bf16.mxu0 0
  %10610 = vmatpush1.bf16.msra.mxu0 %v10569
  %10611 = vmatprep.subr.bf16.mxu0 0
  %10612 = vmatpush1.bf16.msra.mxu0 %v10570
  %10613 = vmatprep.subr.bf16.mxu0 0
  %10614 = vmatpush1.bf16.msra.mxu0 %v10571
  %10615 = vmatprep.subr.bf16.mxu0 0
  %10616 = vmatpush1.bf16.msra.mxu0 %v10572
  %10617 = vmatprep.subr.bf16.mxu0 0
  %10618 = vmatpush1.bf16.msra.mxu0 %v10573
  %10619 = vmatprep.subr.bf16.mxu0 0
  %10620 = vmatpush1.bf16.msra.mxu0 %v10574
  %10621 = vmatprep.subr.bf16.mxu0 0
  %10622 = vmatpush1.bf16.msra.mxu0 %v10575
  %10623 = vmatprep.subr.bf16.mxu0 0
  %10624 = vmatpush1.bf16.msra.mxu0 %v10576
  %10625 = vmatprep.mubr.bf16.mxu0 %v10457
  %10626 = vmatmul.mubr.bf16.gmra.mrb[0].mxu0 %v10456
  %v10627 = vpop.f32.mrb[0].mxu0
  %v10628 = vadd.f32 %v10495, %v10627
  %v10629 = vpop.f32.mrb[0].mxu0
  %v10630 = vpop.f32.mrb[0].mxu0
  %v10631 = vpop.f32.mrb[0].mxu0
  %10632 = vdwg.mxu0
  %10633 = vst [vmem:[%s11] sm:$0xff] %v10628
  // Predicated region
  $region46: #{conv_dueling_dqn_forward.1} parent=0 // pred_check
    _
  $region47: #{conv_dueling_dqn_forward.1} parent=0 // pred_check_branch
    %10635 = sbr.rel (0) target = $region49
  $region48: #{conv_dueling_dqn_forward.1} parent=0 // pred_region
    _
  $region49: #{conv_dueling_dqn_forward.1} parent=0 // pred_fallthru
    _
  // Predicated region
  $region50: #{conv_dueling_dqn_forward.1} parent=0 // pred_check
    _
  $region51: #{conv_dueling_dqn_forward.1} parent=0 // pred_check_branch
    %10637 = sbr.rel (0) target = $region53
  $region52: #{conv_dueling_dqn_forward.1} parent=0 // pred_region
    _
  $region53: #{conv_dueling_dqn_forward.1} parent=0 // pred_fallthru
    _

</llo_original>
